<compile_context>
chip_gen: v7x
topology: tpu7x:2x2x1
jax: 0.10.0
libtpu: 0.0.40
codegen_flags: <defaults>
</compile_context>

<pallas_src>
import functools

import jax
import jax.numpy as jnp
from jax import lax
from jax.experimental import pallas as pl
from jax.experimental.pallas import tpu as pltpu


def _round_up(x, m):
    return (x + m - 1) // m * m


# ----------------------------------------------------------------------------
# Kernel 1: fused conv (implicit im2col) + bias + per-sample BN partial stats
#   x_ref    : [1, Cin, Qin]    flattened padded input (one sample)
#   w_ref    : [T, Cout, Cin]   per-tap weight matrices (T = kd*kh*kw)
#   b_ref    : [Cout, 1]        conv bias
#   mask_ref : [1, Qout]        1.0 at valid output positions, 0.0 elsewhere
#   y_ref    : [1, Cout, Qout]  conv output on padded-spatial geometry
#   s_ref    : [1, Cout, 1]     per-sample, per-channel sum of valid outputs
#   sq_ref   : [1, Cout, 1]     per-sample, per-channel sum of squares
# ----------------------------------------------------------------------------
def _conv_stats_kernel(x_ref, w_ref, b_ref, mask_ref, y_ref, s_ref, sq_ref, *,
                       offsets):
    ntaps, cout, _ = w_ref.shape
    q_len = y_ref.shape[2]

    acc = jnp.zeros((cout, q_len), dtype=jnp.float32)
    for t in range(ntaps):                                   # static unroll
        xs = x_ref[0, :, pl.ds(offsets[t], q_len)]           # [Cin, Q] window
        acc = acc + jnp.dot(w_ref[t], xs, preferred_element_type=jnp.float32)

    y = acc + b_ref[...]                                     # [Cout, Q] + [Cout, 1]
    y_ref[0] = y                                             # lane-dense store

    ym = y * mask_ref[...]                                   # mask invalid cols
    s_ref[0] = jnp.sum(ym, axis=1, keepdims=True)            # [Cout, 1]
    sq_ref[0] = jnp.sum(ym * y, axis=1, keepdims=True)       # [Cout, 1]


# ----------------------------------------------------------------------------
# Kernel 2: batchnorm apply (precomputed scale/shift) + ReLU
# ----------------------------------------------------------------------------
def _bn_relu_kernel(y_ref, scale_ref, shift_ref, o_ref):
    o_ref[0] = jnp.maximum(y_ref[0] * scale_ref[...] + shift_ref[...], 0.0)


# ----------------------------------------------------------------------------
# Python wrapper
# ----------------------------------------------------------------------------
def conv_block_forward(x, w, b, gamma, beta, *, padding=1, eps=1e-5):
    """x: [N, Cin, D, H, W]  w: [Cout, Cin, kd, kh, kw] -> [N, Cout, Do, Ho, Wo]."""
    N, Cin, D, H, W = x.shape
    Cout, _, kd, kh, kw = w.shape
    Dp, Hp, Wp = D + 2 * padding, H + 2 * padding, W + 2 * padding
    Do, Ho, Wo = Dp - kd + 1, Hp - kh + 1, Wp - kw + 1

    Qp = Dp * Hp * Wp                       # flat padded spatial size
    Qout = _round_up(Qp, 128)               # lane-dense output width
    max_off = (kd - 1) * Hp * Wp + (kh - 1) * Wp + (kw - 1)
    Qin = _round_up(Qout + max_off, 128)    # input width incl. tap halo

    # --- glue: flatten padded input (single cheap pass, no im2col copy) ---
    xp = jnp.pad(x.astype(jnp.float32),
                 ((0, 0), (0, 0), (padding,) * 2, (padding,) * 2, (padding,) * 2))
    x_flat = jnp.pad(xp.reshape(N, Cin, Qp), ((0, 0), (0, 0), (0, Qin - Qp)))

    # Per-tap [Cout, Cin] weight matrices; tap order (i, j, k) matches offsets.
    ntaps = kd * kh * kw
    w_taps = jnp.transpose(w.astype(jnp.float32), (2, 3, 4, 0, 1)).reshape(
        ntaps, Cout, Cin)
    offsets = tuple(int(i * Hp * Wp + j * Wp + k)
                    for i in range(kd) for j in range(kh) for k in range(kw))
    b_col = b.reshape(Cout, 1).astype(jnp.float32)

    # Validity mask over padded-geometry output positions (for BN stats).
    q = jnp.arange(Qout)
    dq, hq, wq = q // (Hp * Wp), (q // Wp) % Hp, q % Wp
    mask = ((dq < Do) & (hq < Ho) & (wq < Wo)).astype(jnp.float32).reshape(1, Qout)

    # ---- Pallas call 1: conv + bias + partial BN stats (parallel over N) ----
    conv_y, ssum, ssq = pl.pallas_call(
        functools.partial(_conv_stats_kernel, offsets=offsets),
        out_shape=(jax.ShapeDtypeStruct((N, Cout, Qout), jnp.float32),
                   jax.ShapeDtypeStruct((N, Cout, 1), jnp.float32),
                   jax.ShapeDtypeStruct((N, Cout, 1), jnp.float32)),
        grid_spec=pltpu.PrefetchScalarGridSpec(
            num_scalar_prefetch=0,
            grid=(N,),
            in_specs=[
                pl.BlockSpec((1, Cin, Qin), lambda n: (n, 0, 0)),
                pl.BlockSpec((ntaps, Cout, Cin), lambda n: (0, 0, 0)),
                pl.BlockSpec((Cout, 1), lambda n: (0, 0)),
                pl.BlockSpec((1, Qout), lambda n: (0, 0)),
            ],
            out_specs=[
                pl.BlockSpec((1, Cout, Qout), lambda n: (n, 0, 0)),
                pl.BlockSpec((1, Cout, 1), lambda n: (n, 0, 0)),
                pl.BlockSpec((1, Cout, 1), lambda n: (n, 0, 0)),
            ],
        ),
        compiler_params=pltpu.CompilerParams(
            dimension_semantics=("parallel",)),
    )(x_flat, w_taps, b_col, mask)

    # --- glue: tiny (Cout,) stats reduction + scale/shift precompute ---
    cnt = float(N * Do * Ho * Wo)
    total = jnp.sum(ssum[:, :, 0], axis=0)          # (Cout,)
    total_sq = jnp.sum(ssq[:, :, 0], axis=0)        # (Cout,)
    mean = total / cnt
    var = total_sq / cnt - mean * mean              # biased (training) variance
    inv = lax.rsqrt(var + eps)
    scale_vec = gamma.astype(jnp.float32) * inv
    shift_vec = beta.astype(jnp.float32) - mean * scale_vec
    scale = scale_vec.reshape(Cout, 1)
    shift = shift_vec.reshape(Cout, 1)

    # ---- Pallas call 2: batchnorm apply + ReLU (parallel over N) ----
    bn_y = pl.pallas_call(
        _bn_relu_kernel,
        out_shape=jax.ShapeDtypeStruct((N, Cout, Qout), jnp.float32),
        grid_spec=pltpu.PrefetchScalarGridSpec(
            num_scalar_prefetch=0,
            grid=(N,),
            in_specs=[
                pl.BlockSpec((1, Cout, Qout), lambda n: (n, 0, 0)),
                pl.BlockSpec((Cout, 1), lambda n: (0, 0)),
                pl.BlockSpec((Cout, 1), lambda n: (0, 0)),
            ],
            out_specs=pl.BlockSpec((1, Cout, Qout), lambda n: (n, 0, 0)),
        ),
        compiler_params=pltpu.CompilerParams(
            dimension_semantics=("parallel",)),
    )(conv_y, scale, shift)

    # --- glue: compact padded-geometry output to [N, Cout, Do, Ho, Wo] ---
    # (contiguous slice, already channel-major: no transpose needed)
    out = bn_y[:, :, :Qp].reshape(N, Cout, Dp, Hp, Wp)[:, :, :Do, :Ho, :Wo]
    return out


# ----------------------------------------------------------------------------
# Pure-JAX reference (for sanity check)
# ----------------------------------------------------------------------------
def conv_block_ref(x, w, b, gamma, beta, *, padding=1, eps=1e-5):
    y = lax.conv_general_dilated(
        x, w, window_strides=(1, 1, 1),
        padding=[(padding, padding)] * 3,
        dimension_numbers=("NCDHW", "OIDHW", "NCDHW"))
    y = y + b.reshape(1, -1, 1, 1, 1)
    mean = jnp.mean(y, axis=(0, 2, 3, 4), keepdims=True)
    var = jnp.mean((y - mean) ** 2, axis=(0, 2, 3, 4), keepdims=True)
    y = (y - mean) / jnp.sqrt(var + eps)
    y = y * gamma.reshape(1, -1, 1, 1, 1) + beta.reshape(1, -1, 1, 1, 1)
    return jnp.maximum(y, 0.0)


if __name__ == "__main__":
    key = jax.random.PRNGKey(0)
    k_x, k_w, k_b = jax.random.split(key, 3)

    # conv_block(in_channels=4, out_channels=8, kernel_size=3, padding=1)
    N, Cin, Cout = 2, 4, 8
    D = H = W = 8
    kd = kh = kw = 3

    x = jax.random.normal(k_x, (N, Cin, D, H, W), dtype=jnp.float32)
    w = jax.random.normal(k_w, (Cout, Cin, kd, kh, kw), dtype=jnp.float32) * 0.1
    b = jax.random.normal(k_b, (Cout,), dtype=jnp.float32) * 0.1
    gamma = jnp.ones((Cout,), dtype=jnp.float32)   # BatchNorm3d default weight
    beta = jnp.zeros((Cout,), dtype=jnp.float32)   # BatchNorm3d default bias

    out = conv_block_forward(x, w, b, gamma, beta, padding=1)
    out = jax.block_until_ready(out)

    ref = conv_block_ref(x, w, b, gamma, beta, padding=1)
    assert out.shape == (N, Cout, D, H, W)
    assert jnp.allclose(out, ref, atol=1e-3, rtol=1e-3), "mismatch vs reference"

    print("KERNEL_OK")
</pallas_src>

<mosaic_0001>
module attributes {stable_mosaic.version = 11 : i64} {
  func.func @_conv_stats_kernel(%arg0: i32, %arg1: memref<1x4x1280xf32, #tpu.memory_space<vmem>>, %arg2: memref<27x8x4xf32, #tpu.memory_space<vmem>>, %arg3: memref<8x1xf32, #tpu.memory_space<vmem>>, %arg4: memref<1x1024xf32, #tpu.memory_space<vmem>>, %arg5: memref<1x8x1024xf32, #tpu.memory_space<vmem>>, %arg6: memref<1x8x1xf32, #tpu.memory_space<vmem>>, %arg7: memref<1x8x1xf32, #tpu.memory_space<vmem>>) attributes {dimension_semantics = [#tpu.dimension_semantics<parallel>], iteration_bounds = array<i64: 2>, scalar_prefetch = 0 : i64, scratch_operands = 0 : i64, tpu.core_type = #tpu.core_type<tc>, window_params = [{transform_indices = @transform_0, window_bounds = array<i64: 1, 4, 1280>}, {pipeline_mode = #tpu.pipeline_mode<synchronous>, transform_indices = @transform_1, window_bounds = array<i64: 27, 8, 4>}, {pipeline_mode = #tpu.pipeline_mode<synchronous>, transform_indices = @transform_2, window_bounds = array<i64: 8, 1>}, {pipeline_mode = #tpu.pipeline_mode<synchronous>, transform_indices = @transform_3, window_bounds = array<i64: 1, 1024>}, {transform_indices = @transform_4, window_bounds = array<i64: 1, 8, 1024>}, {transform_indices = @transform_5, window_bounds = array<i64: 1, 8, 1>}, {transform_indices = @transform_6, window_bounds = array<i64: 1, 8, 1>}]} {
    %cst = arith.constant 0.000000e+00 : f32
    %0 = vector.broadcast %cst : f32 to vector<8x1024xf32>
    %c0 = arith.constant 0 : index
    %c0_0 = arith.constant 0 : index
    %c0_1 = arith.constant 0 : index
    %1 = vector.load %arg1[%c0, %c0_0, %c0_1] : memref<1x4x1280xf32, #tpu.memory_space<vmem>>, vector<1x4x1024xf32>
    %2 = vector.shape_cast %1 : vector<1x4x1024xf32> to vector<4x1024xf32>
    %c0_2 = arith.constant 0 : index
    %c0_3 = arith.constant 0 : index
    %c0_4 = arith.constant 0 : index
    %3 = vector.load %arg2[%c0_2, %c0_3, %c0_4] : memref<27x8x4xf32, #tpu.memory_space<vmem>>, vector<1x8x4xf32>
    %4 = vector.shape_cast %3 : vector<1x8x4xf32> to vector<8x4xf32>
    %cst_5 = arith.constant dense<0.000000e+00> : vector<8x1024xf32>
    %5 = tpu.matmul %4, %2, %cst_5 {dimension_numbers = #tpu.dot_dimension_numbers<[1], [0], [0], [1], [0, 0, 1, 1], [], []>} : vector<8x4xf32>, vector<4x1024xf32>, vector<8x1024xf32> -> vector<8x1024xf32>
    %6 = arith.addf %0, %5 : vector<8x1024xf32>
    %c0_6 = arith.constant 0 : index
    %c0_7 = arith.constant 0 : index
    %c1 = arith.constant 1 : index
    %7 = vector.load %arg1[%c0_6, %c0_7, %c1] : memref<1x4x1280xf32, #tpu.memory_space<vmem>>, vector<1x4x1024xf32>
    %8 = vector.shape_cast %7 : vector<1x4x1024xf32> to vector<4x1024xf32>
    %c1_8 = arith.constant 1 : index
    %c0_9 = arith.constant 0 : index
    %c0_10 = arith.constant 0 : index
    %9 = vector.load %arg2[%c1_8, %c0_9, %c0_10] : memref<27x8x4xf32, #tpu.memory_space<vmem>>, vector<1x8x4xf32>
    %10 = vector.shape_cast %9 : vector<1x8x4xf32> to vector<8x4xf32>
    %cst_11 = arith.constant dense<0.000000e+00> : vector<8x1024xf32>
    %11 = tpu.matmul %10, %8, %cst_11 {dimension_numbers = #tpu.dot_dimension_numbers<[1], [0], [0], [1], [0, 0, 1, 1], [], []>} : vector<8x4xf32>, vector<4x1024xf32>, vector<8x1024xf32> -> vector<8x1024xf32>
    %12 = arith.addf %6, %11 : vector<8x1024xf32>
    %c0_12 = arith.constant 0 : index
    %c0_13 = arith.constant 0 : index
    %c2 = arith.constant 2 : index
    %13 = vector.load %arg1[%c0_12, %c0_13, %c2] : memref<1x4x1280xf32, #tpu.memory_space<vmem>>, vector<1x4x1024xf32>
    %14 = vector.shape_cast %13 : vector<1x4x1024xf32> to vector<4x1024xf32>
    %c2_14 = arith.constant 2 : index
    %c0_15 = arith.constant 0 : index
    %c0_16 = arith.constant 0 : index
    %15 = vector.load %arg2[%c2_14, %c0_15, %c0_16] : memref<27x8x4xf32, #tpu.memory_space<vmem>>, vector<1x8x4xf32>
    %16 = vector.shape_cast %15 : vector<1x8x4xf32> to vector<8x4xf32>
    %cst_17 = arith.constant dense<0.000000e+00> : vector<8x1024xf32>
    %17 = tpu.matmul %16, %14, %cst_17 {dimension_numbers = #tpu.dot_dimension_numbers<[1], [0], [0], [1], [0, 0, 1, 1], [], []>} : vector<8x4xf32>, vector<4x1024xf32>, vector<8x1024xf32> -> vector<8x1024xf32>
    %18 = arith.addf %12, %17 : vector<8x1024xf32>
    %c0_18 = arith.constant 0 : index
    %c0_19 = arith.constant 0 : index
    %c10 = arith.constant 10 : index
    %19 = vector.load %arg1[%c0_18, %c0_19, %c10] : memref<1x4x1280xf32, #tpu.memory_space<vmem>>, vector<1x4x1024xf32>
    %20 = vector.shape_cast %19 : vector<1x4x1024xf32> to vector<4x1024xf32>
    %c3 = arith.constant 3 : index
    %c0_20 = arith.constant 0 : index
    %c0_21 = arith.constant 0 : index
    %21 = vector.load %arg2[%c3, %c0_20, %c0_21] : memref<27x8x4xf32, #tpu.memory_space<vmem>>, vector<1x8x4xf32>
    %22 = vector.shape_cast %21 : vector<1x8x4xf32> to vector<8x4xf32>
    %cst_22 = arith.constant dense<0.000000e+00> : vector<8x1024xf32>
    %23 = tpu.matmul %22, %20, %cst_22 {dimension_numbers = #tpu.dot_dimension_numbers<[1], [0], [0], [1], [0, 0, 1, 1], [], []>} : vector<8x4xf32>, vector<4x1024xf32>, vector<8x1024xf32> -> vector<8x1024xf32>
    %24 = arith.addf %18, %23 : vector<8x1024xf32>
    %c0_23 = arith.constant 0 : index
    %c0_24 = arith.constant 0 : index
    %c11 = arith.constant 11 : index
    %25 = vector.load %arg1[%c0_23, %c0_24, %c11] : memref<1x4x1280xf32, #tpu.memory_space<vmem>>, vector<1x4x1024xf32>
    %26 = vector.shape_cast %25 : vector<1x4x1024xf32> to vector<4x1024xf32>
    %c4 = arith.constant 4 : index
    %c0_25 = arith.constant 0 : index
    %c0_26 = arith.constant 0 : index
    %27 = vector.load %arg2[%c4, %c0_25, %c0_26] : memref<27x8x4xf32, #tpu.memory_space<vmem>>, vector<1x8x4xf32>
    %28 = vector.shape_cast %27 : vector<1x8x4xf32> to vector<8x4xf32>
    %cst_27 = arith.constant dense<0.000000e+00> : vector<8x1024xf32>
    %29 = tpu.matmul %28, %26, %cst_27 {dimension_numbers = #tpu.dot_dimension_numbers<[1], [0], [0], [1], [0, 0, 1, 1], [], []>} : vector<8x4xf32>, vector<4x1024xf32>, vector<8x1024xf32> -> vector<8x1024xf32>
    %30 = arith.addf %24, %29 : vector<8x1024xf32>
    %c0_28 = arith.constant 0 : index
    %c0_29 = arith.constant 0 : index
    %c12 = arith.constant 12 : index
    %31 = vector.load %arg1[%c0_28, %c0_29, %c12] : memref<1x4x1280xf32, #tpu.memory_space<vmem>>, vector<1x4x1024xf32>
    %32 = vector.shape_cast %31 : vector<1x4x1024xf32> to vector<4x1024xf32>
    %c5 = arith.constant 5 : index
    %c0_30 = arith.constant 0 : index
    %c0_31 = arith.constant 0 : index
    %33 = vector.load %arg2[%c5, %c0_30, %c0_31] : memref<27x8x4xf32, #tpu.memory_space<vmem>>, vector<1x8x4xf32>
    %34 = vector.shape_cast %33 : vector<1x8x4xf32> to vector<8x4xf32>
    %cst_32 = arith.constant dense<0.000000e+00> : vector<8x1024xf32>
    %35 = tpu.matmul %34, %32, %cst_32 {dimension_numbers = #tpu.dot_dimension_numbers<[1], [0], [0], [1], [0, 0, 1, 1], [], []>} : vector<8x4xf32>, vector<4x1024xf32>, vector<8x1024xf32> -> vector<8x1024xf32>
    %36 = arith.addf %30, %35 : vector<8x1024xf32>
    %c0_33 = arith.constant 0 : index
    %c0_34 = arith.constant 0 : index
    %c20 = arith.constant 20 : index
    %37 = vector.load %arg1[%c0_33, %c0_34, %c20] : memref<1x4x1280xf32, #tpu.memory_space<vmem>>, vector<1x4x1024xf32>
    %38 = vector.shape_cast %37 : vector<1x4x1024xf32> to vector<4x1024xf32>
    %c6 = arith.constant 6 : index
    %c0_35 = arith.constant 0 : index
    %c0_36 = arith.constant 0 : index
    %39 = vector.load %arg2[%c6, %c0_35, %c0_36] : memref<27x8x4xf32, #tpu.memory_space<vmem>>, vector<1x8x4xf32>
    %40 = vector.shape_cast %39 : vector<1x8x4xf32> to vector<8x4xf32>
    %cst_37 = arith.constant dense<0.000000e+00> : vector<8x1024xf32>
    %41 = tpu.matmul %40, %38, %cst_37 {dimension_numbers = #tpu.dot_dimension_numbers<[1], [0], [0], [1], [0, 0, 1, 1], [], []>} : vector<8x4xf32>, vector<4x1024xf32>, vector<8x1024xf32> -> vector<8x1024xf32>
    %42 = arith.addf %36, %41 : vector<8x1024xf32>
    %c0_38 = arith.constant 0 : index
    %c0_39 = arith.constant 0 : index
    %c21 = arith.constant 21 : index
    %43 = vector.load %arg1[%c0_38, %c0_39, %c21] : memref<1x4x1280xf32, #tpu.memory_space<vmem>>, vector<1x4x1024xf32>
    %44 = vector.shape_cast %43 : vector<1x4x1024xf32> to vector<4x1024xf32>
    %c7 = arith.constant 7 : index
    %c0_40 = arith.constant 0 : index
    %c0_41 = arith.constant 0 : index
    %45 = vector.load %arg2[%c7, %c0_40, %c0_41] : memref<27x8x4xf32, #tpu.memory_space<vmem>>, vector<1x8x4xf32>
    %46 = vector.shape_cast %45 : vector<1x8x4xf32> to vector<8x4xf32>
    %cst_42 = arith.constant dense<0.000000e+00> : vector<8x1024xf32>
    %47 = tpu.matmul %46, %44, %cst_42 {dimension_numbers = #tpu.dot_dimension_numbers<[1], [0], [0], [1], [0, 0, 1, 1], [], []>} : vector<8x4xf32>, vector<4x1024xf32>, vector<8x1024xf32> -> vector<8x1024xf32>
    %48 = arith.addf %42, %47 : vector<8x1024xf32>
    %c0_43 = arith.constant 0 : index
    %c0_44 = arith.constant 0 : index
    %c22 = arith.constant 22 : index
    %49 = vector.load %arg1[%c0_43, %c0_44, %c22] : memref<1x4x1280xf32, #tpu.memory_space<vmem>>, vector<1x4x1024xf32>
    %50 = vector.shape_cast %49 : vector<1x4x1024xf32> to vector<4x1024xf32>
    %c8 = arith.constant 8 : index
    %c0_45 = arith.constant 0 : index
    %c0_46 = arith.constant 0 : index
    %51 = vector.load %arg2[%c8, %c0_45, %c0_46] : memref<27x8x4xf32, #tpu.memory_space<vmem>>, vector<1x8x4xf32>
    %52 = vector.shape_cast %51 : vector<1x8x4xf32> to vector<8x4xf32>
    %cst_47 = arith.constant dense<0.000000e+00> : vector<8x1024xf32>
    %53 = tpu.matmul %52, %50, %cst_47 {dimension_numbers = #tpu.dot_dimension_numbers<[1], [0], [0], [1], [0, 0, 1, 1], [], []>} : vector<8x4xf32>, vector<4x1024xf32>, vector<8x1024xf32> -> vector<8x1024xf32>
    %54 = arith.addf %48, %53 : vector<8x1024xf32>
    %c0_48 = arith.constant 0 : index
    %c0_49 = arith.constant 0 : index
    %c100 = arith.constant 100 : index
    %55 = vector.load %arg1[%c0_48, %c0_49, %c100] : memref<1x4x1280xf32, #tpu.memory_space<vmem>>, vector<1x4x1024xf32>
    %56 = vector.shape_cast %55 : vector<1x4x1024xf32> to vector<4x1024xf32>
    %c9 = arith.constant 9 : index
    %c0_50 = arith.constant 0 : index
    %c0_51 = arith.constant 0 : index
    %57 = vector.load %arg2[%c9, %c0_50, %c0_51] : memref<27x8x4xf32, #tpu.memory_space<vmem>>, vector<1x8x4xf32>
    %58 = vector.shape_cast %57 : vector<1x8x4xf32> to vector<8x4xf32>
    %cst_52 = arith.constant dense<0.000000e+00> : vector<8x1024xf32>
    %59 = tpu.matmul %58, %56, %cst_52 {dimension_numbers = #tpu.dot_dimension_numbers<[1], [0], [0], [1], [0, 0, 1, 1], [], []>} : vector<8x4xf32>, vector<4x1024xf32>, vector<8x1024xf32> -> vector<8x1024xf32>
    %60 = arith.addf %54, %59 : vector<8x1024xf32>
    %c0_53 = arith.constant 0 : index
    %c0_54 = arith.constant 0 : index
    %c101 = arith.constant 101 : index
    %61 = vector.load %arg1[%c0_53, %c0_54, %c101] : memref<1x4x1280xf32, #tpu.memory_space<vmem>>, vector<1x4x1024xf32>
    %62 = vector.shape_cast %61 : vector<1x4x1024xf32> to vector<4x1024xf32>
    %c10_55 = arith.constant 10 : index
    %c0_56 = arith.constant 0 : index
    %c0_57 = arith.constant 0 : index
    %63 = vector.load %arg2[%c10_55, %c0_56, %c0_57] : memref<27x8x4xf32, #tpu.memory_space<vmem>>, vector<1x8x4xf32>
    %64 = vector.shape_cast %63 : vector<1x8x4xf32> to vector<8x4xf32>
    %cst_58 = arith.constant dense<0.000000e+00> : vector<8x1024xf32>
    %65 = tpu.matmul %64, %62, %cst_58 {dimension_numbers = #tpu.dot_dimension_numbers<[1], [0], [0], [1], [0, 0, 1, 1], [], []>} : vector<8x4xf32>, vector<4x1024xf32>, vector<8x1024xf32> -> vector<8x1024xf32>
    %66 = arith.addf %60, %65 : vector<8x1024xf32>
    %c0_59 = arith.constant 0 : index
    %c0_60 = arith.constant 0 : index
    %c102 = arith.constant 102 : index
    %67 = vector.load %arg1[%c0_59, %c0_60, %c102] : memref<1x4x1280xf32, #tpu.memory_space<vmem>>, vector<1x4x1024xf32>
    %68 = vector.shape_cast %67 : vector<1x4x1024xf32> to vector<4x1024xf32>
    %c11_61 = arith.constant 11 : index
    %c0_62 = arith.constant 0 : index
    %c0_63 = arith.constant 0 : index
    %69 = vector.load %arg2[%c11_61, %c0_62, %c0_63] : memref<27x8x4xf32, #tpu.memory_space<vmem>>, vector<1x8x4xf32>
    %70 = vector.shape_cast %69 : vector<1x8x4xf32> to vector<8x4xf32>
    %cst_64 = arith.constant dense<0.000000e+00> : vector<8x1024xf32>
    %71 = tpu.matmul %70, %68, %cst_64 {dimension_numbers = #tpu.dot_dimension_numbers<[1], [0], [0], [1], [0, 0, 1, 1], [], []>} : vector<8x4xf32>, vector<4x1024xf32>, vector<8x1024xf32> -> vector<8x1024xf32>
    %72 = arith.addf %66, %71 : vector<8x1024xf32>
    %c0_65 = arith.constant 0 : index
    %c0_66 = arith.constant 0 : index
    %c110 = arith.constant 110 : index
    %73 = vector.load %arg1[%c0_65, %c0_66, %c110] : memref<1x4x1280xf32, #tpu.memory_space<vmem>>, vector<1x4x1024xf32>
    %74 = vector.shape_cast %73 : vector<1x4x1024xf32> to vector<4x1024xf32>
    %c12_67 = arith.constant 12 : index
    %c0_68 = arith.constant 0 : index
    %c0_69 = arith.constant 0 : index
    %75 = vector.load %arg2[%c12_67, %c0_68, %c0_69] : memref<27x8x4xf32, #tpu.memory_space<vmem>>, vector<1x8x4xf32>
    %76 = vector.shape_cast %75 : vector<1x8x4xf32> to vector<8x4xf32>
    %cst_70 = arith.constant dense<0.000000e+00> : vector<8x1024xf32>
    %77 = tpu.matmul %76, %74, %cst_70 {dimension_numbers = #tpu.dot_dimension_numbers<[1], [0], [0], [1], [0, 0, 1, 1], [], []>} : vector<8x4xf32>, vector<4x1024xf32>, vector<8x1024xf32> -> vector<8x1024xf32>
    %78 = arith.addf %72, %77 : vector<8x1024xf32>
    %c0_71 = arith.constant 0 : index
    %c0_72 = arith.constant 0 : index
    %c111 = arith.constant 111 : index
    %79 = vector.load %arg1[%c0_71, %c0_72, %c111] : memref<1x4x1280xf32, #tpu.memory_space<vmem>>, vector<1x4x1024xf32>
    %80 = vector.shape_cast %79 : vector<1x4x1024xf32> to vector<4x1024xf32>
    %c13 = arith.constant 13 : index
    %c0_73 = arith.constant 0 : index
    %c0_74 = arith.constant 0 : index
    %81 = vector.load %arg2[%c13, %c0_73, %c0_74] : memref<27x8x4xf32, #tpu.memory_space<vmem>>, vector<1x8x4xf32>
    %82 = vector.shape_cast %81 : vector<1x8x4xf32> to vector<8x4xf32>
    %cst_75 = arith.constant dense<0.000000e+00> : vector<8x1024xf32>
    %83 = tpu.matmul %82, %80, %cst_75 {dimension_numbers = #tpu.dot_dimension_numbers<[1], [0], [0], [1], [0, 0, 1, 1], [], []>} : vector<8x4xf32>, vector<4x1024xf32>, vector<8x1024xf32> -> vector<8x1024xf32>
    %84 = arith.addf %78, %83 : vector<8x1024xf32>
    %c0_76 = arith.constant 0 : index
    %c0_77 = arith.constant 0 : index
    %c112 = arith.constant 112 : index
    %85 = vector.load %arg1[%c0_76, %c0_77, %c112] : memref<1x4x1280xf32, #tpu.memory_space<vmem>>, vector<1x4x1024xf32>
    %86 = vector.shape_cast %85 : vector<1x4x1024xf32> to vector<4x1024xf32>
    %c14 = arith.constant 14 : index
    %c0_78 = arith.constant 0 : index
    %c0_79 = arith.constant 0 : index
    %87 = vector.load %arg2[%c14, %c0_78, %c0_79] : memref<27x8x4xf32, #tpu.memory_space<vmem>>, vector<1x8x4xf32>
    %88 = vector.shape_cast %87 : vector<1x8x4xf32> to vector<8x4xf32>
    %cst_80 = arith.constant dense<0.000000e+00> : vector<8x1024xf32>
    %89 = tpu.matmul %88, %86, %cst_80 {dimension_numbers = #tpu.dot_dimension_numbers<[1], [0], [0], [1], [0, 0, 1, 1], [], []>} : vector<8x4xf32>, vector<4x1024xf32>, vector<8x1024xf32> -> vector<8x1024xf32>
    %90 = arith.addf %84, %89 : vector<8x1024xf32>
    %c0_81 = arith.constant 0 : index
    %c0_82 = arith.constant 0 : index
    %c120 = arith.constant 120 : index
    %91 = vector.load %arg1[%c0_81, %c0_82, %c120] : memref<1x4x1280xf32, #tpu.memory_space<vmem>>, vector<1x4x1024xf32>
    %92 = vector.shape_cast %91 : vector<1x4x1024xf32> to vector<4x1024xf32>
    %c15 = arith.constant 15 : index
    %c0_83 = arith.constant 0 : index
    %c0_84 = arith.constant 0 : index
    %93 = vector.load %arg2[%c15, %c0_83, %c0_84] : memref<27x8x4xf32, #tpu.memory_space<vmem>>, vector<1x8x4xf32>
    %94 = vector.shape_cast %93 : vector<1x8x4xf32> to vector<8x4xf32>
    %cst_85 = arith.constant dense<0.000000e+00> : vector<8x1024xf32>
    %95 = tpu.matmul %94, %92, %cst_85 {dimension_numbers = #tpu.dot_dimension_numbers<[1], [0], [0], [1], [0, 0, 1, 1], [], []>} : vector<8x4xf32>, vector<4x1024xf32>, vector<8x1024xf32> -> vector<8x1024xf32>
    %96 = arith.addf %90, %95 : vector<8x1024xf32>
    %c0_86 = arith.constant 0 : index
    %c0_87 = arith.constant 0 : index
    %c121 = arith.constant 121 : index
    %97 = vector.load %arg1[%c0_86, %c0_87, %c121] : memref<1x4x1280xf32, #tpu.memory_space<vmem>>, vector<1x4x1024xf32>
    %98 = vector.shape_cast %97 : vector<1x4x1024xf32> to vector<4x1024xf32>
    %c16 = arith.constant 16 : index
    %c0_88 = arith.constant 0 : index
    %c0_89 = arith.constant 0 : index
    %99 = vector.load %arg2[%c16, %c0_88, %c0_89] : memref<27x8x4xf32, #tpu.memory_space<vmem>>, vector<1x8x4xf32>
    %100 = vector.shape_cast %99 : vector<1x8x4xf32> to vector<8x4xf32>
    %cst_90 = arith.constant dense<0.000000e+00> : vector<8x1024xf32>
    %101 = tpu.matmul %100, %98, %cst_90 {dimension_numbers = #tpu.dot_dimension_numbers<[1], [0], [0], [1], [0, 0, 1, 1], [], []>} : vector<8x4xf32>, vector<4x1024xf32>, vector<8x1024xf32> -> vector<8x1024xf32>
    %102 = arith.addf %96, %101 : vector<8x1024xf32>
    %c0_91 = arith.constant 0 : index
    %c0_92 = arith.constant 0 : index
    %c122 = arith.constant 122 : index
    %103 = vector.load %arg1[%c0_91, %c0_92, %c122] : memref<1x4x1280xf32, #tpu.memory_space<vmem>>, vector<1x4x1024xf32>
    %104 = vector.shape_cast %103 : vector<1x4x1024xf32> to vector<4x1024xf32>
    %c17 = arith.constant 17 : index
    %c0_93 = arith.constant 0 : index
    %c0_94 = arith.constant 0 : index
    %105 = vector.load %arg2[%c17, %c0_93, %c0_94] : memref<27x8x4xf32, #tpu.memory_space<vmem>>, vector<1x8x4xf32>
    %106 = vector.shape_cast %105 : vector<1x8x4xf32> to vector<8x4xf32>
    %cst_95 = arith.constant dense<0.000000e+00> : vector<8x1024xf32>
    %107 = tpu.matmul %106, %104, %cst_95 {dimension_numbers = #tpu.dot_dimension_numbers<[1], [0], [0], [1], [0, 0, 1, 1], [], []>} : vector<8x4xf32>, vector<4x1024xf32>, vector<8x1024xf32> -> vector<8x1024xf32>
    %108 = arith.addf %102, %107 : vector<8x1024xf32>
    %c0_96 = arith.constant 0 : index
    %c0_97 = arith.constant 0 : index
    %c200 = arith.constant 200 : index
    %109 = vector.load %arg1[%c0_96, %c0_97, %c200] : memref<1x4x1280xf32, #tpu.memory_space<vmem>>, vector<1x4x1024xf32>
    %110 = vector.shape_cast %109 : vector<1x4x1024xf32> to vector<4x1024xf32>
    %c18 = arith.constant 18 : index
    %c0_98 = arith.constant 0 : index
    %c0_99 = arith.constant 0 : index
    %111 = vector.load %arg2[%c18, %c0_98, %c0_99] : memref<27x8x4xf32, #tpu.memory_space<vmem>>, vector<1x8x4xf32>
    %112 = vector.shape_cast %111 : vector<1x8x4xf32> to vector<8x4xf32>
    %cst_100 = arith.constant dense<0.000000e+00> : vector<8x1024xf32>
    %113 = tpu.matmul %112, %110, %cst_100 {dimension_numbers = #tpu.dot_dimension_numbers<[1], [0], [0], [1], [0, 0, 1, 1], [], []>} : vector<8x4xf32>, vector<4x1024xf32>, vector<8x1024xf32> -> vector<8x1024xf32>
    %114 = arith.addf %108, %113 : vector<8x1024xf32>
    %c0_101 = arith.constant 0 : index
    %c0_102 = arith.constant 0 : index
    %c201 = arith.constant 201 : index
    %115 = vector.load %arg1[%c0_101, %c0_102, %c201] : memref<1x4x1280xf32, #tpu.memory_space<vmem>>, vector<1x4x1024xf32>
    %116 = vector.shape_cast %115 : vector<1x4x1024xf32> to vector<4x1024xf32>
    %c19 = arith.constant 19 : index
    %c0_103 = arith.constant 0 : index
    %c0_104 = arith.constant 0 : index
    %117 = vector.load %arg2[%c19, %c0_103, %c0_104] : memref<27x8x4xf32, #tpu.memory_space<vmem>>, vector<1x8x4xf32>
    %118 = vector.shape_cast %117 : vector<1x8x4xf32> to vector<8x4xf32>
    %cst_105 = arith.constant dense<0.000000e+00> : vector<8x1024xf32>
    %119 = tpu.matmul %118, %116, %cst_105 {dimension_numbers = #tpu.dot_dimension_numbers<[1], [0], [0], [1], [0, 0, 1, 1], [], []>} : vector<8x4xf32>, vector<4x1024xf32>, vector<8x1024xf32> -> vector<8x1024xf32>
    %120 = arith.addf %114, %119 : vector<8x1024xf32>
    %c0_106 = arith.constant 0 : index
    %c0_107 = arith.constant 0 : index
    %c202 = arith.constant 202 : index
    %121 = vector.load %arg1[%c0_106, %c0_107, %c202] : memref<1x4x1280xf32, #tpu.memory_space<vmem>>, vector<1x4x1024xf32>
    %122 = vector.shape_cast %121 : vector<1x4x1024xf32> to vector<4x1024xf32>
    %c20_108 = arith.constant 20 : index
    %c0_109 = arith.constant 0 : index
    %c0_110 = arith.constant 0 : index
    %123 = vector.load %arg2[%c20_108, %c0_109, %c0_110] : memref<27x8x4xf32, #tpu.memory_space<vmem>>, vector<1x8x4xf32>
    %124 = vector.shape_cast %123 : vector<1x8x4xf32> to vector<8x4xf32>
    %cst_111 = arith.constant dense<0.000000e+00> : vector<8x1024xf32>
    %125 = tpu.matmul %124, %122, %cst_111 {dimension_numbers = #tpu.dot_dimension_numbers<[1], [0], [0], [1], [0, 0, 1, 1], [], []>} : vector<8x4xf32>, vector<4x1024xf32>, vector<8x1024xf32> -> vector<8x1024xf32>
    %126 = arith.addf %120, %125 : vector<8x1024xf32>
    %c0_112 = arith.constant 0 : index
    %c0_113 = arith.constant 0 : index
    %c210 = arith.constant 210 : index
    %127 = vector.load %arg1[%c0_112, %c0_113, %c210] : memref<1x4x1280xf32, #tpu.memory_space<vmem>>, vector<1x4x1024xf32>
    %128 = vector.shape_cast %127 : vector<1x4x1024xf32> to vector<4x1024xf32>
    %c21_114 = arith.constant 21 : index
    %c0_115 = arith.constant 0 : index
    %c0_116 = arith.constant 0 : index
    %129 = vector.load %arg2[%c21_114, %c0_115, %c0_116] : memref<27x8x4xf32, #tpu.memory_space<vmem>>, vector<1x8x4xf32>
    %130 = vector.shape_cast %129 : vector<1x8x4xf32> to vector<8x4xf32>
    %cst_117 = arith.constant dense<0.000000e+00> : vector<8x1024xf32>
    %131 = tpu.matmul %130, %128, %cst_117 {dimension_numbers = #tpu.dot_dimension_numbers<[1], [0], [0], [1], [0, 0, 1, 1], [], []>} : vector<8x4xf32>, vector<4x1024xf32>, vector<8x1024xf32> -> vector<8x1024xf32>
    %132 = arith.addf %126, %131 : vector<8x1024xf32>
    %c0_118 = arith.constant 0 : index
    %c0_119 = arith.constant 0 : index
    %c211 = arith.constant 211 : index
    %133 = vector.load %arg1[%c0_118, %c0_119, %c211] : memref<1x4x1280xf32, #tpu.memory_space<vmem>>, vector<1x4x1024xf32>
    %134 = vector.shape_cast %133 : vector<1x4x1024xf32> to vector<4x1024xf32>
    %c22_120 = arith.constant 22 : index
    %c0_121 = arith.constant 0 : index
    %c0_122 = arith.constant 0 : index
    %135 = vector.load %arg2[%c22_120, %c0_121, %c0_122] : memref<27x8x4xf32, #tpu.memory_space<vmem>>, vector<1x8x4xf32>
    %136 = vector.shape_cast %135 : vector<1x8x4xf32> to vector<8x4xf32>
    %cst_123 = arith.constant dense<0.000000e+00> : vector<8x1024xf32>
    %137 = tpu.matmul %136, %134, %cst_123 {dimension_numbers = #tpu.dot_dimension_numbers<[1], [0], [0], [1], [0, 0, 1, 1], [], []>} : vector<8x4xf32>, vector<4x1024xf32>, vector<8x1024xf32> -> vector<8x1024xf32>
    %138 = arith.addf %132, %137 : vector<8x1024xf32>
    %c0_124 = arith.constant 0 : index
    %c0_125 = arith.constant 0 : index
    %c212 = arith.constant 212 : index
    %139 = vector.load %arg1[%c0_124, %c0_125, %c212] : memref<1x4x1280xf32, #tpu.memory_space<vmem>>, vector<1x4x1024xf32>
    %140 = vector.shape_cast %139 : vector<1x4x1024xf32> to vector<4x1024xf32>
    %c23 = arith.constant 23 : index
    %c0_126 = arith.constant 0 : index
    %c0_127 = arith.constant 0 : index
    %141 = vector.load %arg2[%c23, %c0_126, %c0_127] : memref<27x8x4xf32, #tpu.memory_space<vmem>>, vector<1x8x4xf32>
    %142 = vector.shape_cast %141 : vector<1x8x4xf32> to vector<8x4xf32>
    %cst_128 = arith.constant dense<0.000000e+00> : vector<8x1024xf32>
    %143 = tpu.matmul %142, %140, %cst_128 {dimension_numbers = #tpu.dot_dimension_numbers<[1], [0], [0], [1], [0, 0, 1, 1], [], []>} : vector<8x4xf32>, vector<4x1024xf32>, vector<8x1024xf32> -> vector<8x1024xf32>
    %144 = arith.addf %138, %143 : vector<8x1024xf32>
    %c0_129 = arith.constant 0 : index
    %c0_130 = arith.constant 0 : index
    %c220 = arith.constant 220 : index
    %145 = vector.load %arg1[%c0_129, %c0_130, %c220] : memref<1x4x1280xf32, #tpu.memory_space<vmem>>, vector<1x4x1024xf32>
    %146 = vector.shape_cast %145 : vector<1x4x1024xf32> to vector<4x1024xf32>
    %c24 = arith.constant 24 : index
    %c0_131 = arith.constant 0 : index
    %c0_132 = arith.constant 0 : index
    %147 = vector.load %arg2[%c24, %c0_131, %c0_132] : memref<27x8x4xf32, #tpu.memory_space<vmem>>, vector<1x8x4xf32>
    %148 = vector.shape_cast %147 : vector<1x8x4xf32> to vector<8x4xf32>
    %cst_133 = arith.constant dense<0.000000e+00> : vector<8x1024xf32>
    %149 = tpu.matmul %148, %146, %cst_133 {dimension_numbers = #tpu.dot_dimension_numbers<[1], [0], [0], [1], [0, 0, 1, 1], [], []>} : vector<8x4xf32>, vector<4x1024xf32>, vector<8x1024xf32> -> vector<8x1024xf32>
    %150 = arith.addf %144, %149 : vector<8x1024xf32>
    %c0_134 = arith.constant 0 : index
    %c0_135 = arith.constant 0 : index
    %c221 = arith.constant 221 : index
    %151 = vector.load %arg1[%c0_134, %c0_135, %c221] : memref<1x4x1280xf32, #tpu.memory_space<vmem>>, vector<1x4x1024xf32>
    %152 = vector.shape_cast %151 : vector<1x4x1024xf32> to vector<4x1024xf32>
    %c25 = arith.constant 25 : index
    %c0_136 = arith.constant 0 : index
    %c0_137 = arith.constant 0 : index
    %153 = vector.load %arg2[%c25, %c0_136, %c0_137] : memref<27x8x4xf32, #tpu.memory_space<vmem>>, vector<1x8x4xf32>
    %154 = vector.shape_cast %153 : vector<1x8x4xf32> to vector<8x4xf32>
    %cst_138 = arith.constant dense<0.000000e+00> : vector<8x1024xf32>
    %155 = tpu.matmul %154, %152, %cst_138 {dimension_numbers = #tpu.dot_dimension_numbers<[1], [0], [0], [1], [0, 0, 1, 1], [], []>} : vector<8x4xf32>, vector<4x1024xf32>, vector<8x1024xf32> -> vector<8x1024xf32>
    %156 = arith.addf %150, %155 : vector<8x1024xf32>
    %c0_139 = arith.constant 0 : index
    %c0_140 = arith.constant 0 : index
    %c222 = arith.constant 222 : index
    %157 = vector.load %arg1[%c0_139, %c0_140, %c222] : memref<1x4x1280xf32, #tpu.memory_space<vmem>>, vector<1x4x1024xf32>
    %158 = vector.shape_cast %157 : vector<1x4x1024xf32> to vector<4x1024xf32>
    %c26 = arith.constant 26 : index
    %c0_141 = arith.constant 0 : index
    %c0_142 = arith.constant 0 : index
    %159 = vector.load %arg2[%c26, %c0_141, %c0_142] : memref<27x8x4xf32, #tpu.memory_space<vmem>>, vector<1x8x4xf32>
    %160 = vector.shape_cast %159 : vector<1x8x4xf32> to vector<8x4xf32>
    %cst_143 = arith.constant dense<0.000000e+00> : vector<8x1024xf32>
    %161 = tpu.matmul %160, %158, %cst_143 {dimension_numbers = #tpu.dot_dimension_numbers<[1], [0], [0], [1], [0, 0, 1, 1], [], []>} : vector<8x4xf32>, vector<4x1024xf32>, vector<8x1024xf32> -> vector<8x1024xf32>
    %162 = arith.addf %156, %161 : vector<8x1024xf32>
    %c0_144 = arith.constant 0 : index
    %c0_145 = arith.constant 0 : index
    %163 = vector.load %arg3[%c0_144, %c0_145] : memref<8x1xf32, #tpu.memory_space<vmem>>, vector<8x1xf32>
    %164 = vector.broadcast %163 : vector<8x1xf32> to vector<8x1024xf32>
    %165 = arith.addf %162, %164 : vector<8x1024xf32>
    %c0_146 = arith.constant 0 : index
    %c0_147 = arith.constant 0 : index
    %c0_148 = arith.constant 0 : index
    %166 = vector.load %arg5[%c0_146, %c0_147, %c0_148] : memref<1x8x1024xf32, #tpu.memory_space<vmem>>, vector<1x8x1024xf32>
    %167 = vector.shape_cast %166 : vector<1x8x1024xf32> to vector<8x1024xf32>
    %168 = vector.shape_cast %165 : vector<8x1024xf32> to vector<1x8x1024xf32>
    tpu.vector_store %arg5[%c0_146, %c0_147, %c0_148], %168 {strides = array<i32>} : memref<1x8x1024xf32, #tpu.memory_space<vmem>>, vector<1x8x1024xf32>,
    %c0_149 = arith.constant 0 : index
    %c0_150 = arith.constant 0 : index
    %169 = vector.load %arg4[%c0_149, %c0_150] : memref<1x1024xf32, #tpu.memory_space<vmem>>, vector<1x1024xf32>
    %170 = vector.broadcast %169 : vector<1x1024xf32> to vector<8x1024xf32>
    %171 = arith.mulf %165, %170 : vector<8x1024xf32>
    %cst_151 = arith.constant dense<0.000000e+00> : vector<8xf32>
    %172 = vector.multi_reduction <add>, %171, %cst_151 [1] : vector<8x1024xf32> to vector<8xf32>
    %173 = vector.shape_cast %172 : vector<8xf32> to vector<8x1xf32>
    %c0_152 = arith.constant 0 : index
    %c0_153 = arith.constant 0 : index
    %c0_154 = arith.constant 0 : index
    %174 = vector.load %arg6[%c0_152, %c0_153, %c0_154] : memref<1x8x1xf32, #tpu.memory_space<vmem>>, vector<1x8x1xf32>
    %175 = vector.shape_cast %174 : vector<1x8x1xf32> to vector<8x1xf32>
    %176 = vector.shape_cast %173 : vector<8x1xf32> to vector<1x8x1xf32>
    tpu.vector_store %arg6[%c0_152, %c0_153, %c0_154], %176 {strides = array<i32>} : memref<1x8x1xf32, #tpu.memory_space<vmem>>, vector<1x8x1xf32>,
    %177 = arith.mulf %171, %165 : vector<8x1024xf32>
    %cst_155 = arith.constant dense<0.000000e+00> : vector<8xf32>
    %178 = vector.multi_reduction <add>, %177, %cst_155 [1] : vector<8x1024xf32> to vector<8xf32>
    %179 = vector.shape_cast %178 : vector<8xf32> to vector<8x1xf32>
    %c0_156 = arith.constant 0 : index
    %c0_157 = arith.constant 0 : index
    %c0_158 = arith.constant 0 : index
    %180 = vector.load %arg7[%c0_156, %c0_157, %c0_158] : memref<1x8x1xf32, #tpu.memory_space<vmem>>, vector<1x8x1xf32>
    %181 = vector.shape_cast %180 : vector<1x8x1xf32> to vector<8x1xf32>
    %182 = vector.shape_cast %179 : vector<8x1xf32> to vector<1x8x1xf32>
    tpu.vector_store %arg7[%c0_156, %c0_157, %c0_158], %182 {strides = array<i32>} : memref<1x8x1xf32, #tpu.memory_space<vmem>>, vector<1x8x1xf32>,
    return
  }
  func.func @transform_0(%arg0: i32) -> (i32, i32, i32) {
    %c0_i32 = arith.constant 0 : i32
    %c0_i32_0 = arith.constant 0 : i32
    %c0_i32_1 = arith.constant 0 : i32
    return %arg0, %c0_i32, %c0_i32_0 : i32, i32, i32
  }
  func.func @transform_1(%arg0: i32) -> (i32, i32, i32) {
    %c0_i32 = arith.constant 0 : i32
    %c0_i32_0 = arith.constant 0 : i32
    %c0_i32_1 = arith.constant 0 : i32
    %c0_i32_2 = arith.constant 0 : i32
    return %c0_i32, %c0_i32_0, %c0_i32_1 : i32, i32, i32
  }
  func.func @transform_2(%arg0: i32) -> (i32, i32) {
    %c0_i32 = arith.constant 0 : i32
    %c0_i32_0 = arith.constant 0 : i32
    %c0_i32_1 = arith.constant 0 : i32
    return %c0_i32, %c0_i32_0 : i32, i32
  }
  func.func @transform_3(%arg0: i32) -> (i32, i32) {
    %c0_i32 = arith.constant 0 : i32
    %c0_i32_0 = arith.constant 0 : i32
    %c0_i32_1 = arith.constant 0 : i32
    return %c0_i32, %c0_i32_0 : i32, i32
  }
  func.func @transform_4(%arg0: i32) -> (i32, i32, i32) {
    %c0_i32 = arith.constant 0 : i32
    %c0_i32_0 = arith.constant 0 : i32
    %c0_i32_1 = arith.constant 0 : i32
    return %arg0, %c0_i32, %c0_i32_0 : i32, i32, i32
  }
  func.func @transform_5(%arg0: i32) -> (i32, i32, i32) {
    %c0_i32 = arith.constant 0 : i32
    %c0_i32_0 = arith.constant 0 : i32
    %c0_i32_1 = arith.constant 0 : i32
    return %arg0, %c0_i32, %c0_i32_0 : i32, i32, i32
  }
  func.func @transform_6(%arg0: i32) -> (i32, i32, i32) {
    %c0_i32 = arith.constant 0 : i32
    %c0_i32_0 = arith.constant 0 : i32
    %c0_i32_1 = arith.constant 0 : i32
    return %arg0, %c0_i32, %c0_i32_0 : i32, i32, i32
  }
}

</mosaic_0001>

<llo_original>
// kernel: tpu_custom_call.1
$region0: #{tpu_custom_call.1}
  #allocation0 [shape = 'u32[]', space=smem, size = 0x4, offset = 0x4, fixed_abs, tag = 'smem constant byte address 0x4 - core index']
  #allocation1 [shape = 'u32[144,128]{1,0:T(1,128)}', space=vmem, size = 0x12000, scoped, tag = 'internal scratch']
  %s0 = inlined_call_operand.vmem [shape: f32[2,4,1280], index: 0, kind: input, shape index: {}]
  %s1 = inlined_call_operand.vmem [shape: f32[27,8,4], index: 1, kind: input, shape index: {}]
  %s2 = inlined_call_operand.vmem [shape: f32[8,1], index: 2, kind: input, shape index: {}]
  %s3 = inlined_call_operand.vmem [shape: f32[1,1024], index: 3, kind: input, shape index: {}]
  %s4 = inlined_call_operand.hbm [shape: f32[2,8,1024], index: 4, kind: output, shape index: {0}]
  %s5 = inlined_call_operand.vmem [shape: f32[2,8,1], index: 5, kind: output, shape index: {1}]
  %s6 = inlined_call_operand.vmem [shape: f32[2,8,1], index: 6, kind: output, shape index: {2}]
  %7 = xla_tuple %s4, %s5, %s6
  %s8 = sld [smem:[#allocation0]]
  $region65: #{tpu_custom_call.1} parent=0
    _
  %s10 = ssub.s32 1, %s8
  %s11 = scalar_select 0, %s10, %s8
  $region1: #{tpu_custom_call.1} parent=0
    #allocation2 [shape = 'u8[65536]{0}', space=vmem, size = 0x10000, scoped, tag = 'output window, operand 0']
    #allocation3 [shape = 's32[2]{0}', space=sflag, size = 0x8, scoped, tag = 'scoped memory for tpu_custom_call.1']
    %12 = vsyncpa [#allocation3], 0
    %s13 = scalar_lea.sflag [#allocation3], 1
    %14 = vsyncpa %s13, 0
    loop: start=0, step=1, limit=4
    $region2: #{tpu_custom_call.1} parent=1 // loop_pre_header
      _
    $region3: #{tpu_custom_call.1} parent=1 // loop_header
      %s16 = sphi 0, %s20
      %p17 = scmp.ge.s32.totalorder %s16, 4
      %s26 = sphi 0, %s28
      %s29 = sphi 0, %s26
      %s30 = sphi 0, %s29
      %s46 = sphi 0, %s30
      %s50 = sphi 0, %s50
      %s52 = sphi 0, %s50
      %s53 = sphi 0, %s52
      %s67 = sphi 0, %s53
      %s71 = sphi 0, %s71
      %s73 = sphi 0, %s71
      %s74 = sphi 0, %s73
      %s88 = sphi 0, %s74
      %s92 = sphi 0, %s92
      %s94 = sphi 0, %s92
      %s95 = sphi 0, %s94
      %s109 = sphi 0, %s95
      %s115 = sphi 0, %s117
      %s118 = sphi 0, %s115
      %s119 = sphi 0, %s118
      %s135 = sphi 0, %s119
      %s141 = sphi 0, %s143
      %s144 = sphi 0, %s141
      %s145 = sphi 0, %s144
      %s161 = sphi 0, %s145
      %s167 = sphi 0, %s169
      %s170 = sphi 0, %s167
      %s171 = sphi 0, %s170
      %s187 = sphi 0, %s171
    $region4: #{tpu_custom_call.1} parent=1 // loop_header_branch
      %19 = sbr.rel (%p17) target = $region8
    $region5: #{tpu_custom_call.1} parent=1 // loop_body
      %s21 = ssub.s32 %s16, 1
      %s22 = ssub.s32 %s16, 2
      %s23 = sadd.s32 %s16, 1
      %s24 = ssub.s32 %s16, %s23
      %p25 = scmp.eq.s32.totalorder %s24, 0
      %s27 = sadd.s32 %s26, 1
      %s28 = scalar_select %p25, %s26, %s27
      %p31 = pneg %p25
      %p32 = scmp.eq.s32.totalorder %s16, 1
      %p33 = por %p31, %p32
      %p34 = scmp.ne.s32.totalorder %s26, %s29
      %p35 = scmp.eq.s32.totalorder %s16, 0
      %p36 = por %p34, %p35
      %p37 = scmp.ne.s32.totalorder %s26, %s29
      %p38 = scmp.eq.s32.totalorder %s21, 1
      %p39 = por %p37, %p38
      %p40 = scmp.ne.s32.totalorder %s29, %s30
      %p41 = scmp.eq.s32.totalorder %s21, 0
      %p42 = por %p40, %p41
      %p43 = scmp.ne.s32.totalorder %s29, %s30
      %p44 = scmp.eq.s32.totalorder %s22, 1
      %p45 = por %p43, %p44
      %p47 = scmp.ne.s32.totalorder %s30, %s46
      %p48 = scmp.eq.s32.totalorder %s22, 0
      %p49 = por %p47, %p48
      %s51 = sadd.s32 %s50, 1
      %p54 = scmp.eq.s32.totalorder %s16, 1
      %p55 = scmp.ne.s32.totalorder %s50, %s52
      %p56 = scmp.eq.s32.totalorder %s16, 0
      %p57 = por %p55, %p56
      %p58 = scmp.ne.s32.totalorder %s50, %s52
      %p59 = scmp.eq.s32.totalorder %s21, 1
      %p60 = por %p58, %p59
      %p61 = scmp.ne.s32.totalorder %s52, %s53
      %p62 = scmp.eq.s32.totalorder %s21, 0
      %p63 = por %p61, %p62
      %p64 = scmp.ne.s32.totalorder %s52, %s53
      %p65 = scmp.eq.s32.totalorder %s22, 1
      %p66 = por %p64, %p65
      %p68 = scmp.ne.s32.totalorder %s53, %s67
      %p69 = scmp.eq.s32.totalorder %s22, 0
      %p70 = por %p68, %p69
      %s72 = sadd.s32 %s71, 1
      %p75 = scmp.eq.s32.totalorder %s16, 1
      %p76 = scmp.ne.s32.totalorder %s71, %s73
      %p77 = scmp.eq.s32.totalorder %s16, 0
      %p78 = por %p76, %p77
      %p79 = scmp.ne.s32.totalorder %s71, %s73
      %p80 = scmp.eq.s32.totalorder %s21, 1
      %p81 = por %p79, %p80
      %p82 = scmp.ne.s32.totalorder %s73, %s74
      %p83 = scmp.eq.s32.totalorder %s21, 0
      %p84 = por %p82, %p83
      %p85 = scmp.ne.s32.totalorder %s73, %s74
      %p86 = scmp.eq.s32.totalorder %s22, 1
      %p87 = por %p85, %p86
      %p89 = scmp.ne.s32.totalorder %s74, %s88
      %p90 = scmp.eq.s32.totalorder %s22, 0
      %p91 = por %p89, %p90
      %s93 = sadd.s32 %s92, 1
      %p96 = scmp.eq.s32.totalorder %s16, 1
      %p97 = scmp.ne.s32.totalorder %s92, %s94
      %p98 = scmp.eq.s32.totalorder %s16, 0
      %p99 = por %p97, %p98
      %p100 = scmp.ne.s32.totalorder %s92, %s94
      %p101 = scmp.eq.s32.totalorder %s21, 1
      %p102 = por %p100, %p101
      %p103 = scmp.ne.s32.totalorder %s94, %s95
      %p104 = scmp.eq.s32.totalorder %s21, 0
      %p105 = por %p103, %p104
      %p106 = scmp.ne.s32.totalorder %s94, %s95
      %p107 = scmp.eq.s32.totalorder %s22, 1
      %p108 = por %p106, %p107
      %p110 = scmp.ne.s32.totalorder %s95, %s109
      %p111 = scmp.eq.s32.totalorder %s22, 0
      %p112 = por %p110, %p111
      %s113 = ssub.s32 %s16, %s23
      %p114 = scmp.eq.s32.totalorder %s113, 0
      %s116 = sadd.s32 %s115, 1
      %s117 = scalar_select %p114, %s115, %s116
      %p120 = pneg %p114
      %p121 = scmp.eq.s32.totalorder %s16, 1
      %p122 = por %p120, %p121
      %p123 = scmp.ne.s32.totalorder %s115, %s118
      %p124 = scmp.eq.s32.totalorder %s16, 0
      %p125 = por %p123, %p124
      %p126 = scmp.ne.s32.totalorder %s115, %s118
      %p127 = scmp.eq.s32.totalorder %s21, 1
      %p128 = por %p126, %p127
      %p129 = scmp.ne.s32.totalorder %s118, %s119
      %p130 = scmp.eq.s32.totalorder %s21, 0
      %p131 = por %p129, %p130
      %p132 = scmp.ne.s32.totalorder %s118, %s119
      %p133 = scmp.eq.s32.totalorder %s22, 1
      %p134 = por %p132, %p133
      %p136 = scmp.ne.s32.totalorder %s119, %s135
      %p137 = scmp.eq.s32.totalorder %s22, 0
      %p138 = por %p136, %p137
      %s139 = ssub.s32 %s16, %s23
      %p140 = scmp.eq.s32.totalorder %s139, 0
      %s142 = sadd.s32 %s141, 1
      %s143 = scalar_select %p140, %s141, %s142
      %p146 = pneg %p140
      %p147 = scmp.eq.s32.totalorder %s16, 1
      %p148 = por %p146, %p147
      %p149 = scmp.ne.s32.totalorder %s141, %s144
      %p150 = scmp.eq.s32.totalorder %s16, 0
      %p151 = por %p149, %p150
      %p152 = scmp.ne.s32.totalorder %s141, %s144
      %p153 = scmp.eq.s32.totalorder %s21, 1
      %p154 = por %p152, %p153
      %p155 = scmp.ne.s32.totalorder %s144, %s145
      %p156 = scmp.eq.s32.totalorder %s21, 0
      %p157 = por %p155, %p156
      %p158 = scmp.ne.s32.totalorder %s144, %s145
      %p159 = scmp.eq.s32.totalorder %s22, 1
      %p160 = por %p158, %p159
      %p162 = scmp.ne.s32.totalorder %s145, %s161
      %p163 = scmp.eq.s32.totalorder %s22, 0
      %p164 = por %p162, %p163
      %s165 = ssub.s32 %s16, %s23
      %p166 = scmp.eq.s32.totalorder %s165, 0
      %s168 = sadd.s32 %s167, 1
      %s169 = scalar_select %p166, %s167, %s168
      %p172 = pneg %p166
      %p173 = scmp.eq.s32.totalorder %s16, 1
      %p174 = por %p172, %p173
      %p175 = scmp.ne.s32.totalorder %s167, %s170
      %p176 = scmp.eq.s32.totalorder %s16, 0
      %p177 = por %p175, %p176
      %p178 = scmp.ne.s32.totalorder %s167, %s170
      %p179 = scmp.eq.s32.totalorder %s21, 1
      %p180 = por %p178, %p179
      %p181 = scmp.ne.s32.totalorder %s170, %s171
      %p182 = scmp.eq.s32.totalorder %s21, 0
      %p183 = por %p181, %p182
      %p184 = scmp.ne.s32.totalorder %s170, %s171
      %p185 = scmp.eq.s32.totalorder %s22, 1
      %p186 = por %p184, %p185
      %p188 = scmp.ne.s32.totalorder %s171, %s187
      %p189 = scmp.eq.s32.totalorder %s22, 0
      %p190 = por %p188, %p189
      %p191 = scmp.le.s32.totalorder 1, %s16
      %p192 = scmp.lt.s32.totalorder %s16, 3
      %p193 = pnand %p191, %p192
      %p194 = pneg %p193
      // Predicated region
      $region9: #{tpu_custom_call.1} parent=5 // pred_check
        _
      $region10: #{tpu_custom_call.1} parent=5 // pred_check_branch
        %196 = sbr.rel (%p193) target = $region12
      $region11: #{tpu_custom_call.1} parent=5 // pred_region
        %s197 = ssub.s32 %s16, 1
        // Predicated region
        $region13: #{tpu_custom_call.1} parent=11 // pred_check
          %p198 = pneg %p63
        $region14: #{tpu_custom_call.1} parent=11 // pred_check_branch
          %200 = sbr.rel (%p198) target = $region16
        $region15: #{tpu_custom_call.1} parent=11 // pred_region
          _
        $region16: #{tpu_custom_call.1} parent=11 // pred_fallthru
          _
        // Predicated region
        $region17: #{tpu_custom_call.1} parent=11 // pred_check
          %p201 = pneg %p84
        $region18: #{tpu_custom_call.1} parent=11 // pred_check_branch
          %203 = sbr.rel (%p201) target = $region20
        $region19: #{tpu_custom_call.1} parent=11 // pred_region
          _
        $region20: #{tpu_custom_call.1} parent=11 // pred_fallthru
          _
        // Predicated region
        $region21: #{tpu_custom_call.1} parent=11 // pred_check
          %p204 = pneg %p105
        $region22: #{tpu_custom_call.1} parent=11 // pred_check_branch
          %206 = sbr.rel (%p204) target = $region24
        $region23: #{tpu_custom_call.1} parent=11 // pred_region
          _
        $region24: #{tpu_custom_call.1} parent=11 // pred_fallthru
          _
      $region12: #{tpu_custom_call.1} parent=5 // pred_fallthru
        _
      %p207 = scmp.lt.s32.totalorder %s16, 2
      // Predicated region
      $region25: #{tpu_custom_call.1} parent=5 // pred_check
        %p208 = pneg %p207
      $region26: #{tpu_custom_call.1} parent=5 // pred_check_branch
        %210 = sbr.rel (%p208) target = $region28
      $region27: #{tpu_custom_call.1} parent=5 // pred_region
        // Predicated region
        $region29: #{tpu_custom_call.1} parent=27 // pred_check
          %p211 = pneg %p36
        $region30: #{tpu_custom_call.1} parent=27 // pred_check_branch
          %213 = sbr.rel (%p211) target = $region32
        $region31: #{tpu_custom_call.1} parent=27 // pred_region
          %p214 = scmp.lt.s32.totalorder %s16, 1
          %s215 = scalar_select %p214, %s16, 1
          %s216 = smul.addr %s215, 10
          %s217 = smul.addr %s216, 4
          %s218 = scalar_lea.vmem %s0, %s217
        $region32: #{tpu_custom_call.1} parent=27 // pred_fallthru
          _
      $region28: #{tpu_custom_call.1} parent=5 // pred_fallthru
        _
      %p219 = scmp.le.s32.totalorder 1, %s16
      %p220 = scmp.lt.s32.totalorder %s16, 3
      %p221 = pnand %p219, %p220
      %p222 = pneg %p221
      // Predicated region
      $region33: #{tpu_custom_call.1} parent=5 // pred_check
        _
      $region34: #{tpu_custom_call.1} parent=5 // pred_check_branch
        %224 = sbr.rel (%p221) target = $region36
      $region35: #{tpu_custom_call.1} parent=5 // pred_region
        %s225 = ssub.s32 %s16, 1
        %p226 = scmp.lt.s32.totalorder %s21, 1
        %s227 = scalar_select %p226, %s21, 1
        %s228 = smul.addr %s227, 10
        %s229 = smul.addr %s228, 4
        %s230 = scalar_lea.vmem %s0, %s229
        %p231 = pneg %p42
        %p232 = pneg %p39
        %p233 = pneg %p63
        %p234 = pneg %p60
        %p235 = pneg %p84
        %p236 = pneg %p81
        %p237 = pneg %p105
        %p238 = pneg %p102
        %p239 = pneg %p131
        %p240 = pneg %p128
        %s241 = sand.u32 %s118, 1
        %s242 = scalar_lea.sflag [#allocation3], %s241
        %s243 = sand.u32 %s118, 1
        %s244 = smul.addr %s243, 64
        %s245 = scalar_lea.vmem [#allocation2], %s244
        %p246 = pneg %p157
        %p247 = pneg %p154
        %p248 = scmp.lt.s32.totalorder %s21, 1
        %s249 = scalar_select %p248, %s21, 1
        %s250 = smul.addr %s249, 8
        %s251 = scalar_lea.vmem %s5, %s250
        %p252 = pneg %p183
        %p253 = pneg %p180
        %p254 = scmp.lt.s32.totalorder %s21, 1
        %s255 = scalar_select %p254, %s21, 1
        %s256 = smul.addr %s255, 8
        %s257 = scalar_lea.vmem %s6, %s256
        %p258 = scmp.lt.s32.totalorder %s21, 1
        %s259 = scalar_select %p258, %s21, 1
        %s260 = smul.addr %s259, 10
        %s261 = smul.addr %s260, 4
        %s262 = scalar_lea.vmem %s0, %s261
        %p263 = scmp.lt.s32.totalorder %s21, 1
        %s264 = scalar_select %p263, %s21, 1
        %s265 = smul.addr %s264, 8
        %s266 = scalar_lea.vmem %s5, %s265
        %p267 = scmp.lt.s32.totalorder %s21, 1
        %s268 = scalar_select %p267, %s21, 1
        %s269 = smul.addr %s268, 8
        %s270 = scalar_lea.vmem %s6, %s269
        %v271 = vld [vmem:[%s262] sm:$0xff]
        %v272 = vld [vmem:[%s262 + $0x8] sm:$0xff]
        %v273 = vld [vmem:[%s262 + $0x10] sm:$0xff]
        %v274 = vld [vmem:[%s262 + $0x18] sm:$0xff]
        %v275 = vld [vmem:[%s1] sm:$0xff]
        %v276 = vld [vmem:[%s262 + $0x20] sm:$0xf]
        %s277 = scalar_lea.vmem %s1, 8
        %v278 = vld [vmem:[%s277] sm:$0xff]
        %v284 = vcombine.high %v271, %v271
        %v285 = vcombine.high %v272, %v272
        %v286 = vcombine.high %v273, %v273
        %v287 = vcombine.high %v274, %v274
        %288 = vrot.lane.b32.xlu0 %v271, 127
        %v289 = vpop.permute.xlu0 %288
        %290 = vrot.lane.b32.xlu0 %v284, 127
        %v291 = vpop.permute.xlu0 %290
        %292 = vrot.lane.b32.xlu0 %v272, 127
        %v293 = vpop.permute.xlu0 %292
        %294 = vrot.lane.b32.xlu0 %v285, 127
        %v295 = vpop.permute.xlu0 %294
        %296 = vrot.lane.b32.xlu0 %v273, 127
        %v297 = vpop.permute.xlu0 %296
        %298 = vrot.lane.b32.xlu0 %v286, 127
        %v299 = vpop.permute.xlu0 %298
        %300 = vrot.lane.b32.xlu0 %v274, 127
        %v301 = vpop.permute.xlu0 %300
        %302 = vrot.lane.b32.xlu0 %v287, 127
        %v303 = vpop.permute.xlu0 %302
        %304 = vrot.lane.b32.xlu0 %v276, 127
        %v305 = vpop.permute.xlu0 %304
        %vm306 = vcmask 1039360
        %v307 = vsel %vm306, %v289, %v291
        %v308 = vsel %vm306, %v291, %v293
        %v309 = vsel %vm306, %v293, %v295
        %v310 = vsel %vm306, %v295, %v297
        %v311 = vsel %vm306, %v297, %v299
        %v312 = vsel %vm306, %v299, %v301
        %v313 = vsel %vm306, %v301, %v303
        %v314 = vsel %vm306, %v303, %v305
        %vm315 = vcmask 31744
        %v317 = vsel %vm315, %v278, 0
        %vm319 = vcmask 1043456
        %v320 = vsel %vm319, %v307, 0
        %v322 = vsel %vm319, %v308, 0
        %v324 = vsel %vm319, %v309, 0
        %v326 = vsel %vm319, %v310, 0
        %v328 = vsel %vm319, %v311, 0
        %v330 = vsel %vm319, %v312, 0
        %v332 = vsel %vm319, %v313, 0
        %v334 = vsel %vm319, %v314, 0
        %336 = vmatprep.subr.mxu0 %v322
        %337 = vmatpush1.msra.mxu0 %v320
        %338 = vmatprep.subr.mxu0 0.0
        %339 = vmatpush1.msra.mxu0 0.0
        %340 = vmatprep.subr.mxu0 0.0
        %341 = vmatpush1.msra.mxu0 0.0
        %342 = vmatprep.subr.mxu0 0.0
        %343 = vmatpush1.msra.mxu0 0.0
        %344 = vmatprep.subr.mxu0 0.0
        %345 = vmatpush1.msra.mxu0 0.0
        %346 = vmatprep.subr.mxu0 0.0
        %347 = vmatpush1.msra.mxu0 0.0
        %348 = vmatprep.subr.mxu0 0.0
        %349 = vmatpush1.msra.mxu0 0.0
        %350 = vmatprep.subr.mxu0 0.0
        %351 = vmatpush1.msra.mxu0 0.0
        %352 = vmatprep.subr.mxu0 0.0
        %353 = vmatpush1.msra.mxu0 0.0
        %354 = vmatprep.subr.mxu0 0.0
        %355 = vmatpush1.msra.mxu0 0.0
        %356 = vmatprep.subr.mxu0 0.0
        %357 = vmatpush1.msra.mxu0 0.0
        %358 = vmatprep.subr.mxu0 0.0
        %359 = vmatpush1.msra.mxu0 0.0
        %360 = vmatprep.subr.mxu0 0.0
        %361 = vmatpush1.msra.mxu0 0.0
        %362 = vmatprep.subr.mxu0 0.0
        %363 = vmatpush1.msra.mxu0 0.0
        %364 = vmatprep.subr.mxu0 0.0
        %365 = vmatpush1.msra.mxu0 0.0
        %366 = vmatprep.subr.mxu0 0.0
        %367 = vmatpush1.msra.mxu0 0.0
        %368 = vmatprep.subr.mxu0 0.0
        %369 = vmatpush1.msra.mxu0 0.0
        %370 = vmatprep.subr.mxu0 0.0
        %371 = vmatpush1.msra.mxu0 0.0
        %372 = vmatprep.subr.mxu0 0.0
        %373 = vmatpush1.msra.mxu0 0.0
        %374 = vmatprep.subr.mxu0 0.0
        %375 = vmatpush1.msra.mxu0 0.0
        %376 = vmatprep.subr.mxu0 0.0
        %377 = vmatpush1.msra.mxu0 0.0
        %378 = vmatprep.subr.mxu0 0.0
        %379 = vmatpush1.msra.mxu0 0.0
        %380 = vmatprep.subr.mxu0 0.0
        %381 = vmatpush1.msra.mxu0 0.0
        %382 = vmatprep.subr.mxu0 0.0
        %383 = vmatpush1.msra.mxu0 0.0
        %384 = vmatprep.subr.mxu0 0.0
        %385 = vmatpush1.msra.mxu0 0.0
        %386 = vmatprep.subr.mxu0 0.0
        %387 = vmatpush1.msra.mxu0 0.0
        %388 = vmatprep.subr.mxu0 0.0
        %389 = vmatpush1.msra.mxu0 0.0
        %390 = vmatprep.subr.mxu0 0.0
        %391 = vmatpush1.msra.mxu0 0.0
        %392 = vmatprep.subr.mxu0 0.0
        %393 = vmatpush1.msra.mxu0 0.0
        %394 = vmatprep.subr.mxu0 0.0
        %395 = vmatpush1.msra.mxu0 0.0
        %396 = vmatprep.subr.mxu0 0.0
        %397 = vmatpush1.msra.mxu0 0.0
        %398 = vmatprep.subr.mxu0 0.0
        %399 = vmatpush1.msra.mxu0 0.0
        %400 = vmatprep.mubr.f32.mxu0 0.0
        %401 = vmatmul.mubr.f32.gmra.mrb[0].mxu0 %v317
        %v402 = vpop.f32.mrb[0].mxu0
        %v403 = vadd.f32 0.0, %v402
        %v404 = vpop.f32.mrb[0].mxu0
        %v405 = vadd.f32 0.0, %v404
        %406 = vdwg.mxu0
        %407 = vmatprep.subr.mxu0 %v326
        %408 = vmatpush1.msra.mxu0 %v324
        %409 = vmatprep.subr.mxu0 0.0
        %410 = vmatpush1.msra.mxu0 0.0
        %411 = vmatprep.subr.mxu0 0.0
        %412 = vmatpush1.msra.mxu0 0.0
        %413 = vmatprep.subr.mxu0 0.0
        %414 = vmatpush1.msra.mxu0 0.0
        %415 = vmatprep.subr.mxu0 0.0
        %416 = vmatpush1.msra.mxu0 0.0
        %417 = vmatprep.subr.mxu0 0.0
        %418 = vmatpush1.msra.mxu0 0.0
        %419 = vmatprep.subr.mxu0 0.0
        %420 = vmatpush1.msra.mxu0 0.0
        %421 = vmatprep.subr.mxu0 0.0
        %422 = vmatpush1.msra.mxu0 0.0
        %423 = vmatprep.subr.mxu0 0.0
        %424 = vmatpush1.msra.mxu0 0.0
        %425 = vmatprep.subr.mxu0 0.0
        %426 = vmatpush1.msra.mxu0 0.0
        %427 = vmatprep.subr.mxu0 0.0
        %428 = vmatpush1.msra.mxu0 0.0
        %429 = vmatprep.subr.mxu0 0.0
        %430 = vmatpush1.msra.mxu0 0.0
        %431 = vmatprep.subr.mxu0 0.0
        %432 = vmatpush1.msra.mxu0 0.0
        %433 = vmatprep.subr.mxu0 0.0
        %434 = vmatpush1.msra.mxu0 0.0
        %435 = vmatprep.subr.mxu0 0.0
        %436 = vmatpush1.msra.mxu0 0.0
        %437 = vmatprep.subr.mxu0 0.0
        %438 = vmatpush1.msra.mxu0 0.0
        %439 = vmatprep.subr.mxu0 0.0
        %440 = vmatpush1.msra.mxu0 0.0
        %441 = vmatprep.subr.mxu0 0.0
        %442 = vmatpush1.msra.mxu0 0.0
        %443 = vmatprep.subr.mxu0 0.0
        %444 = vmatpush1.msra.mxu0 0.0
        %445 = vmatprep.subr.mxu0 0.0
        %446 = vmatpush1.msra.mxu0 0.0
        %447 = vmatprep.subr.mxu0 0.0
        %448 = vmatpush1.msra.mxu0 0.0
        %449 = vmatprep.subr.mxu0 0.0
        %450 = vmatpush1.msra.mxu0 0.0
        %451 = vmatprep.subr.mxu0 0.0
        %452 = vmatpush1.msra.mxu0 0.0
        %453 = vmatprep.subr.mxu0 0.0
        %454 = vmatpush1.msra.mxu0 0.0
        %455 = vmatprep.subr.mxu0 0.0
        %456 = vmatpush1.msra.mxu0 0.0
        %457 = vmatprep.subr.mxu0 0.0
        %458 = vmatpush1.msra.mxu0 0.0
        %459 = vmatprep.subr.mxu0 0.0
        %460 = vmatpush1.msra.mxu0 0.0
        %461 = vmatprep.subr.mxu0 0.0
        %462 = vmatpush1.msra.mxu0 0.0
        %463 = vmatprep.subr.mxu0 0.0
        %464 = vmatpush1.msra.mxu0 0.0
        %465 = vmatprep.subr.mxu0 0.0
        %466 = vmatpush1.msra.mxu0 0.0
        %467 = vmatprep.subr.mxu0 0.0
        %468 = vmatpush1.msra.mxu0 0.0
        %469 = vmatprep.subr.mxu0 0.0
        %470 = vmatpush1.msra.mxu0 0.0
        %471 = vmatprep.mubr.f32.mxu0 0.0
        %472 = vmatmul.mubr.f32.gmra.mrb[0].mxu0 %v317
        %v473 = vpop.f32.mrb[0].mxu0
        %v474 = vadd.f32 0.0, %v473
        %v475 = vpop.f32.mrb[0].mxu0
        %v476 = vadd.f32 0.0, %v475
        %477 = vdwg.mxu0
        %478 = vmatprep.subr.mxu0 %v330
        %479 = vmatpush1.msra.mxu0 %v328
        %480 = vmatprep.subr.mxu0 0.0
        %481 = vmatpush1.msra.mxu0 0.0
        %482 = vmatprep.subr.mxu0 0.0
        %483 = vmatpush1.msra.mxu0 0.0
        %484 = vmatprep.subr.mxu0 0.0
        %485 = vmatpush1.msra.mxu0 0.0
        %486 = vmatprep.subr.mxu0 0.0
        %487 = vmatpush1.msra.mxu0 0.0
        %488 = vmatprep.subr.mxu0 0.0
        %489 = vmatpush1.msra.mxu0 0.0
        %490 = vmatprep.subr.mxu0 0.0
        %491 = vmatpush1.msra.mxu0 0.0
        %492 = vmatprep.subr.mxu0 0.0
        %493 = vmatpush1.msra.mxu0 0.0
        %494 = vmatprep.subr.mxu0 0.0
        %495 = vmatpush1.msra.mxu0 0.0
        %496 = vmatprep.subr.mxu0 0.0
        %497 = vmatpush1.msra.mxu0 0.0
        %498 = vmatprep.subr.mxu0 0.0
        %499 = vmatpush1.msra.mxu0 0.0
        %500 = vmatprep.subr.mxu0 0.0
        %501 = vmatpush1.msra.mxu0 0.0
        %502 = vmatprep.subr.mxu0 0.0
        %503 = vmatpush1.msra.mxu0 0.0
        %504 = vmatprep.subr.mxu0 0.0
        %505 = vmatpush1.msra.mxu0 0.0
        %506 = vmatprep.subr.mxu0 0.0
        %507 = vmatpush1.msra.mxu0 0.0
        %508 = vmatprep.subr.mxu0 0.0
        %509 = vmatpush1.msra.mxu0 0.0
        %510 = vmatprep.subr.mxu0 0.0
        %511 = vmatpush1.msra.mxu0 0.0
        %512 = vmatprep.subr.mxu0 0.0
        %513 = vmatpush1.msra.mxu0 0.0
        %514 = vmatprep.subr.mxu0 0.0
        %515 = vmatpush1.msra.mxu0 0.0
        %516 = vmatprep.subr.mxu0 0.0
        %517 = vmatpush1.msra.mxu0 0.0
        %518 = vmatprep.subr.mxu0 0.0
        %519 = vmatpush1.msra.mxu0 0.0
        %520 = vmatprep.subr.mxu0 0.0
        %521 = vmatpush1.msra.mxu0 0.0
        %522 = vmatprep.subr.mxu0 0.0
        %523 = vmatpush1.msra.mxu0 0.0
        %524 = vmatprep.subr.mxu0 0.0
        %525 = vmatpush1.msra.mxu0 0.0
        %526 = vmatprep.subr.mxu0 0.0
        %527 = vmatpush1.msra.mxu0 0.0
        %528 = vmatprep.subr.mxu0 0.0
        %529 = vmatpush1.msra.mxu0 0.0
        %530 = vmatprep.subr.mxu0 0.0
        %531 = vmatpush1.msra.mxu0 0.0
        %532 = vmatprep.subr.mxu0 0.0
        %533 = vmatpush1.msra.mxu0 0.0
        %534 = vmatprep.subr.mxu0 0.0
        %535 = vmatpush1.msra.mxu0 0.0
        %536 = vmatprep.subr.mxu0 0.0
        %537 = vmatpush1.msra.mxu0 0.0
        %538 = vmatprep.subr.mxu0 0.0
        %539 = vmatpush1.msra.mxu0 0.0
        %540 = vmatprep.subr.mxu0 0.0
        %541 = vmatpush1.msra.mxu0 0.0
        %542 = vmatprep.mubr.f32.mxu0 0.0
        %543 = vmatmul.mubr.f32.gmra.mrb[0].mxu0 %v317
        %v544 = vpop.f32.mrb[0].mxu0
        %v545 = vadd.f32 0.0, %v544
        %v546 = vpop.f32.mrb[0].mxu0
        %v547 = vadd.f32 0.0, %v546
        %548 = vdwg.mxu0
        %549 = vmatprep.subr.mxu0 %v334
        %550 = vmatpush1.msra.mxu0 %v332
        %551 = vmatprep.subr.mxu0 0.0
        %552 = vmatpush1.msra.mxu0 0.0
        %553 = vmatprep.subr.mxu0 0.0
        %554 = vmatpush1.msra.mxu0 0.0
        %555 = vmatprep.subr.mxu0 0.0
        %556 = vmatpush1.msra.mxu0 0.0
        %557 = vmatprep.subr.mxu0 0.0
        %558 = vmatpush1.msra.mxu0 0.0
        %559 = vmatprep.subr.mxu0 0.0
        %560 = vmatpush1.msra.mxu0 0.0
        %561 = vmatprep.subr.mxu0 0.0
        %562 = vmatpush1.msra.mxu0 0.0
        %563 = vmatprep.subr.mxu0 0.0
        %564 = vmatpush1.msra.mxu0 0.0
        %565 = vmatprep.subr.mxu0 0.0
        %566 = vmatpush1.msra.mxu0 0.0
        %567 = vmatprep.subr.mxu0 0.0
        %568 = vmatpush1.msra.mxu0 0.0
        %569 = vmatprep.subr.mxu0 0.0
        %570 = vmatpush1.msra.mxu0 0.0
        %571 = vmatprep.subr.mxu0 0.0
        %572 = vmatpush1.msra.mxu0 0.0
        %573 = vmatprep.subr.mxu0 0.0
        %574 = vmatpush1.msra.mxu0 0.0
        %575 = vmatprep.subr.mxu0 0.0
        %576 = vmatpush1.msra.mxu0 0.0
        %577 = vmatprep.subr.mxu0 0.0
        %578 = vmatpush1.msra.mxu0 0.0
        %579 = vmatprep.subr.mxu0 0.0
        %580 = vmatpush1.msra.mxu0 0.0
        %581 = vmatprep.subr.mxu0 0.0
        %582 = vmatpush1.msra.mxu0 0.0
        %583 = vmatprep.subr.mxu0 0.0
        %584 = vmatpush1.msra.mxu0 0.0
        %585 = vmatprep.subr.mxu0 0.0
        %586 = vmatpush1.msra.mxu0 0.0
        %587 = vmatprep.subr.mxu0 0.0
        %588 = vmatpush1.msra.mxu0 0.0
        %589 = vmatprep.subr.mxu0 0.0
        %590 = vmatpush1.msra.mxu0 0.0
        %591 = vmatprep.subr.mxu0 0.0
        %592 = vmatpush1.msra.mxu0 0.0
        %593 = vmatprep.subr.mxu0 0.0
        %594 = vmatpush1.msra.mxu0 0.0
        %595 = vmatprep.subr.mxu0 0.0
        %596 = vmatpush1.msra.mxu0 0.0
        %597 = vmatprep.subr.mxu0 0.0
        %598 = vmatpush1.msra.mxu0 0.0
        %599 = vmatprep.subr.mxu0 0.0
        %600 = vmatpush1.msra.mxu0 0.0
        %601 = vmatprep.subr.mxu0 0.0
        %602 = vmatpush1.msra.mxu0 0.0
        %603 = vmatprep.subr.mxu0 0.0
        %604 = vmatpush1.msra.mxu0 0.0
        %605 = vmatprep.subr.mxu0 0.0
        %606 = vmatpush1.msra.mxu0 0.0
        %607 = vmatprep.subr.mxu0 0.0
        %608 = vmatpush1.msra.mxu0 0.0
        %609 = vmatprep.subr.mxu0 0.0
        %610 = vmatpush1.msra.mxu0 0.0
        %611 = vmatprep.subr.mxu0 0.0
        %612 = vmatpush1.msra.mxu0 0.0
        %613 = vmatprep.mubr.f32.mxu0 0.0
        %614 = vmatmul.mubr.f32.gmra.mrb[0].mxu0 %v317
        %v615 = vpop.f32.mrb[0].mxu0
        %v616 = vadd.f32 0.0, %v615
        %v617 = vpop.f32.mrb[0].mxu0
        %v618 = vadd.f32 0.0, %v617
        %619 = vdwg.mxu0
        %v621 = vsel %vm315, %v275, 0
        %v623 = vsel %vm319, %v271, 0
        %v625 = vsel %vm319, %v284, 0
        %v627 = vsel %vm319, %v272, 0
        %v629 = vsel %vm319, %v285, 0
        %v631 = vsel %vm319, %v273, 0
        %v633 = vsel %vm319, %v286, 0
        %v635 = vsel %vm319, %v274, 0
        %v637 = vsel %vm319, %v287, 0
        %639 = vmatprep.subr.mxu0 %v625
        %640 = vmatpush1.msra.mxu0 %v623
        %641 = vmatprep.subr.mxu0 0.0
        %642 = vmatpush1.msra.mxu0 0.0
        %643 = vmatprep.subr.mxu0 0.0
        %644 = vmatpush1.msra.mxu0 0.0
        %645 = vmatprep.subr.mxu0 0.0
        %646 = vmatpush1.msra.mxu0 0.0
        %647 = vmatprep.subr.mxu0 0.0
        %648 = vmatpush1.msra.mxu0 0.0
        %649 = vmatprep.subr.mxu0 0.0
        %650 = vmatpush1.msra.mxu0 0.0
        %651 = vmatprep.subr.mxu0 0.0
        %652 = vmatpush1.msra.mxu0 0.0
        %653 = vmatprep.subr.mxu0 0.0
        %654 = vmatpush1.msra.mxu0 0.0
        %655 = vmatprep.subr.mxu0 0.0
        %656 = vmatpush1.msra.mxu0 0.0
        %657 = vmatprep.subr.mxu0 0.0
        %658 = vmatpush1.msra.mxu0 0.0
        %659 = vmatprep.subr.mxu0 0.0
        %660 = vmatpush1.msra.mxu0 0.0
        %661 = vmatprep.subr.mxu0 0.0
        %662 = vmatpush1.msra.mxu0 0.0
        %663 = vmatprep.subr.mxu0 0.0
        %664 = vmatpush1.msra.mxu0 0.0
        %665 = vmatprep.subr.mxu0 0.0
        %666 = vmatpush1.msra.mxu0 0.0
        %667 = vmatprep.subr.mxu0 0.0
        %668 = vmatpush1.msra.mxu0 0.0
        %669 = vmatprep.subr.mxu0 0.0
        %670 = vmatpush1.msra.mxu0 0.0
        %671 = vmatprep.subr.mxu0 0.0
        %672 = vmatpush1.msra.mxu0 0.0
        %673 = vmatprep.subr.mxu0 0.0
        %674 = vmatpush1.msra.mxu0 0.0
        %675 = vmatprep.subr.mxu0 0.0
        %676 = vmatpush1.msra.mxu0 0.0
        %677 = vmatprep.subr.mxu0 0.0
        %678 = vmatpush1.msra.mxu0 0.0
        %679 = vmatprep.subr.mxu0 0.0
        %680 = vmatpush1.msra.mxu0 0.0
        %681 = vmatprep.subr.mxu0 0.0
        %682 = vmatpush1.msra.mxu0 0.0
        %683 = vmatprep.subr.mxu0 0.0
        %684 = vmatpush1.msra.mxu0 0.0
        %685 = vmatprep.subr.mxu0 0.0
        %686 = vmatpush1.msra.mxu0 0.0
        %687 = vmatprep.subr.mxu0 0.0
        %688 = vmatpush1.msra.mxu0 0.0
        %689 = vmatprep.subr.mxu0 0.0
        %690 = vmatpush1.msra.mxu0 0.0
        %691 = vmatprep.subr.mxu0 0.0
        %692 = vmatpush1.msra.mxu0 0.0
        %693 = vmatprep.subr.mxu0 0.0
        %694 = vmatpush1.msra.mxu0 0.0
        %695 = vmatprep.subr.mxu0 0.0
        %696 = vmatpush1.msra.mxu0 0.0
        %697 = vmatprep.subr.mxu0 0.0
        %698 = vmatpush1.msra.mxu0 0.0
        %699 = vmatprep.subr.mxu0 0.0
        %700 = vmatpush1.msra.mxu0 0.0
        %701 = vmatprep.subr.mxu0 0.0
        %702 = vmatpush1.msra.mxu0 0.0
        %703 = vmatprep.mubr.f32.mxu0 0.0
        %704 = vmatmul.mubr.f32.gmra.mrb[0].mxu0 %v621
        %v705 = vpop.f32.mrb[0].mxu0
        %v706 = vadd.f32 %v403, %v705
        %v707 = vpop.f32.mrb[0].mxu0
        %v708 = vadd.f32 %v405, %v707
        %709 = vdwg.mxu0
        %710 = vmatprep.subr.mxu0 %v629
        %711 = vmatpush1.msra.mxu0 %v627
        %712 = vmatprep.subr.mxu0 0.0
        %713 = vmatpush1.msra.mxu0 0.0
        %714 = vmatprep.subr.mxu0 0.0
        %715 = vmatpush1.msra.mxu0 0.0
        %716 = vmatprep.subr.mxu0 0.0
        %717 = vmatpush1.msra.mxu0 0.0
        %718 = vmatprep.subr.mxu0 0.0
        %719 = vmatpush1.msra.mxu0 0.0
        %720 = vmatprep.subr.mxu0 0.0
        %721 = vmatpush1.msra.mxu0 0.0
        %722 = vmatprep.subr.mxu0 0.0
        %723 = vmatpush1.msra.mxu0 0.0
        %724 = vmatprep.subr.mxu0 0.0
        %725 = vmatpush1.msra.mxu0 0.0
        %726 = vmatprep.subr.mxu0 0.0
        %727 = vmatpush1.msra.mxu0 0.0
        %728 = vmatprep.subr.mxu0 0.0
        %729 = vmatpush1.msra.mxu0 0.0
        %730 = vmatprep.subr.mxu0 0.0
        %731 = vmatpush1.msra.mxu0 0.0
        %732 = vmatprep.subr.mxu0 0.0
        %733 = vmatpush1.msra.mxu0 0.0
        %734 = vmatprep.subr.mxu0 0.0
        %735 = vmatpush1.msra.mxu0 0.0
        %736 = vmatprep.subr.mxu0 0.0
        %737 = vmatpush1.msra.mxu0 0.0
        %738 = vmatprep.subr.mxu0 0.0
        %739 = vmatpush1.msra.mxu0 0.0
        %740 = vmatprep.subr.mxu0 0.0
        %741 = vmatpush1.msra.mxu0 0.0
        %742 = vmatprep.subr.mxu0 0.0
        %743 = vmatpush1.msra.mxu0 0.0
        %744 = vmatprep.subr.mxu0 0.0
        %745 = vmatpush1.msra.mxu0 0.0
        %746 = vmatprep.subr.mxu0 0.0
        %747 = vmatpush1.msra.mxu0 0.0
        %748 = vmatprep.subr.mxu0 0.0
        %749 = vmatpush1.msra.mxu0 0.0
        %750 = vmatprep.subr.mxu0 0.0
        %751 = vmatpush1.msra.mxu0 0.0
        %752 = vmatprep.subr.mxu0 0.0
        %753 = vmatpush1.msra.mxu0 0.0
        %754 = vmatprep.subr.mxu0 0.0
        %755 = vmatpush1.msra.mxu0 0.0
        %756 = vmatprep.subr.mxu0 0.0
        %757 = vmatpush1.msra.mxu0 0.0
        %758 = vmatprep.subr.mxu0 0.0
        %759 = vmatpush1.msra.mxu0 0.0
        %760 = vmatprep.subr.mxu0 0.0
        %761 = vmatpush1.msra.mxu0 0.0
        %762 = vmatprep.subr.mxu0 0.0
        %763 = vmatpush1.msra.mxu0 0.0
        %764 = vmatprep.subr.mxu0 0.0
        %765 = vmatpush1.msra.mxu0 0.0
        %766 = vmatprep.subr.mxu0 0.0
        %767 = vmatpush1.msra.mxu0 0.0
        %768 = vmatprep.subr.mxu0 0.0
        %769 = vmatpush1.msra.mxu0 0.0
        %770 = vmatprep.subr.mxu0 0.0
        %771 = vmatpush1.msra.mxu0 0.0
        %772 = vmatprep.subr.mxu0 0.0
        %773 = vmatpush1.msra.mxu0 0.0
        %774 = vmatprep.mubr.f32.mxu0 0.0
        %775 = vmatmul.mubr.f32.gmra.mrb[0].mxu0 %v621
        %v776 = vpop.f32.mrb[0].mxu0
        %v777 = vadd.f32 %v474, %v776
        %v778 = vpop.f32.mrb[0].mxu0
        %v779 = vadd.f32 %v476, %v778
        %780 = vdwg.mxu0
        %781 = vmatprep.subr.mxu0 %v633
        %782 = vmatpush1.msra.mxu0 %v631
        %783 = vmatprep.subr.mxu0 0.0
        %784 = vmatpush1.msra.mxu0 0.0
        %785 = vmatprep.subr.mxu0 0.0
        %786 = vmatpush1.msra.mxu0 0.0
        %787 = vmatprep.subr.mxu0 0.0
        %788 = vmatpush1.msra.mxu0 0.0
        %789 = vmatprep.subr.mxu0 0.0
        %790 = vmatpush1.msra.mxu0 0.0
        %791 = vmatprep.subr.mxu0 0.0
        %792 = vmatpush1.msra.mxu0 0.0
        %793 = vmatprep.subr.mxu0 0.0
        %794 = vmatpush1.msra.mxu0 0.0
        %795 = vmatprep.subr.mxu0 0.0
        %796 = vmatpush1.msra.mxu0 0.0
        %797 = vmatprep.subr.mxu0 0.0
        %798 = vmatpush1.msra.mxu0 0.0
        %799 = vmatprep.subr.mxu0 0.0
        %800 = vmatpush1.msra.mxu0 0.0
        %801 = vmatprep.subr.mxu0 0.0
        %802 = vmatpush1.msra.mxu0 0.0
        %803 = vmatprep.subr.mxu0 0.0
        %804 = vmatpush1.msra.mxu0 0.0
        %805 = vmatprep.subr.mxu0 0.0
        %806 = vmatpush1.msra.mxu0 0.0
        %807 = vmatprep.subr.mxu0 0.0
        %808 = vmatpush1.msra.mxu0 0.0
        %809 = vmatprep.subr.mxu0 0.0
        %810 = vmatpush1.msra.mxu0 0.0
        %811 = vmatprep.subr.mxu0 0.0
        %812 = vmatpush1.msra.mxu0 0.0
        %813 = vmatprep.subr.mxu0 0.0
        %814 = vmatpush1.msra.mxu0 0.0
        %815 = vmatprep.subr.mxu0 0.0
        %816 = vmatpush1.msra.mxu0 0.0
        %817 = vmatprep.subr.mxu0 0.0
        %818 = vmatpush1.msra.mxu0 0.0
        %819 = vmatprep.subr.mxu0 0.0
        %820 = vmatpush1.msra.mxu0 0.0
        %821 = vmatprep.subr.mxu0 0.0
        %822 = vmatpush1.msra.mxu0 0.0
        %823 = vmatprep.subr.mxu0 0.0
        %824 = vmatpush1.msra.mxu0 0.0
        %825 = vmatprep.subr.mxu0 0.0
        %826 = vmatpush1.msra.mxu0 0.0
        %827 = vmatprep.subr.mxu0 0.0
        %828 = vmatpush1.msra.mxu0 0.0
        %829 = vmatprep.subr.mxu0 0.0
        %830 = vmatpush1.msra.mxu0 0.0
        %831 = vmatprep.subr.mxu0 0.0
        %832 = vmatpush1.msra.mxu0 0.0
        %833 = vmatprep.subr.mxu0 0.0
        %834 = vmatpush1.msra.mxu0 0.0
        %835 = vmatprep.subr.mxu0 0.0
        %836 = vmatpush1.msra.mxu0 0.0
        %837 = vmatprep.subr.mxu0 0.0
        %838 = vmatpush1.msra.mxu0 0.0
        %839 = vmatprep.subr.mxu0 0.0
        %840 = vmatpush1.msra.mxu0 0.0
        %841 = vmatprep.subr.mxu0 0.0
        %842 = vmatpush1.msra.mxu0 0.0
        %843 = vmatprep.subr.mxu0 0.0
        %844 = vmatpush1.msra.mxu0 0.0
        %845 = vmatprep.mubr.f32.mxu0 0.0
        %846 = vmatmul.mubr.f32.gmra.mrb[0].mxu0 %v621
        %v847 = vpop.f32.mrb[0].mxu0
        %v848 = vadd.f32 %v545, %v847
        %v849 = vpop.f32.mrb[0].mxu0
        %v850 = vadd.f32 %v547, %v849
        %851 = vdwg.mxu0
        %852 = vmatprep.subr.mxu0 %v637
        %853 = vmatpush1.msra.mxu0 %v635
        %854 = vmatprep.subr.mxu0 0.0
        %855 = vmatpush1.msra.mxu0 0.0
        %856 = vmatprep.subr.mxu0 0.0
        %857 = vmatpush1.msra.mxu0 0.0
        %858 = vmatprep.subr.mxu0 0.0
        %859 = vmatpush1.msra.mxu0 0.0
        %860 = vmatprep.subr.mxu0 0.0
        %861 = vmatpush1.msra.mxu0 0.0
        %862 = vmatprep.subr.mxu0 0.0
        %863 = vmatpush1.msra.mxu0 0.0
        %864 = vmatprep.subr.mxu0 0.0
        %865 = vmatpush1.msra.mxu0 0.0
        %866 = vmatprep.subr.mxu0 0.0
        %867 = vmatpush1.msra.mxu0 0.0
        %868 = vmatprep.subr.mxu0 0.0
        %869 = vmatpush1.msra.mxu0 0.0
        %870 = vmatprep.subr.mxu0 0.0
        %871 = vmatpush1.msra.mxu0 0.0
        %872 = vmatprep.subr.mxu0 0.0
        %873 = vmatpush1.msra.mxu0 0.0
        %874 = vmatprep.subr.mxu0 0.0
        %875 = vmatpush1.msra.mxu0 0.0
        %876 = vmatprep.subr.mxu0 0.0
        %877 = vmatpush1.msra.mxu0 0.0
        %878 = vmatprep.subr.mxu0 0.0
        %879 = vmatpush1.msra.mxu0 0.0
        %880 = vmatprep.subr.mxu0 0.0
        %881 = vmatpush1.msra.mxu0 0.0
        %882 = vmatprep.subr.mxu0 0.0
        %883 = vmatpush1.msra.mxu0 0.0
        %884 = vmatprep.subr.mxu0 0.0
        %885 = vmatpush1.msra.mxu0 0.0
        %886 = vmatprep.subr.mxu0 0.0
        %887 = vmatpush1.msra.mxu0 0.0
        %888 = vmatprep.subr.mxu0 0.0
        %889 = vmatpush1.msra.mxu0 0.0
        %890 = vmatprep.subr.mxu0 0.0
        %891 = vmatpush1.msra.mxu0 0.0
        %892 = vmatprep.subr.mxu0 0.0
        %893 = vmatpush1.msra.mxu0 0.0
        %894 = vmatprep.subr.mxu0 0.0
        %895 = vmatpush1.msra.mxu0 0.0
        %896 = vmatprep.subr.mxu0 0.0
        %897 = vmatpush1.msra.mxu0 0.0
        %898 = vmatprep.subr.mxu0 0.0
        %899 = vmatpush1.msra.mxu0 0.0
        %900 = vmatprep.subr.mxu0 0.0
        %901 = vmatpush1.msra.mxu0 0.0
        %902 = vmatprep.subr.mxu0 0.0
        %903 = vmatpush1.msra.mxu0 0.0
        %904 = vmatprep.subr.mxu0 0.0
        %905 = vmatpush1.msra.mxu0 0.0
        %906 = vmatprep.subr.mxu0 0.0
        %907 = vmatpush1.msra.mxu0 0.0
        %908 = vmatprep.subr.mxu0 0.0
        %909 = vmatpush1.msra.mxu0 0.0
        %910 = vmatprep.subr.mxu0 0.0
        %911 = vmatpush1.msra.mxu0 0.0
        %912 = vmatprep.subr.mxu0 0.0
        %913 = vmatpush1.msra.mxu0 0.0
        %914 = vmatprep.subr.mxu0 0.0
        %915 = vmatpush1.msra.mxu0 0.0
        %916 = vmatprep.mubr.f32.mxu0 0.0
        %917 = vmatmul.mubr.f32.gmra.mrb[0].mxu0 %v621
        %v918 = vpop.f32.mrb[0].mxu0
        %v919 = vadd.f32 %v616, %v918
        %v920 = vpop.f32.mrb[0].mxu0
        %v921 = vadd.f32 %v618, %v920
        %922 = vdwg.mxu0
        %v923 = vld [vmem:[%s262] sm:$0xff]
        %v924 = vld [vmem:[%s262 + $0x8] sm:$0xff]
        %v925 = vld [vmem:[%s262 + $0x10] sm:$0xff]
        %v926 = vld [vmem:[%s262 + $0x18] sm:$0xff]
        %v927 = vld [vmem:[%s262 + $0x20] sm:$0xf]
        %s928 = scalar_lea.vmem %s1, 16
        %v929 = vld [vmem:[%s928] sm:$0xff]
        %v935 = vcombine.high %v923, %v923
        %v936 = vcombine.high %v924, %v924
        %v937 = vcombine.high %v925, %v925
        %v938 = vcombine.high %v926, %v926
        %939 = vrot.lane.b32.xlu0 %v923, 126
        %v940 = vpop.permute.xlu0 %939
        %941 = vrot.lane.b32.xlu0 %v935, 126
        %v942 = vpop.permute.xlu0 %941
        %943 = vrot.lane.b32.xlu0 %v924, 126
        %v944 = vpop.permute.xlu0 %943
        %945 = vrot.lane.b32.xlu0 %v936, 126
        %v946 = vpop.permute.xlu0 %945
        %947 = vrot.lane.b32.xlu0 %v925, 126
        %v948 = vpop.permute.xlu0 %947
        %949 = vrot.lane.b32.xlu0 %v937, 126
        %v950 = vpop.permute.xlu0 %949
        %951 = vrot.lane.b32.xlu0 %v926, 126
        %v952 = vpop.permute.xlu0 %951
        %953 = vrot.lane.b32.xlu0 %v938, 126
        %v954 = vpop.permute.xlu0 %953
        %955 = vrot.lane.b32.xlu0 %v927, 126
        %v956 = vpop.permute.xlu0 %955
        %vm957 = vcmask 1031168
        %v958 = vsel %vm957, %v940, %v942
        %v959 = vsel %vm957, %v942, %v944
        %v960 = vsel %vm957, %v944, %v946
        %v961 = vsel %vm957, %v946, %v948
        %v962 = vsel %vm957, %v948, %v950
        %v963 = vsel %vm957, %v950, %v952
        %v964 = vsel %vm957, %v952, %v954
        %v965 = vsel %vm957, %v954, %v956
        %v967 = vsel %vm315, %v929, 0
        %v969 = vsel %vm319, %v958, 0
        %v971 = vsel %vm319, %v959, 0
        %v973 = vsel %vm319, %v960, 0
        %v975 = vsel %vm319, %v961, 0
        %v977 = vsel %vm319, %v962, 0
        %v979 = vsel %vm319, %v963, 0
        %v981 = vsel %vm319, %v964, 0
        %v983 = vsel %vm319, %v965, 0
        %985 = vmatprep.subr.mxu0 %v971
        %986 = vmatpush1.msra.mxu0 %v969
        %987 = vmatprep.subr.mxu0 0.0
        %988 = vmatpush1.msra.mxu0 0.0
        %989 = vmatprep.subr.mxu0 0.0
        %990 = vmatpush1.msra.mxu0 0.0
        %991 = vmatprep.subr.mxu0 0.0
        %992 = vmatpush1.msra.mxu0 0.0
        %993 = vmatprep.subr.mxu0 0.0
        %994 = vmatpush1.msra.mxu0 0.0
        %995 = vmatprep.subr.mxu0 0.0
        %996 = vmatpush1.msra.mxu0 0.0
        %997 = vmatprep.subr.mxu0 0.0
        %998 = vmatpush1.msra.mxu0 0.0
        %999 = vmatprep.subr.mxu0 0.0
        %1000 = vmatpush1.msra.mxu0 0.0
        %1001 = vmatprep.subr.mxu0 0.0
        %1002 = vmatpush1.msra.mxu0 0.0
        %1003 = vmatprep.subr.mxu0 0.0
        %1004 = vmatpush1.msra.mxu0 0.0
        %1005 = vmatprep.subr.mxu0 0.0
        %1006 = vmatpush1.msra.mxu0 0.0
        %1007 = vmatprep.subr.mxu0 0.0
        %1008 = vmatpush1.msra.mxu0 0.0
        %1009 = vmatprep.subr.mxu0 0.0
        %1010 = vmatpush1.msra.mxu0 0.0
        %1011 = vmatprep.subr.mxu0 0.0
        %1012 = vmatpush1.msra.mxu0 0.0
        %1013 = vmatprep.subr.mxu0 0.0
        %1014 = vmatpush1.msra.mxu0 0.0
        %1015 = vmatprep.subr.mxu0 0.0
        %1016 = vmatpush1.msra.mxu0 0.0
        %1017 = vmatprep.subr.mxu0 0.0
        %1018 = vmatpush1.msra.mxu0 0.0
        %1019 = vmatprep.subr.mxu0 0.0
        %1020 = vmatpush1.msra.mxu0 0.0
        %1021 = vmatprep.subr.mxu0 0.0
        %1022 = vmatpush1.msra.mxu0 0.0
        %1023 = vmatprep.subr.mxu0 0.0
        %1024 = vmatpush1.msra.mxu0 0.0
        %1025 = vmatprep.subr.mxu0 0.0
        %1026 = vmatpush1.msra.mxu0 0.0
        %1027 = vmatprep.subr.mxu0 0.0
        %1028 = vmatpush1.msra.mxu0 0.0
        %1029 = vmatprep.subr.mxu0 0.0
        %1030 = vmatpush1.msra.mxu0 0.0
        %1031 = vmatprep.subr.mxu0 0.0
        %1032 = vmatpush1.msra.mxu0 0.0
        %1033 = vmatprep.subr.mxu0 0.0
        %1034 = vmatpush1.msra.mxu0 0.0
        %1035 = vmatprep.subr.mxu0 0.0
        %1036 = vmatpush1.msra.mxu0 0.0
        %1037 = vmatprep.subr.mxu0 0.0
        %1038 = vmatpush1.msra.mxu0 0.0
        %1039 = vmatprep.subr.mxu0 0.0
        %1040 = vmatpush1.msra.mxu0 0.0
        %1041 = vmatprep.subr.mxu0 0.0
        %1042 = vmatpush1.msra.mxu0 0.0
        %1043 = vmatprep.subr.mxu0 0.0
        %1044 = vmatpush1.msra.mxu0 0.0
        %1045 = vmatprep.subr.mxu0 0.0
        %1046 = vmatpush1.msra.mxu0 0.0
        %1047 = vmatprep.subr.mxu0 0.0
        %1048 = vmatpush1.msra.mxu0 0.0
        %1049 = vmatprep.mubr.f32.mxu0 0.0
        %1050 = vmatmul.mubr.f32.gmra.mrb[0].mxu0 %v967
        %v1051 = vpop.f32.mrb[0].mxu0
        %v1052 = vadd.f32 0.0, %v1051
        %v1053 = vpop.f32.mrb[0].mxu0
        %v1054 = vadd.f32 0.0, %v1053
        %1055 = vdwg.mxu0
        %1056 = vmatprep.subr.mxu0 %v975
        %1057 = vmatpush1.msra.mxu0 %v973
        %1058 = vmatprep.subr.mxu0 0.0
        %1059 = vmatpush1.msra.mxu0 0.0
        %1060 = vmatprep.subr.mxu0 0.0
        %1061 = vmatpush1.msra.mxu0 0.0
        %1062 = vmatprep.subr.mxu0 0.0
        %1063 = vmatpush1.msra.mxu0 0.0
        %1064 = vmatprep.subr.mxu0 0.0
        %1065 = vmatpush1.msra.mxu0 0.0
        %1066 = vmatprep.subr.mxu0 0.0
        %1067 = vmatpush1.msra.mxu0 0.0
        %1068 = vmatprep.subr.mxu0 0.0
        %1069 = vmatpush1.msra.mxu0 0.0
        %1070 = vmatprep.subr.mxu0 0.0
        %1071 = vmatpush1.msra.mxu0 0.0
        %1072 = vmatprep.subr.mxu0 0.0
        %1073 = vmatpush1.msra.mxu0 0.0
        %1074 = vmatprep.subr.mxu0 0.0
        %1075 = vmatpush1.msra.mxu0 0.0
        %1076 = vmatprep.subr.mxu0 0.0
        %1077 = vmatpush1.msra.mxu0 0.0
        %1078 = vmatprep.subr.mxu0 0.0
        %1079 = vmatpush1.msra.mxu0 0.0
        %1080 = vmatprep.subr.mxu0 0.0
        %1081 = vmatpush1.msra.mxu0 0.0
        %1082 = vmatprep.subr.mxu0 0.0
        %1083 = vmatpush1.msra.mxu0 0.0
        %1084 = vmatprep.subr.mxu0 0.0
        %1085 = vmatpush1.msra.mxu0 0.0
        %1086 = vmatprep.subr.mxu0 0.0
        %1087 = vmatpush1.msra.mxu0 0.0
        %1088 = vmatprep.subr.mxu0 0.0
        %1089 = vmatpush1.msra.mxu0 0.0
        %1090 = vmatprep.subr.mxu0 0.0
        %1091 = vmatpush1.msra.mxu0 0.0
        %1092 = vmatprep.subr.mxu0 0.0
        %1093 = vmatpush1.msra.mxu0 0.0
        %1094 = vmatprep.subr.mxu0 0.0
        %1095 = vmatpush1.msra.mxu0 0.0
        %1096 = vmatprep.subr.mxu0 0.0
        %1097 = vmatpush1.msra.mxu0 0.0
        %1098 = vmatprep.subr.mxu0 0.0
        %1099 = vmatpush1.msra.mxu0 0.0
        %1100 = vmatprep.subr.mxu0 0.0
        %1101 = vmatpush1.msra.mxu0 0.0
        %1102 = vmatprep.subr.mxu0 0.0
        %1103 = vmatpush1.msra.mxu0 0.0
        %1104 = vmatprep.subr.mxu0 0.0
        %1105 = vmatpush1.msra.mxu0 0.0
        %1106 = vmatprep.subr.mxu0 0.0
        %1107 = vmatpush1.msra.mxu0 0.0
        %1108 = vmatprep.subr.mxu0 0.0
        %1109 = vmatpush1.msra.mxu0 0.0
        %1110 = vmatprep.subr.mxu0 0.0
        %1111 = vmatpush1.msra.mxu0 0.0
        %1112 = vmatprep.subr.mxu0 0.0
        %1113 = vmatpush1.msra.mxu0 0.0
        %1114 = vmatprep.subr.mxu0 0.0
        %1115 = vmatpush1.msra.mxu0 0.0
        %1116 = vmatprep.subr.mxu0 0.0
        %1117 = vmatpush1.msra.mxu0 0.0
        %1118 = vmatprep.subr.mxu0 0.0
        %1119 = vmatpush1.msra.mxu0 0.0
        %1120 = vmatprep.mubr.f32.mxu0 0.0
        %1121 = vmatmul.mubr.f32.gmra.mrb[0].mxu0 %v967
        %v1122 = vpop.f32.mrb[0].mxu0
        %v1123 = vadd.f32 0.0, %v1122
        %v1124 = vpop.f32.mrb[0].mxu0
        %v1125 = vadd.f32 0.0, %v1124
        %1126 = vdwg.mxu0
        %1127 = vmatprep.subr.mxu0 %v979
        %1128 = vmatpush1.msra.mxu0 %v977
        %1129 = vmatprep.subr.mxu0 0.0
        %1130 = vmatpush1.msra.mxu0 0.0
        %1131 = vmatprep.subr.mxu0 0.0
        %1132 = vmatpush1.msra.mxu0 0.0
        %1133 = vmatprep.subr.mxu0 0.0
        %1134 = vmatpush1.msra.mxu0 0.0
        %1135 = vmatprep.subr.mxu0 0.0
        %1136 = vmatpush1.msra.mxu0 0.0
        %1137 = vmatprep.subr.mxu0 0.0
        %1138 = vmatpush1.msra.mxu0 0.0
        %1139 = vmatprep.subr.mxu0 0.0
        %1140 = vmatpush1.msra.mxu0 0.0
        %1141 = vmatprep.subr.mxu0 0.0
        %1142 = vmatpush1.msra.mxu0 0.0
        %1143 = vmatprep.subr.mxu0 0.0
        %1144 = vmatpush1.msra.mxu0 0.0
        %1145 = vmatprep.subr.mxu0 0.0
        %1146 = vmatpush1.msra.mxu0 0.0
        %1147 = vmatprep.subr.mxu0 0.0
        %1148 = vmatpush1.msra.mxu0 0.0
        %1149 = vmatprep.subr.mxu0 0.0
        %1150 = vmatpush1.msra.mxu0 0.0
        %1151 = vmatprep.subr.mxu0 0.0
        %1152 = vmatpush1.msra.mxu0 0.0
        %1153 = vmatprep.subr.mxu0 0.0
        %1154 = vmatpush1.msra.mxu0 0.0
        %1155 = vmatprep.subr.mxu0 0.0
        %1156 = vmatpush1.msra.mxu0 0.0
        %1157 = vmatprep.subr.mxu0 0.0
        %1158 = vmatpush1.msra.mxu0 0.0
        %1159 = vmatprep.subr.mxu0 0.0
        %1160 = vmatpush1.msra.mxu0 0.0
        %1161 = vmatprep.subr.mxu0 0.0
        %1162 = vmatpush1.msra.mxu0 0.0
        %1163 = vmatprep.subr.mxu0 0.0
        %1164 = vmatpush1.msra.mxu0 0.0
        %1165 = vmatprep.subr.mxu0 0.0
        %1166 = vmatpush1.msra.mxu0 0.0
        %1167 = vmatprep.subr.mxu0 0.0
        %1168 = vmatpush1.msra.mxu0 0.0
        %1169 = vmatprep.subr.mxu0 0.0
        %1170 = vmatpush1.msra.mxu0 0.0
        %1171 = vmatprep.subr.mxu0 0.0
        %1172 = vmatpush1.msra.mxu0 0.0
        %1173 = vmatprep.subr.mxu0 0.0
        %1174 = vmatpush1.msra.mxu0 0.0
        %1175 = vmatprep.subr.mxu0 0.0
        %1176 = vmatpush1.msra.mxu0 0.0
        %1177 = vmatprep.subr.mxu0 0.0
        %1178 = vmatpush1.msra.mxu0 0.0
        %1179 = vmatprep.subr.mxu0 0.0
        %1180 = vmatpush1.msra.mxu0 0.0
        %1181 = vmatprep.subr.mxu0 0.0
        %1182 = vmatpush1.msra.mxu0 0.0
        %1183 = vmatprep.subr.mxu0 0.0
        %1184 = vmatpush1.msra.mxu0 0.0
        %1185 = vmatprep.subr.mxu0 0.0
        %1186 = vmatpush1.msra.mxu0 0.0
        %1187 = vmatprep.subr.mxu0 0.0
        %1188 = vmatpush1.msra.mxu0 0.0
        %1189 = vmatprep.subr.mxu0 0.0
        %1190 = vmatpush1.msra.mxu0 0.0
        %1191 = vmatprep.mubr.f32.mxu0 0.0
        %1192 = vmatmul.mubr.f32.gmra.mrb[0].mxu0 %v967
        %v1193 = vpop.f32.mrb[0].mxu0
        %v1194 = vadd.f32 0.0, %v1193
        %v1195 = vpop.f32.mrb[0].mxu0
        %v1196 = vadd.f32 0.0, %v1195
        %1197 = vdwg.mxu0
        %1198 = vmatprep.subr.mxu0 %v983
        %1199 = vmatpush1.msra.mxu0 %v981
        %1200 = vmatprep.subr.mxu0 0.0
        %1201 = vmatpush1.msra.mxu0 0.0
        %1202 = vmatprep.subr.mxu0 0.0
        %1203 = vmatpush1.msra.mxu0 0.0
        %1204 = vmatprep.subr.mxu0 0.0
        %1205 = vmatpush1.msra.mxu0 0.0
        %1206 = vmatprep.subr.mxu0 0.0
        %1207 = vmatpush1.msra.mxu0 0.0
        %1208 = vmatprep.subr.mxu0 0.0
        %1209 = vmatpush1.msra.mxu0 0.0
        %1210 = vmatprep.subr.mxu0 0.0
        %1211 = vmatpush1.msra.mxu0 0.0
        %1212 = vmatprep.subr.mxu0 0.0
        %1213 = vmatpush1.msra.mxu0 0.0
        %1214 = vmatprep.subr.mxu0 0.0
        %1215 = vmatpush1.msra.mxu0 0.0
        %1216 = vmatprep.subr.mxu0 0.0
        %1217 = vmatpush1.msra.mxu0 0.0
        %1218 = vmatprep.subr.mxu0 0.0
        %1219 = vmatpush1.msra.mxu0 0.0
        %1220 = vmatprep.subr.mxu0 0.0
        %1221 = vmatpush1.msra.mxu0 0.0
        %1222 = vmatprep.subr.mxu0 0.0
        %1223 = vmatpush1.msra.mxu0 0.0
        %1224 = vmatprep.subr.mxu0 0.0
        %1225 = vmatpush1.msra.mxu0 0.0
        %1226 = vmatprep.subr.mxu0 0.0
        %1227 = vmatpush1.msra.mxu0 0.0
        %1228 = vmatprep.subr.mxu0 0.0
        %1229 = vmatpush1.msra.mxu0 0.0
        %1230 = vmatprep.subr.mxu0 0.0
        %1231 = vmatpush1.msra.mxu0 0.0
        %1232 = vmatprep.subr.mxu0 0.0
        %1233 = vmatpush1.msra.mxu0 0.0
        %1234 = vmatprep.subr.mxu0 0.0
        %1235 = vmatpush1.msra.mxu0 0.0
        %1236 = vmatprep.subr.mxu0 0.0
        %1237 = vmatpush1.msra.mxu0 0.0
        %1238 = vmatprep.subr.mxu0 0.0
        %1239 = vmatpush1.msra.mxu0 0.0
        %1240 = vmatprep.subr.mxu0 0.0
        %1241 = vmatpush1.msra.mxu0 0.0
        %1242 = vmatprep.subr.mxu0 0.0
        %1243 = vmatpush1.msra.mxu0 0.0
        %1244 = vmatprep.subr.mxu0 0.0
        %1245 = vmatpush1.msra.mxu0 0.0
        %1246 = vmatprep.subr.mxu0 0.0
        %1247 = vmatpush1.msra.mxu0 0.0
        %1248 = vmatprep.subr.mxu0 0.0
        %1249 = vmatpush1.msra.mxu0 0.0
        %1250 = vmatprep.subr.mxu0 0.0
        %1251 = vmatpush1.msra.mxu0 0.0
        %1252 = vmatprep.subr.mxu0 0.0
        %1253 = vmatpush1.msra.mxu0 0.0
        %1254 = vmatprep.subr.mxu0 0.0
        %1255 = vmatpush1.msra.mxu0 0.0
        %1256 = vmatprep.subr.mxu0 0.0
        %1257 = vmatpush1.msra.mxu0 0.0
        %1258 = vmatprep.subr.mxu0 0.0
        %1259 = vmatpush1.msra.mxu0 0.0
        %1260 = vmatprep.subr.mxu0 0.0
        %1261 = vmatpush1.msra.mxu0 0.0
        %1262 = vmatprep.mubr.f32.mxu0 0.0
        %1263 = vmatmul.mubr.f32.gmra.mrb[0].mxu0 %v967
        %v1264 = vpop.f32.mrb[0].mxu0
        %v1265 = vadd.f32 0.0, %v1264
        %v1266 = vpop.f32.mrb[0].mxu0
        %v1267 = vadd.f32 0.0, %v1266
        %1268 = vdwg.mxu0
        %v1269 = vadd.f32 %v706, %v1052
        %v1270 = vadd.f32 %v708, %v1054
        %v1271 = vadd.f32 %v777, %v1123
        %v1272 = vadd.f32 %v779, %v1125
        %v1273 = vadd.f32 %v848, %v1194
        %v1274 = vadd.f32 %v850, %v1196
        %v1275 = vadd.f32 %v919, %v1265
        %v1276 = vadd.f32 %v921, %v1267
        %v1277 = vld [vmem:[%s262] sm:$0xff]
        %v1278 = vld [vmem:[%s262 + $0x8] sm:$0xff]
        %v1279 = vld [vmem:[%s262 + $0x10] sm:$0xff]
        %v1280 = vld [vmem:[%s262 + $0x18] sm:$0xff]
        %v1281 = vld [vmem:[%s262 + $0x20] sm:$0xf]
        %s1282 = scalar_lea.vmem %s1, 24
        %v1283 = vld [vmem:[%s1282] sm:$0xff]
        %v1289 = vcombine.high %v1277, %v1277
        %v1290 = vcombine.high %v1278, %v1278
        %v1291 = vcombine.high %v1279, %v1279
        %v1292 = vcombine.high %v1280, %v1280
        %1293 = vrot.lane.b32.xlu0 %v1277, 118
        %v1294 = vpop.permute.xlu0 %1293
        %1295 = vrot.lane.b32.xlu0 %v1289, 118
        %v1296 = vpop.permute.xlu0 %1295
        %1297 = vrot.lane.b32.xlu0 %v1278, 118
        %v1298 = vpop.permute.xlu0 %1297
        %1299 = vrot.lane.b32.xlu0 %v1290, 118
        %v1300 = vpop.permute.xlu0 %1299
        %1301 = vrot.lane.b32.xlu0 %v1279, 118
        %v1302 = vpop.permute.xlu0 %1301
        %1303 = vrot.lane.b32.xlu0 %v1291, 118
        %v1304 = vpop.permute.xlu0 %1303
        %1305 = vrot.lane.b32.xlu0 %v1280, 118
        %v1306 = vpop.permute.xlu0 %1305
        %1307 = vrot.lane.b32.xlu0 %v1292, 118
        %v1308 = vpop.permute.xlu0 %1307
        %1309 = vrot.lane.b32.xlu0 %v1281, 118
        %v1310 = vpop.permute.xlu0 %1309
        %vm1311 = vcmask 965632
        %v1312 = vsel %vm1311, %v1294, %v1296
        %v1313 = vsel %vm1311, %v1296, %v1298
        %v1314 = vsel %vm1311, %v1298, %v1300
        %v1315 = vsel %vm1311, %v1300, %v1302
        %v1316 = vsel %vm1311, %v1302, %v1304
        %v1317 = vsel %vm1311, %v1304, %v1306
        %v1318 = vsel %vm1311, %v1306, %v1308
        %v1319 = vsel %vm1311, %v1308, %v1310
        %v1321 = vsel %vm315, %v1283, 0
        %v1323 = vsel %vm319, %v1312, 0
        %v1325 = vsel %vm319, %v1313, 0
        %v1327 = vsel %vm319, %v1314, 0
        %v1329 = vsel %vm319, %v1315, 0
        %v1331 = vsel %vm319, %v1316, 0
        %v1333 = vsel %vm319, %v1317, 0
        %v1335 = vsel %vm319, %v1318, 0
        %v1337 = vsel %vm319, %v1319, 0
        %1339 = vmatprep.subr.mxu0 %v1325
        %1340 = vmatpush1.msra.mxu0 %v1323
        %1341 = vmatprep.subr.mxu0 0.0
        %1342 = vmatpush1.msra.mxu0 0.0
        %1343 = vmatprep.subr.mxu0 0.0
        %1344 = vmatpush1.msra.mxu0 0.0
        %1345 = vmatprep.subr.mxu0 0.0
        %1346 = vmatpush1.msra.mxu0 0.0
        %1347 = vmatprep.subr.mxu0 0.0
        %1348 = vmatpush1.msra.mxu0 0.0
        %1349 = vmatprep.subr.mxu0 0.0
        %1350 = vmatpush1.msra.mxu0 0.0
        %1351 = vmatprep.subr.mxu0 0.0
        %1352 = vmatpush1.msra.mxu0 0.0
        %1353 = vmatprep.subr.mxu0 0.0
        %1354 = vmatpush1.msra.mxu0 0.0
        %1355 = vmatprep.subr.mxu0 0.0
        %1356 = vmatpush1.msra.mxu0 0.0
        %1357 = vmatprep.subr.mxu0 0.0
        %1358 = vmatpush1.msra.mxu0 0.0
        %1359 = vmatprep.subr.mxu0 0.0
        %1360 = vmatpush1.msra.mxu0 0.0
        %1361 = vmatprep.subr.mxu0 0.0
        %1362 = vmatpush1.msra.mxu0 0.0
        %1363 = vmatprep.subr.mxu0 0.0
        %1364 = vmatpush1.msra.mxu0 0.0
        %1365 = vmatprep.subr.mxu0 0.0
        %1366 = vmatpush1.msra.mxu0 0.0
        %1367 = vmatprep.subr.mxu0 0.0
        %1368 = vmatpush1.msra.mxu0 0.0
        %1369 = vmatprep.subr.mxu0 0.0
        %1370 = vmatpush1.msra.mxu0 0.0
        %1371 = vmatprep.subr.mxu0 0.0
        %1372 = vmatpush1.msra.mxu0 0.0
        %1373 = vmatprep.subr.mxu0 0.0
        %1374 = vmatpush1.msra.mxu0 0.0
        %1375 = vmatprep.subr.mxu0 0.0
        %1376 = vmatpush1.msra.mxu0 0.0
        %1377 = vmatprep.subr.mxu0 0.0
        %1378 = vmatpush1.msra.mxu0 0.0
        %1379 = vmatprep.subr.mxu0 0.0
        %1380 = vmatpush1.msra.mxu0 0.0
        %1381 = vmatprep.subr.mxu0 0.0
        %1382 = vmatpush1.msra.mxu0 0.0
        %1383 = vmatprep.subr.mxu0 0.0
        %1384 = vmatpush1.msra.mxu0 0.0
        %1385 = vmatprep.subr.mxu0 0.0
        %1386 = vmatpush1.msra.mxu0 0.0
        %1387 = vmatprep.subr.mxu0 0.0
        %1388 = vmatpush1.msra.mxu0 0.0
        %1389 = vmatprep.subr.mxu0 0.0
        %1390 = vmatpush1.msra.mxu0 0.0
        %1391 = vmatprep.subr.mxu0 0.0
        %1392 = vmatpush1.msra.mxu0 0.0
        %1393 = vmatprep.subr.mxu0 0.0
        %1394 = vmatpush1.msra.mxu0 0.0
        %1395 = vmatprep.subr.mxu0 0.0
        %1396 = vmatpush1.msra.mxu0 0.0
        %1397 = vmatprep.subr.mxu0 0.0
        %1398 = vmatpush1.msra.mxu0 0.0
        %1399 = vmatprep.subr.mxu0 0.0
        %1400 = vmatpush1.msra.mxu0 0.0
        %1401 = vmatprep.subr.mxu0 0.0
        %1402 = vmatpush1.msra.mxu0 0.0
        %1403 = vmatprep.mubr.f32.mxu0 0.0
        %1404 = vmatmul.mubr.f32.gmra.mrb[0].mxu0 %v1321
        %v1405 = vpop.f32.mrb[0].mxu0
        %v1406 = vadd.f32 0.0, %v1405
        %v1407 = vpop.f32.mrb[0].mxu0
        %v1408 = vadd.f32 0.0, %v1407
        %1409 = vdwg.mxu0
        %1410 = vmatprep.subr.mxu0 %v1329
        %1411 = vmatpush1.msra.mxu0 %v1327
        %1412 = vmatprep.subr.mxu0 0.0
        %1413 = vmatpush1.msra.mxu0 0.0
        %1414 = vmatprep.subr.mxu0 0.0
        %1415 = vmatpush1.msra.mxu0 0.0
        %1416 = vmatprep.subr.mxu0 0.0
        %1417 = vmatpush1.msra.mxu0 0.0
        %1418 = vmatprep.subr.mxu0 0.0
        %1419 = vmatpush1.msra.mxu0 0.0
        %1420 = vmatprep.subr.mxu0 0.0
        %1421 = vmatpush1.msra.mxu0 0.0
        %1422 = vmatprep.subr.mxu0 0.0
        %1423 = vmatpush1.msra.mxu0 0.0
        %1424 = vmatprep.subr.mxu0 0.0
        %1425 = vmatpush1.msra.mxu0 0.0
        %1426 = vmatprep.subr.mxu0 0.0
        %1427 = vmatpush1.msra.mxu0 0.0
        %1428 = vmatprep.subr.mxu0 0.0
        %1429 = vmatpush1.msra.mxu0 0.0
        %1430 = vmatprep.subr.mxu0 0.0
        %1431 = vmatpush1.msra.mxu0 0.0
        %1432 = vmatprep.subr.mxu0 0.0
        %1433 = vmatpush1.msra.mxu0 0.0
        %1434 = vmatprep.subr.mxu0 0.0
        %1435 = vmatpush1.msra.mxu0 0.0
        %1436 = vmatprep.subr.mxu0 0.0
        %1437 = vmatpush1.msra.mxu0 0.0
        %1438 = vmatprep.subr.mxu0 0.0
        %1439 = vmatpush1.msra.mxu0 0.0
        %1440 = vmatprep.subr.mxu0 0.0
        %1441 = vmatpush1.msra.mxu0 0.0
        %1442 = vmatprep.subr.mxu0 0.0
        %1443 = vmatpush1.msra.mxu0 0.0
        %1444 = vmatprep.subr.mxu0 0.0
        %1445 = vmatpush1.msra.mxu0 0.0
        %1446 = vmatprep.subr.mxu0 0.0
        %1447 = vmatpush1.msra.mxu0 0.0
        %1448 = vmatprep.subr.mxu0 0.0
        %1449 = vmatpush1.msra.mxu0 0.0
        %1450 = vmatprep.subr.mxu0 0.0
        %1451 = vmatpush1.msra.mxu0 0.0
        %1452 = vmatprep.subr.mxu0 0.0
        %1453 = vmatpush1.msra.mxu0 0.0
        %1454 = vmatprep.subr.mxu0 0.0
        %1455 = vmatpush1.msra.mxu0 0.0
        %1456 = vmatprep.subr.mxu0 0.0
        %1457 = vmatpush1.msra.mxu0 0.0
        %1458 = vmatprep.subr.mxu0 0.0
        %1459 = vmatpush1.msra.mxu0 0.0
        %1460 = vmatprep.subr.mxu0 0.0
        %1461 = vmatpush1.msra.mxu0 0.0
        %1462 = vmatprep.subr.mxu0 0.0
        %1463 = vmatpush1.msra.mxu0 0.0
        %1464 = vmatprep.subr.mxu0 0.0
        %1465 = vmatpush1.msra.mxu0 0.0
        %1466 = vmatprep.subr.mxu0 0.0
        %1467 = vmatpush1.msra.mxu0 0.0
        %1468 = vmatprep.subr.mxu0 0.0
        %1469 = vmatpush1.msra.mxu0 0.0
        %1470 = vmatprep.subr.mxu0 0.0
        %1471 = vmatpush1.msra.mxu0 0.0
        %1472 = vmatprep.subr.mxu0 0.0
        %1473 = vmatpush1.msra.mxu0 0.0
        %1474 = vmatprep.mubr.f32.mxu0 0.0
        %1475 = vmatmul.mubr.f32.gmra.mrb[0].mxu0 %v1321
        %v1476 = vpop.f32.mrb[0].mxu0
        %v1477 = vadd.f32 0.0, %v1476
        %v1478 = vpop.f32.mrb[0].mxu0
        %v1479 = vadd.f32 0.0, %v1478
        %1480 = vdwg.mxu0
        %1481 = vmatprep.subr.mxu0 %v1333
        %1482 = vmatpush1.msra.mxu0 %v1331
        %1483 = vmatprep.subr.mxu0 0.0
        %1484 = vmatpush1.msra.mxu0 0.0
        %1485 = vmatprep.subr.mxu0 0.0
        %1486 = vmatpush1.msra.mxu0 0.0
        %1487 = vmatprep.subr.mxu0 0.0
        %1488 = vmatpush1.msra.mxu0 0.0
        %1489 = vmatprep.subr.mxu0 0.0
        %1490 = vmatpush1.msra.mxu0 0.0
        %1491 = vmatprep.subr.mxu0 0.0
        %1492 = vmatpush1.msra.mxu0 0.0
        %1493 = vmatprep.subr.mxu0 0.0
        %1494 = vmatpush1.msra.mxu0 0.0
        %1495 = vmatprep.subr.mxu0 0.0
        %1496 = vmatpush1.msra.mxu0 0.0
        %1497 = vmatprep.subr.mxu0 0.0
        %1498 = vmatpush1.msra.mxu0 0.0
        %1499 = vmatprep.subr.mxu0 0.0
        %1500 = vmatpush1.msra.mxu0 0.0
        %1501 = vmatprep.subr.mxu0 0.0
        %1502 = vmatpush1.msra.mxu0 0.0
        %1503 = vmatprep.subr.mxu0 0.0
        %1504 = vmatpush1.msra.mxu0 0.0
        %1505 = vmatprep.subr.mxu0 0.0
        %1506 = vmatpush1.msra.mxu0 0.0
        %1507 = vmatprep.subr.mxu0 0.0
        %1508 = vmatpush1.msra.mxu0 0.0
        %1509 = vmatprep.subr.mxu0 0.0
        %1510 = vmatpush1.msra.mxu0 0.0
        %1511 = vmatprep.subr.mxu0 0.0
        %1512 = vmatpush1.msra.mxu0 0.0
        %1513 = vmatprep.subr.mxu0 0.0
        %1514 = vmatpush1.msra.mxu0 0.0
        %1515 = vmatprep.subr.mxu0 0.0
        %1516 = vmatpush1.msra.mxu0 0.0
        %1517 = vmatprep.subr.mxu0 0.0
        %1518 = vmatpush1.msra.mxu0 0.0
        %1519 = vmatprep.subr.mxu0 0.0
        %1520 = vmatpush1.msra.mxu0 0.0
        %1521 = vmatprep.subr.mxu0 0.0
        %1522 = vmatpush1.msra.mxu0 0.0
        %1523 = vmatprep.subr.mxu0 0.0
        %1524 = vmatpush1.msra.mxu0 0.0
        %1525 = vmatprep.subr.mxu0 0.0
        %1526 = vmatpush1.msra.mxu0 0.0
        %1527 = vmatprep.subr.mxu0 0.0
        %1528 = vmatpush1.msra.mxu0 0.0
        %1529 = vmatprep.subr.mxu0 0.0
        %1530 = vmatpush1.msra.mxu0 0.0
        %1531 = vmatprep.subr.mxu0 0.0
        %1532 = vmatpush1.msra.mxu0 0.0
        %1533 = vmatprep.subr.mxu0 0.0
        %1534 = vmatpush1.msra.mxu0 0.0
        %1535 = vmatprep.subr.mxu0 0.0
        %1536 = vmatpush1.msra.mxu0 0.0
        %1537 = vmatprep.subr.mxu0 0.0
        %1538 = vmatpush1.msra.mxu0 0.0
        %1539 = vmatprep.subr.mxu0 0.0
        %1540 = vmatpush1.msra.mxu0 0.0
        %1541 = vmatprep.subr.mxu0 0.0
        %1542 = vmatpush1.msra.mxu0 0.0
        %1543 = vmatprep.subr.mxu0 0.0
        %1544 = vmatpush1.msra.mxu0 0.0
        %1545 = vmatprep.mubr.f32.mxu0 0.0
        %1546 = vmatmul.mubr.f32.gmra.mrb[0].mxu0 %v1321
        %v1547 = vpop.f32.mrb[0].mxu0
        %v1548 = vadd.f32 0.0, %v1547
        %v1549 = vpop.f32.mrb[0].mxu0
        %v1550 = vadd.f32 0.0, %v1549
        %1551 = vdwg.mxu0
        %1552 = vmatprep.subr.mxu0 %v1337
        %1553 = vmatpush1.msra.mxu0 %v1335
        %1554 = vmatprep.subr.mxu0 0.0
        %1555 = vmatpush1.msra.mxu0 0.0
        %1556 = vmatprep.subr.mxu0 0.0
        %1557 = vmatpush1.msra.mxu0 0.0
        %1558 = vmatprep.subr.mxu0 0.0
        %1559 = vmatpush1.msra.mxu0 0.0
        %1560 = vmatprep.subr.mxu0 0.0
        %1561 = vmatpush1.msra.mxu0 0.0
        %1562 = vmatprep.subr.mxu0 0.0
        %1563 = vmatpush1.msra.mxu0 0.0
        %1564 = vmatprep.subr.mxu0 0.0
        %1565 = vmatpush1.msra.mxu0 0.0
        %1566 = vmatprep.subr.mxu0 0.0
        %1567 = vmatpush1.msra.mxu0 0.0
        %1568 = vmatprep.subr.mxu0 0.0
        %1569 = vmatpush1.msra.mxu0 0.0
        %1570 = vmatprep.subr.mxu0 0.0
        %1571 = vmatpush1.msra.mxu0 0.0
        %1572 = vmatprep.subr.mxu0 0.0
        %1573 = vmatpush1.msra.mxu0 0.0
        %1574 = vmatprep.subr.mxu0 0.0
        %1575 = vmatpush1.msra.mxu0 0.0
        %1576 = vmatprep.subr.mxu0 0.0
        %1577 = vmatpush1.msra.mxu0 0.0
        %1578 = vmatprep.subr.mxu0 0.0
        %1579 = vmatpush1.msra.mxu0 0.0
        %1580 = vmatprep.subr.mxu0 0.0
        %1581 = vmatpush1.msra.mxu0 0.0
        %1582 = vmatprep.subr.mxu0 0.0
        %1583 = vmatpush1.msra.mxu0 0.0
        %1584 = vmatprep.subr.mxu0 0.0
        %1585 = vmatpush1.msra.mxu0 0.0
        %1586 = vmatprep.subr.mxu0 0.0
        %1587 = vmatpush1.msra.mxu0 0.0
        %1588 = vmatprep.subr.mxu0 0.0
        %1589 = vmatpush1.msra.mxu0 0.0
        %1590 = vmatprep.subr.mxu0 0.0
        %1591 = vmatpush1.msra.mxu0 0.0
        %1592 = vmatprep.subr.mxu0 0.0
        %1593 = vmatpush1.msra.mxu0 0.0
        %1594 = vmatprep.subr.mxu0 0.0
        %1595 = vmatpush1.msra.mxu0 0.0
        %1596 = vmatprep.subr.mxu0 0.0
        %1597 = vmatpush1.msra.mxu0 0.0
        %1598 = vmatprep.subr.mxu0 0.0
        %1599 = vmatpush1.msra.mxu0 0.0
        %1600 = vmatprep.subr.mxu0 0.0
        %1601 = vmatpush1.msra.mxu0 0.0
        %1602 = vmatprep.subr.mxu0 0.0
        %1603 = vmatpush1.msra.mxu0 0.0
        %1604 = vmatprep.subr.mxu0 0.0
        %1605 = vmatpush1.msra.mxu0 0.0
        %1606 = vmatprep.subr.mxu0 0.0
        %1607 = vmatpush1.msra.mxu0 0.0
        %1608 = vmatprep.subr.mxu0 0.0
        %1609 = vmatpush1.msra.mxu0 0.0
        %1610 = vmatprep.subr.mxu0 0.0
        %1611 = vmatpush1.msra.mxu0 0.0
        %1612 = vmatprep.subr.mxu0 0.0
        %1613 = vmatpush1.msra.mxu0 0.0
        %1614 = vmatprep.subr.mxu0 0.0
        %1615 = vmatpush1.msra.mxu0 0.0
        %1616 = vmatprep.mubr.f32.mxu0 0.0
        %1617 = vmatmul.mubr.f32.gmra.mrb[0].mxu0 %v1321
        %v1618 = vpop.f32.mrb[0].mxu0
        %v1619 = vadd.f32 0.0, %v1618
        %v1620 = vpop.f32.mrb[0].mxu0
        %v1621 = vadd.f32 0.0, %v1620
        %1622 = vdwg.mxu0
        %v1623 = vadd.f32 %v1269, %v1406
        %v1624 = vadd.f32 %v1270, %v1408
        %v1625 = vadd.f32 %v1271, %v1477
        %v1626 = vadd.f32 %v1272, %v1479
        %v1627 = vadd.f32 %v1273, %v1548
        %v1628 = vadd.f32 %v1274, %v1550
        %v1629 = vadd.f32 %v1275, %v1619
        %v1630 = vadd.f32 %v1276, %v1621
        %v1631 = vld [vmem:[%s262] sm:$0xff]
        %v1632 = vld [vmem:[%s262 + $0x8] sm:$0xff]
        %v1633 = vld [vmem:[%s262 + $0x10] sm:$0xff]
        %v1634 = vld [vmem:[%s262 + $0x18] sm:$0xff]
        %v1635 = vld [vmem:[%s262 + $0x20] sm:$0xf]
        %s1636 = scalar_lea.vmem %s1, 32
        %v1637 = vld [vmem:[%s1636] sm:$0xff]
        %v1643 = vcombine.high %v1631, %v1631
        %v1644 = vcombine.high %v1632, %v1632
        %v1645 = vcombine.high %v1633, %v1633
        %v1646 = vcombine.high %v1634, %v1634
        %1647 = vrot.lane.b32.xlu0 %v1631, 117
        %v1648 = vpop.permute.xlu0 %1647
        %1649 = vrot.lane.b32.xlu0 %v1643, 117
        %v1650 = vpop.permute.xlu0 %1649
        %1651 = vrot.lane.b32.xlu0 %v1632, 117
        %v1652 = vpop.permute.xlu0 %1651
        %1653 = vrot.lane.b32.xlu0 %v1644, 117
        %v1654 = vpop.permute.xlu0 %1653
        %1655 = vrot.lane.b32.xlu0 %v1633, 117
        %v1656 = vpop.permute.xlu0 %1655
        %1657 = vrot.lane.b32.xlu0 %v1645, 117
        %v1658 = vpop.permute.xlu0 %1657
        %1659 = vrot.lane.b32.xlu0 %v1634, 117
        %v1660 = vpop.permute.xlu0 %1659
        %1661 = vrot.lane.b32.xlu0 %v1646, 117
        %v1662 = vpop.permute.xlu0 %1661
        %1663 = vrot.lane.b32.xlu0 %v1635, 117
        %v1664 = vpop.permute.xlu0 %1663
        %vm1665 = vcmask 957440
        %v1666 = vsel %vm1665, %v1648, %v1650
        %v1667 = vsel %vm1665, %v1650, %v1652
        %v1668 = vsel %vm1665, %v1652, %v1654
        %v1669 = vsel %vm1665, %v1654, %v1656
        %v1670 = vsel %vm1665, %v1656, %v1658
        %v1671 = vsel %vm1665, %v1658, %v1660
        %v1672 = vsel %vm1665, %v1660, %v1662
        %v1673 = vsel %vm1665, %v1662, %v1664
        %v1675 = vsel %vm315, %v1637, 0
        %v1677 = vsel %vm319, %v1666, 0
        %v1679 = vsel %vm319, %v1667, 0
        %v1681 = vsel %vm319, %v1668, 0
        %v1683 = vsel %vm319, %v1669, 0
        %v1685 = vsel %vm319, %v1670, 0
        %v1687 = vsel %vm319, %v1671, 0
        %v1689 = vsel %vm319, %v1672, 0
        %v1691 = vsel %vm319, %v1673, 0
        %1693 = vmatprep.subr.mxu0 %v1679
        %1694 = vmatpush1.msra.mxu0 %v1677
        %1695 = vmatprep.subr.mxu0 0.0
        %1696 = vmatpush1.msra.mxu0 0.0
        %1697 = vmatprep.subr.mxu0 0.0
        %1698 = vmatpush1.msra.mxu0 0.0
        %1699 = vmatprep.subr.mxu0 0.0
        %1700 = vmatpush1.msra.mxu0 0.0
        %1701 = vmatprep.subr.mxu0 0.0
        %1702 = vmatpush1.msra.mxu0 0.0
        %1703 = vmatprep.subr.mxu0 0.0
        %1704 = vmatpush1.msra.mxu0 0.0
        %1705 = vmatprep.subr.mxu0 0.0
        %1706 = vmatpush1.msra.mxu0 0.0
        %1707 = vmatprep.subr.mxu0 0.0
        %1708 = vmatpush1.msra.mxu0 0.0
        %1709 = vmatprep.subr.mxu0 0.0
        %1710 = vmatpush1.msra.mxu0 0.0
        %1711 = vmatprep.subr.mxu0 0.0
        %1712 = vmatpush1.msra.mxu0 0.0
        %1713 = vmatprep.subr.mxu0 0.0
        %1714 = vmatpush1.msra.mxu0 0.0
        %1715 = vmatprep.subr.mxu0 0.0
        %1716 = vmatpush1.msra.mxu0 0.0
        %1717 = vmatprep.subr.mxu0 0.0
        %1718 = vmatpush1.msra.mxu0 0.0
        %1719 = vmatprep.subr.mxu0 0.0
        %1720 = vmatpush1.msra.mxu0 0.0
        %1721 = vmatprep.subr.mxu0 0.0
        %1722 = vmatpush1.msra.mxu0 0.0
        %1723 = vmatprep.subr.mxu0 0.0
        %1724 = vmatpush1.msra.mxu0 0.0
        %1725 = vmatprep.subr.mxu0 0.0
        %1726 = vmatpush1.msra.mxu0 0.0
        %1727 = vmatprep.subr.mxu0 0.0
        %1728 = vmatpush1.msra.mxu0 0.0
        %1729 = vmatprep.subr.mxu0 0.0
        %1730 = vmatpush1.msra.mxu0 0.0
        %1731 = vmatprep.subr.mxu0 0.0
        %1732 = vmatpush1.msra.mxu0 0.0
        %1733 = vmatprep.subr.mxu0 0.0
        %1734 = vmatpush1.msra.mxu0 0.0
        %1735 = vmatprep.subr.mxu0 0.0
        %1736 = vmatpush1.msra.mxu0 0.0
        %1737 = vmatprep.subr.mxu0 0.0
        %1738 = vmatpush1.msra.mxu0 0.0
        %1739 = vmatprep.subr.mxu0 0.0
        %1740 = vmatpush1.msra.mxu0 0.0
        %1741 = vmatprep.subr.mxu0 0.0
        %1742 = vmatpush1.msra.mxu0 0.0
        %1743 = vmatprep.subr.mxu0 0.0
        %1744 = vmatpush1.msra.mxu0 0.0
        %1745 = vmatprep.subr.mxu0 0.0
        %1746 = vmatpush1.msra.mxu0 0.0
        %1747 = vmatprep.subr.mxu0 0.0
        %1748 = vmatpush1.msra.mxu0 0.0
        %1749 = vmatprep.subr.mxu0 0.0
        %1750 = vmatpush1.msra.mxu0 0.0
        %1751 = vmatprep.subr.mxu0 0.0
        %1752 = vmatpush1.msra.mxu0 0.0
        %1753 = vmatprep.subr.mxu0 0.0
        %1754 = vmatpush1.msra.mxu0 0.0
        %1755 = vmatprep.subr.mxu0 0.0
        %1756 = vmatpush1.msra.mxu0 0.0
        %1757 = vmatprep.mubr.f32.mxu0 0.0
        %1758 = vmatmul.mubr.f32.gmra.mrb[0].mxu0 %v1675
        %v1759 = vpop.f32.mrb[0].mxu0
        %v1760 = vadd.f32 0.0, %v1759
        %v1761 = vpop.f32.mrb[0].mxu0
        %v1762 = vadd.f32 0.0, %v1761
        %1763 = vdwg.mxu0
        %1764 = vmatprep.subr.mxu0 %v1683
        %1765 = vmatpush1.msra.mxu0 %v1681
        %1766 = vmatprep.subr.mxu0 0.0
        %1767 = vmatpush1.msra.mxu0 0.0
        %1768 = vmatprep.subr.mxu0 0.0
        %1769 = vmatpush1.msra.mxu0 0.0
        %1770 = vmatprep.subr.mxu0 0.0
        %1771 = vmatpush1.msra.mxu0 0.0
        %1772 = vmatprep.subr.mxu0 0.0
        %1773 = vmatpush1.msra.mxu0 0.0
        %1774 = vmatprep.subr.mxu0 0.0
        %1775 = vmatpush1.msra.mxu0 0.0
        %1776 = vmatprep.subr.mxu0 0.0
        %1777 = vmatpush1.msra.mxu0 0.0
        %1778 = vmatprep.subr.mxu0 0.0
        %1779 = vmatpush1.msra.mxu0 0.0
        %1780 = vmatprep.subr.mxu0 0.0
        %1781 = vmatpush1.msra.mxu0 0.0
        %1782 = vmatprep.subr.mxu0 0.0
        %1783 = vmatpush1.msra.mxu0 0.0
        %1784 = vmatprep.subr.mxu0 0.0
        %1785 = vmatpush1.msra.mxu0 0.0
        %1786 = vmatprep.subr.mxu0 0.0
        %1787 = vmatpush1.msra.mxu0 0.0
        %1788 = vmatprep.subr.mxu0 0.0
        %1789 = vmatpush1.msra.mxu0 0.0
        %1790 = vmatprep.subr.mxu0 0.0
        %1791 = vmatpush1.msra.mxu0 0.0
        %1792 = vmatprep.subr.mxu0 0.0
        %1793 = vmatpush1.msra.mxu0 0.0
        %1794 = vmatprep.subr.mxu0 0.0
        %1795 = vmatpush1.msra.mxu0 0.0
        %1796 = vmatprep.subr.mxu0 0.0
        %1797 = vmatpush1.msra.mxu0 0.0
        %1798 = vmatprep.subr.mxu0 0.0
        %1799 = vmatpush1.msra.mxu0 0.0
        %1800 = vmatprep.subr.mxu0 0.0
        %1801 = vmatpush1.msra.mxu0 0.0
        %1802 = vmatprep.subr.mxu0 0.0
        %1803 = vmatpush1.msra.mxu0 0.0
        %1804 = vmatprep.subr.mxu0 0.0
        %1805 = vmatpush1.msra.mxu0 0.0
        %1806 = vmatprep.subr.mxu0 0.0
        %1807 = vmatpush1.msra.mxu0 0.0
        %1808 = vmatprep.subr.mxu0 0.0
        %1809 = vmatpush1.msra.mxu0 0.0
        %1810 = vmatprep.subr.mxu0 0.0
        %1811 = vmatpush1.msra.mxu0 0.0
        %1812 = vmatprep.subr.mxu0 0.0
        %1813 = vmatpush1.msra.mxu0 0.0
        %1814 = vmatprep.subr.mxu0 0.0
        %1815 = vmatpush1.msra.mxu0 0.0
        %1816 = vmatprep.subr.mxu0 0.0
        %1817 = vmatpush1.msra.mxu0 0.0
        %1818 = vmatprep.subr.mxu0 0.0
        %1819 = vmatpush1.msra.mxu0 0.0
        %1820 = vmatprep.subr.mxu0 0.0
        %1821 = vmatpush1.msra.mxu0 0.0
        %1822 = vmatprep.subr.mxu0 0.0
        %1823 = vmatpush1.msra.mxu0 0.0
        %1824 = vmatprep.subr.mxu0 0.0
        %1825 = vmatpush1.msra.mxu0 0.0
        %1826 = vmatprep.subr.mxu0 0.0
        %1827 = vmatpush1.msra.mxu0 0.0
        %1828 = vmatprep.mubr.f32.mxu0 0.0
        %1829 = vmatmul.mubr.f32.gmra.mrb[0].mxu0 %v1675
        %v1830 = vpop.f32.mrb[0].mxu0
        %v1831 = vadd.f32 0.0, %v1830
        %v1832 = vpop.f32.mrb[0].mxu0
        %v1833 = vadd.f32 0.0, %v1832
        %1834 = vdwg.mxu0
        %1835 = vmatprep.subr.mxu0 %v1687
        %1836 = vmatpush1.msra.mxu0 %v1685
        %1837 = vmatprep.subr.mxu0 0.0
        %1838 = vmatpush1.msra.mxu0 0.0
        %1839 = vmatprep.subr.mxu0 0.0
        %1840 = vmatpush1.msra.mxu0 0.0
        %1841 = vmatprep.subr.mxu0 0.0
        %1842 = vmatpush1.msra.mxu0 0.0
        %1843 = vmatprep.subr.mxu0 0.0
        %1844 = vmatpush1.msra.mxu0 0.0
        %1845 = vmatprep.subr.mxu0 0.0
        %1846 = vmatpush1.msra.mxu0 0.0
        %1847 = vmatprep.subr.mxu0 0.0
        %1848 = vmatpush1.msra.mxu0 0.0
        %1849 = vmatprep.subr.mxu0 0.0
        %1850 = vmatpush1.msra.mxu0 0.0
        %1851 = vmatprep.subr.mxu0 0.0
        %1852 = vmatpush1.msra.mxu0 0.0
        %1853 = vmatprep.subr.mxu0 0.0
        %1854 = vmatpush1.msra.mxu0 0.0
        %1855 = vmatprep.subr.mxu0 0.0
        %1856 = vmatpush1.msra.mxu0 0.0
        %1857 = vmatprep.subr.mxu0 0.0
        %1858 = vmatpush1.msra.mxu0 0.0
        %1859 = vmatprep.subr.mxu0 0.0
        %1860 = vmatpush1.msra.mxu0 0.0
        %1861 = vmatprep.subr.mxu0 0.0
        %1862 = vmatpush1.msra.mxu0 0.0
        %1863 = vmatprep.subr.mxu0 0.0
        %1864 = vmatpush1.msra.mxu0 0.0
        %1865 = vmatprep.subr.mxu0 0.0
        %1866 = vmatpush1.msra.mxu0 0.0
        %1867 = vmatprep.subr.mxu0 0.0
        %1868 = vmatpush1.msra.mxu0 0.0
        %1869 = vmatprep.subr.mxu0 0.0
        %1870 = vmatpush1.msra.mxu0 0.0
        %1871 = vmatprep.subr.mxu0 0.0
        %1872 = vmatpush1.msra.mxu0 0.0
        %1873 = vmatprep.subr.mxu0 0.0
        %1874 = vmatpush1.msra.mxu0 0.0
        %1875 = vmatprep.subr.mxu0 0.0
        %1876 = vmatpush1.msra.mxu0 0.0
        %1877 = vmatprep.subr.mxu0 0.0
        %1878 = vmatpush1.msra.mxu0 0.0
        %1879 = vmatprep.subr.mxu0 0.0
        %1880 = vmatpush1.msra.mxu0 0.0
        %1881 = vmatprep.subr.mxu0 0.0
        %1882 = vmatpush1.msra.mxu0 0.0
        %1883 = vmatprep.subr.mxu0 0.0
        %1884 = vmatpush1.msra.mxu0 0.0
        %1885 = vmatprep.subr.mxu0 0.0
        %1886 = vmatpush1.msra.mxu0 0.0
        %1887 = vmatprep.subr.mxu0 0.0
        %1888 = vmatpush1.msra.mxu0 0.0
        %1889 = vmatprep.subr.mxu0 0.0
        %1890 = vmatpush1.msra.mxu0 0.0
        %1891 = vmatprep.subr.mxu0 0.0
        %1892 = vmatpush1.msra.mxu0 0.0
        %1893 = vmatprep.subr.mxu0 0.0
        %1894 = vmatpush1.msra.mxu0 0.0
        %1895 = vmatprep.subr.mxu0 0.0
        %1896 = vmatpush1.msra.mxu0 0.0
        %1897 = vmatprep.subr.mxu0 0.0
        %1898 = vmatpush1.msra.mxu0 0.0
        %1899 = vmatprep.mubr.f32.mxu0 0.0
        %1900 = vmatmul.mubr.f32.gmra.mrb[0].mxu0 %v1675
        %v1901 = vpop.f32.mrb[0].mxu0
        %v1902 = vadd.f32 0.0, %v1901
        %v1903 = vpop.f32.mrb[0].mxu0
        %v1904 = vadd.f32 0.0, %v1903
        %1905 = vdwg.mxu0
        %1906 = vmatprep.subr.mxu0 %v1691
        %1907 = vmatpush1.msra.mxu0 %v1689
        %1908 = vmatprep.subr.mxu0 0.0
        %1909 = vmatpush1.msra.mxu0 0.0
        %1910 = vmatprep.subr.mxu0 0.0
        %1911 = vmatpush1.msra.mxu0 0.0
        %1912 = vmatprep.subr.mxu0 0.0
        %1913 = vmatpush1.msra.mxu0 0.0
        %1914 = vmatprep.subr.mxu0 0.0
        %1915 = vmatpush1.msra.mxu0 0.0
        %1916 = vmatprep.subr.mxu0 0.0
        %1917 = vmatpush1.msra.mxu0 0.0
        %1918 = vmatprep.subr.mxu0 0.0
        %1919 = vmatpush1.msra.mxu0 0.0
        %1920 = vmatprep.subr.mxu0 0.0
        %1921 = vmatpush1.msra.mxu0 0.0
        %1922 = vmatprep.subr.mxu0 0.0
        %1923 = vmatpush1.msra.mxu0 0.0
        %1924 = vmatprep.subr.mxu0 0.0
        %1925 = vmatpush1.msra.mxu0 0.0
        %1926 = vmatprep.subr.mxu0 0.0
        %1927 = vmatpush1.msra.mxu0 0.0
        %1928 = vmatprep.subr.mxu0 0.0
        %1929 = vmatpush1.msra.mxu0 0.0
        %1930 = vmatprep.subr.mxu0 0.0
        %1931 = vmatpush1.msra.mxu0 0.0
        %1932 = vmatprep.subr.mxu0 0.0
        %1933 = vmatpush1.msra.mxu0 0.0
        %1934 = vmatprep.subr.mxu0 0.0
        %1935 = vmatpush1.msra.mxu0 0.0
        %1936 = vmatprep.subr.mxu0 0.0
        %1937 = vmatpush1.msra.mxu0 0.0
        %1938 = vmatprep.subr.mxu0 0.0
        %1939 = vmatpush1.msra.mxu0 0.0
        %1940 = vmatprep.subr.mxu0 0.0
        %1941 = vmatpush1.msra.mxu0 0.0
        %1942 = vmatprep.subr.mxu0 0.0
        %1943 = vmatpush1.msra.mxu0 0.0
        %1944 = vmatprep.subr.mxu0 0.0
        %1945 = vmatpush1.msra.mxu0 0.0
        %1946 = vmatprep.subr.mxu0 0.0
        %1947 = vmatpush1.msra.mxu0 0.0
        %1948 = vmatprep.subr.mxu0 0.0
        %1949 = vmatpush1.msra.mxu0 0.0
        %1950 = vmatprep.subr.mxu0 0.0
        %1951 = vmatpush1.msra.mxu0 0.0
        %1952 = vmatprep.subr.mxu0 0.0
        %1953 = vmatpush1.msra.mxu0 0.0
        %1954 = vmatprep.subr.mxu0 0.0
        %1955 = vmatpush1.msra.mxu0 0.0
        %1956 = vmatprep.subr.mxu0 0.0
        %1957 = vmatpush1.msra.mxu0 0.0
        %1958 = vmatprep.subr.mxu0 0.0
        %1959 = vmatpush1.msra.mxu0 0.0
        %1960 = vmatprep.subr.mxu0 0.0
        %1961 = vmatpush1.msra.mxu0 0.0
        %1962 = vmatprep.subr.mxu0 0.0
        %1963 = vmatpush1.msra.mxu0 0.0
        %1964 = vmatprep.subr.mxu0 0.0
        %1965 = vmatpush1.msra.mxu0 0.0
        %1966 = vmatprep.subr.mxu0 0.0
        %1967 = vmatpush1.msra.mxu0 0.0
        %1968 = vmatprep.subr.mxu0 0.0
        %1969 = vmatpush1.msra.mxu0 0.0
        %1970 = vmatprep.mubr.f32.mxu0 0.0
        %1971 = vmatmul.mubr.f32.gmra.mrb[0].mxu0 %v1675
        %v1972 = vpop.f32.mrb[0].mxu0
        %v1973 = vadd.f32 0.0, %v1972
        %v1974 = vpop.f32.mrb[0].mxu0
        %v1975 = vadd.f32 0.0, %v1974
        %1976 = vdwg.mxu0
        %v1977 = vadd.f32 %v1623, %v1760
        %v1978 = vadd.f32 %v1624, %v1762
        %v1979 = vadd.f32 %v1625, %v1831
        %v1980 = vadd.f32 %v1626, %v1833
        %v1981 = vadd.f32 %v1627, %v1902
        %v1982 = vadd.f32 %v1628, %v1904
        %v1983 = vadd.f32 %v1629, %v1973
        %v1984 = vadd.f32 %v1630, %v1975
        %v1985 = vld [vmem:[%s262] sm:$0xff]
        %v1986 = vld [vmem:[%s262 + $0x8] sm:$0xff]
        %v1987 = vld [vmem:[%s262 + $0x10] sm:$0xff]
        %v1988 = vld [vmem:[%s262 + $0x18] sm:$0xff]
        %v1989 = vld [vmem:[%s262 + $0x20] sm:$0xf]
        %s1990 = scalar_lea.vmem %s1, 40
        %v1991 = vld [vmem:[%s1990] sm:$0xff]
        %v1997 = vcombine.high %v1985, %v1985
        %v1998 = vcombine.high %v1986, %v1986
        %v1999 = vcombine.high %v1987, %v1987
        %v2000 = vcombine.high %v1988, %v1988
        %2001 = vrot.lane.b32.xlu0 %v1985, 116
        %v2002 = vpop.permute.xlu0 %2001
        %2003 = vrot.lane.b32.xlu0 %v1997, 116
        %v2004 = vpop.permute.xlu0 %2003
        %2005 = vrot.lane.b32.xlu0 %v1986, 116
        %v2006 = vpop.permute.xlu0 %2005
        %2007 = vrot.lane.b32.xlu0 %v1998, 116
        %v2008 = vpop.permute.xlu0 %2007
        %2009 = vrot.lane.b32.xlu0 %v1987, 116
        %v2010 = vpop.permute.xlu0 %2009
        %2011 = vrot.lane.b32.xlu0 %v1999, 116
        %v2012 = vpop.permute.xlu0 %2011
        %2013 = vrot.lane.b32.xlu0 %v1988, 116
        %v2014 = vpop.permute.xlu0 %2013
        %2015 = vrot.lane.b32.xlu0 %v2000, 116
        %v2016 = vpop.permute.xlu0 %2015
        %2017 = vrot.lane.b32.xlu0 %v1989, 116
        %v2018 = vpop.permute.xlu0 %2017
        %vm2019 = vcmask 949248
        %v2020 = vsel %vm2019, %v2002, %v2004
        %v2021 = vsel %vm2019, %v2004, %v2006
        %v2022 = vsel %vm2019, %v2006, %v2008
        %v2023 = vsel %vm2019, %v2008, %v2010
        %v2024 = vsel %vm2019, %v2010, %v2012
        %v2025 = vsel %vm2019, %v2012, %v2014
        %v2026 = vsel %vm2019, %v2014, %v2016
        %v2027 = vsel %vm2019, %v2016, %v2018
        %v2029 = vsel %vm315, %v1991, 0
        %v2031 = vsel %vm319, %v2020, 0
        %v2033 = vsel %vm319, %v2021, 0
        %v2035 = vsel %vm319, %v2022, 0
        %v2037 = vsel %vm319, %v2023, 0
        %v2039 = vsel %vm319, %v2024, 0
        %v2041 = vsel %vm319, %v2025, 0
        %v2043 = vsel %vm319, %v2026, 0
        %v2045 = vsel %vm319, %v2027, 0
        %2047 = vmatprep.subr.mxu0 %v2033
        %2048 = vmatpush1.msra.mxu0 %v2031
        %2049 = vmatprep.subr.mxu0 0.0
        %2050 = vmatpush1.msra.mxu0 0.0
        %2051 = vmatprep.subr.mxu0 0.0
        %2052 = vmatpush1.msra.mxu0 0.0
        %2053 = vmatprep.subr.mxu0 0.0
        %2054 = vmatpush1.msra.mxu0 0.0
        %2055 = vmatprep.subr.mxu0 0.0
        %2056 = vmatpush1.msra.mxu0 0.0
        %2057 = vmatprep.subr.mxu0 0.0
        %2058 = vmatpush1.msra.mxu0 0.0
        %2059 = vmatprep.subr.mxu0 0.0
        %2060 = vmatpush1.msra.mxu0 0.0
        %2061 = vmatprep.subr.mxu0 0.0
        %2062 = vmatpush1.msra.mxu0 0.0
        %2063 = vmatprep.subr.mxu0 0.0
        %2064 = vmatpush1.msra.mxu0 0.0
        %2065 = vmatprep.subr.mxu0 0.0
        %2066 = vmatpush1.msra.mxu0 0.0
        %2067 = vmatprep.subr.mxu0 0.0
        %2068 = vmatpush1.msra.mxu0 0.0
        %2069 = vmatprep.subr.mxu0 0.0
        %2070 = vmatpush1.msra.mxu0 0.0
        %2071 = vmatprep.subr.mxu0 0.0
        %2072 = vmatpush1.msra.mxu0 0.0
        %2073 = vmatprep.subr.mxu0 0.0
        %2074 = vmatpush1.msra.mxu0 0.0
        %2075 = vmatprep.subr.mxu0 0.0
        %2076 = vmatpush1.msra.mxu0 0.0
        %2077 = vmatprep.subr.mxu0 0.0
        %2078 = vmatpush1.msra.mxu0 0.0
        %2079 = vmatprep.subr.mxu0 0.0
        %2080 = vmatpush1.msra.mxu0 0.0
        %2081 = vmatprep.subr.mxu0 0.0
        %2082 = vmatpush1.msra.mxu0 0.0
        %2083 = vmatprep.subr.mxu0 0.0
        %2084 = vmatpush1.msra.mxu0 0.0
        %2085 = vmatprep.subr.mxu0 0.0
        %2086 = vmatpush1.msra.mxu0 0.0
        %2087 = vmatprep.subr.mxu0 0.0
        %2088 = vmatpush1.msra.mxu0 0.0
        %2089 = vmatprep.subr.mxu0 0.0
        %2090 = vmatpush1.msra.mxu0 0.0
        %2091 = vmatprep.subr.mxu0 0.0
        %2092 = vmatpush1.msra.mxu0 0.0
        %2093 = vmatprep.subr.mxu0 0.0
        %2094 = vmatpush1.msra.mxu0 0.0
        %2095 = vmatprep.subr.mxu0 0.0
        %2096 = vmatpush1.msra.mxu0 0.0
        %2097 = vmatprep.subr.mxu0 0.0
        %2098 = vmatpush1.msra.mxu0 0.0
        %2099 = vmatprep.subr.mxu0 0.0
        %2100 = vmatpush1.msra.mxu0 0.0
        %2101 = vmatprep.subr.mxu0 0.0
        %2102 = vmatpush1.msra.mxu0 0.0
        %2103 = vmatprep.subr.mxu0 0.0
        %2104 = vmatpush1.msra.mxu0 0.0
        %2105 = vmatprep.subr.mxu0 0.0
        %2106 = vmatpush1.msra.mxu0 0.0
        %2107 = vmatprep.subr.mxu0 0.0
        %2108 = vmatpush1.msra.mxu0 0.0
        %2109 = vmatprep.subr.mxu0 0.0
        %2110 = vmatpush1.msra.mxu0 0.0
        %2111 = vmatprep.mubr.f32.mxu0 0.0
        %2112 = vmatmul.mubr.f32.gmra.mrb[0].mxu0 %v2029
        %v2113 = vpop.f32.mrb[0].mxu0
        %v2114 = vadd.f32 0.0, %v2113
        %v2115 = vpop.f32.mrb[0].mxu0
        %v2116 = vadd.f32 0.0, %v2115
        %2117 = vdwg.mxu0
        %2118 = vmatprep.subr.mxu0 %v2037
        %2119 = vmatpush1.msra.mxu0 %v2035
        %2120 = vmatprep.subr.mxu0 0.0
        %2121 = vmatpush1.msra.mxu0 0.0
        %2122 = vmatprep.subr.mxu0 0.0
        %2123 = vmatpush1.msra.mxu0 0.0
        %2124 = vmatprep.subr.mxu0 0.0
        %2125 = vmatpush1.msra.mxu0 0.0
        %2126 = vmatprep.subr.mxu0 0.0
        %2127 = vmatpush1.msra.mxu0 0.0
        %2128 = vmatprep.subr.mxu0 0.0
        %2129 = vmatpush1.msra.mxu0 0.0
        %2130 = vmatprep.subr.mxu0 0.0
        %2131 = vmatpush1.msra.mxu0 0.0
        %2132 = vmatprep.subr.mxu0 0.0
        %2133 = vmatpush1.msra.mxu0 0.0
        %2134 = vmatprep.subr.mxu0 0.0
        %2135 = vmatpush1.msra.mxu0 0.0
        %2136 = vmatprep.subr.mxu0 0.0
        %2137 = vmatpush1.msra.mxu0 0.0
        %2138 = vmatprep.subr.mxu0 0.0
        %2139 = vmatpush1.msra.mxu0 0.0
        %2140 = vmatprep.subr.mxu0 0.0
        %2141 = vmatpush1.msra.mxu0 0.0
        %2142 = vmatprep.subr.mxu0 0.0
        %2143 = vmatpush1.msra.mxu0 0.0
        %2144 = vmatprep.subr.mxu0 0.0
        %2145 = vmatpush1.msra.mxu0 0.0
        %2146 = vmatprep.subr.mxu0 0.0
        %2147 = vmatpush1.msra.mxu0 0.0
        %2148 = vmatprep.subr.mxu0 0.0
        %2149 = vmatpush1.msra.mxu0 0.0
        %2150 = vmatprep.subr.mxu0 0.0
        %2151 = vmatpush1.msra.mxu0 0.0
        %2152 = vmatprep.subr.mxu0 0.0
        %2153 = vmatpush1.msra.mxu0 0.0
        %2154 = vmatprep.subr.mxu0 0.0
        %2155 = vmatpush1.msra.mxu0 0.0
        %2156 = vmatprep.subr.mxu0 0.0
        %2157 = vmatpush1.msra.mxu0 0.0
        %2158 = vmatprep.subr.mxu0 0.0
        %2159 = vmatpush1.msra.mxu0 0.0
        %2160 = vmatprep.subr.mxu0 0.0
        %2161 = vmatpush1.msra.mxu0 0.0
        %2162 = vmatprep.subr.mxu0 0.0
        %2163 = vmatpush1.msra.mxu0 0.0
        %2164 = vmatprep.subr.mxu0 0.0
        %2165 = vmatpush1.msra.mxu0 0.0
        %2166 = vmatprep.subr.mxu0 0.0
        %2167 = vmatpush1.msra.mxu0 0.0
        %2168 = vmatprep.subr.mxu0 0.0
        %2169 = vmatpush1.msra.mxu0 0.0
        %2170 = vmatprep.subr.mxu0 0.0
        %2171 = vmatpush1.msra.mxu0 0.0
        %2172 = vmatprep.subr.mxu0 0.0
        %2173 = vmatpush1.msra.mxu0 0.0
        %2174 = vmatprep.subr.mxu0 0.0
        %2175 = vmatpush1.msra.mxu0 0.0
        %2176 = vmatprep.subr.mxu0 0.0
        %2177 = vmatpush1.msra.mxu0 0.0
        %2178 = vmatprep.subr.mxu0 0.0
        %2179 = vmatpush1.msra.mxu0 0.0
        %2180 = vmatprep.subr.mxu0 0.0
        %2181 = vmatpush1.msra.mxu0 0.0
        %2182 = vmatprep.mubr.f32.mxu0 0.0
        %2183 = vmatmul.mubr.f32.gmra.mrb[0].mxu0 %v2029
        %v2184 = vpop.f32.mrb[0].mxu0
        %v2185 = vadd.f32 0.0, %v2184
        %v2186 = vpop.f32.mrb[0].mxu0
        %v2187 = vadd.f32 0.0, %v2186
        %2188 = vdwg.mxu0
        %2189 = vmatprep.subr.mxu0 %v2041
        %2190 = vmatpush1.msra.mxu0 %v2039
        %2191 = vmatprep.subr.mxu0 0.0
        %2192 = vmatpush1.msra.mxu0 0.0
        %2193 = vmatprep.subr.mxu0 0.0
        %2194 = vmatpush1.msra.mxu0 0.0
        %2195 = vmatprep.subr.mxu0 0.0
        %2196 = vmatpush1.msra.mxu0 0.0
        %2197 = vmatprep.subr.mxu0 0.0
        %2198 = vmatpush1.msra.mxu0 0.0
        %2199 = vmatprep.subr.mxu0 0.0
        %2200 = vmatpush1.msra.mxu0 0.0
        %2201 = vmatprep.subr.mxu0 0.0
        %2202 = vmatpush1.msra.mxu0 0.0
        %2203 = vmatprep.subr.mxu0 0.0
        %2204 = vmatpush1.msra.mxu0 0.0
        %2205 = vmatprep.subr.mxu0 0.0
        %2206 = vmatpush1.msra.mxu0 0.0
        %2207 = vmatprep.subr.mxu0 0.0
        %2208 = vmatpush1.msra.mxu0 0.0
        %2209 = vmatprep.subr.mxu0 0.0
        %2210 = vmatpush1.msra.mxu0 0.0
        %2211 = vmatprep.subr.mxu0 0.0
        %2212 = vmatpush1.msra.mxu0 0.0
        %2213 = vmatprep.subr.mxu0 0.0
        %2214 = vmatpush1.msra.mxu0 0.0
        %2215 = vmatprep.subr.mxu0 0.0
        %2216 = vmatpush1.msra.mxu0 0.0
        %2217 = vmatprep.subr.mxu0 0.0
        %2218 = vmatpush1.msra.mxu0 0.0
        %2219 = vmatprep.subr.mxu0 0.0
        %2220 = vmatpush1.msra.mxu0 0.0
        %2221 = vmatprep.subr.mxu0 0.0
        %2222 = vmatpush1.msra.mxu0 0.0
        %2223 = vmatprep.subr.mxu0 0.0
        %2224 = vmatpush1.msra.mxu0 0.0
        %2225 = vmatprep.subr.mxu0 0.0
        %2226 = vmatpush1.msra.mxu0 0.0
        %2227 = vmatprep.subr.mxu0 0.0
        %2228 = vmatpush1.msra.mxu0 0.0
        %2229 = vmatprep.subr.mxu0 0.0
        %2230 = vmatpush1.msra.mxu0 0.0
        %2231 = vmatprep.subr.mxu0 0.0
        %2232 = vmatpush1.msra.mxu0 0.0
        %2233 = vmatprep.subr.mxu0 0.0
        %2234 = vmatpush1.msra.mxu0 0.0
        %2235 = vmatprep.subr.mxu0 0.0
        %2236 = vmatpush1.msra.mxu0 0.0
        %2237 = vmatprep.subr.mxu0 0.0
        %2238 = vmatpush1.msra.mxu0 0.0
        %2239 = vmatprep.subr.mxu0 0.0
        %2240 = vmatpush1.msra.mxu0 0.0
        %2241 = vmatprep.subr.mxu0 0.0
        %2242 = vmatpush1.msra.mxu0 0.0
        %2243 = vmatprep.subr.mxu0 0.0
        %2244 = vmatpush1.msra.mxu0 0.0
        %2245 = vmatprep.subr.mxu0 0.0
        %2246 = vmatpush1.msra.mxu0 0.0
        %2247 = vmatprep.subr.mxu0 0.0
        %2248 = vmatpush1.msra.mxu0 0.0
        %2249 = vmatprep.subr.mxu0 0.0
        %2250 = vmatpush1.msra.mxu0 0.0
        %2251 = vmatprep.subr.mxu0 0.0
        %2252 = vmatpush1.msra.mxu0 0.0
        %2253 = vmatprep.mubr.f32.mxu0 0.0
        %2254 = vmatmul.mubr.f32.gmra.mrb[0].mxu0 %v2029
        %v2255 = vpop.f32.mrb[0].mxu0
        %v2256 = vadd.f32 0.0, %v2255
        %v2257 = vpop.f32.mrb[0].mxu0
        %v2258 = vadd.f32 0.0, %v2257
        %2259 = vdwg.mxu0
        %2260 = vmatprep.subr.mxu0 %v2045
        %2261 = vmatpush1.msra.mxu0 %v2043
        %2262 = vmatprep.subr.mxu0 0.0
        %2263 = vmatpush1.msra.mxu0 0.0
        %2264 = vmatprep.subr.mxu0 0.0
        %2265 = vmatpush1.msra.mxu0 0.0
        %2266 = vmatprep.subr.mxu0 0.0
        %2267 = vmatpush1.msra.mxu0 0.0
        %2268 = vmatprep.subr.mxu0 0.0
        %2269 = vmatpush1.msra.mxu0 0.0
        %2270 = vmatprep.subr.mxu0 0.0
        %2271 = vmatpush1.msra.mxu0 0.0
        %2272 = vmatprep.subr.mxu0 0.0
        %2273 = vmatpush1.msra.mxu0 0.0
        %2274 = vmatprep.subr.mxu0 0.0
        %2275 = vmatpush1.msra.mxu0 0.0
        %2276 = vmatprep.subr.mxu0 0.0
        %2277 = vmatpush1.msra.mxu0 0.0
        %2278 = vmatprep.subr.mxu0 0.0
        %2279 = vmatpush1.msra.mxu0 0.0
        %2280 = vmatprep.subr.mxu0 0.0
        %2281 = vmatpush1.msra.mxu0 0.0
        %2282 = vmatprep.subr.mxu0 0.0
        %2283 = vmatpush1.msra.mxu0 0.0
        %2284 = vmatprep.subr.mxu0 0.0
        %2285 = vmatpush1.msra.mxu0 0.0
        %2286 = vmatprep.subr.mxu0 0.0
        %2287 = vmatpush1.msra.mxu0 0.0
        %2288 = vmatprep.subr.mxu0 0.0
        %2289 = vmatpush1.msra.mxu0 0.0
        %2290 = vmatprep.subr.mxu0 0.0
        %2291 = vmatpush1.msra.mxu0 0.0
        %2292 = vmatprep.subr.mxu0 0.0
        %2293 = vmatpush1.msra.mxu0 0.0
        %2294 = vmatprep.subr.mxu0 0.0
        %2295 = vmatpush1.msra.mxu0 0.0
        %2296 = vmatprep.subr.mxu0 0.0
        %2297 = vmatpush1.msra.mxu0 0.0
        %2298 = vmatprep.subr.mxu0 0.0
        %2299 = vmatpush1.msra.mxu0 0.0
        %2300 = vmatprep.subr.mxu0 0.0
        %2301 = vmatpush1.msra.mxu0 0.0
        %2302 = vmatprep.subr.mxu0 0.0
        %2303 = vmatpush1.msra.mxu0 0.0
        %2304 = vmatprep.subr.mxu0 0.0
        %2305 = vmatpush1.msra.mxu0 0.0
        %2306 = vmatprep.subr.mxu0 0.0
        %2307 = vmatpush1.msra.mxu0 0.0
        %2308 = vmatprep.subr.mxu0 0.0
        %2309 = vmatpush1.msra.mxu0 0.0
        %2310 = vmatprep.subr.mxu0 0.0
        %2311 = vmatpush1.msra.mxu0 0.0
        %2312 = vmatprep.subr.mxu0 0.0
        %2313 = vmatpush1.msra.mxu0 0.0
        %2314 = vmatprep.subr.mxu0 0.0
        %2315 = vmatpush1.msra.mxu0 0.0
        %2316 = vmatprep.subr.mxu0 0.0
        %2317 = vmatpush1.msra.mxu0 0.0
        %2318 = vmatprep.subr.mxu0 0.0
        %2319 = vmatpush1.msra.mxu0 0.0
        %2320 = vmatprep.subr.mxu0 0.0
        %2321 = vmatpush1.msra.mxu0 0.0
        %2322 = vmatprep.subr.mxu0 0.0
        %2323 = vmatpush1.msra.mxu0 0.0
        %2324 = vmatprep.mubr.f32.mxu0 0.0
        %2325 = vmatmul.mubr.f32.gmra.mrb[0].mxu0 %v2029
        %v2326 = vpop.f32.mrb[0].mxu0
        %v2327 = vadd.f32 0.0, %v2326
        %v2328 = vpop.f32.mrb[0].mxu0
        %v2329 = vadd.f32 0.0, %v2328
        %2330 = vdwg.mxu0
        %v2331 = vadd.f32 %v1977, %v2114
        %v2332 = vadd.f32 %v1978, %v2116
        %v2333 = vadd.f32 %v1979, %v2185
        %v2334 = vadd.f32 %v1980, %v2187
        %v2335 = vadd.f32 %v1981, %v2256
        %v2336 = vadd.f32 %v1982, %v2258
        %v2337 = vadd.f32 %v1983, %v2327
        %v2338 = vadd.f32 %v1984, %v2329
        %v2339 = vld [vmem:[%s262] sm:$0xff]
        %v2340 = vld [vmem:[%s262 + $0x8] sm:$0xff]
        %v2341 = vld [vmem:[%s262 + $0x10] sm:$0xff]
        %v2342 = vld [vmem:[%s262 + $0x18] sm:$0xff]
        %v2343 = vld [vmem:[%s262 + $0x20] sm:$0xf]
        %s2344 = scalar_lea.vmem %s1, 48
        %v2345 = vld [vmem:[%s2344] sm:$0xff]
        %v2351 = vcombine.high %v2339, %v2339
        %v2352 = vcombine.high %v2340, %v2340
        %v2353 = vcombine.high %v2341, %v2341
        %v2354 = vcombine.high %v2342, %v2342
        %2355 = vrot.lane.b32.xlu0 %v2339, 108
        %v2356 = vpop.permute.xlu0 %2355
        %2357 = vrot.lane.b32.xlu0 %v2351, 108
        %v2358 = vpop.permute.xlu0 %2357
        %2359 = vrot.lane.b32.xlu0 %v2340, 108
        %v2360 = vpop.permute.xlu0 %2359
        %2361 = vrot.lane.b32.xlu0 %v2352, 108
        %v2362 = vpop.permute.xlu0 %2361
        %2363 = vrot.lane.b32.xlu0 %v2341, 108
        %v2364 = vpop.permute.xlu0 %2363
        %2365 = vrot.lane.b32.xlu0 %v2353, 108
        %v2366 = vpop.permute.xlu0 %2365
        %2367 = vrot.lane.b32.xlu0 %v2342, 108
        %v2368 = vpop.permute.xlu0 %2367
        %2369 = vrot.lane.b32.xlu0 %v2354, 108
        %v2370 = vpop.permute.xlu0 %2369
        %2371 = vrot.lane.b32.xlu0 %v2343, 108
        %v2372 = vpop.permute.xlu0 %2371
        %vm2373 = vcmask 883712
        %v2374 = vsel %vm2373, %v2356, %v2358
        %v2375 = vsel %vm2373, %v2358, %v2360
        %v2376 = vsel %vm2373, %v2360, %v2362
        %v2377 = vsel %vm2373, %v2362, %v2364
        %v2378 = vsel %vm2373, %v2364, %v2366
        %v2379 = vsel %vm2373, %v2366, %v2368
        %v2380 = vsel %vm2373, %v2368, %v2370
        %v2381 = vsel %vm2373, %v2370, %v2372
        %v2383 = vsel %vm315, %v2345, 0
        %v2385 = vsel %vm319, %v2374, 0
        %v2387 = vsel %vm319, %v2375, 0
        %v2389 = vsel %vm319, %v2376, 0
        %v2391 = vsel %vm319, %v2377, 0
        %v2393 = vsel %vm319, %v2378, 0
        %v2395 = vsel %vm319, %v2379, 0
        %v2397 = vsel %vm319, %v2380, 0
        %v2399 = vsel %vm319, %v2381, 0
        %2401 = vmatprep.subr.mxu0 %v2387
        %2402 = vmatpush1.msra.mxu0 %v2385
        %2403 = vmatprep.subr.mxu0 0.0
        %2404 = vmatpush1.msra.mxu0 0.0
        %2405 = vmatprep.subr.mxu0 0.0
        %2406 = vmatpush1.msra.mxu0 0.0
        %2407 = vmatprep.subr.mxu0 0.0
        %2408 = vmatpush1.msra.mxu0 0.0
        %2409 = vmatprep.subr.mxu0 0.0
        %2410 = vmatpush1.msra.mxu0 0.0
        %2411 = vmatprep.subr.mxu0 0.0
        %2412 = vmatpush1.msra.mxu0 0.0
        %2413 = vmatprep.subr.mxu0 0.0
        %2414 = vmatpush1.msra.mxu0 0.0
        %2415 = vmatprep.subr.mxu0 0.0
        %2416 = vmatpush1.msra.mxu0 0.0
        %2417 = vmatprep.subr.mxu0 0.0
        %2418 = vmatpush1.msra.mxu0 0.0
        %2419 = vmatprep.subr.mxu0 0.0
        %2420 = vmatpush1.msra.mxu0 0.0
        %2421 = vmatprep.subr.mxu0 0.0
        %2422 = vmatpush1.msra.mxu0 0.0
        %2423 = vmatprep.subr.mxu0 0.0
        %2424 = vmatpush1.msra.mxu0 0.0
        %2425 = vmatprep.subr.mxu0 0.0
        %2426 = vmatpush1.msra.mxu0 0.0
        %2427 = vmatprep.subr.mxu0 0.0
        %2428 = vmatpush1.msra.mxu0 0.0
        %2429 = vmatprep.subr.mxu0 0.0
        %2430 = vmatpush1.msra.mxu0 0.0
        %2431 = vmatprep.subr.mxu0 0.0
        %2432 = vmatpush1.msra.mxu0 0.0
        %2433 = vmatprep.subr.mxu0 0.0
        %2434 = vmatpush1.msra.mxu0 0.0
        %2435 = vmatprep.subr.mxu0 0.0
        %2436 = vmatpush1.msra.mxu0 0.0
        %2437 = vmatprep.subr.mxu0 0.0
        %2438 = vmatpush1.msra.mxu0 0.0
        %2439 = vmatprep.subr.mxu0 0.0
        %2440 = vmatpush1.msra.mxu0 0.0
        %2441 = vmatprep.subr.mxu0 0.0
        %2442 = vmatpush1.msra.mxu0 0.0
        %2443 = vmatprep.subr.mxu0 0.0
        %2444 = vmatpush1.msra.mxu0 0.0
        %2445 = vmatprep.subr.mxu0 0.0
        %2446 = vmatpush1.msra.mxu0 0.0
        %2447 = vmatprep.subr.mxu0 0.0
        %2448 = vmatpush1.msra.mxu0 0.0
        %2449 = vmatprep.subr.mxu0 0.0
        %2450 = vmatpush1.msra.mxu0 0.0
        %2451 = vmatprep.subr.mxu0 0.0
        %2452 = vmatpush1.msra.mxu0 0.0
        %2453 = vmatprep.subr.mxu0 0.0
        %2454 = vmatpush1.msra.mxu0 0.0
        %2455 = vmatprep.subr.mxu0 0.0
        %2456 = vmatpush1.msra.mxu0 0.0
        %2457 = vmatprep.subr.mxu0 0.0
        %2458 = vmatpush1.msra.mxu0 0.0
        %2459 = vmatprep.subr.mxu0 0.0
        %2460 = vmatpush1.msra.mxu0 0.0
        %2461 = vmatprep.subr.mxu0 0.0
        %2462 = vmatpush1.msra.mxu0 0.0
        %2463 = vmatprep.subr.mxu0 0.0
        %2464 = vmatpush1.msra.mxu0 0.0
        %2465 = vmatprep.mubr.f32.mxu0 0.0
        %2466 = vmatmul.mubr.f32.gmra.mrb[0].mxu0 %v2383
        %v2467 = vpop.f32.mrb[0].mxu0
        %v2468 = vadd.f32 0.0, %v2467
        %v2469 = vpop.f32.mrb[0].mxu0
        %v2470 = vadd.f32 0.0, %v2469
        %2471 = vdwg.mxu0
        %2472 = vmatprep.subr.mxu0 %v2391
        %2473 = vmatpush1.msra.mxu0 %v2389
        %2474 = vmatprep.subr.mxu0 0.0
        %2475 = vmatpush1.msra.mxu0 0.0
        %2476 = vmatprep.subr.mxu0 0.0
        %2477 = vmatpush1.msra.mxu0 0.0
        %2478 = vmatprep.subr.mxu0 0.0
        %2479 = vmatpush1.msra.mxu0 0.0
        %2480 = vmatprep.subr.mxu0 0.0
        %2481 = vmatpush1.msra.mxu0 0.0
        %2482 = vmatprep.subr.mxu0 0.0
        %2483 = vmatpush1.msra.mxu0 0.0
        %2484 = vmatprep.subr.mxu0 0.0
        %2485 = vmatpush1.msra.mxu0 0.0
        %2486 = vmatprep.subr.mxu0 0.0
        %2487 = vmatpush1.msra.mxu0 0.0
        %2488 = vmatprep.subr.mxu0 0.0
        %2489 = vmatpush1.msra.mxu0 0.0
        %2490 = vmatprep.subr.mxu0 0.0
        %2491 = vmatpush1.msra.mxu0 0.0
        %2492 = vmatprep.subr.mxu0 0.0
        %2493 = vmatpush1.msra.mxu0 0.0
        %2494 = vmatprep.subr.mxu0 0.0
        %2495 = vmatpush1.msra.mxu0 0.0
        %2496 = vmatprep.subr.mxu0 0.0
        %2497 = vmatpush1.msra.mxu0 0.0
        %2498 = vmatprep.subr.mxu0 0.0
        %2499 = vmatpush1.msra.mxu0 0.0
        %2500 = vmatprep.subr.mxu0 0.0
        %2501 = vmatpush1.msra.mxu0 0.0
        %2502 = vmatprep.subr.mxu0 0.0
        %2503 = vmatpush1.msra.mxu0 0.0
        %2504 = vmatprep.subr.mxu0 0.0
        %2505 = vmatpush1.msra.mxu0 0.0
        %2506 = vmatprep.subr.mxu0 0.0
        %2507 = vmatpush1.msra.mxu0 0.0
        %2508 = vmatprep.subr.mxu0 0.0
        %2509 = vmatpush1.msra.mxu0 0.0
        %2510 = vmatprep.subr.mxu0 0.0
        %2511 = vmatpush1.msra.mxu0 0.0
        %2512 = vmatprep.subr.mxu0 0.0
        %2513 = vmatpush1.msra.mxu0 0.0
        %2514 = vmatprep.subr.mxu0 0.0
        %2515 = vmatpush1.msra.mxu0 0.0
        %2516 = vmatprep.subr.mxu0 0.0
        %2517 = vmatpush1.msra.mxu0 0.0
        %2518 = vmatprep.subr.mxu0 0.0
        %2519 = vmatpush1.msra.mxu0 0.0
        %2520 = vmatprep.subr.mxu0 0.0
        %2521 = vmatpush1.msra.mxu0 0.0
        %2522 = vmatprep.subr.mxu0 0.0
        %2523 = vmatpush1.msra.mxu0 0.0
        %2524 = vmatprep.subr.mxu0 0.0
        %2525 = vmatpush1.msra.mxu0 0.0
        %2526 = vmatprep.subr.mxu0 0.0
        %2527 = vmatpush1.msra.mxu0 0.0
        %2528 = vmatprep.subr.mxu0 0.0
        %2529 = vmatpush1.msra.mxu0 0.0
        %2530 = vmatprep.subr.mxu0 0.0
        %2531 = vmatpush1.msra.mxu0 0.0
        %2532 = vmatprep.subr.mxu0 0.0
        %2533 = vmatpush1.msra.mxu0 0.0
        %2534 = vmatprep.subr.mxu0 0.0
        %2535 = vmatpush1.msra.mxu0 0.0
        %2536 = vmatprep.mubr.f32.mxu0 0.0
        %2537 = vmatmul.mubr.f32.gmra.mrb[0].mxu0 %v2383
        %v2538 = vpop.f32.mrb[0].mxu0
        %v2539 = vadd.f32 0.0, %v2538
        %v2540 = vpop.f32.mrb[0].mxu0
        %v2541 = vadd.f32 0.0, %v2540
        %2542 = vdwg.mxu0
        %2543 = vmatprep.subr.mxu0 %v2395
        %2544 = vmatpush1.msra.mxu0 %v2393
        %2545 = vmatprep.subr.mxu0 0.0
        %2546 = vmatpush1.msra.mxu0 0.0
        %2547 = vmatprep.subr.mxu0 0.0
        %2548 = vmatpush1.msra.mxu0 0.0
        %2549 = vmatprep.subr.mxu0 0.0
        %2550 = vmatpush1.msra.mxu0 0.0
        %2551 = vmatprep.subr.mxu0 0.0
        %2552 = vmatpush1.msra.mxu0 0.0
        %2553 = vmatprep.subr.mxu0 0.0
        %2554 = vmatpush1.msra.mxu0 0.0
        %2555 = vmatprep.subr.mxu0 0.0
        %2556 = vmatpush1.msra.mxu0 0.0
        %2557 = vmatprep.subr.mxu0 0.0
        %2558 = vmatpush1.msra.mxu0 0.0
        %2559 = vmatprep.subr.mxu0 0.0
        %2560 = vmatpush1.msra.mxu0 0.0
        %2561 = vmatprep.subr.mxu0 0.0
        %2562 = vmatpush1.msra.mxu0 0.0
        %2563 = vmatprep.subr.mxu0 0.0
        %2564 = vmatpush1.msra.mxu0 0.0
        %2565 = vmatprep.subr.mxu0 0.0
        %2566 = vmatpush1.msra.mxu0 0.0
        %2567 = vmatprep.subr.mxu0 0.0
        %2568 = vmatpush1.msra.mxu0 0.0
        %2569 = vmatprep.subr.mxu0 0.0
        %2570 = vmatpush1.msra.mxu0 0.0
        %2571 = vmatprep.subr.mxu0 0.0
        %2572 = vmatpush1.msra.mxu0 0.0
        %2573 = vmatprep.subr.mxu0 0.0
        %2574 = vmatpush1.msra.mxu0 0.0
        %2575 = vmatprep.subr.mxu0 0.0
        %2576 = vmatpush1.msra.mxu0 0.0
        %2577 = vmatprep.subr.mxu0 0.0
        %2578 = vmatpush1.msra.mxu0 0.0
        %2579 = vmatprep.subr.mxu0 0.0
        %2580 = vmatpush1.msra.mxu0 0.0
        %2581 = vmatprep.subr.mxu0 0.0
        %2582 = vmatpush1.msra.mxu0 0.0
        %2583 = vmatprep.subr.mxu0 0.0
        %2584 = vmatpush1.msra.mxu0 0.0
        %2585 = vmatprep.subr.mxu0 0.0
        %2586 = vmatpush1.msra.mxu0 0.0
        %2587 = vmatprep.subr.mxu0 0.0
        %2588 = vmatpush1.msra.mxu0 0.0
        %2589 = vmatprep.subr.mxu0 0.0
        %2590 = vmatpush1.msra.mxu0 0.0
        %2591 = vmatprep.subr.mxu0 0.0
        %2592 = vmatpush1.msra.mxu0 0.0
        %2593 = vmatprep.subr.mxu0 0.0
        %2594 = vmatpush1.msra.mxu0 0.0
        %2595 = vmatprep.subr.mxu0 0.0
        %2596 = vmatpush1.msra.mxu0 0.0
        %2597 = vmatprep.subr.mxu0 0.0
        %2598 = vmatpush1.msra.mxu0 0.0
        %2599 = vmatprep.subr.mxu0 0.0
        %2600 = vmatpush1.msra.mxu0 0.0
        %2601 = vmatprep.subr.mxu0 0.0
        %2602 = vmatpush1.msra.mxu0 0.0
        %2603 = vmatprep.subr.mxu0 0.0
        %2604 = vmatpush1.msra.mxu0 0.0
        %2605 = vmatprep.subr.mxu0 0.0
        %2606 = vmatpush1.msra.mxu0 0.0
        %2607 = vmatprep.mubr.f32.mxu0 0.0
        %2608 = vmatmul.mubr.f32.gmra.mrb[0].mxu0 %v2383
        %v2609 = vpop.f32.mrb[0].mxu0
        %v2610 = vadd.f32 0.0, %v2609
        %v2611 = vpop.f32.mrb[0].mxu0
        %v2612 = vadd.f32 0.0, %v2611
        %2613 = vdwg.mxu0
        %2614 = vmatprep.subr.mxu0 %v2399
        %2615 = vmatpush1.msra.mxu0 %v2397
        %2616 = vmatprep.subr.mxu0 0.0
        %2617 = vmatpush1.msra.mxu0 0.0
        %2618 = vmatprep.subr.mxu0 0.0
        %2619 = vmatpush1.msra.mxu0 0.0
        %2620 = vmatprep.subr.mxu0 0.0
        %2621 = vmatpush1.msra.mxu0 0.0
        %2622 = vmatprep.subr.mxu0 0.0
        %2623 = vmatpush1.msra.mxu0 0.0
        %2624 = vmatprep.subr.mxu0 0.0
        %2625 = vmatpush1.msra.mxu0 0.0
        %2626 = vmatprep.subr.mxu0 0.0
        %2627 = vmatpush1.msra.mxu0 0.0
        %2628 = vmatprep.subr.mxu0 0.0
        %2629 = vmatpush1.msra.mxu0 0.0
        %2630 = vmatprep.subr.mxu0 0.0
        %2631 = vmatpush1.msra.mxu0 0.0
        %2632 = vmatprep.subr.mxu0 0.0
        %2633 = vmatpush1.msra.mxu0 0.0
        %2634 = vmatprep.subr.mxu0 0.0
        %2635 = vmatpush1.msra.mxu0 0.0
        %2636 = vmatprep.subr.mxu0 0.0
        %2637 = vmatpush1.msra.mxu0 0.0
        %2638 = vmatprep.subr.mxu0 0.0
        %2639 = vmatpush1.msra.mxu0 0.0
        %2640 = vmatprep.subr.mxu0 0.0
        %2641 = vmatpush1.msra.mxu0 0.0
        %2642 = vmatprep.subr.mxu0 0.0
        %2643 = vmatpush1.msra.mxu0 0.0
        %2644 = vmatprep.subr.mxu0 0.0
        %2645 = vmatpush1.msra.mxu0 0.0
        %2646 = vmatprep.subr.mxu0 0.0
        %2647 = vmatpush1.msra.mxu0 0.0
        %2648 = vmatprep.subr.mxu0 0.0
        %2649 = vmatpush1.msra.mxu0 0.0
        %2650 = vmatprep.subr.mxu0 0.0
        %2651 = vmatpush1.msra.mxu0 0.0
        %2652 = vmatprep.subr.mxu0 0.0
        %2653 = vmatpush1.msra.mxu0 0.0
        %2654 = vmatprep.subr.mxu0 0.0
        %2655 = vmatpush1.msra.mxu0 0.0
        %2656 = vmatprep.subr.mxu0 0.0
        %2657 = vmatpush1.msra.mxu0 0.0
        %2658 = vmatprep.subr.mxu0 0.0
        %2659 = vmatpush1.msra.mxu0 0.0
        %2660 = vmatprep.subr.mxu0 0.0
        %2661 = vmatpush1.msra.mxu0 0.0
        %2662 = vmatprep.subr.mxu0 0.0
        %2663 = vmatpush1.msra.mxu0 0.0
        %2664 = vmatprep.subr.mxu0 0.0
        %2665 = vmatpush1.msra.mxu0 0.0
        %2666 = vmatprep.subr.mxu0 0.0
        %2667 = vmatpush1.msra.mxu0 0.0
        %2668 = vmatprep.subr.mxu0 0.0
        %2669 = vmatpush1.msra.mxu0 0.0
        %2670 = vmatprep.subr.mxu0 0.0
        %2671 = vmatpush1.msra.mxu0 0.0
        %2672 = vmatprep.subr.mxu0 0.0
        %2673 = vmatpush1.msra.mxu0 0.0
        %2674 = vmatprep.subr.mxu0 0.0
        %2675 = vmatpush1.msra.mxu0 0.0
        %2676 = vmatprep.subr.mxu0 0.0
        %2677 = vmatpush1.msra.mxu0 0.0
        %2678 = vmatprep.mubr.f32.mxu0 0.0
        %2679 = vmatmul.mubr.f32.gmra.mrb[0].mxu0 %v2383
        %v2680 = vpop.f32.mrb[0].mxu0
        %v2681 = vadd.f32 0.0, %v2680
        %v2682 = vpop.f32.mrb[0].mxu0
        %v2683 = vadd.f32 0.0, %v2682
        %2684 = vdwg.mxu0
        %v2685 = vadd.f32 %v2331, %v2468
        %v2686 = vadd.f32 %v2332, %v2470
        %v2687 = vadd.f32 %v2333, %v2539
        %v2688 = vadd.f32 %v2334, %v2541
        %v2689 = vadd.f32 %v2335, %v2610
        %v2690 = vadd.f32 %v2336, %v2612
        %v2691 = vadd.f32 %v2337, %v2681
        %v2692 = vadd.f32 %v2338, %v2683
        %v2693 = vld [vmem:[%s262] sm:$0xff]
        %v2694 = vld [vmem:[%s262 + $0x8] sm:$0xff]
        %v2695 = vld [vmem:[%s262 + $0x10] sm:$0xff]
        %v2696 = vld [vmem:[%s262 + $0x18] sm:$0xff]
        %v2697 = vld [vmem:[%s262 + $0x20] sm:$0xf]
        %s2698 = scalar_lea.vmem %s1, 56
        %v2699 = vld [vmem:[%s2698] sm:$0xff]
        %v2705 = vcombine.high %v2693, %v2693
        %v2706 = vcombine.high %v2694, %v2694
        %v2707 = vcombine.high %v2695, %v2695
        %v2708 = vcombine.high %v2696, %v2696
        %2709 = vrot.lane.b32.xlu0 %v2693, 107
        %v2710 = vpop.permute.xlu0 %2709
        %2711 = vrot.lane.b32.xlu0 %v2705, 107
        %v2712 = vpop.permute.xlu0 %2711
        %2713 = vrot.lane.b32.xlu0 %v2694, 107
        %v2714 = vpop.permute.xlu0 %2713
        %2715 = vrot.lane.b32.xlu0 %v2706, 107
        %v2716 = vpop.permute.xlu0 %2715
        %2717 = vrot.lane.b32.xlu0 %v2695, 107
        %v2718 = vpop.permute.xlu0 %2717
        %2719 = vrot.lane.b32.xlu0 %v2707, 107
        %v2720 = vpop.permute.xlu0 %2719
        %2721 = vrot.lane.b32.xlu0 %v2696, 107
        %v2722 = vpop.permute.xlu0 %2721
        %2723 = vrot.lane.b32.xlu0 %v2708, 107
        %v2724 = vpop.permute.xlu0 %2723
        %2725 = vrot.lane.b32.xlu0 %v2697, 107
        %v2726 = vpop.permute.xlu0 %2725
        %vm2727 = vcmask 875520
        %v2728 = vsel %vm2727, %v2710, %v2712
        %v2729 = vsel %vm2727, %v2712, %v2714
        %v2730 = vsel %vm2727, %v2714, %v2716
        %v2731 = vsel %vm2727, %v2716, %v2718
        %v2732 = vsel %vm2727, %v2718, %v2720
        %v2733 = vsel %vm2727, %v2720, %v2722
        %v2734 = vsel %vm2727, %v2722, %v2724
        %v2735 = vsel %vm2727, %v2724, %v2726
        %v2737 = vsel %vm315, %v2699, 0
        %v2739 = vsel %vm319, %v2728, 0
        %v2741 = vsel %vm319, %v2729, 0
        %v2743 = vsel %vm319, %v2730, 0
        %v2745 = vsel %vm319, %v2731, 0
        %v2747 = vsel %vm319, %v2732, 0
        %v2749 = vsel %vm319, %v2733, 0
        %v2751 = vsel %vm319, %v2734, 0
        %v2753 = vsel %vm319, %v2735, 0
        %2755 = vmatprep.subr.mxu0 %v2741
        %2756 = vmatpush1.msra.mxu0 %v2739
        %2757 = vmatprep.subr.mxu0 0.0
        %2758 = vmatpush1.msra.mxu0 0.0
        %2759 = vmatprep.subr.mxu0 0.0
        %2760 = vmatpush1.msra.mxu0 0.0
        %2761 = vmatprep.subr.mxu0 0.0
        %2762 = vmatpush1.msra.mxu0 0.0
        %2763 = vmatprep.subr.mxu0 0.0
        %2764 = vmatpush1.msra.mxu0 0.0
        %2765 = vmatprep.subr.mxu0 0.0
        %2766 = vmatpush1.msra.mxu0 0.0
        %2767 = vmatprep.subr.mxu0 0.0
        %2768 = vmatpush1.msra.mxu0 0.0
        %2769 = vmatprep.subr.mxu0 0.0
        %2770 = vmatpush1.msra.mxu0 0.0
        %2771 = vmatprep.subr.mxu0 0.0
        %2772 = vmatpush1.msra.mxu0 0.0
        %2773 = vmatprep.subr.mxu0 0.0
        %2774 = vmatpush1.msra.mxu0 0.0
        %2775 = vmatprep.subr.mxu0 0.0
        %2776 = vmatpush1.msra.mxu0 0.0
        %2777 = vmatprep.subr.mxu0 0.0
        %2778 = vmatpush1.msra.mxu0 0.0
        %2779 = vmatprep.subr.mxu0 0.0
        %2780 = vmatpush1.msra.mxu0 0.0
        %2781 = vmatprep.subr.mxu0 0.0
        %2782 = vmatpush1.msra.mxu0 0.0
        %2783 = vmatprep.subr.mxu0 0.0
        %2784 = vmatpush1.msra.mxu0 0.0
        %2785 = vmatprep.subr.mxu0 0.0
        %2786 = vmatpush1.msra.mxu0 0.0
        %2787 = vmatprep.subr.mxu0 0.0
        %2788 = vmatpush1.msra.mxu0 0.0
        %2789 = vmatprep.subr.mxu0 0.0
        %2790 = vmatpush1.msra.mxu0 0.0
        %2791 = vmatprep.subr.mxu0 0.0
        %2792 = vmatpush1.msra.mxu0 0.0
        %2793 = vmatprep.subr.mxu0 0.0
        %2794 = vmatpush1.msra.mxu0 0.0
        %2795 = vmatprep.subr.mxu0 0.0
        %2796 = vmatpush1.msra.mxu0 0.0
        %2797 = vmatprep.subr.mxu0 0.0
        %2798 = vmatpush1.msra.mxu0 0.0
        %2799 = vmatprep.subr.mxu0 0.0
        %2800 = vmatpush1.msra.mxu0 0.0
        %2801 = vmatprep.subr.mxu0 0.0
        %2802 = vmatpush1.msra.mxu0 0.0
        %2803 = vmatprep.subr.mxu0 0.0
        %2804 = vmatpush1.msra.mxu0 0.0
        %2805 = vmatprep.subr.mxu0 0.0
        %2806 = vmatpush1.msra.mxu0 0.0
        %2807 = vmatprep.subr.mxu0 0.0
        %2808 = vmatpush1.msra.mxu0 0.0
        %2809 = vmatprep.subr.mxu0 0.0
        %2810 = vmatpush1.msra.mxu0 0.0
        %2811 = vmatprep.subr.mxu0 0.0
        %2812 = vmatpush1.msra.mxu0 0.0
        %2813 = vmatprep.subr.mxu0 0.0
        %2814 = vmatpush1.msra.mxu0 0.0
        %2815 = vmatprep.subr.mxu0 0.0
        %2816 = vmatpush1.msra.mxu0 0.0
        %2817 = vmatprep.subr.mxu0 0.0
        %2818 = vmatpush1.msra.mxu0 0.0
        %2819 = vmatprep.mubr.f32.mxu0 0.0
        %2820 = vmatmul.mubr.f32.gmra.mrb[0].mxu0 %v2737
        %v2821 = vpop.f32.mrb[0].mxu0
        %v2822 = vadd.f32 0.0, %v2821
        %v2823 = vpop.f32.mrb[0].mxu0
        %v2824 = vadd.f32 0.0, %v2823
        %2825 = vdwg.mxu0
        %2826 = vmatprep.subr.mxu0 %v2745
        %2827 = vmatpush1.msra.mxu0 %v2743
        %2828 = vmatprep.subr.mxu0 0.0
        %2829 = vmatpush1.msra.mxu0 0.0
        %2830 = vmatprep.subr.mxu0 0.0
        %2831 = vmatpush1.msra.mxu0 0.0
        %2832 = vmatprep.subr.mxu0 0.0
        %2833 = vmatpush1.msra.mxu0 0.0
        %2834 = vmatprep.subr.mxu0 0.0
        %2835 = vmatpush1.msra.mxu0 0.0
        %2836 = vmatprep.subr.mxu0 0.0
        %2837 = vmatpush1.msra.mxu0 0.0
        %2838 = vmatprep.subr.mxu0 0.0
        %2839 = vmatpush1.msra.mxu0 0.0
        %2840 = vmatprep.subr.mxu0 0.0
        %2841 = vmatpush1.msra.mxu0 0.0
        %2842 = vmatprep.subr.mxu0 0.0
        %2843 = vmatpush1.msra.mxu0 0.0
        %2844 = vmatprep.subr.mxu0 0.0
        %2845 = vmatpush1.msra.mxu0 0.0
        %2846 = vmatprep.subr.mxu0 0.0
        %2847 = vmatpush1.msra.mxu0 0.0
        %2848 = vmatprep.subr.mxu0 0.0
        %2849 = vmatpush1.msra.mxu0 0.0
        %2850 = vmatprep.subr.mxu0 0.0
        %2851 = vmatpush1.msra.mxu0 0.0
        %2852 = vmatprep.subr.mxu0 0.0
        %2853 = vmatpush1.msra.mxu0 0.0
        %2854 = vmatprep.subr.mxu0 0.0
        %2855 = vmatpush1.msra.mxu0 0.0
        %2856 = vmatprep.subr.mxu0 0.0
        %2857 = vmatpush1.msra.mxu0 0.0
        %2858 = vmatprep.subr.mxu0 0.0
        %2859 = vmatpush1.msra.mxu0 0.0
        %2860 = vmatprep.subr.mxu0 0.0
        %2861 = vmatpush1.msra.mxu0 0.0
        %2862 = vmatprep.subr.mxu0 0.0
        %2863 = vmatpush1.msra.mxu0 0.0
        %2864 = vmatprep.subr.mxu0 0.0
        %2865 = vmatpush1.msra.mxu0 0.0
        %2866 = vmatprep.subr.mxu0 0.0
        %2867 = vmatpush1.msra.mxu0 0.0
        %2868 = vmatprep.subr.mxu0 0.0
        %2869 = vmatpush1.msra.mxu0 0.0
        %2870 = vmatprep.subr.mxu0 0.0
        %2871 = vmatpush1.msra.mxu0 0.0
        %2872 = vmatprep.subr.mxu0 0.0
        %2873 = vmatpush1.msra.mxu0 0.0
        %2874 = vmatprep.subr.mxu0 0.0
        %2875 = vmatpush1.msra.mxu0 0.0
        %2876 = vmatprep.subr.mxu0 0.0
        %2877 = vmatpush1.msra.mxu0 0.0
        %2878 = vmatprep.subr.mxu0 0.0
        %2879 = vmatpush1.msra.mxu0 0.0
        %2880 = vmatprep.subr.mxu0 0.0
        %2881 = vmatpush1.msra.mxu0 0.0
        %2882 = vmatprep.subr.mxu0 0.0
        %2883 = vmatpush1.msra.mxu0 0.0
        %2884 = vmatprep.subr.mxu0 0.0
        %2885 = vmatpush1.msra.mxu0 0.0
        %2886 = vmatprep.subr.mxu0 0.0
        %2887 = vmatpush1.msra.mxu0 0.0
        %2888 = vmatprep.subr.mxu0 0.0
        %2889 = vmatpush1.msra.mxu0 0.0
        %2890 = vmatprep.mubr.f32.mxu0 0.0
        %2891 = vmatmul.mubr.f32.gmra.mrb[0].mxu0 %v2737
        %v2892 = vpop.f32.mrb[0].mxu0
        %v2893 = vadd.f32 0.0, %v2892
        %v2894 = vpop.f32.mrb[0].mxu0
        %v2895 = vadd.f32 0.0, %v2894
        %2896 = vdwg.mxu0
        %2897 = vmatprep.subr.mxu0 %v2749
        %2898 = vmatpush1.msra.mxu0 %v2747
        %2899 = vmatprep.subr.mxu0 0.0
        %2900 = vmatpush1.msra.mxu0 0.0
        %2901 = vmatprep.subr.mxu0 0.0
        %2902 = vmatpush1.msra.mxu0 0.0
        %2903 = vmatprep.subr.mxu0 0.0
        %2904 = vmatpush1.msra.mxu0 0.0
        %2905 = vmatprep.subr.mxu0 0.0
        %2906 = vmatpush1.msra.mxu0 0.0
        %2907 = vmatprep.subr.mxu0 0.0
        %2908 = vmatpush1.msra.mxu0 0.0
        %2909 = vmatprep.subr.mxu0 0.0
        %2910 = vmatpush1.msra.mxu0 0.0
        %2911 = vmatprep.subr.mxu0 0.0
        %2912 = vmatpush1.msra.mxu0 0.0
        %2913 = vmatprep.subr.mxu0 0.0
        %2914 = vmatpush1.msra.mxu0 0.0
        %2915 = vmatprep.subr.mxu0 0.0
        %2916 = vmatpush1.msra.mxu0 0.0
        %2917 = vmatprep.subr.mxu0 0.0
        %2918 = vmatpush1.msra.mxu0 0.0
        %2919 = vmatprep.subr.mxu0 0.0
        %2920 = vmatpush1.msra.mxu0 0.0
        %2921 = vmatprep.subr.mxu0 0.0
        %2922 = vmatpush1.msra.mxu0 0.0
        %2923 = vmatprep.subr.mxu0 0.0
        %2924 = vmatpush1.msra.mxu0 0.0
        %2925 = vmatprep.subr.mxu0 0.0
        %2926 = vmatpush1.msra.mxu0 0.0
        %2927 = vmatprep.subr.mxu0 0.0
        %2928 = vmatpush1.msra.mxu0 0.0
        %2929 = vmatprep.subr.mxu0 0.0
        %2930 = vmatpush1.msra.mxu0 0.0
        %2931 = vmatprep.subr.mxu0 0.0
        %2932 = vmatpush1.msra.mxu0 0.0
        %2933 = vmatprep.subr.mxu0 0.0
        %2934 = vmatpush1.msra.mxu0 0.0
        %2935 = vmatprep.subr.mxu0 0.0
        %2936 = vmatpush1.msra.mxu0 0.0
        %2937 = vmatprep.subr.mxu0 0.0
        %2938 = vmatpush1.msra.mxu0 0.0
        %2939 = vmatprep.subr.mxu0 0.0
        %2940 = vmatpush1.msra.mxu0 0.0
        %2941 = vmatprep.subr.mxu0 0.0
        %2942 = vmatpush1.msra.mxu0 0.0
        %2943 = vmatprep.subr.mxu0 0.0
        %2944 = vmatpush1.msra.mxu0 0.0
        %2945 = vmatprep.subr.mxu0 0.0
        %2946 = vmatpush1.msra.mxu0 0.0
        %2947 = vmatprep.subr.mxu0 0.0
        %2948 = vmatpush1.msra.mxu0 0.0
        %2949 = vmatprep.subr.mxu0 0.0
        %2950 = vmatpush1.msra.mxu0 0.0
        %2951 = vmatprep.subr.mxu0 0.0
        %2952 = vmatpush1.msra.mxu0 0.0
        %2953 = vmatprep.subr.mxu0 0.0
        %2954 = vmatpush1.msra.mxu0 0.0
        %2955 = vmatprep.subr.mxu0 0.0
        %2956 = vmatpush1.msra.mxu0 0.0
        %2957 = vmatprep.subr.mxu0 0.0
        %2958 = vmatpush1.msra.mxu0 0.0
        %2959 = vmatprep.subr.mxu0 0.0
        %2960 = vmatpush1.msra.mxu0 0.0
        %2961 = vmatprep.mubr.f32.mxu0 0.0
        %2962 = vmatmul.mubr.f32.gmra.mrb[0].mxu0 %v2737
        %v2963 = vpop.f32.mrb[0].mxu0
        %v2964 = vadd.f32 0.0, %v2963
        %v2965 = vpop.f32.mrb[0].mxu0
        %v2966 = vadd.f32 0.0, %v2965
        %2967 = vdwg.mxu0
        %2968 = vmatprep.subr.mxu0 %v2753
        %2969 = vmatpush1.msra.mxu0 %v2751
        %2970 = vmatprep.subr.mxu0 0.0
        %2971 = vmatpush1.msra.mxu0 0.0
        %2972 = vmatprep.subr.mxu0 0.0
        %2973 = vmatpush1.msra.mxu0 0.0
        %2974 = vmatprep.subr.mxu0 0.0
        %2975 = vmatpush1.msra.mxu0 0.0
        %2976 = vmatprep.subr.mxu0 0.0
        %2977 = vmatpush1.msra.mxu0 0.0
        %2978 = vmatprep.subr.mxu0 0.0
        %2979 = vmatpush1.msra.mxu0 0.0
        %2980 = vmatprep.subr.mxu0 0.0
        %2981 = vmatpush1.msra.mxu0 0.0
        %2982 = vmatprep.subr.mxu0 0.0
        %2983 = vmatpush1.msra.mxu0 0.0
        %2984 = vmatprep.subr.mxu0 0.0
        %2985 = vmatpush1.msra.mxu0 0.0
        %2986 = vmatprep.subr.mxu0 0.0
        %2987 = vmatpush1.msra.mxu0 0.0
        %2988 = vmatprep.subr.mxu0 0.0
        %2989 = vmatpush1.msra.mxu0 0.0
        %2990 = vmatprep.subr.mxu0 0.0
        %2991 = vmatpush1.msra.mxu0 0.0
        %2992 = vmatprep.subr.mxu0 0.0
        %2993 = vmatpush1.msra.mxu0 0.0
        %2994 = vmatprep.subr.mxu0 0.0
        %2995 = vmatpush1.msra.mxu0 0.0
        %2996 = vmatprep.subr.mxu0 0.0
        %2997 = vmatpush1.msra.mxu0 0.0
        %2998 = vmatprep.subr.mxu0 0.0
        %2999 = vmatpush1.msra.mxu0 0.0
        %3000 = vmatprep.subr.mxu0 0.0
        %3001 = vmatpush1.msra.mxu0 0.0
        %3002 = vmatprep.subr.mxu0 0.0
        %3003 = vmatpush1.msra.mxu0 0.0
        %3004 = vmatprep.subr.mxu0 0.0
        %3005 = vmatpush1.msra.mxu0 0.0
        %3006 = vmatprep.subr.mxu0 0.0
        %3007 = vmatpush1.msra.mxu0 0.0
        %3008 = vmatprep.subr.mxu0 0.0
        %3009 = vmatpush1.msra.mxu0 0.0
        %3010 = vmatprep.subr.mxu0 0.0
        %3011 = vmatpush1.msra.mxu0 0.0
        %3012 = vmatprep.subr.mxu0 0.0
        %3013 = vmatpush1.msra.mxu0 0.0
        %3014 = vmatprep.subr.mxu0 0.0
        %3015 = vmatpush1.msra.mxu0 0.0
        %3016 = vmatprep.subr.mxu0 0.0
        %3017 = vmatpush1.msra.mxu0 0.0
        %3018 = vmatprep.subr.mxu0 0.0
        %3019 = vmatpush1.msra.mxu0 0.0
        %3020 = vmatprep.subr.mxu0 0.0
        %3021 = vmatpush1.msra.mxu0 0.0
        %3022 = vmatprep.subr.mxu0 0.0
        %3023 = vmatpush1.msra.mxu0 0.0
        %3024 = vmatprep.subr.mxu0 0.0
        %3025 = vmatpush1.msra.mxu0 0.0
        %3026 = vmatprep.subr.mxu0 0.0
        %3027 = vmatpush1.msra.mxu0 0.0
        %3028 = vmatprep.subr.mxu0 0.0
        %3029 = vmatpush1.msra.mxu0 0.0
        %3030 = vmatprep.subr.mxu0 0.0
        %3031 = vmatpush1.msra.mxu0 0.0
        %3032 = vmatprep.mubr.f32.mxu0 0.0
        %3033 = vmatmul.mubr.f32.gmra.mrb[0].mxu0 %v2737
        %v3034 = vpop.f32.mrb[0].mxu0
        %v3035 = vadd.f32 0.0, %v3034
        %v3036 = vpop.f32.mrb[0].mxu0
        %v3037 = vadd.f32 0.0, %v3036
        %3038 = vdwg.mxu0
        %v3039 = vadd.f32 %v2685, %v2822
        %v3040 = vadd.f32 %v2686, %v2824
        %v3041 = vadd.f32 %v2687, %v2893
        %v3042 = vadd.f32 %v2688, %v2895
        %v3043 = vadd.f32 %v2689, %v2964
        %v3044 = vadd.f32 %v2690, %v2966
        %v3045 = vadd.f32 %v2691, %v3035
        %v3046 = vadd.f32 %v2692, %v3037
        %v3047 = vld [vmem:[%s262] sm:$0xff]
        %v3048 = vld [vmem:[%s262 + $0x8] sm:$0xff]
        %v3049 = vld [vmem:[%s262 + $0x10] sm:$0xff]
        %v3050 = vld [vmem:[%s262 + $0x18] sm:$0xff]
        %v3051 = vld [vmem:[%s262 + $0x20] sm:$0xf]
        %s3052 = scalar_lea.vmem %s1, 64
        %v3053 = vld [vmem:[%s3052] sm:$0xff]
        %v3059 = vcombine.high %v3047, %v3047
        %v3060 = vcombine.high %v3048, %v3048
        %v3061 = vcombine.high %v3049, %v3049
        %v3062 = vcombine.high %v3050, %v3050
        %3063 = vrot.lane.b32.xlu0 %v3047, 106
        %v3064 = vpop.permute.xlu0 %3063
        %3065 = vrot.lane.b32.xlu0 %v3059, 106
        %v3066 = vpop.permute.xlu0 %3065
        %3067 = vrot.lane.b32.xlu0 %v3048, 106
        %v3068 = vpop.permute.xlu0 %3067
        %3069 = vrot.lane.b32.xlu0 %v3060, 106
        %v3070 = vpop.permute.xlu0 %3069
        %3071 = vrot.lane.b32.xlu0 %v3049, 106
        %v3072 = vpop.permute.xlu0 %3071
        %3073 = vrot.lane.b32.xlu0 %v3061, 106
        %v3074 = vpop.permute.xlu0 %3073
        %3075 = vrot.lane.b32.xlu0 %v3050, 106
        %v3076 = vpop.permute.xlu0 %3075
        %3077 = vrot.lane.b32.xlu0 %v3062, 106
        %v3078 = vpop.permute.xlu0 %3077
        %3079 = vrot.lane.b32.xlu0 %v3051, 106
        %v3080 = vpop.permute.xlu0 %3079
        %vm3081 = vcmask 867328
        %v3082 = vsel %vm3081, %v3064, %v3066
        %v3083 = vsel %vm3081, %v3066, %v3068
        %v3084 = vsel %vm3081, %v3068, %v3070
        %v3085 = vsel %vm3081, %v3070, %v3072
        %v3086 = vsel %vm3081, %v3072, %v3074
        %v3087 = vsel %vm3081, %v3074, %v3076
        %v3088 = vsel %vm3081, %v3076, %v3078
        %v3089 = vsel %vm3081, %v3078, %v3080
        %v3091 = vsel %vm315, %v3053, 0
        %v3093 = vsel %vm319, %v3082, 0
        %v3095 = vsel %vm319, %v3083, 0
        %v3097 = vsel %vm319, %v3084, 0
        %v3099 = vsel %vm319, %v3085, 0
        %v3101 = vsel %vm319, %v3086, 0
        %v3103 = vsel %vm319, %v3087, 0
        %v3105 = vsel %vm319, %v3088, 0
        %v3107 = vsel %vm319, %v3089, 0
        %3109 = vmatprep.subr.mxu0 %v3095
        %3110 = vmatpush1.msra.mxu0 %v3093
        %3111 = vmatprep.subr.mxu0 0.0
        %3112 = vmatpush1.msra.mxu0 0.0
        %3113 = vmatprep.subr.mxu0 0.0
        %3114 = vmatpush1.msra.mxu0 0.0
        %3115 = vmatprep.subr.mxu0 0.0
        %3116 = vmatpush1.msra.mxu0 0.0
        %3117 = vmatprep.subr.mxu0 0.0
        %3118 = vmatpush1.msra.mxu0 0.0
        %3119 = vmatprep.subr.mxu0 0.0
        %3120 = vmatpush1.msra.mxu0 0.0
        %3121 = vmatprep.subr.mxu0 0.0
        %3122 = vmatpush1.msra.mxu0 0.0
        %3123 = vmatprep.subr.mxu0 0.0
        %3124 = vmatpush1.msra.mxu0 0.0
        %3125 = vmatprep.subr.mxu0 0.0
        %3126 = vmatpush1.msra.mxu0 0.0
        %3127 = vmatprep.subr.mxu0 0.0
        %3128 = vmatpush1.msra.mxu0 0.0
        %3129 = vmatprep.subr.mxu0 0.0
        %3130 = vmatpush1.msra.mxu0 0.0
        %3131 = vmatprep.subr.mxu0 0.0
        %3132 = vmatpush1.msra.mxu0 0.0
        %3133 = vmatprep.subr.mxu0 0.0
        %3134 = vmatpush1.msra.mxu0 0.0
        %3135 = vmatprep.subr.mxu0 0.0
        %3136 = vmatpush1.msra.mxu0 0.0
        %3137 = vmatprep.subr.mxu0 0.0
        %3138 = vmatpush1.msra.mxu0 0.0
        %3139 = vmatprep.subr.mxu0 0.0
        %3140 = vmatpush1.msra.mxu0 0.0
        %3141 = vmatprep.subr.mxu0 0.0
        %3142 = vmatpush1.msra.mxu0 0.0
        %3143 = vmatprep.subr.mxu0 0.0
        %3144 = vmatpush1.msra.mxu0 0.0
        %3145 = vmatprep.subr.mxu0 0.0
        %3146 = vmatpush1.msra.mxu0 0.0
        %3147 = vmatprep.subr.mxu0 0.0
        %3148 = vmatpush1.msra.mxu0 0.0
        %3149 = vmatprep.subr.mxu0 0.0
        %3150 = vmatpush1.msra.mxu0 0.0
        %3151 = vmatprep.subr.mxu0 0.0
        %3152 = vmatpush1.msra.mxu0 0.0
        %3153 = vmatprep.subr.mxu0 0.0
        %3154 = vmatpush1.msra.mxu0 0.0
        %3155 = vmatprep.subr.mxu0 0.0
        %3156 = vmatpush1.msra.mxu0 0.0
        %3157 = vmatprep.subr.mxu0 0.0
        %3158 = vmatpush1.msra.mxu0 0.0
        %3159 = vmatprep.subr.mxu0 0.0
        %3160 = vmatpush1.msra.mxu0 0.0
        %3161 = vmatprep.subr.mxu0 0.0
        %3162 = vmatpush1.msra.mxu0 0.0
        %3163 = vmatprep.subr.mxu0 0.0
        %3164 = vmatpush1.msra.mxu0 0.0
        %3165 = vmatprep.subr.mxu0 0.0
        %3166 = vmatpush1.msra.mxu0 0.0
        %3167 = vmatprep.subr.mxu0 0.0
        %3168 = vmatpush1.msra.mxu0 0.0
        %3169 = vmatprep.subr.mxu0 0.0
        %3170 = vmatpush1.msra.mxu0 0.0
        %3171 = vmatprep.subr.mxu0 0.0
        %3172 = vmatpush1.msra.mxu0 0.0
        %3173 = vmatprep.mubr.f32.mxu0 0.0
        %3174 = vmatmul.mubr.f32.gmra.mrb[0].mxu0 %v3091
        %v3175 = vpop.f32.mrb[0].mxu0
        %v3176 = vadd.f32 0.0, %v3175
        %v3177 = vpop.f32.mrb[0].mxu0
        %v3178 = vadd.f32 0.0, %v3177
        %3179 = vdwg.mxu0
        %3180 = vmatprep.subr.mxu0 %v3099
        %3181 = vmatpush1.msra.mxu0 %v3097
        %3182 = vmatprep.subr.mxu0 0.0
        %3183 = vmatpush1.msra.mxu0 0.0
        %3184 = vmatprep.subr.mxu0 0.0
        %3185 = vmatpush1.msra.mxu0 0.0
        %3186 = vmatprep.subr.mxu0 0.0
        %3187 = vmatpush1.msra.mxu0 0.0
        %3188 = vmatprep.subr.mxu0 0.0
        %3189 = vmatpush1.msra.mxu0 0.0
        %3190 = vmatprep.subr.mxu0 0.0
        %3191 = vmatpush1.msra.mxu0 0.0
        %3192 = vmatprep.subr.mxu0 0.0
        %3193 = vmatpush1.msra.mxu0 0.0
        %3194 = vmatprep.subr.mxu0 0.0
        %3195 = vmatpush1.msra.mxu0 0.0
        %3196 = vmatprep.subr.mxu0 0.0
        %3197 = vmatpush1.msra.mxu0 0.0
        %3198 = vmatprep.subr.mxu0 0.0
        %3199 = vmatpush1.msra.mxu0 0.0
        %3200 = vmatprep.subr.mxu0 0.0
        %3201 = vmatpush1.msra.mxu0 0.0
        %3202 = vmatprep.subr.mxu0 0.0
        %3203 = vmatpush1.msra.mxu0 0.0
        %3204 = vmatprep.subr.mxu0 0.0
        %3205 = vmatpush1.msra.mxu0 0.0
        %3206 = vmatprep.subr.mxu0 0.0
        %3207 = vmatpush1.msra.mxu0 0.0
        %3208 = vmatprep.subr.mxu0 0.0
        %3209 = vmatpush1.msra.mxu0 0.0
        %3210 = vmatprep.subr.mxu0 0.0
        %3211 = vmatpush1.msra.mxu0 0.0
        %3212 = vmatprep.subr.mxu0 0.0
        %3213 = vmatpush1.msra.mxu0 0.0
        %3214 = vmatprep.subr.mxu0 0.0
        %3215 = vmatpush1.msra.mxu0 0.0
        %3216 = vmatprep.subr.mxu0 0.0
        %3217 = vmatpush1.msra.mxu0 0.0
        %3218 = vmatprep.subr.mxu0 0.0
        %3219 = vmatpush1.msra.mxu0 0.0
        %3220 = vmatprep.subr.mxu0 0.0
        %3221 = vmatpush1.msra.mxu0 0.0
        %3222 = vmatprep.subr.mxu0 0.0
        %3223 = vmatpush1.msra.mxu0 0.0
        %3224 = vmatprep.subr.mxu0 0.0
        %3225 = vmatpush1.msra.mxu0 0.0
        %3226 = vmatprep.subr.mxu0 0.0
        %3227 = vmatpush1.msra.mxu0 0.0
        %3228 = vmatprep.subr.mxu0 0.0
        %3229 = vmatpush1.msra.mxu0 0.0
        %3230 = vmatprep.subr.mxu0 0.0
        %3231 = vmatpush1.msra.mxu0 0.0
        %3232 = vmatprep.subr.mxu0 0.0
        %3233 = vmatpush1.msra.mxu0 0.0
        %3234 = vmatprep.subr.mxu0 0.0
        %3235 = vmatpush1.msra.mxu0 0.0
        %3236 = vmatprep.subr.mxu0 0.0
        %3237 = vmatpush1.msra.mxu0 0.0
        %3238 = vmatprep.subr.mxu0 0.0
        %3239 = vmatpush1.msra.mxu0 0.0
        %3240 = vmatprep.subr.mxu0 0.0
        %3241 = vmatpush1.msra.mxu0 0.0
        %3242 = vmatprep.subr.mxu0 0.0
        %3243 = vmatpush1.msra.mxu0 0.0
        %3244 = vmatprep.mubr.f32.mxu0 0.0
        %3245 = vmatmul.mubr.f32.gmra.mrb[0].mxu0 %v3091
        %v3246 = vpop.f32.mrb[0].mxu0
        %v3247 = vadd.f32 0.0, %v3246
        %v3248 = vpop.f32.mrb[0].mxu0
        %v3249 = vadd.f32 0.0, %v3248
        %3250 = vdwg.mxu0
        %3251 = vmatprep.subr.mxu0 %v3103
        %3252 = vmatpush1.msra.mxu0 %v3101
        %3253 = vmatprep.subr.mxu0 0.0
        %3254 = vmatpush1.msra.mxu0 0.0
        %3255 = vmatprep.subr.mxu0 0.0
        %3256 = vmatpush1.msra.mxu0 0.0
        %3257 = vmatprep.subr.mxu0 0.0
        %3258 = vmatpush1.msra.mxu0 0.0
        %3259 = vmatprep.subr.mxu0 0.0
        %3260 = vmatpush1.msra.mxu0 0.0
        %3261 = vmatprep.subr.mxu0 0.0
        %3262 = vmatpush1.msra.mxu0 0.0
        %3263 = vmatprep.subr.mxu0 0.0
        %3264 = vmatpush1.msra.mxu0 0.0
        %3265 = vmatprep.subr.mxu0 0.0
        %3266 = vmatpush1.msra.mxu0 0.0
        %3267 = vmatprep.subr.mxu0 0.0
        %3268 = vmatpush1.msra.mxu0 0.0
        %3269 = vmatprep.subr.mxu0 0.0
        %3270 = vmatpush1.msra.mxu0 0.0
        %3271 = vmatprep.subr.mxu0 0.0
        %3272 = vmatpush1.msra.mxu0 0.0
        %3273 = vmatprep.subr.mxu0 0.0
        %3274 = vmatpush1.msra.mxu0 0.0
        %3275 = vmatprep.subr.mxu0 0.0
        %3276 = vmatpush1.msra.mxu0 0.0
        %3277 = vmatprep.subr.mxu0 0.0
        %3278 = vmatpush1.msra.mxu0 0.0
        %3279 = vmatprep.subr.mxu0 0.0
        %3280 = vmatpush1.msra.mxu0 0.0
        %3281 = vmatprep.subr.mxu0 0.0
        %3282 = vmatpush1.msra.mxu0 0.0
        %3283 = vmatprep.subr.mxu0 0.0
        %3284 = vmatpush1.msra.mxu0 0.0
        %3285 = vmatprep.subr.mxu0 0.0
        %3286 = vmatpush1.msra.mxu0 0.0
        %3287 = vmatprep.subr.mxu0 0.0
        %3288 = vmatpush1.msra.mxu0 0.0
        %3289 = vmatprep.subr.mxu0 0.0
        %3290 = vmatpush1.msra.mxu0 0.0
        %3291 = vmatprep.subr.mxu0 0.0
        %3292 = vmatpush1.msra.mxu0 0.0
        %3293 = vmatprep.subr.mxu0 0.0
        %3294 = vmatpush1.msra.mxu0 0.0
        %3295 = vmatprep.subr.mxu0 0.0
        %3296 = vmatpush1.msra.mxu0 0.0
        %3297 = vmatprep.subr.mxu0 0.0
        %3298 = vmatpush1.msra.mxu0 0.0
        %3299 = vmatprep.subr.mxu0 0.0
        %3300 = vmatpush1.msra.mxu0 0.0
        %3301 = vmatprep.subr.mxu0 0.0
        %3302 = vmatpush1.msra.mxu0 0.0
        %3303 = vmatprep.subr.mxu0 0.0
        %3304 = vmatpush1.msra.mxu0 0.0
        %3305 = vmatprep.subr.mxu0 0.0
        %3306 = vmatpush1.msra.mxu0 0.0
        %3307 = vmatprep.subr.mxu0 0.0
        %3308 = vmatpush1.msra.mxu0 0.0
        %3309 = vmatprep.subr.mxu0 0.0
        %3310 = vmatpush1.msra.mxu0 0.0
        %3311 = vmatprep.subr.mxu0 0.0
        %3312 = vmatpush1.msra.mxu0 0.0
        %3313 = vmatprep.subr.mxu0 0.0
        %3314 = vmatpush1.msra.mxu0 0.0
        %3315 = vmatprep.mubr.f32.mxu0 0.0
        %3316 = vmatmul.mubr.f32.gmra.mrb[0].mxu0 %v3091
        %v3317 = vpop.f32.mrb[0].mxu0
        %v3318 = vadd.f32 0.0, %v3317
        %v3319 = vpop.f32.mrb[0].mxu0
        %v3320 = vadd.f32 0.0, %v3319
        %3321 = vdwg.mxu0
        %3322 = vmatprep.subr.mxu0 %v3107
        %3323 = vmatpush1.msra.mxu0 %v3105
        %3324 = vmatprep.subr.mxu0 0.0
        %3325 = vmatpush1.msra.mxu0 0.0
        %3326 = vmatprep.subr.mxu0 0.0
        %3327 = vmatpush1.msra.mxu0 0.0
        %3328 = vmatprep.subr.mxu0 0.0
        %3329 = vmatpush1.msra.mxu0 0.0
        %3330 = vmatprep.subr.mxu0 0.0
        %3331 = vmatpush1.msra.mxu0 0.0
        %3332 = vmatprep.subr.mxu0 0.0
        %3333 = vmatpush1.msra.mxu0 0.0
        %3334 = vmatprep.subr.mxu0 0.0
        %3335 = vmatpush1.msra.mxu0 0.0
        %3336 = vmatprep.subr.mxu0 0.0
        %3337 = vmatpush1.msra.mxu0 0.0
        %3338 = vmatprep.subr.mxu0 0.0
        %3339 = vmatpush1.msra.mxu0 0.0
        %3340 = vmatprep.subr.mxu0 0.0
        %3341 = vmatpush1.msra.mxu0 0.0
        %3342 = vmatprep.subr.mxu0 0.0
        %3343 = vmatpush1.msra.mxu0 0.0
        %3344 = vmatprep.subr.mxu0 0.0
        %3345 = vmatpush1.msra.mxu0 0.0
        %3346 = vmatprep.subr.mxu0 0.0
        %3347 = vmatpush1.msra.mxu0 0.0
        %3348 = vmatprep.subr.mxu0 0.0
        %3349 = vmatpush1.msra.mxu0 0.0
        %3350 = vmatprep.subr.mxu0 0.0
        %3351 = vmatpush1.msra.mxu0 0.0
        %3352 = vmatprep.subr.mxu0 0.0
        %3353 = vmatpush1.msra.mxu0 0.0
        %3354 = vmatprep.subr.mxu0 0.0
        %3355 = vmatpush1.msra.mxu0 0.0
        %3356 = vmatprep.subr.mxu0 0.0
        %3357 = vmatpush1.msra.mxu0 0.0
        %3358 = vmatprep.subr.mxu0 0.0
        %3359 = vmatpush1.msra.mxu0 0.0
        %3360 = vmatprep.subr.mxu0 0.0
        %3361 = vmatpush1.msra.mxu0 0.0
        %3362 = vmatprep.subr.mxu0 0.0
        %3363 = vmatpush1.msra.mxu0 0.0
        %3364 = vmatprep.subr.mxu0 0.0
        %3365 = vmatpush1.msra.mxu0 0.0
        %3366 = vmatprep.subr.mxu0 0.0
        %3367 = vmatpush1.msra.mxu0 0.0
        %3368 = vmatprep.subr.mxu0 0.0
        %3369 = vmatpush1.msra.mxu0 0.0
        %3370 = vmatprep.subr.mxu0 0.0
        %3371 = vmatpush1.msra.mxu0 0.0
        %3372 = vmatprep.subr.mxu0 0.0
        %3373 = vmatpush1.msra.mxu0 0.0
        %3374 = vmatprep.subr.mxu0 0.0
        %3375 = vmatpush1.msra.mxu0 0.0
        %3376 = vmatprep.subr.mxu0 0.0
        %3377 = vmatpush1.msra.mxu0 0.0
        %3378 = vmatprep.subr.mxu0 0.0
        %3379 = vmatpush1.msra.mxu0 0.0
        %3380 = vmatprep.subr.mxu0 0.0
        %3381 = vmatpush1.msra.mxu0 0.0
        %3382 = vmatprep.subr.mxu0 0.0
        %3383 = vmatpush1.msra.mxu0 0.0
        %3384 = vmatprep.subr.mxu0 0.0
        %3385 = vmatpush1.msra.mxu0 0.0
        %3386 = vmatprep.mubr.f32.mxu0 0.0
        %3387 = vmatmul.mubr.f32.gmra.mrb[0].mxu0 %v3091
        %v3388 = vpop.f32.mrb[0].mxu0
        %v3389 = vadd.f32 0.0, %v3388
        %v3390 = vpop.f32.mrb[0].mxu0
        %v3391 = vadd.f32 0.0, %v3390
        %3392 = vdwg.mxu0
        %v3393 = vadd.f32 %v3039, %v3176
        %v3394 = vadd.f32 %v3040, %v3178
        %v3395 = vadd.f32 %v3041, %v3247
        %v3396 = vadd.f32 %v3042, %v3249
        %v3397 = vadd.f32 %v3043, %v3318
        %v3398 = vadd.f32 %v3044, %v3320
        %v3399 = vadd.f32 %v3045, %v3389
        %v3400 = vadd.f32 %v3046, %v3391
        %v3401 = vld [vmem:[%s262] sm:$0xff]
        %v3402 = vld [vmem:[%s262 + $0x8] sm:$0xff]
        %v3403 = vld [vmem:[%s262 + $0x10] sm:$0xff]
        %v3404 = vld [vmem:[%s262 + $0x18] sm:$0xff]
        %v3405 = vld [vmem:[%s262 + $0x20] sm:$0xf]
        %s3406 = scalar_lea.vmem %s1, 72
        %v3407 = vld [vmem:[%s3406] sm:$0xff]
        %v3413 = vcombine.high %v3401, %v3401
        %v3414 = vcombine.high %v3402, %v3402
        %v3415 = vcombine.high %v3403, %v3403
        %v3416 = vcombine.high %v3404, %v3404
        %3417 = vrot.lane.b32.xlu0 %v3401, 28
        %v3418 = vpop.permute.xlu0 %3417
        %3419 = vrot.lane.b32.xlu0 %v3413, 28
        %v3420 = vpop.permute.xlu0 %3419
        %3421 = vrot.lane.b32.xlu0 %v3402, 28
        %v3422 = vpop.permute.xlu0 %3421
        %3423 = vrot.lane.b32.xlu0 %v3414, 28
        %v3424 = vpop.permute.xlu0 %3423
        %3425 = vrot.lane.b32.xlu0 %v3403, 28
        %v3426 = vpop.permute.xlu0 %3425
        %3427 = vrot.lane.b32.xlu0 %v3415, 28
        %v3428 = vpop.permute.xlu0 %3427
        %3429 = vrot.lane.b32.xlu0 %v3404, 28
        %v3430 = vpop.permute.xlu0 %3429
        %3431 = vrot.lane.b32.xlu0 %v3416, 28
        %v3432 = vpop.permute.xlu0 %3431
        %3433 = vrot.lane.b32.xlu0 %v3405, 28
        %v3434 = vpop.permute.xlu0 %3433
        %vm3435 = vcmask 228352
        %v3436 = vsel %vm3435, %v3418, %v3420
        %v3437 = vsel %vm3435, %v3420, %v3422
        %v3438 = vsel %vm3435, %v3422, %v3424
        %v3439 = vsel %vm3435, %v3424, %v3426
        %v3440 = vsel %vm3435, %v3426, %v3428
        %v3441 = vsel %vm3435, %v3428, %v3430
        %v3442 = vsel %vm3435, %v3430, %v3432
        %v3443 = vsel %vm3435, %v3432, %v3434
        %v3445 = vsel %vm315, %v3407, 0
        %v3447 = vsel %vm319, %v3436, 0
        %v3449 = vsel %vm319, %v3437, 0
        %v3451 = vsel %vm319, %v3438, 0
        %v3453 = vsel %vm319, %v3439, 0
        %v3455 = vsel %vm319, %v3440, 0
        %v3457 = vsel %vm319, %v3441, 0
        %v3459 = vsel %vm319, %v3442, 0
        %v3461 = vsel %vm319, %v3443, 0
        %3463 = vmatprep.subr.mxu0 %v3449
        %3464 = vmatpush1.msra.mxu0 %v3447
        %3465 = vmatprep.subr.mxu0 0.0
        %3466 = vmatpush1.msra.mxu0 0.0
        %3467 = vmatprep.subr.mxu0 0.0
        %3468 = vmatpush1.msra.mxu0 0.0
        %3469 = vmatprep.subr.mxu0 0.0
        %3470 = vmatpush1.msra.mxu0 0.0
        %3471 = vmatprep.subr.mxu0 0.0
        %3472 = vmatpush1.msra.mxu0 0.0
        %3473 = vmatprep.subr.mxu0 0.0
        %3474 = vmatpush1.msra.mxu0 0.0
        %3475 = vmatprep.subr.mxu0 0.0
        %3476 = vmatpush1.msra.mxu0 0.0
        %3477 = vmatprep.subr.mxu0 0.0
        %3478 = vmatpush1.msra.mxu0 0.0
        %3479 = vmatprep.subr.mxu0 0.0
        %3480 = vmatpush1.msra.mxu0 0.0
        %3481 = vmatprep.subr.mxu0 0.0
        %3482 = vmatpush1.msra.mxu0 0.0
        %3483 = vmatprep.subr.mxu0 0.0
        %3484 = vmatpush1.msra.mxu0 0.0
        %3485 = vmatprep.subr.mxu0 0.0
        %3486 = vmatpush1.msra.mxu0 0.0
        %3487 = vmatprep.subr.mxu0 0.0
        %3488 = vmatpush1.msra.mxu0 0.0
        %3489 = vmatprep.subr.mxu0 0.0
        %3490 = vmatpush1.msra.mxu0 0.0
        %3491 = vmatprep.subr.mxu0 0.0
        %3492 = vmatpush1.msra.mxu0 0.0
        %3493 = vmatprep.subr.mxu0 0.0
        %3494 = vmatpush1.msra.mxu0 0.0
        %3495 = vmatprep.subr.mxu0 0.0
        %3496 = vmatpush1.msra.mxu0 0.0
        %3497 = vmatprep.subr.mxu0 0.0
        %3498 = vmatpush1.msra.mxu0 0.0
        %3499 = vmatprep.subr.mxu0 0.0
        %3500 = vmatpush1.msra.mxu0 0.0
        %3501 = vmatprep.subr.mxu0 0.0
        %3502 = vmatpush1.msra.mxu0 0.0
        %3503 = vmatprep.subr.mxu0 0.0
        %3504 = vmatpush1.msra.mxu0 0.0
        %3505 = vmatprep.subr.mxu0 0.0
        %3506 = vmatpush1.msra.mxu0 0.0
        %3507 = vmatprep.subr.mxu0 0.0
        %3508 = vmatpush1.msra.mxu0 0.0
        %3509 = vmatprep.subr.mxu0 0.0
        %3510 = vmatpush1.msra.mxu0 0.0
        %3511 = vmatprep.subr.mxu0 0.0
        %3512 = vmatpush1.msra.mxu0 0.0
        %3513 = vmatprep.subr.mxu0 0.0
        %3514 = vmatpush1.msra.mxu0 0.0
        %3515 = vmatprep.subr.mxu0 0.0
        %3516 = vmatpush1.msra.mxu0 0.0
        %3517 = vmatprep.subr.mxu0 0.0
        %3518 = vmatpush1.msra.mxu0 0.0
        %3519 = vmatprep.subr.mxu0 0.0
        %3520 = vmatpush1.msra.mxu0 0.0
        %3521 = vmatprep.subr.mxu0 0.0
        %3522 = vmatpush1.msra.mxu0 0.0
        %3523 = vmatprep.subr.mxu0 0.0
        %3524 = vmatpush1.msra.mxu0 0.0
        %3525 = vmatprep.subr.mxu0 0.0
        %3526 = vmatpush1.msra.mxu0 0.0
        %3527 = vmatprep.mubr.f32.mxu0 0.0
        %3528 = vmatmul.mubr.f32.gmra.mrb[0].mxu0 %v3445
        %v3529 = vpop.f32.mrb[0].mxu0
        %v3530 = vadd.f32 0.0, %v3529
        %v3531 = vpop.f32.mrb[0].mxu0
        %v3532 = vadd.f32 0.0, %v3531
        %3533 = vdwg.mxu0
        %3534 = vmatprep.subr.mxu0 %v3453
        %3535 = vmatpush1.msra.mxu0 %v3451
        %3536 = vmatprep.subr.mxu0 0.0
        %3537 = vmatpush1.msra.mxu0 0.0
        %3538 = vmatprep.subr.mxu0 0.0
        %3539 = vmatpush1.msra.mxu0 0.0
        %3540 = vmatprep.subr.mxu0 0.0
        %3541 = vmatpush1.msra.mxu0 0.0
        %3542 = vmatprep.subr.mxu0 0.0
        %3543 = vmatpush1.msra.mxu0 0.0
        %3544 = vmatprep.subr.mxu0 0.0
        %3545 = vmatpush1.msra.mxu0 0.0
        %3546 = vmatprep.subr.mxu0 0.0
        %3547 = vmatpush1.msra.mxu0 0.0
        %3548 = vmatprep.subr.mxu0 0.0
        %3549 = vmatpush1.msra.mxu0 0.0
        %3550 = vmatprep.subr.mxu0 0.0
        %3551 = vmatpush1.msra.mxu0 0.0
        %3552 = vmatprep.subr.mxu0 0.0
        %3553 = vmatpush1.msra.mxu0 0.0
        %3554 = vmatprep.subr.mxu0 0.0
        %3555 = vmatpush1.msra.mxu0 0.0
        %3556 = vmatprep.subr.mxu0 0.0
        %3557 = vmatpush1.msra.mxu0 0.0
        %3558 = vmatprep.subr.mxu0 0.0
        %3559 = vmatpush1.msra.mxu0 0.0
        %3560 = vmatprep.subr.mxu0 0.0
        %3561 = vmatpush1.msra.mxu0 0.0
        %3562 = vmatprep.subr.mxu0 0.0
        %3563 = vmatpush1.msra.mxu0 0.0
        %3564 = vmatprep.subr.mxu0 0.0
        %3565 = vmatpush1.msra.mxu0 0.0
        %3566 = vmatprep.subr.mxu0 0.0
        %3567 = vmatpush1.msra.mxu0 0.0
        %3568 = vmatprep.subr.mxu0 0.0
        %3569 = vmatpush1.msra.mxu0 0.0
        %3570 = vmatprep.subr.mxu0 0.0
        %3571 = vmatpush1.msra.mxu0 0.0
        %3572 = vmatprep.subr.mxu0 0.0
        %3573 = vmatpush1.msra.mxu0 0.0
        %3574 = vmatprep.subr.mxu0 0.0
        %3575 = vmatpush1.msra.mxu0 0.0
        %3576 = vmatprep.subr.mxu0 0.0
        %3577 = vmatpush1.msra.mxu0 0.0
        %3578 = vmatprep.subr.mxu0 0.0
        %3579 = vmatpush1.msra.mxu0 0.0
        %3580 = vmatprep.subr.mxu0 0.0
        %3581 = vmatpush1.msra.mxu0 0.0
        %3582 = vmatprep.subr.mxu0 0.0
        %3583 = vmatpush1.msra.mxu0 0.0
        %3584 = vmatprep.subr.mxu0 0.0
        %3585 = vmatpush1.msra.mxu0 0.0
        %3586 = vmatprep.subr.mxu0 0.0
        %3587 = vmatpush1.msra.mxu0 0.0
        %3588 = vmatprep.subr.mxu0 0.0
        %3589 = vmatpush1.msra.mxu0 0.0
        %3590 = vmatprep.subr.mxu0 0.0
        %3591 = vmatpush1.msra.mxu0 0.0
        %3592 = vmatprep.subr.mxu0 0.0
        %3593 = vmatpush1.msra.mxu0 0.0
        %3594 = vmatprep.subr.mxu0 0.0
        %3595 = vmatpush1.msra.mxu0 0.0
        %3596 = vmatprep.subr.mxu0 0.0
        %3597 = vmatpush1.msra.mxu0 0.0
        %3598 = vmatprep.mubr.f32.mxu0 0.0
        %3599 = vmatmul.mubr.f32.gmra.mrb[0].mxu0 %v3445
        %v3600 = vpop.f32.mrb[0].mxu0
        %v3601 = vadd.f32 0.0, %v3600
        %v3602 = vpop.f32.mrb[0].mxu0
        %v3603 = vadd.f32 0.0, %v3602
        %3604 = vdwg.mxu0
        %3605 = vmatprep.subr.mxu0 %v3457
        %3606 = vmatpush1.msra.mxu0 %v3455
        %3607 = vmatprep.subr.mxu0 0.0
        %3608 = vmatpush1.msra.mxu0 0.0
        %3609 = vmatprep.subr.mxu0 0.0
        %3610 = vmatpush1.msra.mxu0 0.0
        %3611 = vmatprep.subr.mxu0 0.0
        %3612 = vmatpush1.msra.mxu0 0.0
        %3613 = vmatprep.subr.mxu0 0.0
        %3614 = vmatpush1.msra.mxu0 0.0
        %3615 = vmatprep.subr.mxu0 0.0
        %3616 = vmatpush1.msra.mxu0 0.0
        %3617 = vmatprep.subr.mxu0 0.0
        %3618 = vmatpush1.msra.mxu0 0.0
        %3619 = vmatprep.subr.mxu0 0.0
        %3620 = vmatpush1.msra.mxu0 0.0
        %3621 = vmatprep.subr.mxu0 0.0
        %3622 = vmatpush1.msra.mxu0 0.0
        %3623 = vmatprep.subr.mxu0 0.0
        %3624 = vmatpush1.msra.mxu0 0.0
        %3625 = vmatprep.subr.mxu0 0.0
        %3626 = vmatpush1.msra.mxu0 0.0
        %3627 = vmatprep.subr.mxu0 0.0
        %3628 = vmatpush1.msra.mxu0 0.0
        %3629 = vmatprep.subr.mxu0 0.0
        %3630 = vmatpush1.msra.mxu0 0.0
        %3631 = vmatprep.subr.mxu0 0.0
        %3632 = vmatpush1.msra.mxu0 0.0
        %3633 = vmatprep.subr.mxu0 0.0
        %3634 = vmatpush1.msra.mxu0 0.0
        %3635 = vmatprep.subr.mxu0 0.0
        %3636 = vmatpush1.msra.mxu0 0.0
        %3637 = vmatprep.subr.mxu0 0.0
        %3638 = vmatpush1.msra.mxu0 0.0
        %3639 = vmatprep.subr.mxu0 0.0
        %3640 = vmatpush1.msra.mxu0 0.0
        %3641 = vmatprep.subr.mxu0 0.0
        %3642 = vmatpush1.msra.mxu0 0.0
        %3643 = vmatprep.subr.mxu0 0.0
        %3644 = vmatpush1.msra.mxu0 0.0
        %3645 = vmatprep.subr.mxu0 0.0
        %3646 = vmatpush1.msra.mxu0 0.0
        %3647 = vmatprep.subr.mxu0 0.0
        %3648 = vmatpush1.msra.mxu0 0.0
        %3649 = vmatprep.subr.mxu0 0.0
        %3650 = vmatpush1.msra.mxu0 0.0
        %3651 = vmatprep.subr.mxu0 0.0
        %3652 = vmatpush1.msra.mxu0 0.0
        %3653 = vmatprep.subr.mxu0 0.0
        %3654 = vmatpush1.msra.mxu0 0.0
        %3655 = vmatprep.subr.mxu0 0.0
        %3656 = vmatpush1.msra.mxu0 0.0
        %3657 = vmatprep.subr.mxu0 0.0
        %3658 = vmatpush1.msra.mxu0 0.0
        %3659 = vmatprep.subr.mxu0 0.0
        %3660 = vmatpush1.msra.mxu0 0.0
        %3661 = vmatprep.subr.mxu0 0.0
        %3662 = vmatpush1.msra.mxu0 0.0
        %3663 = vmatprep.subr.mxu0 0.0
        %3664 = vmatpush1.msra.mxu0 0.0
        %3665 = vmatprep.subr.mxu0 0.0
        %3666 = vmatpush1.msra.mxu0 0.0
        %3667 = vmatprep.subr.mxu0 0.0
        %3668 = vmatpush1.msra.mxu0 0.0
        %3669 = vmatprep.mubr.f32.mxu0 0.0
        %3670 = vmatmul.mubr.f32.gmra.mrb[0].mxu0 %v3445
        %v3671 = vpop.f32.mrb[0].mxu0
        %v3672 = vadd.f32 0.0, %v3671
        %v3673 = vpop.f32.mrb[0].mxu0
        %v3674 = vadd.f32 0.0, %v3673
        %3675 = vdwg.mxu0
        %3676 = vmatprep.subr.mxu0 %v3461
        %3677 = vmatpush1.msra.mxu0 %v3459
        %3678 = vmatprep.subr.mxu0 0.0
        %3679 = vmatpush1.msra.mxu0 0.0
        %3680 = vmatprep.subr.mxu0 0.0
        %3681 = vmatpush1.msra.mxu0 0.0
        %3682 = vmatprep.subr.mxu0 0.0
        %3683 = vmatpush1.msra.mxu0 0.0
        %3684 = vmatprep.subr.mxu0 0.0
        %3685 = vmatpush1.msra.mxu0 0.0
        %3686 = vmatprep.subr.mxu0 0.0
        %3687 = vmatpush1.msra.mxu0 0.0
        %3688 = vmatprep.subr.mxu0 0.0
        %3689 = vmatpush1.msra.mxu0 0.0
        %3690 = vmatprep.subr.mxu0 0.0
        %3691 = vmatpush1.msra.mxu0 0.0
        %3692 = vmatprep.subr.mxu0 0.0
        %3693 = vmatpush1.msra.mxu0 0.0
        %3694 = vmatprep.subr.mxu0 0.0
        %3695 = vmatpush1.msra.mxu0 0.0
        %3696 = vmatprep.subr.mxu0 0.0
        %3697 = vmatpush1.msra.mxu0 0.0
        %3698 = vmatprep.subr.mxu0 0.0
        %3699 = vmatpush1.msra.mxu0 0.0
        %3700 = vmatprep.subr.mxu0 0.0
        %3701 = vmatpush1.msra.mxu0 0.0
        %3702 = vmatprep.subr.mxu0 0.0
        %3703 = vmatpush1.msra.mxu0 0.0
        %3704 = vmatprep.subr.mxu0 0.0
        %3705 = vmatpush1.msra.mxu0 0.0
        %3706 = vmatprep.subr.mxu0 0.0
        %3707 = vmatpush1.msra.mxu0 0.0
        %3708 = vmatprep.subr.mxu0 0.0
        %3709 = vmatpush1.msra.mxu0 0.0
        %3710 = vmatprep.subr.mxu0 0.0
        %3711 = vmatpush1.msra.mxu0 0.0
        %3712 = vmatprep.subr.mxu0 0.0
        %3713 = vmatpush1.msra.mxu0 0.0
        %3714 = vmatprep.subr.mxu0 0.0
        %3715 = vmatpush1.msra.mxu0 0.0
        %3716 = vmatprep.subr.mxu0 0.0
        %3717 = vmatpush1.msra.mxu0 0.0
        %3718 = vmatprep.subr.mxu0 0.0
        %3719 = vmatpush1.msra.mxu0 0.0
        %3720 = vmatprep.subr.mxu0 0.0
        %3721 = vmatpush1.msra.mxu0 0.0
        %3722 = vmatprep.subr.mxu0 0.0
        %3723 = vmatpush1.msra.mxu0 0.0
        %3724 = vmatprep.subr.mxu0 0.0
        %3725 = vmatpush1.msra.mxu0 0.0
        %3726 = vmatprep.subr.mxu0 0.0
        %3727 = vmatpush1.msra.mxu0 0.0
        %3728 = vmatprep.subr.mxu0 0.0
        %3729 = vmatpush1.msra.mxu0 0.0
        %3730 = vmatprep.subr.mxu0 0.0
        %3731 = vmatpush1.msra.mxu0 0.0
        %3732 = vmatprep.subr.mxu0 0.0
        %3733 = vmatpush1.msra.mxu0 0.0
        %3734 = vmatprep.subr.mxu0 0.0
        %3735 = vmatpush1.msra.mxu0 0.0
        %3736 = vmatprep.subr.mxu0 0.0
        %3737 = vmatpush1.msra.mxu0 0.0
        %3738 = vmatprep.subr.mxu0 0.0
        %3739 = vmatpush1.msra.mxu0 0.0
        %3740 = vmatprep.mubr.f32.mxu0 0.0
        %3741 = vmatmul.mubr.f32.gmra.mrb[0].mxu0 %v3445
        %v3742 = vpop.f32.mrb[0].mxu0
        %v3743 = vadd.f32 0.0, %v3742
        %v3744 = vpop.f32.mrb[0].mxu0
        %v3745 = vadd.f32 0.0, %v3744
        %3746 = vdwg.mxu0
        %v3747 = vadd.f32 %v3393, %v3530
        %v3748 = vadd.f32 %v3394, %v3532
        %v3749 = vadd.f32 %v3395, %v3601
        %v3750 = vadd.f32 %v3396, %v3603
        %v3751 = vadd.f32 %v3397, %v3672
        %v3752 = vadd.f32 %v3398, %v3674
        %v3753 = vadd.f32 %v3399, %v3743
        %v3754 = vadd.f32 %v3400, %v3745
        %v3755 = vld [vmem:[%s262] sm:$0xff]
        %v3756 = vld [vmem:[%s262 + $0x8] sm:$0xff]
        %v3757 = vld [vmem:[%s262 + $0x10] sm:$0xff]
        %v3758 = vld [vmem:[%s262 + $0x18] sm:$0xff]
        %v3759 = vld [vmem:[%s262 + $0x20] sm:$0xf]
        %s3760 = scalar_lea.vmem %s1, 80
        %v3761 = vld [vmem:[%s3760] sm:$0xff]
        %v3767 = vcombine.high %v3755, %v3755
        %v3768 = vcombine.high %v3756, %v3756
        %v3769 = vcombine.high %v3757, %v3757
        %v3770 = vcombine.high %v3758, %v3758
        %3771 = vrot.lane.b32.xlu0 %v3755, 27
        %v3772 = vpop.permute.xlu0 %3771
        %3773 = vrot.lane.b32.xlu0 %v3767, 27
        %v3774 = vpop.permute.xlu0 %3773
        %3775 = vrot.lane.b32.xlu0 %v3756, 27
        %v3776 = vpop.permute.xlu0 %3775
        %3777 = vrot.lane.b32.xlu0 %v3768, 27
        %v3778 = vpop.permute.xlu0 %3777
        %3779 = vrot.lane.b32.xlu0 %v3757, 27
        %v3780 = vpop.permute.xlu0 %3779
        %3781 = vrot.lane.b32.xlu0 %v3769, 27
        %v3782 = vpop.permute.xlu0 %3781
        %3783 = vrot.lane.b32.xlu0 %v3758, 27
        %v3784 = vpop.permute.xlu0 %3783
        %3785 = vrot.lane.b32.xlu0 %v3770, 27
        %v3786 = vpop.permute.xlu0 %3785
        %3787 = vrot.lane.b32.xlu0 %v3759, 27
        %v3788 = vpop.permute.xlu0 %3787
        %vm3789 = vcmask 220160
        %v3790 = vsel %vm3789, %v3772, %v3774
        %v3791 = vsel %vm3789, %v3774, %v3776
        %v3792 = vsel %vm3789, %v3776, %v3778
        %v3793 = vsel %vm3789, %v3778, %v3780
        %v3794 = vsel %vm3789, %v3780, %v3782
        %v3795 = vsel %vm3789, %v3782, %v3784
        %v3796 = vsel %vm3789, %v3784, %v3786
        %v3797 = vsel %vm3789, %v3786, %v3788
        %v3799 = vsel %vm315, %v3761, 0
        %v3801 = vsel %vm319, %v3790, 0
        %v3803 = vsel %vm319, %v3791, 0
        %v3805 = vsel %vm319, %v3792, 0
        %v3807 = vsel %vm319, %v3793, 0
        %v3809 = vsel %vm319, %v3794, 0
        %v3811 = vsel %vm319, %v3795, 0
        %v3813 = vsel %vm319, %v3796, 0
        %v3815 = vsel %vm319, %v3797, 0
        %3817 = vmatprep.subr.mxu0 %v3803
        %3818 = vmatpush1.msra.mxu0 %v3801
        %3819 = vmatprep.subr.mxu0 0.0
        %3820 = vmatpush1.msra.mxu0 0.0
        %3821 = vmatprep.subr.mxu0 0.0
        %3822 = vmatpush1.msra.mxu0 0.0
        %3823 = vmatprep.subr.mxu0 0.0
        %3824 = vmatpush1.msra.mxu0 0.0
        %3825 = vmatprep.subr.mxu0 0.0
        %3826 = vmatpush1.msra.mxu0 0.0
        %3827 = vmatprep.subr.mxu0 0.0
        %3828 = vmatpush1.msra.mxu0 0.0
        %3829 = vmatprep.subr.mxu0 0.0
        %3830 = vmatpush1.msra.mxu0 0.0
        %3831 = vmatprep.subr.mxu0 0.0
        %3832 = vmatpush1.msra.mxu0 0.0
        %3833 = vmatprep.subr.mxu0 0.0
        %3834 = vmatpush1.msra.mxu0 0.0
        %3835 = vmatprep.subr.mxu0 0.0
        %3836 = vmatpush1.msra.mxu0 0.0
        %3837 = vmatprep.subr.mxu0 0.0
        %3838 = vmatpush1.msra.mxu0 0.0
        %3839 = vmatprep.subr.mxu0 0.0
        %3840 = vmatpush1.msra.mxu0 0.0
        %3841 = vmatprep.subr.mxu0 0.0
        %3842 = vmatpush1.msra.mxu0 0.0
        %3843 = vmatprep.subr.mxu0 0.0
        %3844 = vmatpush1.msra.mxu0 0.0
        %3845 = vmatprep.subr.mxu0 0.0
        %3846 = vmatpush1.msra.mxu0 0.0
        %3847 = vmatprep.subr.mxu0 0.0
        %3848 = vmatpush1.msra.mxu0 0.0
        %3849 = vmatprep.subr.mxu0 0.0
        %3850 = vmatpush1.msra.mxu0 0.0
        %3851 = vmatprep.subr.mxu0 0.0
        %3852 = vmatpush1.msra.mxu0 0.0
        %3853 = vmatprep.subr.mxu0 0.0
        %3854 = vmatpush1.msra.mxu0 0.0
        %3855 = vmatprep.subr.mxu0 0.0
        %3856 = vmatpush1.msra.mxu0 0.0
        %3857 = vmatprep.subr.mxu0 0.0
        %3858 = vmatpush1.msra.mxu0 0.0
        %3859 = vmatprep.subr.mxu0 0.0
        %3860 = vmatpush1.msra.mxu0 0.0
        %3861 = vmatprep.subr.mxu0 0.0
        %3862 = vmatpush1.msra.mxu0 0.0
        %3863 = vmatprep.subr.mxu0 0.0
        %3864 = vmatpush1.msra.mxu0 0.0
        %3865 = vmatprep.subr.mxu0 0.0
        %3866 = vmatpush1.msra.mxu0 0.0
        %3867 = vmatprep.subr.mxu0 0.0
        %3868 = vmatpush1.msra.mxu0 0.0
        %3869 = vmatprep.subr.mxu0 0.0
        %3870 = vmatpush1.msra.mxu0 0.0
        %3871 = vmatprep.subr.mxu0 0.0
        %3872 = vmatpush1.msra.mxu0 0.0
        %3873 = vmatprep.subr.mxu0 0.0
        %3874 = vmatpush1.msra.mxu0 0.0
        %3875 = vmatprep.subr.mxu0 0.0
        %3876 = vmatpush1.msra.mxu0 0.0
        %3877 = vmatprep.subr.mxu0 0.0
        %3878 = vmatpush1.msra.mxu0 0.0
        %3879 = vmatprep.subr.mxu0 0.0
        %3880 = vmatpush1.msra.mxu0 0.0
        %3881 = vmatprep.mubr.f32.mxu0 0.0
        %3882 = vmatmul.mubr.f32.gmra.mrb[0].mxu0 %v3799
        %v3883 = vpop.f32.mrb[0].mxu0
        %v3884 = vadd.f32 0.0, %v3883
        %v3885 = vpop.f32.mrb[0].mxu0
        %v3886 = vadd.f32 0.0, %v3885
        %3887 = vdwg.mxu0
        %3888 = vmatprep.subr.mxu0 %v3807
        %3889 = vmatpush1.msra.mxu0 %v3805
        %3890 = vmatprep.subr.mxu0 0.0
        %3891 = vmatpush1.msra.mxu0 0.0
        %3892 = vmatprep.subr.mxu0 0.0
        %3893 = vmatpush1.msra.mxu0 0.0
        %3894 = vmatprep.subr.mxu0 0.0
        %3895 = vmatpush1.msra.mxu0 0.0
        %3896 = vmatprep.subr.mxu0 0.0
        %3897 = vmatpush1.msra.mxu0 0.0
        %3898 = vmatprep.subr.mxu0 0.0
        %3899 = vmatpush1.msra.mxu0 0.0
        %3900 = vmatprep.subr.mxu0 0.0
        %3901 = vmatpush1.msra.mxu0 0.0
        %3902 = vmatprep.subr.mxu0 0.0
        %3903 = vmatpush1.msra.mxu0 0.0
        %3904 = vmatprep.subr.mxu0 0.0
        %3905 = vmatpush1.msra.mxu0 0.0
        %3906 = vmatprep.subr.mxu0 0.0
        %3907 = vmatpush1.msra.mxu0 0.0
        %3908 = vmatprep.subr.mxu0 0.0
        %3909 = vmatpush1.msra.mxu0 0.0
        %3910 = vmatprep.subr.mxu0 0.0
        %3911 = vmatpush1.msra.mxu0 0.0
        %3912 = vmatprep.subr.mxu0 0.0
        %3913 = vmatpush1.msra.mxu0 0.0
        %3914 = vmatprep.subr.mxu0 0.0
        %3915 = vmatpush1.msra.mxu0 0.0
        %3916 = vmatprep.subr.mxu0 0.0
        %3917 = vmatpush1.msra.mxu0 0.0
        %3918 = vmatprep.subr.mxu0 0.0
        %3919 = vmatpush1.msra.mxu0 0.0
        %3920 = vmatprep.subr.mxu0 0.0
        %3921 = vmatpush1.msra.mxu0 0.0
        %3922 = vmatprep.subr.mxu0 0.0
        %3923 = vmatpush1.msra.mxu0 0.0
        %3924 = vmatprep.subr.mxu0 0.0
        %3925 = vmatpush1.msra.mxu0 0.0
        %3926 = vmatprep.subr.mxu0 0.0
        %3927 = vmatpush1.msra.mxu0 0.0
        %3928 = vmatprep.subr.mxu0 0.0
        %3929 = vmatpush1.msra.mxu0 0.0
        %3930 = vmatprep.subr.mxu0 0.0
        %3931 = vmatpush1.msra.mxu0 0.0
        %3932 = vmatprep.subr.mxu0 0.0
        %3933 = vmatpush1.msra.mxu0 0.0
        %3934 = vmatprep.subr.mxu0 0.0
        %3935 = vmatpush1.msra.mxu0 0.0
        %3936 = vmatprep.subr.mxu0 0.0
        %3937 = vmatpush1.msra.mxu0 0.0
        %3938 = vmatprep.subr.mxu0 0.0
        %3939 = vmatpush1.msra.mxu0 0.0
        %3940 = vmatprep.subr.mxu0 0.0
        %3941 = vmatpush1.msra.mxu0 0.0
        %3942 = vmatprep.subr.mxu0 0.0
        %3943 = vmatpush1.msra.mxu0 0.0
        %3944 = vmatprep.subr.mxu0 0.0
        %3945 = vmatpush1.msra.mxu0 0.0
        %3946 = vmatprep.subr.mxu0 0.0
        %3947 = vmatpush1.msra.mxu0 0.0
        %3948 = vmatprep.subr.mxu0 0.0
        %3949 = vmatpush1.msra.mxu0 0.0
        %3950 = vmatprep.subr.mxu0 0.0
        %3951 = vmatpush1.msra.mxu0 0.0
        %3952 = vmatprep.mubr.f32.mxu0 0.0
        %3953 = vmatmul.mubr.f32.gmra.mrb[0].mxu0 %v3799
        %v3954 = vpop.f32.mrb[0].mxu0
        %v3955 = vadd.f32 0.0, %v3954
        %v3956 = vpop.f32.mrb[0].mxu0
        %v3957 = vadd.f32 0.0, %v3956
        %3958 = vdwg.mxu0
        %3959 = vmatprep.subr.mxu0 %v3811
        %3960 = vmatpush1.msra.mxu0 %v3809
        %3961 = vmatprep.subr.mxu0 0.0
        %3962 = vmatpush1.msra.mxu0 0.0
        %3963 = vmatprep.subr.mxu0 0.0
        %3964 = vmatpush1.msra.mxu0 0.0
        %3965 = vmatprep.subr.mxu0 0.0
        %3966 = vmatpush1.msra.mxu0 0.0
        %3967 = vmatprep.subr.mxu0 0.0
        %3968 = vmatpush1.msra.mxu0 0.0
        %3969 = vmatprep.subr.mxu0 0.0
        %3970 = vmatpush1.msra.mxu0 0.0
        %3971 = vmatprep.subr.mxu0 0.0
        %3972 = vmatpush1.msra.mxu0 0.0
        %3973 = vmatprep.subr.mxu0 0.0
        %3974 = vmatpush1.msra.mxu0 0.0
        %3975 = vmatprep.subr.mxu0 0.0
        %3976 = vmatpush1.msra.mxu0 0.0
        %3977 = vmatprep.subr.mxu0 0.0
        %3978 = vmatpush1.msra.mxu0 0.0
        %3979 = vmatprep.subr.mxu0 0.0
        %3980 = vmatpush1.msra.mxu0 0.0
        %3981 = vmatprep.subr.mxu0 0.0
        %3982 = vmatpush1.msra.mxu0 0.0
        %3983 = vmatprep.subr.mxu0 0.0
        %3984 = vmatpush1.msra.mxu0 0.0
        %3985 = vmatprep.subr.mxu0 0.0
        %3986 = vmatpush1.msra.mxu0 0.0
        %3987 = vmatprep.subr.mxu0 0.0
        %3988 = vmatpush1.msra.mxu0 0.0
        %3989 = vmatprep.subr.mxu0 0.0
        %3990 = vmatpush1.msra.mxu0 0.0
        %3991 = vmatprep.subr.mxu0 0.0
        %3992 = vmatpush1.msra.mxu0 0.0
        %3993 = vmatprep.subr.mxu0 0.0
        %3994 = vmatpush1.msra.mxu0 0.0
        %3995 = vmatprep.subr.mxu0 0.0
        %3996 = vmatpush1.msra.mxu0 0.0
        %3997 = vmatprep.subr.mxu0 0.0
        %3998 = vmatpush1.msra.mxu0 0.0
        %3999 = vmatprep.subr.mxu0 0.0
        %4000 = vmatpush1.msra.mxu0 0.0
        %4001 = vmatprep.subr.mxu0 0.0
        %4002 = vmatpush1.msra.mxu0 0.0
        %4003 = vmatprep.subr.mxu0 0.0
        %4004 = vmatpush1.msra.mxu0 0.0
        %4005 = vmatprep.subr.mxu0 0.0
        %4006 = vmatpush1.msra.mxu0 0.0
        %4007 = vmatprep.subr.mxu0 0.0
        %4008 = vmatpush1.msra.mxu0 0.0
        %4009 = vmatprep.subr.mxu0 0.0
        %4010 = vmatpush1.msra.mxu0 0.0
        %4011 = vmatprep.subr.mxu0 0.0
        %4012 = vmatpush1.msra.mxu0 0.0
        %4013 = vmatprep.subr.mxu0 0.0
        %4014 = vmatpush1.msra.mxu0 0.0
        %4015 = vmatprep.subr.mxu0 0.0
        %4016 = vmatpush1.msra.mxu0 0.0
        %4017 = vmatprep.subr.mxu0 0.0
        %4018 = vmatpush1.msra.mxu0 0.0
        %4019 = vmatprep.subr.mxu0 0.0
        %4020 = vmatpush1.msra.mxu0 0.0
        %4021 = vmatprep.subr.mxu0 0.0
        %4022 = vmatpush1.msra.mxu0 0.0
        %4023 = vmatprep.mubr.f32.mxu0 0.0
        %4024 = vmatmul.mubr.f32.gmra.mrb[0].mxu0 %v3799
        %v4025 = vpop.f32.mrb[0].mxu0
        %v4026 = vadd.f32 0.0, %v4025
        %v4027 = vpop.f32.mrb[0].mxu0
        %v4028 = vadd.f32 0.0, %v4027
        %4029 = vdwg.mxu0
        %4030 = vmatprep.subr.mxu0 %v3815
        %4031 = vmatpush1.msra.mxu0 %v3813
        %4032 = vmatprep.subr.mxu0 0.0
        %4033 = vmatpush1.msra.mxu0 0.0
        %4034 = vmatprep.subr.mxu0 0.0
        %4035 = vmatpush1.msra.mxu0 0.0
        %4036 = vmatprep.subr.mxu0 0.0
        %4037 = vmatpush1.msra.mxu0 0.0
        %4038 = vmatprep.subr.mxu0 0.0
        %4039 = vmatpush1.msra.mxu0 0.0
        %4040 = vmatprep.subr.mxu0 0.0
        %4041 = vmatpush1.msra.mxu0 0.0
        %4042 = vmatprep.subr.mxu0 0.0
        %4043 = vmatpush1.msra.mxu0 0.0
        %4044 = vmatprep.subr.mxu0 0.0
        %4045 = vmatpush1.msra.mxu0 0.0
        %4046 = vmatprep.subr.mxu0 0.0
        %4047 = vmatpush1.msra.mxu0 0.0
        %4048 = vmatprep.subr.mxu0 0.0
        %4049 = vmatpush1.msra.mxu0 0.0
        %4050 = vmatprep.subr.mxu0 0.0
        %4051 = vmatpush1.msra.mxu0 0.0
        %4052 = vmatprep.subr.mxu0 0.0
        %4053 = vmatpush1.msra.mxu0 0.0
        %4054 = vmatprep.subr.mxu0 0.0
        %4055 = vmatpush1.msra.mxu0 0.0
        %4056 = vmatprep.subr.mxu0 0.0
        %4057 = vmatpush1.msra.mxu0 0.0
        %4058 = vmatprep.subr.mxu0 0.0
        %4059 = vmatpush1.msra.mxu0 0.0
        %4060 = vmatprep.subr.mxu0 0.0
        %4061 = vmatpush1.msra.mxu0 0.0
        %4062 = vmatprep.subr.mxu0 0.0
        %4063 = vmatpush1.msra.mxu0 0.0
        %4064 = vmatprep.subr.mxu0 0.0
        %4065 = vmatpush1.msra.mxu0 0.0
        %4066 = vmatprep.subr.mxu0 0.0
        %4067 = vmatpush1.msra.mxu0 0.0
        %4068 = vmatprep.subr.mxu0 0.0
        %4069 = vmatpush1.msra.mxu0 0.0
        %4070 = vmatprep.subr.mxu0 0.0
        %4071 = vmatpush1.msra.mxu0 0.0
        %4072 = vmatprep.subr.mxu0 0.0
        %4073 = vmatpush1.msra.mxu0 0.0
        %4074 = vmatprep.subr.mxu0 0.0
        %4075 = vmatpush1.msra.mxu0 0.0
        %4076 = vmatprep.subr.mxu0 0.0
        %4077 = vmatpush1.msra.mxu0 0.0
        %4078 = vmatprep.subr.mxu0 0.0
        %4079 = vmatpush1.msra.mxu0 0.0
        %4080 = vmatprep.subr.mxu0 0.0
        %4081 = vmatpush1.msra.mxu0 0.0
        %4082 = vmatprep.subr.mxu0 0.0
        %4083 = vmatpush1.msra.mxu0 0.0
        %4084 = vmatprep.subr.mxu0 0.0
        %4085 = vmatpush1.msra.mxu0 0.0
        %4086 = vmatprep.subr.mxu0 0.0
        %4087 = vmatpush1.msra.mxu0 0.0
        %4088 = vmatprep.subr.mxu0 0.0
        %4089 = vmatpush1.msra.mxu0 0.0
        %4090 = vmatprep.subr.mxu0 0.0
        %4091 = vmatpush1.msra.mxu0 0.0
        %4092 = vmatprep.subr.mxu0 0.0
        %4093 = vmatpush1.msra.mxu0 0.0
        %4094 = vmatprep.mubr.f32.mxu0 0.0
        %4095 = vmatmul.mubr.f32.gmra.mrb[0].mxu0 %v3799
        %v4096 = vpop.f32.mrb[0].mxu0
        %v4097 = vadd.f32 0.0, %v4096
        %v4098 = vpop.f32.mrb[0].mxu0
        %v4099 = vadd.f32 0.0, %v4098
        %4100 = vdwg.mxu0
        %v4101 = vadd.f32 %v3747, %v3884
        %v4102 = vadd.f32 %v3748, %v3886
        %v4103 = vadd.f32 %v3749, %v3955
        %v4104 = vadd.f32 %v3750, %v3957
        %v4105 = vadd.f32 %v3751, %v4026
        %v4106 = vadd.f32 %v3752, %v4028
        %v4107 = vadd.f32 %v3753, %v4097
        %v4108 = vadd.f32 %v3754, %v4099
        %v4109 = vld [vmem:[%s262] sm:$0xff]
        %v4110 = vld [vmem:[%s262 + $0x8] sm:$0xff]
        %v4111 = vld [vmem:[%s262 + $0x10] sm:$0xff]
        %v4112 = vld [vmem:[%s262 + $0x18] sm:$0xff]
        %v4113 = vld [vmem:[%s262 + $0x20] sm:$0xf]
        %s4114 = scalar_lea.vmem %s1, 88
        %v4115 = vld [vmem:[%s4114] sm:$0xff]
        %v4121 = vcombine.high %v4109, %v4109
        %v4122 = vcombine.high %v4110, %v4110
        %v4123 = vcombine.high %v4111, %v4111
        %v4124 = vcombine.high %v4112, %v4112
        %4125 = vrot.lane.b32.xlu0 %v4109, 26
        %v4126 = vpop.permute.xlu0 %4125
        %4127 = vrot.lane.b32.xlu0 %v4121, 26
        %v4128 = vpop.permute.xlu0 %4127
        %4129 = vrot.lane.b32.xlu0 %v4110, 26
        %v4130 = vpop.permute.xlu0 %4129
        %4131 = vrot.lane.b32.xlu0 %v4122, 26
        %v4132 = vpop.permute.xlu0 %4131
        %4133 = vrot.lane.b32.xlu0 %v4111, 26
        %v4134 = vpop.permute.xlu0 %4133
        %4135 = vrot.lane.b32.xlu0 %v4123, 26
        %v4136 = vpop.permute.xlu0 %4135
        %4137 = vrot.lane.b32.xlu0 %v4112, 26
        %v4138 = vpop.permute.xlu0 %4137
        %4139 = vrot.lane.b32.xlu0 %v4124, 26
        %v4140 = vpop.permute.xlu0 %4139
        %4141 = vrot.lane.b32.xlu0 %v4113, 26
        %v4142 = vpop.permute.xlu0 %4141
        %vm4143 = vcmask 211968
        %v4144 = vsel %vm4143, %v4126, %v4128
        %v4145 = vsel %vm4143, %v4128, %v4130
        %v4146 = vsel %vm4143, %v4130, %v4132
        %v4147 = vsel %vm4143, %v4132, %v4134
        %v4148 = vsel %vm4143, %v4134, %v4136
        %v4149 = vsel %vm4143, %v4136, %v4138
        %v4150 = vsel %vm4143, %v4138, %v4140
        %v4151 = vsel %vm4143, %v4140, %v4142
        %v4153 = vsel %vm315, %v4115, 0
        %v4155 = vsel %vm319, %v4144, 0
        %v4157 = vsel %vm319, %v4145, 0
        %v4159 = vsel %vm319, %v4146, 0
        %v4161 = vsel %vm319, %v4147, 0
        %v4163 = vsel %vm319, %v4148, 0
        %v4165 = vsel %vm319, %v4149, 0
        %v4167 = vsel %vm319, %v4150, 0
        %v4169 = vsel %vm319, %v4151, 0
        %4171 = vmatprep.subr.mxu0 %v4157
        %4172 = vmatpush1.msra.mxu0 %v4155
        %4173 = vmatprep.subr.mxu0 0.0
        %4174 = vmatpush1.msra.mxu0 0.0
        %4175 = vmatprep.subr.mxu0 0.0
        %4176 = vmatpush1.msra.mxu0 0.0
        %4177 = vmatprep.subr.mxu0 0.0
        %4178 = vmatpush1.msra.mxu0 0.0
        %4179 = vmatprep.subr.mxu0 0.0
        %4180 = vmatpush1.msra.mxu0 0.0
        %4181 = vmatprep.subr.mxu0 0.0
        %4182 = vmatpush1.msra.mxu0 0.0
        %4183 = vmatprep.subr.mxu0 0.0
        %4184 = vmatpush1.msra.mxu0 0.0
        %4185 = vmatprep.subr.mxu0 0.0
        %4186 = vmatpush1.msra.mxu0 0.0
        %4187 = vmatprep.subr.mxu0 0.0
        %4188 = vmatpush1.msra.mxu0 0.0
        %4189 = vmatprep.subr.mxu0 0.0
        %4190 = vmatpush1.msra.mxu0 0.0
        %4191 = vmatprep.subr.mxu0 0.0
        %4192 = vmatpush1.msra.mxu0 0.0
        %4193 = vmatprep.subr.mxu0 0.0
        %4194 = vmatpush1.msra.mxu0 0.0
        %4195 = vmatprep.subr.mxu0 0.0
        %4196 = vmatpush1.msra.mxu0 0.0
        %4197 = vmatprep.subr.mxu0 0.0
        %4198 = vmatpush1.msra.mxu0 0.0
        %4199 = vmatprep.subr.mxu0 0.0
        %4200 = vmatpush1.msra.mxu0 0.0
        %4201 = vmatprep.subr.mxu0 0.0
        %4202 = vmatpush1.msra.mxu0 0.0
        %4203 = vmatprep.subr.mxu0 0.0
        %4204 = vmatpush1.msra.mxu0 0.0
        %4205 = vmatprep.subr.mxu0 0.0
        %4206 = vmatpush1.msra.mxu0 0.0
        %4207 = vmatprep.subr.mxu0 0.0
        %4208 = vmatpush1.msra.mxu0 0.0
        %4209 = vmatprep.subr.mxu0 0.0
        %4210 = vmatpush1.msra.mxu0 0.0
        %4211 = vmatprep.subr.mxu0 0.0
        %4212 = vmatpush1.msra.mxu0 0.0
        %4213 = vmatprep.subr.mxu0 0.0
        %4214 = vmatpush1.msra.mxu0 0.0
        %4215 = vmatprep.subr.mxu0 0.0
        %4216 = vmatpush1.msra.mxu0 0.0
        %4217 = vmatprep.subr.mxu0 0.0
        %4218 = vmatpush1.msra.mxu0 0.0
        %4219 = vmatprep.subr.mxu0 0.0
        %4220 = vmatpush1.msra.mxu0 0.0
        %4221 = vmatprep.subr.mxu0 0.0
        %4222 = vmatpush1.msra.mxu0 0.0
        %4223 = vmatprep.subr.mxu0 0.0
        %4224 = vmatpush1.msra.mxu0 0.0
        %4225 = vmatprep.subr.mxu0 0.0
        %4226 = vmatpush1.msra.mxu0 0.0
        %4227 = vmatprep.subr.mxu0 0.0
        %4228 = vmatpush1.msra.mxu0 0.0
        %4229 = vmatprep.subr.mxu0 0.0
        %4230 = vmatpush1.msra.mxu0 0.0
        %4231 = vmatprep.subr.mxu0 0.0
        %4232 = vmatpush1.msra.mxu0 0.0
        %4233 = vmatprep.subr.mxu0 0.0
        %4234 = vmatpush1.msra.mxu0 0.0
        %4235 = vmatprep.mubr.f32.mxu0 0.0
        %4236 = vmatmul.mubr.f32.gmra.mrb[0].mxu0 %v4153
        %v4237 = vpop.f32.mrb[0].mxu0
        %v4238 = vadd.f32 0.0, %v4237
        %v4239 = vpop.f32.mrb[0].mxu0
        %v4240 = vadd.f32 0.0, %v4239
        %4241 = vdwg.mxu0
        %4242 = vmatprep.subr.mxu0 %v4161
        %4243 = vmatpush1.msra.mxu0 %v4159
        %4244 = vmatprep.subr.mxu0 0.0
        %4245 = vmatpush1.msra.mxu0 0.0
        %4246 = vmatprep.subr.mxu0 0.0
        %4247 = vmatpush1.msra.mxu0 0.0
        %4248 = vmatprep.subr.mxu0 0.0
        %4249 = vmatpush1.msra.mxu0 0.0
        %4250 = vmatprep.subr.mxu0 0.0
        %4251 = vmatpush1.msra.mxu0 0.0
        %4252 = vmatprep.subr.mxu0 0.0
        %4253 = vmatpush1.msra.mxu0 0.0
        %4254 = vmatprep.subr.mxu0 0.0
        %4255 = vmatpush1.msra.mxu0 0.0
        %4256 = vmatprep.subr.mxu0 0.0
        %4257 = vmatpush1.msra.mxu0 0.0
        %4258 = vmatprep.subr.mxu0 0.0
        %4259 = vmatpush1.msra.mxu0 0.0
        %4260 = vmatprep.subr.mxu0 0.0
        %4261 = vmatpush1.msra.mxu0 0.0
        %4262 = vmatprep.subr.mxu0 0.0
        %4263 = vmatpush1.msra.mxu0 0.0
        %4264 = vmatprep.subr.mxu0 0.0
        %4265 = vmatpush1.msra.mxu0 0.0
        %4266 = vmatprep.subr.mxu0 0.0
        %4267 = vmatpush1.msra.mxu0 0.0
        %4268 = vmatprep.subr.mxu0 0.0
        %4269 = vmatpush1.msra.mxu0 0.0
        %4270 = vmatprep.subr.mxu0 0.0
        %4271 = vmatpush1.msra.mxu0 0.0
        %4272 = vmatprep.subr.mxu0 0.0
        %4273 = vmatpush1.msra.mxu0 0.0
        %4274 = vmatprep.subr.mxu0 0.0
        %4275 = vmatpush1.msra.mxu0 0.0
        %4276 = vmatprep.subr.mxu0 0.0
        %4277 = vmatpush1.msra.mxu0 0.0
        %4278 = vmatprep.subr.mxu0 0.0
        %4279 = vmatpush1.msra.mxu0 0.0
        %4280 = vmatprep.subr.mxu0 0.0
        %4281 = vmatpush1.msra.mxu0 0.0
        %4282 = vmatprep.subr.mxu0 0.0
        %4283 = vmatpush1.msra.mxu0 0.0
        %4284 = vmatprep.subr.mxu0 0.0
        %4285 = vmatpush1.msra.mxu0 0.0
        %4286 = vmatprep.subr.mxu0 0.0
        %4287 = vmatpush1.msra.mxu0 0.0
        %4288 = vmatprep.subr.mxu0 0.0
        %4289 = vmatpush1.msra.mxu0 0.0
        %4290 = vmatprep.subr.mxu0 0.0
        %4291 = vmatpush1.msra.mxu0 0.0
        %4292 = vmatprep.subr.mxu0 0.0
        %4293 = vmatpush1.msra.mxu0 0.0
        %4294 = vmatprep.subr.mxu0 0.0
        %4295 = vmatpush1.msra.mxu0 0.0
        %4296 = vmatprep.subr.mxu0 0.0
        %4297 = vmatpush1.msra.mxu0 0.0
        %4298 = vmatprep.subr.mxu0 0.0
        %4299 = vmatpush1.msra.mxu0 0.0
        %4300 = vmatprep.subr.mxu0 0.0
        %4301 = vmatpush1.msra.mxu0 0.0
        %4302 = vmatprep.subr.mxu0 0.0
        %4303 = vmatpush1.msra.mxu0 0.0
        %4304 = vmatprep.subr.mxu0 0.0
        %4305 = vmatpush1.msra.mxu0 0.0
        %4306 = vmatprep.mubr.f32.mxu0 0.0
        %4307 = vmatmul.mubr.f32.gmra.mrb[0].mxu0 %v4153
        %v4308 = vpop.f32.mrb[0].mxu0
        %v4309 = vadd.f32 0.0, %v4308
        %v4310 = vpop.f32.mrb[0].mxu0
        %v4311 = vadd.f32 0.0, %v4310
        %4312 = vdwg.mxu0
        %4313 = vmatprep.subr.mxu0 %v4165
        %4314 = vmatpush1.msra.mxu0 %v4163
        %4315 = vmatprep.subr.mxu0 0.0
        %4316 = vmatpush1.msra.mxu0 0.0
        %4317 = vmatprep.subr.mxu0 0.0
        %4318 = vmatpush1.msra.mxu0 0.0
        %4319 = vmatprep.subr.mxu0 0.0
        %4320 = vmatpush1.msra.mxu0 0.0
        %4321 = vmatprep.subr.mxu0 0.0
        %4322 = vmatpush1.msra.mxu0 0.0
        %4323 = vmatprep.subr.mxu0 0.0
        %4324 = vmatpush1.msra.mxu0 0.0
        %4325 = vmatprep.subr.mxu0 0.0
        %4326 = vmatpush1.msra.mxu0 0.0
        %4327 = vmatprep.subr.mxu0 0.0
        %4328 = vmatpush1.msra.mxu0 0.0
        %4329 = vmatprep.subr.mxu0 0.0
        %4330 = vmatpush1.msra.mxu0 0.0
        %4331 = vmatprep.subr.mxu0 0.0
        %4332 = vmatpush1.msra.mxu0 0.0
        %4333 = vmatprep.subr.mxu0 0.0
        %4334 = vmatpush1.msra.mxu0 0.0
        %4335 = vmatprep.subr.mxu0 0.0
        %4336 = vmatpush1.msra.mxu0 0.0
        %4337 = vmatprep.subr.mxu0 0.0
        %4338 = vmatpush1.msra.mxu0 0.0
        %4339 = vmatprep.subr.mxu0 0.0
        %4340 = vmatpush1.msra.mxu0 0.0
        %4341 = vmatprep.subr.mxu0 0.0
        %4342 = vmatpush1.msra.mxu0 0.0
        %4343 = vmatprep.subr.mxu0 0.0
        %4344 = vmatpush1.msra.mxu0 0.0
        %4345 = vmatprep.subr.mxu0 0.0
        %4346 = vmatpush1.msra.mxu0 0.0
        %4347 = vmatprep.subr.mxu0 0.0
        %4348 = vmatpush1.msra.mxu0 0.0
        %4349 = vmatprep.subr.mxu0 0.0
        %4350 = vmatpush1.msra.mxu0 0.0
        %4351 = vmatprep.subr.mxu0 0.0
        %4352 = vmatpush1.msra.mxu0 0.0
        %4353 = vmatprep.subr.mxu0 0.0
        %4354 = vmatpush1.msra.mxu0 0.0
        %4355 = vmatprep.subr.mxu0 0.0
        %4356 = vmatpush1.msra.mxu0 0.0
        %4357 = vmatprep.subr.mxu0 0.0
        %4358 = vmatpush1.msra.mxu0 0.0
        %4359 = vmatprep.subr.mxu0 0.0
        %4360 = vmatpush1.msra.mxu0 0.0
        %4361 = vmatprep.subr.mxu0 0.0
        %4362 = vmatpush1.msra.mxu0 0.0
        %4363 = vmatprep.subr.mxu0 0.0
        %4364 = vmatpush1.msra.mxu0 0.0
        %4365 = vmatprep.subr.mxu0 0.0
        %4366 = vmatpush1.msra.mxu0 0.0
        %4367 = vmatprep.subr.mxu0 0.0
        %4368 = vmatpush1.msra.mxu0 0.0
        %4369 = vmatprep.subr.mxu0 0.0
        %4370 = vmatpush1.msra.mxu0 0.0
        %4371 = vmatprep.subr.mxu0 0.0
        %4372 = vmatpush1.msra.mxu0 0.0
        %4373 = vmatprep.subr.mxu0 0.0
        %4374 = vmatpush1.msra.mxu0 0.0
        %4375 = vmatprep.subr.mxu0 0.0
        %4376 = vmatpush1.msra.mxu0 0.0
        %4377 = vmatprep.mubr.f32.mxu0 0.0
        %4378 = vmatmul.mubr.f32.gmra.mrb[0].mxu0 %v4153
        %v4379 = vpop.f32.mrb[0].mxu0
        %v4380 = vadd.f32 0.0, %v4379
        %v4381 = vpop.f32.mrb[0].mxu0
        %v4382 = vadd.f32 0.0, %v4381
        %4383 = vdwg.mxu0
        %4384 = vmatprep.subr.mxu0 %v4169
        %4385 = vmatpush1.msra.mxu0 %v4167
        %4386 = vmatprep.subr.mxu0 0.0
        %4387 = vmatpush1.msra.mxu0 0.0
        %4388 = vmatprep.subr.mxu0 0.0
        %4389 = vmatpush1.msra.mxu0 0.0
        %4390 = vmatprep.subr.mxu0 0.0
        %4391 = vmatpush1.msra.mxu0 0.0
        %4392 = vmatprep.subr.mxu0 0.0
        %4393 = vmatpush1.msra.mxu0 0.0
        %4394 = vmatprep.subr.mxu0 0.0
        %4395 = vmatpush1.msra.mxu0 0.0
        %4396 = vmatprep.subr.mxu0 0.0
        %4397 = vmatpush1.msra.mxu0 0.0
        %4398 = vmatprep.subr.mxu0 0.0
        %4399 = vmatpush1.msra.mxu0 0.0
        %4400 = vmatprep.subr.mxu0 0.0
        %4401 = vmatpush1.msra.mxu0 0.0
        %4402 = vmatprep.subr.mxu0 0.0
        %4403 = vmatpush1.msra.mxu0 0.0
        %4404 = vmatprep.subr.mxu0 0.0
        %4405 = vmatpush1.msra.mxu0 0.0
        %4406 = vmatprep.subr.mxu0 0.0
        %4407 = vmatpush1.msra.mxu0 0.0
        %4408 = vmatprep.subr.mxu0 0.0
        %4409 = vmatpush1.msra.mxu0 0.0
        %4410 = vmatprep.subr.mxu0 0.0
        %4411 = vmatpush1.msra.mxu0 0.0
        %4412 = vmatprep.subr.mxu0 0.0
        %4413 = vmatpush1.msra.mxu0 0.0
        %4414 = vmatprep.subr.mxu0 0.0
        %4415 = vmatpush1.msra.mxu0 0.0
        %4416 = vmatprep.subr.mxu0 0.0
        %4417 = vmatpush1.msra.mxu0 0.0
        %4418 = vmatprep.subr.mxu0 0.0
        %4419 = vmatpush1.msra.mxu0 0.0
        %4420 = vmatprep.subr.mxu0 0.0
        %4421 = vmatpush1.msra.mxu0 0.0
        %4422 = vmatprep.subr.mxu0 0.0
        %4423 = vmatpush1.msra.mxu0 0.0
        %4424 = vmatprep.subr.mxu0 0.0
        %4425 = vmatpush1.msra.mxu0 0.0
        %4426 = vmatprep.subr.mxu0 0.0
        %4427 = vmatpush1.msra.mxu0 0.0
        %4428 = vmatprep.subr.mxu0 0.0
        %4429 = vmatpush1.msra.mxu0 0.0
        %4430 = vmatprep.subr.mxu0 0.0
        %4431 = vmatpush1.msra.mxu0 0.0
        %4432 = vmatprep.subr.mxu0 0.0
        %4433 = vmatpush1.msra.mxu0 0.0
        %4434 = vmatprep.subr.mxu0 0.0
        %4435 = vmatpush1.msra.mxu0 0.0
        %4436 = vmatprep.subr.mxu0 0.0
        %4437 = vmatpush1.msra.mxu0 0.0
        %4438 = vmatprep.subr.mxu0 0.0
        %4439 = vmatpush1.msra.mxu0 0.0
        %4440 = vmatprep.subr.mxu0 0.0
        %4441 = vmatpush1.msra.mxu0 0.0
        %4442 = vmatprep.subr.mxu0 0.0
        %4443 = vmatpush1.msra.mxu0 0.0
        %4444 = vmatprep.subr.mxu0 0.0
        %4445 = vmatpush1.msra.mxu0 0.0
        %4446 = vmatprep.subr.mxu0 0.0
        %4447 = vmatpush1.msra.mxu0 0.0
        %4448 = vmatprep.mubr.f32.mxu0 0.0
        %4449 = vmatmul.mubr.f32.gmra.mrb[0].mxu0 %v4153
        %v4450 = vpop.f32.mrb[0].mxu0
        %v4451 = vadd.f32 0.0, %v4450
        %v4452 = vpop.f32.mrb[0].mxu0
        %v4453 = vadd.f32 0.0, %v4452
        %4454 = vdwg.mxu0
        %v4455 = vadd.f32 %v4101, %v4238
        %v4456 = vadd.f32 %v4102, %v4240
        %v4457 = vadd.f32 %v4103, %v4309
        %v4458 = vadd.f32 %v4104, %v4311
        %v4459 = vadd.f32 %v4105, %v4380
        %v4460 = vadd.f32 %v4106, %v4382
        %v4461 = vadd.f32 %v4107, %v4451
        %v4462 = vadd.f32 %v4108, %v4453
        %v4463 = vld [vmem:[%s262] sm:$0xff]
        %v4464 = vld [vmem:[%s262 + $0x8] sm:$0xff]
        %v4465 = vld [vmem:[%s262 + $0x10] sm:$0xff]
        %v4466 = vld [vmem:[%s262 + $0x18] sm:$0xff]
        %v4467 = vld [vmem:[%s262 + $0x20] sm:$0xf]
        %s4468 = scalar_lea.vmem %s1, 96
        %v4469 = vld [vmem:[%s4468] sm:$0xff]
        %v4475 = vcombine.high %v4463, %v4463
        %v4476 = vcombine.high %v4464, %v4464
        %v4477 = vcombine.high %v4465, %v4465
        %v4478 = vcombine.high %v4466, %v4466
        %4479 = vrot.lane.b32.xlu0 %v4463, 18
        %v4480 = vpop.permute.xlu0 %4479
        %4481 = vrot.lane.b32.xlu0 %v4475, 18
        %v4482 = vpop.permute.xlu0 %4481
        %4483 = vrot.lane.b32.xlu0 %v4464, 18
        %v4484 = vpop.permute.xlu0 %4483
        %4485 = vrot.lane.b32.xlu0 %v4476, 18
        %v4486 = vpop.permute.xlu0 %4485
        %4487 = vrot.lane.b32.xlu0 %v4465, 18
        %v4488 = vpop.permute.xlu0 %4487
        %4489 = vrot.lane.b32.xlu0 %v4477, 18
        %v4490 = vpop.permute.xlu0 %4489
        %4491 = vrot.lane.b32.xlu0 %v4466, 18
        %v4492 = vpop.permute.xlu0 %4491
        %4493 = vrot.lane.b32.xlu0 %v4478, 18
        %v4494 = vpop.permute.xlu0 %4493
        %4495 = vrot.lane.b32.xlu0 %v4467, 18
        %v4496 = vpop.permute.xlu0 %4495
        %vm4497 = vcmask 146432
        %v4498 = vsel %vm4497, %v4480, %v4482
        %v4499 = vsel %vm4497, %v4482, %v4484
        %v4500 = vsel %vm4497, %v4484, %v4486
        %v4501 = vsel %vm4497, %v4486, %v4488
        %v4502 = vsel %vm4497, %v4488, %v4490
        %v4503 = vsel %vm4497, %v4490, %v4492
        %v4504 = vsel %vm4497, %v4492, %v4494
        %v4505 = vsel %vm4497, %v4494, %v4496
        %v4507 = vsel %vm315, %v4469, 0
        %v4509 = vsel %vm319, %v4498, 0
        %v4511 = vsel %vm319, %v4499, 0
        %v4513 = vsel %vm319, %v4500, 0
        %v4515 = vsel %vm319, %v4501, 0
        %v4517 = vsel %vm319, %v4502, 0
        %v4519 = vsel %vm319, %v4503, 0
        %v4521 = vsel %vm319, %v4504, 0
        %v4523 = vsel %vm319, %v4505, 0
        %4525 = vmatprep.subr.mxu0 %v4511
        %4526 = vmatpush1.msra.mxu0 %v4509
        %4527 = vmatprep.subr.mxu0 0.0
        %4528 = vmatpush1.msra.mxu0 0.0
        %4529 = vmatprep.subr.mxu0 0.0
        %4530 = vmatpush1.msra.mxu0 0.0
        %4531 = vmatprep.subr.mxu0 0.0
        %4532 = vmatpush1.msra.mxu0 0.0
        %4533 = vmatprep.subr.mxu0 0.0
        %4534 = vmatpush1.msra.mxu0 0.0
        %4535 = vmatprep.subr.mxu0 0.0
        %4536 = vmatpush1.msra.mxu0 0.0
        %4537 = vmatprep.subr.mxu0 0.0
        %4538 = vmatpush1.msra.mxu0 0.0
        %4539 = vmatprep.subr.mxu0 0.0
        %4540 = vmatpush1.msra.mxu0 0.0
        %4541 = vmatprep.subr.mxu0 0.0
        %4542 = vmatpush1.msra.mxu0 0.0
        %4543 = vmatprep.subr.mxu0 0.0
        %4544 = vmatpush1.msra.mxu0 0.0
        %4545 = vmatprep.subr.mxu0 0.0
        %4546 = vmatpush1.msra.mxu0 0.0
        %4547 = vmatprep.subr.mxu0 0.0
        %4548 = vmatpush1.msra.mxu0 0.0
        %4549 = vmatprep.subr.mxu0 0.0
        %4550 = vmatpush1.msra.mxu0 0.0
        %4551 = vmatprep.subr.mxu0 0.0
        %4552 = vmatpush1.msra.mxu0 0.0
        %4553 = vmatprep.subr.mxu0 0.0
        %4554 = vmatpush1.msra.mxu0 0.0
        %4555 = vmatprep.subr.mxu0 0.0
        %4556 = vmatpush1.msra.mxu0 0.0
        %4557 = vmatprep.subr.mxu0 0.0
        %4558 = vmatpush1.msra.mxu0 0.0
        %4559 = vmatprep.subr.mxu0 0.0
        %4560 = vmatpush1.msra.mxu0 0.0
        %4561 = vmatprep.subr.mxu0 0.0
        %4562 = vmatpush1.msra.mxu0 0.0
        %4563 = vmatprep.subr.mxu0 0.0
        %4564 = vmatpush1.msra.mxu0 0.0
        %4565 = vmatprep.subr.mxu0 0.0
        %4566 = vmatpush1.msra.mxu0 0.0
        %4567 = vmatprep.subr.mxu0 0.0
        %4568 = vmatpush1.msra.mxu0 0.0
        %4569 = vmatprep.subr.mxu0 0.0
        %4570 = vmatpush1.msra.mxu0 0.0
        %4571 = vmatprep.subr.mxu0 0.0
        %4572 = vmatpush1.msra.mxu0 0.0
        %4573 = vmatprep.subr.mxu0 0.0
        %4574 = vmatpush1.msra.mxu0 0.0
        %4575 = vmatprep.subr.mxu0 0.0
        %4576 = vmatpush1.msra.mxu0 0.0
        %4577 = vmatprep.subr.mxu0 0.0
        %4578 = vmatpush1.msra.mxu0 0.0
        %4579 = vmatprep.subr.mxu0 0.0
        %4580 = vmatpush1.msra.mxu0 0.0
        %4581 = vmatprep.subr.mxu0 0.0
        %4582 = vmatpush1.msra.mxu0 0.0
        %4583 = vmatprep.subr.mxu0 0.0
        %4584 = vmatpush1.msra.mxu0 0.0
        %4585 = vmatprep.subr.mxu0 0.0
        %4586 = vmatpush1.msra.mxu0 0.0
        %4587 = vmatprep.subr.mxu0 0.0
        %4588 = vmatpush1.msra.mxu0 0.0
        %4589 = vmatprep.mubr.f32.mxu0 0.0
        %4590 = vmatmul.mubr.f32.gmra.mrb[0].mxu0 %v4507
        %v4591 = vpop.f32.mrb[0].mxu0
        %v4592 = vadd.f32 0.0, %v4591
        %v4593 = vpop.f32.mrb[0].mxu0
        %v4594 = vadd.f32 0.0, %v4593
        %4595 = vdwg.mxu0
        %4596 = vmatprep.subr.mxu0 %v4515
        %4597 = vmatpush1.msra.mxu0 %v4513
        %4598 = vmatprep.subr.mxu0 0.0
        %4599 = vmatpush1.msra.mxu0 0.0
        %4600 = vmatprep.subr.mxu0 0.0
        %4601 = vmatpush1.msra.mxu0 0.0
        %4602 = vmatprep.subr.mxu0 0.0
        %4603 = vmatpush1.msra.mxu0 0.0
        %4604 = vmatprep.subr.mxu0 0.0
        %4605 = vmatpush1.msra.mxu0 0.0
        %4606 = vmatprep.subr.mxu0 0.0
        %4607 = vmatpush1.msra.mxu0 0.0
        %4608 = vmatprep.subr.mxu0 0.0
        %4609 = vmatpush1.msra.mxu0 0.0
        %4610 = vmatprep.subr.mxu0 0.0
        %4611 = vmatpush1.msra.mxu0 0.0
        %4612 = vmatprep.subr.mxu0 0.0
        %4613 = vmatpush1.msra.mxu0 0.0
        %4614 = vmatprep.subr.mxu0 0.0
        %4615 = vmatpush1.msra.mxu0 0.0
        %4616 = vmatprep.subr.mxu0 0.0
        %4617 = vmatpush1.msra.mxu0 0.0
        %4618 = vmatprep.subr.mxu0 0.0
        %4619 = vmatpush1.msra.mxu0 0.0
        %4620 = vmatprep.subr.mxu0 0.0
        %4621 = vmatpush1.msra.mxu0 0.0
        %4622 = vmatprep.subr.mxu0 0.0
        %4623 = vmatpush1.msra.mxu0 0.0
        %4624 = vmatprep.subr.mxu0 0.0
        %4625 = vmatpush1.msra.mxu0 0.0
        %4626 = vmatprep.subr.mxu0 0.0
        %4627 = vmatpush1.msra.mxu0 0.0
        %4628 = vmatprep.subr.mxu0 0.0
        %4629 = vmatpush1.msra.mxu0 0.0
        %4630 = vmatprep.subr.mxu0 0.0
        %4631 = vmatpush1.msra.mxu0 0.0
        %4632 = vmatprep.subr.mxu0 0.0
        %4633 = vmatpush1.msra.mxu0 0.0
        %4634 = vmatprep.subr.mxu0 0.0
        %4635 = vmatpush1.msra.mxu0 0.0
        %4636 = vmatprep.subr.mxu0 0.0
        %4637 = vmatpush1.msra.mxu0 0.0
        %4638 = vmatprep.subr.mxu0 0.0
        %4639 = vmatpush1.msra.mxu0 0.0
        %4640 = vmatprep.subr.mxu0 0.0
        %4641 = vmatpush1.msra.mxu0 0.0
        %4642 = vmatprep.subr.mxu0 0.0
        %4643 = vmatpush1.msra.mxu0 0.0
        %4644 = vmatprep.subr.mxu0 0.0
        %4645 = vmatpush1.msra.mxu0 0.0
        %4646 = vmatprep.subr.mxu0 0.0
        %4647 = vmatpush1.msra.mxu0 0.0
        %4648 = vmatprep.subr.mxu0 0.0
        %4649 = vmatpush1.msra.mxu0 0.0
        %4650 = vmatprep.subr.mxu0 0.0
        %4651 = vmatpush1.msra.mxu0 0.0
        %4652 = vmatprep.subr.mxu0 0.0
        %4653 = vmatpush1.msra.mxu0 0.0
        %4654 = vmatprep.subr.mxu0 0.0
        %4655 = vmatpush1.msra.mxu0 0.0
        %4656 = vmatprep.subr.mxu0 0.0
        %4657 = vmatpush1.msra.mxu0 0.0
        %4658 = vmatprep.subr.mxu0 0.0
        %4659 = vmatpush1.msra.mxu0 0.0
        %4660 = vmatprep.mubr.f32.mxu0 0.0
        %4661 = vmatmul.mubr.f32.gmra.mrb[0].mxu0 %v4507
        %v4662 = vpop.f32.mrb[0].mxu0
        %v4663 = vadd.f32 0.0, %v4662
        %v4664 = vpop.f32.mrb[0].mxu0
        %v4665 = vadd.f32 0.0, %v4664
        %4666 = vdwg.mxu0
        %4667 = vmatprep.subr.mxu0 %v4519
        %4668 = vmatpush1.msra.mxu0 %v4517
        %4669 = vmatprep.subr.mxu0 0.0
        %4670 = vmatpush1.msra.mxu0 0.0
        %4671 = vmatprep.subr.mxu0 0.0
        %4672 = vmatpush1.msra.mxu0 0.0
        %4673 = vmatprep.subr.mxu0 0.0
        %4674 = vmatpush1.msra.mxu0 0.0
        %4675 = vmatprep.subr.mxu0 0.0
        %4676 = vmatpush1.msra.mxu0 0.0
        %4677 = vmatprep.subr.mxu0 0.0
        %4678 = vmatpush1.msra.mxu0 0.0
        %4679 = vmatprep.subr.mxu0 0.0
        %4680 = vmatpush1.msra.mxu0 0.0
        %4681 = vmatprep.subr.mxu0 0.0
        %4682 = vmatpush1.msra.mxu0 0.0
        %4683 = vmatprep.subr.mxu0 0.0
        %4684 = vmatpush1.msra.mxu0 0.0
        %4685 = vmatprep.subr.mxu0 0.0
        %4686 = vmatpush1.msra.mxu0 0.0
        %4687 = vmatprep.subr.mxu0 0.0
        %4688 = vmatpush1.msra.mxu0 0.0
        %4689 = vmatprep.subr.mxu0 0.0
        %4690 = vmatpush1.msra.mxu0 0.0
        %4691 = vmatprep.subr.mxu0 0.0
        %4692 = vmatpush1.msra.mxu0 0.0
        %4693 = vmatprep.subr.mxu0 0.0
        %4694 = vmatpush1.msra.mxu0 0.0
        %4695 = vmatprep.subr.mxu0 0.0
        %4696 = vmatpush1.msra.mxu0 0.0
        %4697 = vmatprep.subr.mxu0 0.0
        %4698 = vmatpush1.msra.mxu0 0.0
        %4699 = vmatprep.subr.mxu0 0.0
        %4700 = vmatpush1.msra.mxu0 0.0
        %4701 = vmatprep.subr.mxu0 0.0
        %4702 = vmatpush1.msra.mxu0 0.0
        %4703 = vmatprep.subr.mxu0 0.0
        %4704 = vmatpush1.msra.mxu0 0.0
        %4705 = vmatprep.subr.mxu0 0.0
        %4706 = vmatpush1.msra.mxu0 0.0
        %4707 = vmatprep.subr.mxu0 0.0
        %4708 = vmatpush1.msra.mxu0 0.0
        %4709 = vmatprep.subr.mxu0 0.0
        %4710 = vmatpush1.msra.mxu0 0.0
        %4711 = vmatprep.subr.mxu0 0.0
        %4712 = vmatpush1.msra.mxu0 0.0
        %4713 = vmatprep.subr.mxu0 0.0
        %4714 = vmatpush1.msra.mxu0 0.0
        %4715 = vmatprep.subr.mxu0 0.0
        %4716 = vmatpush1.msra.mxu0 0.0
        %4717 = vmatprep.subr.mxu0 0.0
        %4718 = vmatpush1.msra.mxu0 0.0
        %4719 = vmatprep.subr.mxu0 0.0
        %4720 = vmatpush1.msra.mxu0 0.0
        %4721 = vmatprep.subr.mxu0 0.0
        %4722 = vmatpush1.msra.mxu0 0.0
        %4723 = vmatprep.subr.mxu0 0.0
        %4724 = vmatpush1.msra.mxu0 0.0
        %4725 = vmatprep.subr.mxu0 0.0
        %4726 = vmatpush1.msra.mxu0 0.0
        %4727 = vmatprep.subr.mxu0 0.0
        %4728 = vmatpush1.msra.mxu0 0.0
        %4729 = vmatprep.subr.mxu0 0.0
        %4730 = vmatpush1.msra.mxu0 0.0
        %4731 = vmatprep.mubr.f32.mxu0 0.0
        %4732 = vmatmul.mubr.f32.gmra.mrb[0].mxu0 %v4507
        %v4733 = vpop.f32.mrb[0].mxu0
        %v4734 = vadd.f32 0.0, %v4733
        %v4735 = vpop.f32.mrb[0].mxu0
        %v4736 = vadd.f32 0.0, %v4735
        %4737 = vdwg.mxu0
        %4738 = vmatprep.subr.mxu0 %v4523
        %4739 = vmatpush1.msra.mxu0 %v4521
        %4740 = vmatprep.subr.mxu0 0.0
        %4741 = vmatpush1.msra.mxu0 0.0
        %4742 = vmatprep.subr.mxu0 0.0
        %4743 = vmatpush1.msra.mxu0 0.0
        %4744 = vmatprep.subr.mxu0 0.0
        %4745 = vmatpush1.msra.mxu0 0.0
        %4746 = vmatprep.subr.mxu0 0.0
        %4747 = vmatpush1.msra.mxu0 0.0
        %4748 = vmatprep.subr.mxu0 0.0
        %4749 = vmatpush1.msra.mxu0 0.0
        %4750 = vmatprep.subr.mxu0 0.0
        %4751 = vmatpush1.msra.mxu0 0.0
        %4752 = vmatprep.subr.mxu0 0.0
        %4753 = vmatpush1.msra.mxu0 0.0
        %4754 = vmatprep.subr.mxu0 0.0
        %4755 = vmatpush1.msra.mxu0 0.0
        %4756 = vmatprep.subr.mxu0 0.0
        %4757 = vmatpush1.msra.mxu0 0.0
        %4758 = vmatprep.subr.mxu0 0.0
        %4759 = vmatpush1.msra.mxu0 0.0
        %4760 = vmatprep.subr.mxu0 0.0
        %4761 = vmatpush1.msra.mxu0 0.0
        %4762 = vmatprep.subr.mxu0 0.0
        %4763 = vmatpush1.msra.mxu0 0.0
        %4764 = vmatprep.subr.mxu0 0.0
        %4765 = vmatpush1.msra.mxu0 0.0
        %4766 = vmatprep.subr.mxu0 0.0
        %4767 = vmatpush1.msra.mxu0 0.0
        %4768 = vmatprep.subr.mxu0 0.0
        %4769 = vmatpush1.msra.mxu0 0.0
        %4770 = vmatprep.subr.mxu0 0.0
        %4771 = vmatpush1.msra.mxu0 0.0
        %4772 = vmatprep.subr.mxu0 0.0
        %4773 = vmatpush1.msra.mxu0 0.0
        %4774 = vmatprep.subr.mxu0 0.0
        %4775 = vmatpush1.msra.mxu0 0.0
        %4776 = vmatprep.subr.mxu0 0.0
        %4777 = vmatpush1.msra.mxu0 0.0
        %4778 = vmatprep.subr.mxu0 0.0
        %4779 = vmatpush1.msra.mxu0 0.0
        %4780 = vmatprep.subr.mxu0 0.0
        %4781 = vmatpush1.msra.mxu0 0.0
        %4782 = vmatprep.subr.mxu0 0.0
        %4783 = vmatpush1.msra.mxu0 0.0
        %4784 = vmatprep.subr.mxu0 0.0
        %4785 = vmatpush1.msra.mxu0 0.0
        %4786 = vmatprep.subr.mxu0 0.0
        %4787 = vmatpush1.msra.mxu0 0.0
        %4788 = vmatprep.subr.mxu0 0.0
        %4789 = vmatpush1.msra.mxu0 0.0
        %4790 = vmatprep.subr.mxu0 0.0
        %4791 = vmatpush1.msra.mxu0 0.0
        %4792 = vmatprep.subr.mxu0 0.0
        %4793 = vmatpush1.msra.mxu0 0.0
        %4794 = vmatprep.subr.mxu0 0.0
        %4795 = vmatpush1.msra.mxu0 0.0
        %4796 = vmatprep.subr.mxu0 0.0
        %4797 = vmatpush1.msra.mxu0 0.0
        %4798 = vmatprep.subr.mxu0 0.0
        %4799 = vmatpush1.msra.mxu0 0.0
        %4800 = vmatprep.subr.mxu0 0.0
        %4801 = vmatpush1.msra.mxu0 0.0
        %4802 = vmatprep.mubr.f32.mxu0 0.0
        %4803 = vmatmul.mubr.f32.gmra.mrb[0].mxu0 %v4507
        %v4804 = vpop.f32.mrb[0].mxu0
        %v4805 = vadd.f32 0.0, %v4804
        %v4806 = vpop.f32.mrb[0].mxu0
        %v4807 = vadd.f32 0.0, %v4806
        %4808 = vdwg.mxu0
        %v4809 = vadd.f32 %v4455, %v4592
        %v4810 = vadd.f32 %v4456, %v4594
        %v4811 = vadd.f32 %v4457, %v4663
        %v4812 = vadd.f32 %v4458, %v4665
        %v4813 = vadd.f32 %v4459, %v4734
        %v4814 = vadd.f32 %v4460, %v4736
        %v4815 = vadd.f32 %v4461, %v4805
        %v4816 = vadd.f32 %v4462, %v4807
        %v4817 = vld [vmem:[%s262] sm:$0xff]
        %v4818 = vld [vmem:[%s262 + $0x8] sm:$0xff]
        %v4819 = vld [vmem:[%s262 + $0x10] sm:$0xff]
        %v4820 = vld [vmem:[%s262 + $0x18] sm:$0xff]
        %v4821 = vld [vmem:[%s262 + $0x20] sm:$0xf]
        %s4822 = scalar_lea.vmem %s1, 104
        %v4823 = vld [vmem:[%s4822] sm:$0xff]
        %v4829 = vcombine.high %v4817, %v4817
        %v4830 = vcombine.high %v4818, %v4818
        %v4831 = vcombine.high %v4819, %v4819
        %v4832 = vcombine.high %v4820, %v4820
        %4833 = vrot.lane.b32.xlu0 %v4817, 17
        %v4834 = vpop.permute.xlu0 %4833
        %4835 = vrot.lane.b32.xlu0 %v4829, 17
        %v4836 = vpop.permute.xlu0 %4835
        %4837 = vrot.lane.b32.xlu0 %v4818, 17
        %v4838 = vpop.permute.xlu0 %4837
        %4839 = vrot.lane.b32.xlu0 %v4830, 17
        %v4840 = vpop.permute.xlu0 %4839
        %4841 = vrot.lane.b32.xlu0 %v4819, 17
        %v4842 = vpop.permute.xlu0 %4841
        %4843 = vrot.lane.b32.xlu0 %v4831, 17
        %v4844 = vpop.permute.xlu0 %4843
        %4845 = vrot.lane.b32.xlu0 %v4820, 17
        %v4846 = vpop.permute.xlu0 %4845
        %4847 = vrot.lane.b32.xlu0 %v4832, 17
        %v4848 = vpop.permute.xlu0 %4847
        %4849 = vrot.lane.b32.xlu0 %v4821, 17
        %v4850 = vpop.permute.xlu0 %4849
        %vm4851 = vcmask 138240
        %v4852 = vsel %vm4851, %v4834, %v4836
        %v4853 = vsel %vm4851, %v4836, %v4838
        %v4854 = vsel %vm4851, %v4838, %v4840
        %v4855 = vsel %vm4851, %v4840, %v4842
        %v4856 = vsel %vm4851, %v4842, %v4844
        %v4857 = vsel %vm4851, %v4844, %v4846
        %v4858 = vsel %vm4851, %v4846, %v4848
        %v4859 = vsel %vm4851, %v4848, %v4850
        %v4861 = vsel %vm315, %v4823, 0
        %v4863 = vsel %vm319, %v4852, 0
        %v4865 = vsel %vm319, %v4853, 0
        %v4867 = vsel %vm319, %v4854, 0
        %v4869 = vsel %vm319, %v4855, 0
        %v4871 = vsel %vm319, %v4856, 0
        %v4873 = vsel %vm319, %v4857, 0
        %v4875 = vsel %vm319, %v4858, 0
        %v4877 = vsel %vm319, %v4859, 0
        %4879 = vmatprep.subr.mxu0 %v4865
        %4880 = vmatpush1.msra.mxu0 %v4863
        %4881 = vmatprep.subr.mxu0 0.0
        %4882 = vmatpush1.msra.mxu0 0.0
        %4883 = vmatprep.subr.mxu0 0.0
        %4884 = vmatpush1.msra.mxu0 0.0
        %4885 = vmatprep.subr.mxu0 0.0
        %4886 = vmatpush1.msra.mxu0 0.0
        %4887 = vmatprep.subr.mxu0 0.0
        %4888 = vmatpush1.msra.mxu0 0.0
        %4889 = vmatprep.subr.mxu0 0.0
        %4890 = vmatpush1.msra.mxu0 0.0
        %4891 = vmatprep.subr.mxu0 0.0
        %4892 = vmatpush1.msra.mxu0 0.0
        %4893 = vmatprep.subr.mxu0 0.0
        %4894 = vmatpush1.msra.mxu0 0.0
        %4895 = vmatprep.subr.mxu0 0.0
        %4896 = vmatpush1.msra.mxu0 0.0
        %4897 = vmatprep.subr.mxu0 0.0
        %4898 = vmatpush1.msra.mxu0 0.0
        %4899 = vmatprep.subr.mxu0 0.0
        %4900 = vmatpush1.msra.mxu0 0.0
        %4901 = vmatprep.subr.mxu0 0.0
        %4902 = vmatpush1.msra.mxu0 0.0
        %4903 = vmatprep.subr.mxu0 0.0
        %4904 = vmatpush1.msra.mxu0 0.0
        %4905 = vmatprep.subr.mxu0 0.0
        %4906 = vmatpush1.msra.mxu0 0.0
        %4907 = vmatprep.subr.mxu0 0.0
        %4908 = vmatpush1.msra.mxu0 0.0
        %4909 = vmatprep.subr.mxu0 0.0
        %4910 = vmatpush1.msra.mxu0 0.0
        %4911 = vmatprep.subr.mxu0 0.0
        %4912 = vmatpush1.msra.mxu0 0.0
        %4913 = vmatprep.subr.mxu0 0.0
        %4914 = vmatpush1.msra.mxu0 0.0
        %4915 = vmatprep.subr.mxu0 0.0
        %4916 = vmatpush1.msra.mxu0 0.0
        %4917 = vmatprep.subr.mxu0 0.0
        %4918 = vmatpush1.msra.mxu0 0.0
        %4919 = vmatprep.subr.mxu0 0.0
        %4920 = vmatpush1.msra.mxu0 0.0
        %4921 = vmatprep.subr.mxu0 0.0
        %4922 = vmatpush1.msra.mxu0 0.0
        %4923 = vmatprep.subr.mxu0 0.0
        %4924 = vmatpush1.msra.mxu0 0.0
        %4925 = vmatprep.subr.mxu0 0.0
        %4926 = vmatpush1.msra.mxu0 0.0
        %4927 = vmatprep.subr.mxu0 0.0
        %4928 = vmatpush1.msra.mxu0 0.0
        %4929 = vmatprep.subr.mxu0 0.0
        %4930 = vmatpush1.msra.mxu0 0.0
        %4931 = vmatprep.subr.mxu0 0.0
        %4932 = vmatpush1.msra.mxu0 0.0
        %4933 = vmatprep.subr.mxu0 0.0
        %4934 = vmatpush1.msra.mxu0 0.0
        %4935 = vmatprep.subr.mxu0 0.0
        %4936 = vmatpush1.msra.mxu0 0.0
        %4937 = vmatprep.subr.mxu0 0.0
        %4938 = vmatpush1.msra.mxu0 0.0
        %4939 = vmatprep.subr.mxu0 0.0
        %4940 = vmatpush1.msra.mxu0 0.0
        %4941 = vmatprep.subr.mxu0 0.0
        %4942 = vmatpush1.msra.mxu0 0.0
        %4943 = vmatprep.mubr.f32.mxu0 0.0
        %4944 = vmatmul.mubr.f32.gmra.mrb[0].mxu0 %v4861
        %v4945 = vpop.f32.mrb[0].mxu0
        %v4946 = vadd.f32 0.0, %v4945
        %v4947 = vpop.f32.mrb[0].mxu0
        %v4948 = vadd.f32 0.0, %v4947
        %4949 = vdwg.mxu0
        %4950 = vmatprep.subr.mxu0 %v4869
        %4951 = vmatpush1.msra.mxu0 %v4867
        %4952 = vmatprep.subr.mxu0 0.0
        %4953 = vmatpush1.msra.mxu0 0.0
        %4954 = vmatprep.subr.mxu0 0.0
        %4955 = vmatpush1.msra.mxu0 0.0
        %4956 = vmatprep.subr.mxu0 0.0
        %4957 = vmatpush1.msra.mxu0 0.0
        %4958 = vmatprep.subr.mxu0 0.0
        %4959 = vmatpush1.msra.mxu0 0.0
        %4960 = vmatprep.subr.mxu0 0.0
        %4961 = vmatpush1.msra.mxu0 0.0
        %4962 = vmatprep.subr.mxu0 0.0
        %4963 = vmatpush1.msra.mxu0 0.0
        %4964 = vmatprep.subr.mxu0 0.0
        %4965 = vmatpush1.msra.mxu0 0.0
        %4966 = vmatprep.subr.mxu0 0.0
        %4967 = vmatpush1.msra.mxu0 0.0
        %4968 = vmatprep.subr.mxu0 0.0
        %4969 = vmatpush1.msra.mxu0 0.0
        %4970 = vmatprep.subr.mxu0 0.0
        %4971 = vmatpush1.msra.mxu0 0.0
        %4972 = vmatprep.subr.mxu0 0.0
        %4973 = vmatpush1.msra.mxu0 0.0
        %4974 = vmatprep.subr.mxu0 0.0
        %4975 = vmatpush1.msra.mxu0 0.0
        %4976 = vmatprep.subr.mxu0 0.0
        %4977 = vmatpush1.msra.mxu0 0.0
        %4978 = vmatprep.subr.mxu0 0.0
        %4979 = vmatpush1.msra.mxu0 0.0
        %4980 = vmatprep.subr.mxu0 0.0
        %4981 = vmatpush1.msra.mxu0 0.0
        %4982 = vmatprep.subr.mxu0 0.0
        %4983 = vmatpush1.msra.mxu0 0.0
        %4984 = vmatprep.subr.mxu0 0.0
        %4985 = vmatpush1.msra.mxu0 0.0
        %4986 = vmatprep.subr.mxu0 0.0
        %4987 = vmatpush1.msra.mxu0 0.0
        %4988 = vmatprep.subr.mxu0 0.0
        %4989 = vmatpush1.msra.mxu0 0.0
        %4990 = vmatprep.subr.mxu0 0.0
        %4991 = vmatpush1.msra.mxu0 0.0
        %4992 = vmatprep.subr.mxu0 0.0
        %4993 = vmatpush1.msra.mxu0 0.0
        %4994 = vmatprep.subr.mxu0 0.0
        %4995 = vmatpush1.msra.mxu0 0.0
        %4996 = vmatprep.subr.mxu0 0.0
        %4997 = vmatpush1.msra.mxu0 0.0
        %4998 = vmatprep.subr.mxu0 0.0
        %4999 = vmatpush1.msra.mxu0 0.0
        %5000 = vmatprep.subr.mxu0 0.0
        %5001 = vmatpush1.msra.mxu0 0.0
        %5002 = vmatprep.subr.mxu0 0.0
        %5003 = vmatpush1.msra.mxu0 0.0
        %5004 = vmatprep.subr.mxu0 0.0
        %5005 = vmatpush1.msra.mxu0 0.0
        %5006 = vmatprep.subr.mxu0 0.0
        %5007 = vmatpush1.msra.mxu0 0.0
        %5008 = vmatprep.subr.mxu0 0.0
        %5009 = vmatpush1.msra.mxu0 0.0
        %5010 = vmatprep.subr.mxu0 0.0
        %5011 = vmatpush1.msra.mxu0 0.0
        %5012 = vmatprep.subr.mxu0 0.0
        %5013 = vmatpush1.msra.mxu0 0.0
        %5014 = vmatprep.mubr.f32.mxu0 0.0
        %5015 = vmatmul.mubr.f32.gmra.mrb[0].mxu0 %v4861
        %v5016 = vpop.f32.mrb[0].mxu0
        %v5017 = vadd.f32 0.0, %v5016
        %v5018 = vpop.f32.mrb[0].mxu0
        %v5019 = vadd.f32 0.0, %v5018
        %5020 = vdwg.mxu0
        %5021 = vmatprep.subr.mxu0 %v4873
        %5022 = vmatpush1.msra.mxu0 %v4871
        %5023 = vmatprep.subr.mxu0 0.0
        %5024 = vmatpush1.msra.mxu0 0.0
        %5025 = vmatprep.subr.mxu0 0.0
        %5026 = vmatpush1.msra.mxu0 0.0
        %5027 = vmatprep.subr.mxu0 0.0
        %5028 = vmatpush1.msra.mxu0 0.0
        %5029 = vmatprep.subr.mxu0 0.0
        %5030 = vmatpush1.msra.mxu0 0.0
        %5031 = vmatprep.subr.mxu0 0.0
        %5032 = vmatpush1.msra.mxu0 0.0
        %5033 = vmatprep.subr.mxu0 0.0
        %5034 = vmatpush1.msra.mxu0 0.0
        %5035 = vmatprep.subr.mxu0 0.0
        %5036 = vmatpush1.msra.mxu0 0.0
        %5037 = vmatprep.subr.mxu0 0.0
        %5038 = vmatpush1.msra.mxu0 0.0
        %5039 = vmatprep.subr.mxu0 0.0
        %5040 = vmatpush1.msra.mxu0 0.0
        %5041 = vmatprep.subr.mxu0 0.0
        %5042 = vmatpush1.msra.mxu0 0.0
        %5043 = vmatprep.subr.mxu0 0.0
        %5044 = vmatpush1.msra.mxu0 0.0
        %5045 = vmatprep.subr.mxu0 0.0
        %5046 = vmatpush1.msra.mxu0 0.0
        %5047 = vmatprep.subr.mxu0 0.0
        %5048 = vmatpush1.msra.mxu0 0.0
        %5049 = vmatprep.subr.mxu0 0.0
        %5050 = vmatpush1.msra.mxu0 0.0
        %5051 = vmatprep.subr.mxu0 0.0
        %5052 = vmatpush1.msra.mxu0 0.0
        %5053 = vmatprep.subr.mxu0 0.0
        %5054 = vmatpush1.msra.mxu0 0.0
        %5055 = vmatprep.subr.mxu0 0.0
        %5056 = vmatpush1.msra.mxu0 0.0
        %5057 = vmatprep.subr.mxu0 0.0
        %5058 = vmatpush1.msra.mxu0 0.0
        %5059 = vmatprep.subr.mxu0 0.0
        %5060 = vmatpush1.msra.mxu0 0.0
        %5061 = vmatprep.subr.mxu0 0.0
        %5062 = vmatpush1.msra.mxu0 0.0
        %5063 = vmatprep.subr.mxu0 0.0
        %5064 = vmatpush1.msra.mxu0 0.0
        %5065 = vmatprep.subr.mxu0 0.0
        %5066 = vmatpush1.msra.mxu0 0.0
        %5067 = vmatprep.subr.mxu0 0.0
        %5068 = vmatpush1.msra.mxu0 0.0
        %5069 = vmatprep.subr.mxu0 0.0
        %5070 = vmatpush1.msra.mxu0 0.0
        %5071 = vmatprep.subr.mxu0 0.0
        %5072 = vmatpush1.msra.mxu0 0.0
        %5073 = vmatprep.subr.mxu0 0.0
        %5074 = vmatpush1.msra.mxu0 0.0
        %5075 = vmatprep.subr.mxu0 0.0
        %5076 = vmatpush1.msra.mxu0 0.0
        %5077 = vmatprep.subr.mxu0 0.0
        %5078 = vmatpush1.msra.mxu0 0.0
        %5079 = vmatprep.subr.mxu0 0.0
        %5080 = vmatpush1.msra.mxu0 0.0
        %5081 = vmatprep.subr.mxu0 0.0
        %5082 = vmatpush1.msra.mxu0 0.0
        %5083 = vmatprep.subr.mxu0 0.0
        %5084 = vmatpush1.msra.mxu0 0.0
        %5085 = vmatprep.mubr.f32.mxu0 0.0
        %5086 = vmatmul.mubr.f32.gmra.mrb[0].mxu0 %v4861
        %v5087 = vpop.f32.mrb[0].mxu0
        %v5088 = vadd.f32 0.0, %v5087
        %v5089 = vpop.f32.mrb[0].mxu0
        %v5090 = vadd.f32 0.0, %v5089
        %5091 = vdwg.mxu0
        %5092 = vmatprep.subr.mxu0 %v4877
        %5093 = vmatpush1.msra.mxu0 %v4875
        %5094 = vmatprep.subr.mxu0 0.0
        %5095 = vmatpush1.msra.mxu0 0.0
        %5096 = vmatprep.subr.mxu0 0.0
        %5097 = vmatpush1.msra.mxu0 0.0
        %5098 = vmatprep.subr.mxu0 0.0
        %5099 = vmatpush1.msra.mxu0 0.0
        %5100 = vmatprep.subr.mxu0 0.0
        %5101 = vmatpush1.msra.mxu0 0.0
        %5102 = vmatprep.subr.mxu0 0.0
        %5103 = vmatpush1.msra.mxu0 0.0
        %5104 = vmatprep.subr.mxu0 0.0
        %5105 = vmatpush1.msra.mxu0 0.0
        %5106 = vmatprep.subr.mxu0 0.0
        %5107 = vmatpush1.msra.mxu0 0.0
        %5108 = vmatprep.subr.mxu0 0.0
        %5109 = vmatpush1.msra.mxu0 0.0
        %5110 = vmatprep.subr.mxu0 0.0
        %5111 = vmatpush1.msra.mxu0 0.0
        %5112 = vmatprep.subr.mxu0 0.0
        %5113 = vmatpush1.msra.mxu0 0.0
        %5114 = vmatprep.subr.mxu0 0.0
        %5115 = vmatpush1.msra.mxu0 0.0
        %5116 = vmatprep.subr.mxu0 0.0
        %5117 = vmatpush1.msra.mxu0 0.0
        %5118 = vmatprep.subr.mxu0 0.0
        %5119 = vmatpush1.msra.mxu0 0.0
        %5120 = vmatprep.subr.mxu0 0.0
        %5121 = vmatpush1.msra.mxu0 0.0
        %5122 = vmatprep.subr.mxu0 0.0
        %5123 = vmatpush1.msra.mxu0 0.0
        %5124 = vmatprep.subr.mxu0 0.0
        %5125 = vmatpush1.msra.mxu0 0.0
        %5126 = vmatprep.subr.mxu0 0.0
        %5127 = vmatpush1.msra.mxu0 0.0
        %5128 = vmatprep.subr.mxu0 0.0
        %5129 = vmatpush1.msra.mxu0 0.0
        %5130 = vmatprep.subr.mxu0 0.0
        %5131 = vmatpush1.msra.mxu0 0.0
        %5132 = vmatprep.subr.mxu0 0.0
        %5133 = vmatpush1.msra.mxu0 0.0
        %5134 = vmatprep.subr.mxu0 0.0
        %5135 = vmatpush1.msra.mxu0 0.0
        %5136 = vmatprep.subr.mxu0 0.0
        %5137 = vmatpush1.msra.mxu0 0.0
        %5138 = vmatprep.subr.mxu0 0.0
        %5139 = vmatpush1.msra.mxu0 0.0
        %5140 = vmatprep.subr.mxu0 0.0
        %5141 = vmatpush1.msra.mxu0 0.0
        %5142 = vmatprep.subr.mxu0 0.0
        %5143 = vmatpush1.msra.mxu0 0.0
        %5144 = vmatprep.subr.mxu0 0.0
        %5145 = vmatpush1.msra.mxu0 0.0
        %5146 = vmatprep.subr.mxu0 0.0
        %5147 = vmatpush1.msra.mxu0 0.0
        %5148 = vmatprep.subr.mxu0 0.0
        %5149 = vmatpush1.msra.mxu0 0.0
        %5150 = vmatprep.subr.mxu0 0.0
        %5151 = vmatpush1.msra.mxu0 0.0
        %5152 = vmatprep.subr.mxu0 0.0
        %5153 = vmatpush1.msra.mxu0 0.0
        %5154 = vmatprep.subr.mxu0 0.0
        %5155 = vmatpush1.msra.mxu0 0.0
        %5156 = vmatprep.mubr.f32.mxu0 0.0
        %5157 = vmatmul.mubr.f32.gmra.mrb[0].mxu0 %v4861
        %v5158 = vpop.f32.mrb[0].mxu0
        %v5159 = vadd.f32 0.0, %v5158
        %v5160 = vpop.f32.mrb[0].mxu0
        %v5161 = vadd.f32 0.0, %v5160
        %5162 = vdwg.mxu0
        %v5163 = vadd.f32 %v4809, %v4946
        %v5164 = vadd.f32 %v4810, %v4948
        %v5165 = vadd.f32 %v4811, %v5017
        %v5166 = vadd.f32 %v4812, %v5019
        %v5167 = vadd.f32 %v4813, %v5088
        %v5168 = vadd.f32 %v4814, %v5090
        %v5169 = vadd.f32 %v4815, %v5159
        %v5170 = vadd.f32 %v4816, %v5161
        %v5171 = vld [vmem:[%s262] sm:$0xff]
        %v5172 = vld [vmem:[%s262 + $0x8] sm:$0xff]
        %v5173 = vld [vmem:[%s262 + $0x10] sm:$0xff]
        %v5174 = vld [vmem:[%s262 + $0x18] sm:$0xff]
        %v5175 = vld [vmem:[%s262 + $0x20] sm:$0xf]
        %s5176 = scalar_lea.vmem %s1, 112
        %v5177 = vld [vmem:[%s5176] sm:$0xff]
        %v5183 = vcombine.high %v5171, %v5171
        %v5184 = vcombine.high %v5172, %v5172
        %v5185 = vcombine.high %v5173, %v5173
        %v5186 = vcombine.high %v5174, %v5174
        %5187 = vrot.lane.b32.xlu0 %v5171, 16
        %v5188 = vpop.permute.xlu0 %5187
        %5189 = vrot.lane.b32.xlu0 %v5183, 16
        %v5190 = vpop.permute.xlu0 %5189
        %5191 = vrot.lane.b32.xlu0 %v5172, 16
        %v5192 = vpop.permute.xlu0 %5191
        %5193 = vrot.lane.b32.xlu0 %v5184, 16
        %v5194 = vpop.permute.xlu0 %5193
        %5195 = vrot.lane.b32.xlu0 %v5173, 16
        %v5196 = vpop.permute.xlu0 %5195
        %5197 = vrot.lane.b32.xlu0 %v5185, 16
        %v5198 = vpop.permute.xlu0 %5197
        %5199 = vrot.lane.b32.xlu0 %v5174, 16
        %v5200 = vpop.permute.xlu0 %5199
        %5201 = vrot.lane.b32.xlu0 %v5186, 16
        %v5202 = vpop.permute.xlu0 %5201
        %5203 = vrot.lane.b32.xlu0 %v5175, 16
        %v5204 = vpop.permute.xlu0 %5203
        %vm5205 = vcmask 130048
        %v5206 = vsel %vm5205, %v5188, %v5190
        %v5207 = vsel %vm5205, %v5190, %v5192
        %v5208 = vsel %vm5205, %v5192, %v5194
        %v5209 = vsel %vm5205, %v5194, %v5196
        %v5210 = vsel %vm5205, %v5196, %v5198
        %v5211 = vsel %vm5205, %v5198, %v5200
        %v5212 = vsel %vm5205, %v5200, %v5202
        %v5213 = vsel %vm5205, %v5202, %v5204
        %v5215 = vsel %vm315, %v5177, 0
        %v5217 = vsel %vm319, %v5206, 0
        %v5219 = vsel %vm319, %v5207, 0
        %v5221 = vsel %vm319, %v5208, 0
        %v5223 = vsel %vm319, %v5209, 0
        %v5225 = vsel %vm319, %v5210, 0
        %v5227 = vsel %vm319, %v5211, 0
        %v5229 = vsel %vm319, %v5212, 0
        %v5231 = vsel %vm319, %v5213, 0
        %5233 = vmatprep.subr.mxu0 %v5219
        %5234 = vmatpush1.msra.mxu0 %v5217
        %5235 = vmatprep.subr.mxu0 0.0
        %5236 = vmatpush1.msra.mxu0 0.0
        %5237 = vmatprep.subr.mxu0 0.0
        %5238 = vmatpush1.msra.mxu0 0.0
        %5239 = vmatprep.subr.mxu0 0.0
        %5240 = vmatpush1.msra.mxu0 0.0
        %5241 = vmatprep.subr.mxu0 0.0
        %5242 = vmatpush1.msra.mxu0 0.0
        %5243 = vmatprep.subr.mxu0 0.0
        %5244 = vmatpush1.msra.mxu0 0.0
        %5245 = vmatprep.subr.mxu0 0.0
        %5246 = vmatpush1.msra.mxu0 0.0
        %5247 = vmatprep.subr.mxu0 0.0
        %5248 = vmatpush1.msra.mxu0 0.0
        %5249 = vmatprep.subr.mxu0 0.0
        %5250 = vmatpush1.msra.mxu0 0.0
        %5251 = vmatprep.subr.mxu0 0.0
        %5252 = vmatpush1.msra.mxu0 0.0
        %5253 = vmatprep.subr.mxu0 0.0
        %5254 = vmatpush1.msra.mxu0 0.0
        %5255 = vmatprep.subr.mxu0 0.0
        %5256 = vmatpush1.msra.mxu0 0.0
        %5257 = vmatprep.subr.mxu0 0.0
        %5258 = vmatpush1.msra.mxu0 0.0
        %5259 = vmatprep.subr.mxu0 0.0
        %5260 = vmatpush1.msra.mxu0 0.0
        %5261 = vmatprep.subr.mxu0 0.0
        %5262 = vmatpush1.msra.mxu0 0.0
        %5263 = vmatprep.subr.mxu0 0.0
        %5264 = vmatpush1.msra.mxu0 0.0
        %5265 = vmatprep.subr.mxu0 0.0
        %5266 = vmatpush1.msra.mxu0 0.0
        %5267 = vmatprep.subr.mxu0 0.0
        %5268 = vmatpush1.msra.mxu0 0.0
        %5269 = vmatprep.subr.mxu0 0.0
        %5270 = vmatpush1.msra.mxu0 0.0
        %5271 = vmatprep.subr.mxu0 0.0
        %5272 = vmatpush1.msra.mxu0 0.0
        %5273 = vmatprep.subr.mxu0 0.0
        %5274 = vmatpush1.msra.mxu0 0.0
        %5275 = vmatprep.subr.mxu0 0.0
        %5276 = vmatpush1.msra.mxu0 0.0
        %5277 = vmatprep.subr.mxu0 0.0
        %5278 = vmatpush1.msra.mxu0 0.0
        %5279 = vmatprep.subr.mxu0 0.0
        %5280 = vmatpush1.msra.mxu0 0.0
        %5281 = vmatprep.subr.mxu0 0.0
        %5282 = vmatpush1.msra.mxu0 0.0
        %5283 = vmatprep.subr.mxu0 0.0
        %5284 = vmatpush1.msra.mxu0 0.0
        %5285 = vmatprep.subr.mxu0 0.0
        %5286 = vmatpush1.msra.mxu0 0.0
        %5287 = vmatprep.subr.mxu0 0.0
        %5288 = vmatpush1.msra.mxu0 0.0
        %5289 = vmatprep.subr.mxu0 0.0
        %5290 = vmatpush1.msra.mxu0 0.0
        %5291 = vmatprep.subr.mxu0 0.0
        %5292 = vmatpush1.msra.mxu0 0.0
        %5293 = vmatprep.subr.mxu0 0.0
        %5294 = vmatpush1.msra.mxu0 0.0
        %5295 = vmatprep.subr.mxu0 0.0
        %5296 = vmatpush1.msra.mxu0 0.0
        %5297 = vmatprep.mubr.f32.mxu0 0.0
        %5298 = vmatmul.mubr.f32.gmra.mrb[0].mxu0 %v5215
        %v5299 = vpop.f32.mrb[0].mxu0
        %v5300 = vadd.f32 0.0, %v5299
        %v5301 = vpop.f32.mrb[0].mxu0
        %v5302 = vadd.f32 0.0, %v5301
        %5303 = vdwg.mxu0
        %5304 = vmatprep.subr.mxu0 %v5223
        %5305 = vmatpush1.msra.mxu0 %v5221
        %5306 = vmatprep.subr.mxu0 0.0
        %5307 = vmatpush1.msra.mxu0 0.0
        %5308 = vmatprep.subr.mxu0 0.0
        %5309 = vmatpush1.msra.mxu0 0.0
        %5310 = vmatprep.subr.mxu0 0.0
        %5311 = vmatpush1.msra.mxu0 0.0
        %5312 = vmatprep.subr.mxu0 0.0
        %5313 = vmatpush1.msra.mxu0 0.0
        %5314 = vmatprep.subr.mxu0 0.0
        %5315 = vmatpush1.msra.mxu0 0.0
        %5316 = vmatprep.subr.mxu0 0.0
        %5317 = vmatpush1.msra.mxu0 0.0
        %5318 = vmatprep.subr.mxu0 0.0
        %5319 = vmatpush1.msra.mxu0 0.0
        %5320 = vmatprep.subr.mxu0 0.0
        %5321 = vmatpush1.msra.mxu0 0.0
        %5322 = vmatprep.subr.mxu0 0.0
        %5323 = vmatpush1.msra.mxu0 0.0
        %5324 = vmatprep.subr.mxu0 0.0
        %5325 = vmatpush1.msra.mxu0 0.0
        %5326 = vmatprep.subr.mxu0 0.0
        %5327 = vmatpush1.msra.mxu0 0.0
        %5328 = vmatprep.subr.mxu0 0.0
        %5329 = vmatpush1.msra.mxu0 0.0
        %5330 = vmatprep.subr.mxu0 0.0
        %5331 = vmatpush1.msra.mxu0 0.0
        %5332 = vmatprep.subr.mxu0 0.0
        %5333 = vmatpush1.msra.mxu0 0.0
        %5334 = vmatprep.subr.mxu0 0.0
        %5335 = vmatpush1.msra.mxu0 0.0
        %5336 = vmatprep.subr.mxu0 0.0
        %5337 = vmatpush1.msra.mxu0 0.0
        %5338 = vmatprep.subr.mxu0 0.0
        %5339 = vmatpush1.msra.mxu0 0.0
        %5340 = vmatprep.subr.mxu0 0.0
        %5341 = vmatpush1.msra.mxu0 0.0
        %5342 = vmatprep.subr.mxu0 0.0
        %5343 = vmatpush1.msra.mxu0 0.0
        %5344 = vmatprep.subr.mxu0 0.0
        %5345 = vmatpush1.msra.mxu0 0.0
        %5346 = vmatprep.subr.mxu0 0.0
        %5347 = vmatpush1.msra.mxu0 0.0
        %5348 = vmatprep.subr.mxu0 0.0
        %5349 = vmatpush1.msra.mxu0 0.0
        %5350 = vmatprep.subr.mxu0 0.0
        %5351 = vmatpush1.msra.mxu0 0.0
        %5352 = vmatprep.subr.mxu0 0.0
        %5353 = vmatpush1.msra.mxu0 0.0
        %5354 = vmatprep.subr.mxu0 0.0
        %5355 = vmatpush1.msra.mxu0 0.0
        %5356 = vmatprep.subr.mxu0 0.0
        %5357 = vmatpush1.msra.mxu0 0.0
        %5358 = vmatprep.subr.mxu0 0.0
        %5359 = vmatpush1.msra.mxu0 0.0
        %5360 = vmatprep.subr.mxu0 0.0
        %5361 = vmatpush1.msra.mxu0 0.0
        %5362 = vmatprep.subr.mxu0 0.0
        %5363 = vmatpush1.msra.mxu0 0.0
        %5364 = vmatprep.subr.mxu0 0.0
        %5365 = vmatpush1.msra.mxu0 0.0
        %5366 = vmatprep.subr.mxu0 0.0
        %5367 = vmatpush1.msra.mxu0 0.0
        %5368 = vmatprep.mubr.f32.mxu0 0.0
        %5369 = vmatmul.mubr.f32.gmra.mrb[0].mxu0 %v5215
        %v5370 = vpop.f32.mrb[0].mxu0
        %v5371 = vadd.f32 0.0, %v5370
        %v5372 = vpop.f32.mrb[0].mxu0
        %v5373 = vadd.f32 0.0, %v5372
        %5374 = vdwg.mxu0
        %5375 = vmatprep.subr.mxu0 %v5227
        %5376 = vmatpush1.msra.mxu0 %v5225
        %5377 = vmatprep.subr.mxu0 0.0
        %5378 = vmatpush1.msra.mxu0 0.0
        %5379 = vmatprep.subr.mxu0 0.0
        %5380 = vmatpush1.msra.mxu0 0.0
        %5381 = vmatprep.subr.mxu0 0.0
        %5382 = vmatpush1.msra.mxu0 0.0
        %5383 = vmatprep.subr.mxu0 0.0
        %5384 = vmatpush1.msra.mxu0 0.0
        %5385 = vmatprep.subr.mxu0 0.0
        %5386 = vmatpush1.msra.mxu0 0.0
        %5387 = vmatprep.subr.mxu0 0.0
        %5388 = vmatpush1.msra.mxu0 0.0
        %5389 = vmatprep.subr.mxu0 0.0
        %5390 = vmatpush1.msra.mxu0 0.0
        %5391 = vmatprep.subr.mxu0 0.0
        %5392 = vmatpush1.msra.mxu0 0.0
        %5393 = vmatprep.subr.mxu0 0.0
        %5394 = vmatpush1.msra.mxu0 0.0
        %5395 = vmatprep.subr.mxu0 0.0
        %5396 = vmatpush1.msra.mxu0 0.0
        %5397 = vmatprep.subr.mxu0 0.0
        %5398 = vmatpush1.msra.mxu0 0.0
        %5399 = vmatprep.subr.mxu0 0.0
        %5400 = vmatpush1.msra.mxu0 0.0
        %5401 = vmatprep.subr.mxu0 0.0
        %5402 = vmatpush1.msra.mxu0 0.0
        %5403 = vmatprep.subr.mxu0 0.0
        %5404 = vmatpush1.msra.mxu0 0.0
        %5405 = vmatprep.subr.mxu0 0.0
        %5406 = vmatpush1.msra.mxu0 0.0
        %5407 = vmatprep.subr.mxu0 0.0
        %5408 = vmatpush1.msra.mxu0 0.0
        %5409 = vmatprep.subr.mxu0 0.0
        %5410 = vmatpush1.msra.mxu0 0.0
        %5411 = vmatprep.subr.mxu0 0.0
        %5412 = vmatpush1.msra.mxu0 0.0
        %5413 = vmatprep.subr.mxu0 0.0
        %5414 = vmatpush1.msra.mxu0 0.0
        %5415 = vmatprep.subr.mxu0 0.0
        %5416 = vmatpush1.msra.mxu0 0.0
        %5417 = vmatprep.subr.mxu0 0.0
        %5418 = vmatpush1.msra.mxu0 0.0
        %5419 = vmatprep.subr.mxu0 0.0
        %5420 = vmatpush1.msra.mxu0 0.0
        %5421 = vmatprep.subr.mxu0 0.0
        %5422 = vmatpush1.msra.mxu0 0.0
        %5423 = vmatprep.subr.mxu0 0.0
        %5424 = vmatpush1.msra.mxu0 0.0
        %5425 = vmatprep.subr.mxu0 0.0
        %5426 = vmatpush1.msra.mxu0 0.0
        %5427 = vmatprep.subr.mxu0 0.0
        %5428 = vmatpush1.msra.mxu0 0.0
        %5429 = vmatprep.subr.mxu0 0.0
        %5430 = vmatpush1.msra.mxu0 0.0
        %5431 = vmatprep.subr.mxu0 0.0
        %5432 = vmatpush1.msra.mxu0 0.0
        %5433 = vmatprep.subr.mxu0 0.0
        %5434 = vmatpush1.msra.mxu0 0.0
        %5435 = vmatprep.subr.mxu0 0.0
        %5436 = vmatpush1.msra.mxu0 0.0
        %5437 = vmatprep.subr.mxu0 0.0
        %5438 = vmatpush1.msra.mxu0 0.0
        %5439 = vmatprep.mubr.f32.mxu0 0.0
        %5440 = vmatmul.mubr.f32.gmra.mrb[0].mxu0 %v5215
        %v5441 = vpop.f32.mrb[0].mxu0
        %v5442 = vadd.f32 0.0, %v5441
        %v5443 = vpop.f32.mrb[0].mxu0
        %v5444 = vadd.f32 0.0, %v5443
        %5445 = vdwg.mxu0
        %5446 = vmatprep.subr.mxu0 %v5231
        %5447 = vmatpush1.msra.mxu0 %v5229
        %5448 = vmatprep.subr.mxu0 0.0
        %5449 = vmatpush1.msra.mxu0 0.0
        %5450 = vmatprep.subr.mxu0 0.0
        %5451 = vmatpush1.msra.mxu0 0.0
        %5452 = vmatprep.subr.mxu0 0.0
        %5453 = vmatpush1.msra.mxu0 0.0
        %5454 = vmatprep.subr.mxu0 0.0
        %5455 = vmatpush1.msra.mxu0 0.0
        %5456 = vmatprep.subr.mxu0 0.0
        %5457 = vmatpush1.msra.mxu0 0.0
        %5458 = vmatprep.subr.mxu0 0.0
        %5459 = vmatpush1.msra.mxu0 0.0
        %5460 = vmatprep.subr.mxu0 0.0
        %5461 = vmatpush1.msra.mxu0 0.0
        %5462 = vmatprep.subr.mxu0 0.0
        %5463 = vmatpush1.msra.mxu0 0.0
        %5464 = vmatprep.subr.mxu0 0.0
        %5465 = vmatpush1.msra.mxu0 0.0
        %5466 = vmatprep.subr.mxu0 0.0
        %5467 = vmatpush1.msra.mxu0 0.0
        %5468 = vmatprep.subr.mxu0 0.0
        %5469 = vmatpush1.msra.mxu0 0.0
        %5470 = vmatprep.subr.mxu0 0.0
        %5471 = vmatpush1.msra.mxu0 0.0
        %5472 = vmatprep.subr.mxu0 0.0
        %5473 = vmatpush1.msra.mxu0 0.0
        %5474 = vmatprep.subr.mxu0 0.0
        %5475 = vmatpush1.msra.mxu0 0.0
        %5476 = vmatprep.subr.mxu0 0.0
        %5477 = vmatpush1.msra.mxu0 0.0
        %5478 = vmatprep.subr.mxu0 0.0
        %5479 = vmatpush1.msra.mxu0 0.0
        %5480 = vmatprep.subr.mxu0 0.0
        %5481 = vmatpush1.msra.mxu0 0.0
        %5482 = vmatprep.subr.mxu0 0.0
        %5483 = vmatpush1.msra.mxu0 0.0
        %5484 = vmatprep.subr.mxu0 0.0
        %5485 = vmatpush1.msra.mxu0 0.0
        %5486 = vmatprep.subr.mxu0 0.0
        %5487 = vmatpush1.msra.mxu0 0.0
        %5488 = vmatprep.subr.mxu0 0.0
        %5489 = vmatpush1.msra.mxu0 0.0
        %5490 = vmatprep.subr.mxu0 0.0
        %5491 = vmatpush1.msra.mxu0 0.0
        %5492 = vmatprep.subr.mxu0 0.0
        %5493 = vmatpush1.msra.mxu0 0.0
        %5494 = vmatprep.subr.mxu0 0.0
        %5495 = vmatpush1.msra.mxu0 0.0
        %5496 = vmatprep.subr.mxu0 0.0
        %5497 = vmatpush1.msra.mxu0 0.0
        %5498 = vmatprep.subr.mxu0 0.0
        %5499 = vmatpush1.msra.mxu0 0.0
        %5500 = vmatprep.subr.mxu0 0.0
        %5501 = vmatpush1.msra.mxu0 0.0
        %5502 = vmatprep.subr.mxu0 0.0
        %5503 = vmatpush1.msra.mxu0 0.0
        %5504 = vmatprep.subr.mxu0 0.0
        %5505 = vmatpush1.msra.mxu0 0.0
        %5506 = vmatprep.subr.mxu0 0.0
        %5507 = vmatpush1.msra.mxu0 0.0
        %5508 = vmatprep.subr.mxu0 0.0
        %5509 = vmatpush1.msra.mxu0 0.0
        %5510 = vmatprep.mubr.f32.mxu0 0.0
        %5511 = vmatmul.mubr.f32.gmra.mrb[0].mxu0 %v5215
        %v5512 = vpop.f32.mrb[0].mxu0
        %v5513 = vadd.f32 0.0, %v5512
        %v5514 = vpop.f32.mrb[0].mxu0
        %v5515 = vadd.f32 0.0, %v5514
        %5516 = vdwg.mxu0
        %v5517 = vadd.f32 %v5163, %v5300
        %v5518 = vadd.f32 %v5164, %v5302
        %v5519 = vadd.f32 %v5165, %v5371
        %v5520 = vadd.f32 %v5166, %v5373
        %v5521 = vadd.f32 %v5167, %v5442
        %v5522 = vadd.f32 %v5168, %v5444
        %v5523 = vadd.f32 %v5169, %v5513
        %v5524 = vadd.f32 %v5170, %v5515
        %v5525 = vld [vmem:[%s262] sm:$0xff]
        %v5526 = vld [vmem:[%s262 + $0x8] sm:$0xff]
        %v5527 = vld [vmem:[%s262 + $0x10] sm:$0xff]
        %v5528 = vld [vmem:[%s262 + $0x18] sm:$0xff]
        %v5529 = vld [vmem:[%s262 + $0x20] sm:$0xf]
        %s5530 = scalar_lea.vmem %s1, 120
        %v5531 = vld [vmem:[%s5530] sm:$0xff]
        %v5537 = vcombine.high %v5525, %v5525
        %v5538 = vcombine.high %v5526, %v5526
        %v5539 = vcombine.high %v5527, %v5527
        %v5540 = vcombine.high %v5528, %v5528
        %5541 = vrot.lane.b32.xlu0 %v5525, 8
        %v5542 = vpop.permute.xlu0 %5541
        %5543 = vrot.lane.b32.xlu0 %v5537, 8
        %v5544 = vpop.permute.xlu0 %5543
        %5545 = vrot.lane.b32.xlu0 %v5526, 8
        %v5546 = vpop.permute.xlu0 %5545
        %5547 = vrot.lane.b32.xlu0 %v5538, 8
        %v5548 = vpop.permute.xlu0 %5547
        %5549 = vrot.lane.b32.xlu0 %v5527, 8
        %v5550 = vpop.permute.xlu0 %5549
        %5551 = vrot.lane.b32.xlu0 %v5539, 8
        %v5552 = vpop.permute.xlu0 %5551
        %5553 = vrot.lane.b32.xlu0 %v5528, 8
        %v5554 = vpop.permute.xlu0 %5553
        %5555 = vrot.lane.b32.xlu0 %v5540, 8
        %v5556 = vpop.permute.xlu0 %5555
        %5557 = vrot.lane.b32.xlu0 %v5529, 8
        %v5558 = vpop.permute.xlu0 %5557
        %vm5559 = vcmask 64512
        %v5560 = vsel %vm5559, %v5542, %v5544
        %v5561 = vsel %vm5559, %v5544, %v5546
        %v5562 = vsel %vm5559, %v5546, %v5548
        %v5563 = vsel %vm5559, %v5548, %v5550
        %v5564 = vsel %vm5559, %v5550, %v5552
        %v5565 = vsel %vm5559, %v5552, %v5554
        %v5566 = vsel %vm5559, %v5554, %v5556
        %v5567 = vsel %vm5559, %v5556, %v5558
        %v5569 = vsel %vm315, %v5531, 0
        %v5571 = vsel %vm319, %v5560, 0
        %v5573 = vsel %vm319, %v5561, 0
        %v5575 = vsel %vm319, %v5562, 0
        %v5577 = vsel %vm319, %v5563, 0
        %v5579 = vsel %vm319, %v5564, 0
        %v5581 = vsel %vm319, %v5565, 0
        %v5583 = vsel %vm319, %v5566, 0
        %v5585 = vsel %vm319, %v5567, 0
        %5587 = vmatprep.subr.mxu0 %v5573
        %5588 = vmatpush1.msra.mxu0 %v5571
        %5589 = vmatprep.subr.mxu0 0.0
        %5590 = vmatpush1.msra.mxu0 0.0
        %5591 = vmatprep.subr.mxu0 0.0
        %5592 = vmatpush1.msra.mxu0 0.0
        %5593 = vmatprep.subr.mxu0 0.0
        %5594 = vmatpush1.msra.mxu0 0.0
        %5595 = vmatprep.subr.mxu0 0.0
        %5596 = vmatpush1.msra.mxu0 0.0
        %5597 = vmatprep.subr.mxu0 0.0
        %5598 = vmatpush1.msra.mxu0 0.0
        %5599 = vmatprep.subr.mxu0 0.0
        %5600 = vmatpush1.msra.mxu0 0.0
        %5601 = vmatprep.subr.mxu0 0.0
        %5602 = vmatpush1.msra.mxu0 0.0
        %5603 = vmatprep.subr.mxu0 0.0
        %5604 = vmatpush1.msra.mxu0 0.0
        %5605 = vmatprep.subr.mxu0 0.0
        %5606 = vmatpush1.msra.mxu0 0.0
        %5607 = vmatprep.subr.mxu0 0.0
        %5608 = vmatpush1.msra.mxu0 0.0
        %5609 = vmatprep.subr.mxu0 0.0
        %5610 = vmatpush1.msra.mxu0 0.0
        %5611 = vmatprep.subr.mxu0 0.0
        %5612 = vmatpush1.msra.mxu0 0.0
        %5613 = vmatprep.subr.mxu0 0.0
        %5614 = vmatpush1.msra.mxu0 0.0
        %5615 = vmatprep.subr.mxu0 0.0
        %5616 = vmatpush1.msra.mxu0 0.0
        %5617 = vmatprep.subr.mxu0 0.0
        %5618 = vmatpush1.msra.mxu0 0.0
        %5619 = vmatprep.subr.mxu0 0.0
        %5620 = vmatpush1.msra.mxu0 0.0
        %5621 = vmatprep.subr.mxu0 0.0
        %5622 = vmatpush1.msra.mxu0 0.0
        %5623 = vmatprep.subr.mxu0 0.0
        %5624 = vmatpush1.msra.mxu0 0.0
        %5625 = vmatprep.subr.mxu0 0.0
        %5626 = vmatpush1.msra.mxu0 0.0
        %5627 = vmatprep.subr.mxu0 0.0
        %5628 = vmatpush1.msra.mxu0 0.0
        %5629 = vmatprep.subr.mxu0 0.0
        %5630 = vmatpush1.msra.mxu0 0.0
        %5631 = vmatprep.subr.mxu0 0.0
        %5632 = vmatpush1.msra.mxu0 0.0
        %5633 = vmatprep.subr.mxu0 0.0
        %5634 = vmatpush1.msra.mxu0 0.0
        %5635 = vmatprep.subr.mxu0 0.0
        %5636 = vmatpush1.msra.mxu0 0.0
        %5637 = vmatprep.subr.mxu0 0.0
        %5638 = vmatpush1.msra.mxu0 0.0
        %5639 = vmatprep.subr.mxu0 0.0
        %5640 = vmatpush1.msra.mxu0 0.0
        %5641 = vmatprep.subr.mxu0 0.0
        %5642 = vmatpush1.msra.mxu0 0.0
        %5643 = vmatprep.subr.mxu0 0.0
        %5644 = vmatpush1.msra.mxu0 0.0
        %5645 = vmatprep.subr.mxu0 0.0
        %5646 = vmatpush1.msra.mxu0 0.0
        %5647 = vmatprep.subr.mxu0 0.0
        %5648 = vmatpush1.msra.mxu0 0.0
        %5649 = vmatprep.subr.mxu0 0.0
        %5650 = vmatpush1.msra.mxu0 0.0
        %5651 = vmatprep.mubr.f32.mxu0 0.0
        %5652 = vmatmul.mubr.f32.gmra.mrb[0].mxu0 %v5569
        %v5653 = vpop.f32.mrb[0].mxu0
        %v5654 = vadd.f32 0.0, %v5653
        %v5655 = vpop.f32.mrb[0].mxu0
        %v5656 = vadd.f32 0.0, %v5655
        %5657 = vdwg.mxu0
        %5658 = vmatprep.subr.mxu0 %v5577
        %5659 = vmatpush1.msra.mxu0 %v5575
        %5660 = vmatprep.subr.mxu0 0.0
        %5661 = vmatpush1.msra.mxu0 0.0
        %5662 = vmatprep.subr.mxu0 0.0
        %5663 = vmatpush1.msra.mxu0 0.0
        %5664 = vmatprep.subr.mxu0 0.0
        %5665 = vmatpush1.msra.mxu0 0.0
        %5666 = vmatprep.subr.mxu0 0.0
        %5667 = vmatpush1.msra.mxu0 0.0
        %5668 = vmatprep.subr.mxu0 0.0
        %5669 = vmatpush1.msra.mxu0 0.0
        %5670 = vmatprep.subr.mxu0 0.0
        %5671 = vmatpush1.msra.mxu0 0.0
        %5672 = vmatprep.subr.mxu0 0.0
        %5673 = vmatpush1.msra.mxu0 0.0
        %5674 = vmatprep.subr.mxu0 0.0
        %5675 = vmatpush1.msra.mxu0 0.0
        %5676 = vmatprep.subr.mxu0 0.0
        %5677 = vmatpush1.msra.mxu0 0.0
        %5678 = vmatprep.subr.mxu0 0.0
        %5679 = vmatpush1.msra.mxu0 0.0
        %5680 = vmatprep.subr.mxu0 0.0
        %5681 = vmatpush1.msra.mxu0 0.0
        %5682 = vmatprep.subr.mxu0 0.0
        %5683 = vmatpush1.msra.mxu0 0.0
        %5684 = vmatprep.subr.mxu0 0.0
        %5685 = vmatpush1.msra.mxu0 0.0
        %5686 = vmatprep.subr.mxu0 0.0
        %5687 = vmatpush1.msra.mxu0 0.0
        %5688 = vmatprep.subr.mxu0 0.0
        %5689 = vmatpush1.msra.mxu0 0.0
        %5690 = vmatprep.subr.mxu0 0.0
        %5691 = vmatpush1.msra.mxu0 0.0
        %5692 = vmatprep.subr.mxu0 0.0
        %5693 = vmatpush1.msra.mxu0 0.0
        %5694 = vmatprep.subr.mxu0 0.0
        %5695 = vmatpush1.msra.mxu0 0.0
        %5696 = vmatprep.subr.mxu0 0.0
        %5697 = vmatpush1.msra.mxu0 0.0
        %5698 = vmatprep.subr.mxu0 0.0
        %5699 = vmatpush1.msra.mxu0 0.0
        %5700 = vmatprep.subr.mxu0 0.0
        %5701 = vmatpush1.msra.mxu0 0.0
        %5702 = vmatprep.subr.mxu0 0.0
        %5703 = vmatpush1.msra.mxu0 0.0
        %5704 = vmatprep.subr.mxu0 0.0
        %5705 = vmatpush1.msra.mxu0 0.0
        %5706 = vmatprep.subr.mxu0 0.0
        %5707 = vmatpush1.msra.mxu0 0.0
        %5708 = vmatprep.subr.mxu0 0.0
        %5709 = vmatpush1.msra.mxu0 0.0
        %5710 = vmatprep.subr.mxu0 0.0
        %5711 = vmatpush1.msra.mxu0 0.0
        %5712 = vmatprep.subr.mxu0 0.0
        %5713 = vmatpush1.msra.mxu0 0.0
        %5714 = vmatprep.subr.mxu0 0.0
        %5715 = vmatpush1.msra.mxu0 0.0
        %5716 = vmatprep.subr.mxu0 0.0
        %5717 = vmatpush1.msra.mxu0 0.0
        %5718 = vmatprep.subr.mxu0 0.0
        %5719 = vmatpush1.msra.mxu0 0.0
        %5720 = vmatprep.subr.mxu0 0.0
        %5721 = vmatpush1.msra.mxu0 0.0
        %5722 = vmatprep.mubr.f32.mxu0 0.0
        %5723 = vmatmul.mubr.f32.gmra.mrb[0].mxu0 %v5569
        %v5724 = vpop.f32.mrb[0].mxu0
        %v5725 = vadd.f32 0.0, %v5724
        %v5726 = vpop.f32.mrb[0].mxu0
        %v5727 = vadd.f32 0.0, %v5726
        %5728 = vdwg.mxu0
        %5729 = vmatprep.subr.mxu0 %v5581
        %5730 = vmatpush1.msra.mxu0 %v5579
        %5731 = vmatprep.subr.mxu0 0.0
        %5732 = vmatpush1.msra.mxu0 0.0
        %5733 = vmatprep.subr.mxu0 0.0
        %5734 = vmatpush1.msra.mxu0 0.0
        %5735 = vmatprep.subr.mxu0 0.0
        %5736 = vmatpush1.msra.mxu0 0.0
        %5737 = vmatprep.subr.mxu0 0.0
        %5738 = vmatpush1.msra.mxu0 0.0
        %5739 = vmatprep.subr.mxu0 0.0
        %5740 = vmatpush1.msra.mxu0 0.0
        %5741 = vmatprep.subr.mxu0 0.0
        %5742 = vmatpush1.msra.mxu0 0.0
        %5743 = vmatprep.subr.mxu0 0.0
        %5744 = vmatpush1.msra.mxu0 0.0
        %5745 = vmatprep.subr.mxu0 0.0
        %5746 = vmatpush1.msra.mxu0 0.0
        %5747 = vmatprep.subr.mxu0 0.0
        %5748 = vmatpush1.msra.mxu0 0.0
        %5749 = vmatprep.subr.mxu0 0.0
        %5750 = vmatpush1.msra.mxu0 0.0
        %5751 = vmatprep.subr.mxu0 0.0
        %5752 = vmatpush1.msra.mxu0 0.0
        %5753 = vmatprep.subr.mxu0 0.0
        %5754 = vmatpush1.msra.mxu0 0.0
        %5755 = vmatprep.subr.mxu0 0.0
        %5756 = vmatpush1.msra.mxu0 0.0
        %5757 = vmatprep.subr.mxu0 0.0
        %5758 = vmatpush1.msra.mxu0 0.0
        %5759 = vmatprep.subr.mxu0 0.0
        %5760 = vmatpush1.msra.mxu0 0.0
        %5761 = vmatprep.subr.mxu0 0.0
        %5762 = vmatpush1.msra.mxu0 0.0
        %5763 = vmatprep.subr.mxu0 0.0
        %5764 = vmatpush1.msra.mxu0 0.0
        %5765 = vmatprep.subr.mxu0 0.0
        %5766 = vmatpush1.msra.mxu0 0.0
        %5767 = vmatprep.subr.mxu0 0.0
        %5768 = vmatpush1.msra.mxu0 0.0
        %5769 = vmatprep.subr.mxu0 0.0
        %5770 = vmatpush1.msra.mxu0 0.0
        %5771 = vmatprep.subr.mxu0 0.0
        %5772 = vmatpush1.msra.mxu0 0.0
        %5773 = vmatprep.subr.mxu0 0.0
        %5774 = vmatpush1.msra.mxu0 0.0
        %5775 = vmatprep.subr.mxu0 0.0
        %5776 = vmatpush1.msra.mxu0 0.0
        %5777 = vmatprep.subr.mxu0 0.0
        %5778 = vmatpush1.msra.mxu0 0.0
        %5779 = vmatprep.subr.mxu0 0.0
        %5780 = vmatpush1.msra.mxu0 0.0
        %5781 = vmatprep.subr.mxu0 0.0
        %5782 = vmatpush1.msra.mxu0 0.0
        %5783 = vmatprep.subr.mxu0 0.0
        %5784 = vmatpush1.msra.mxu0 0.0
        %5785 = vmatprep.subr.mxu0 0.0
        %5786 = vmatpush1.msra.mxu0 0.0
        %5787 = vmatprep.subr.mxu0 0.0
        %5788 = vmatpush1.msra.mxu0 0.0
        %5789 = vmatprep.subr.mxu0 0.0
        %5790 = vmatpush1.msra.mxu0 0.0
        %5791 = vmatprep.subr.mxu0 0.0
        %5792 = vmatpush1.msra.mxu0 0.0
        %5793 = vmatprep.mubr.f32.mxu0 0.0
        %5794 = vmatmul.mubr.f32.gmra.mrb[0].mxu0 %v5569
        %v5795 = vpop.f32.mrb[0].mxu0
        %v5796 = vadd.f32 0.0, %v5795
        %v5797 = vpop.f32.mrb[0].mxu0
        %v5798 = vadd.f32 0.0, %v5797
        %5799 = vdwg.mxu0
        %5800 = vmatprep.subr.mxu0 %v5585
        %5801 = vmatpush1.msra.mxu0 %v5583
        %5802 = vmatprep.subr.mxu0 0.0
        %5803 = vmatpush1.msra.mxu0 0.0
        %5804 = vmatprep.subr.mxu0 0.0
        %5805 = vmatpush1.msra.mxu0 0.0
        %5806 = vmatprep.subr.mxu0 0.0
        %5807 = vmatpush1.msra.mxu0 0.0
        %5808 = vmatprep.subr.mxu0 0.0
        %5809 = vmatpush1.msra.mxu0 0.0
        %5810 = vmatprep.subr.mxu0 0.0
        %5811 = vmatpush1.msra.mxu0 0.0
        %5812 = vmatprep.subr.mxu0 0.0
        %5813 = vmatpush1.msra.mxu0 0.0
        %5814 = vmatprep.subr.mxu0 0.0
        %5815 = vmatpush1.msra.mxu0 0.0
        %5816 = vmatprep.subr.mxu0 0.0
        %5817 = vmatpush1.msra.mxu0 0.0
        %5818 = vmatprep.subr.mxu0 0.0
        %5819 = vmatpush1.msra.mxu0 0.0
        %5820 = vmatprep.subr.mxu0 0.0
        %5821 = vmatpush1.msra.mxu0 0.0
        %5822 = vmatprep.subr.mxu0 0.0
        %5823 = vmatpush1.msra.mxu0 0.0
        %5824 = vmatprep.subr.mxu0 0.0
        %5825 = vmatpush1.msra.mxu0 0.0
        %5826 = vmatprep.subr.mxu0 0.0
        %5827 = vmatpush1.msra.mxu0 0.0
        %5828 = vmatprep.subr.mxu0 0.0
        %5829 = vmatpush1.msra.mxu0 0.0
        %5830 = vmatprep.subr.mxu0 0.0
        %5831 = vmatpush1.msra.mxu0 0.0
        %5832 = vmatprep.subr.mxu0 0.0
        %5833 = vmatpush1.msra.mxu0 0.0
        %5834 = vmatprep.subr.mxu0 0.0
        %5835 = vmatpush1.msra.mxu0 0.0
        %5836 = vmatprep.subr.mxu0 0.0
        %5837 = vmatpush1.msra.mxu0 0.0
        %5838 = vmatprep.subr.mxu0 0.0
        %5839 = vmatpush1.msra.mxu0 0.0
        %5840 = vmatprep.subr.mxu0 0.0
        %5841 = vmatpush1.msra.mxu0 0.0
        %5842 = vmatprep.subr.mxu0 0.0
        %5843 = vmatpush1.msra.mxu0 0.0
        %5844 = vmatprep.subr.mxu0 0.0
        %5845 = vmatpush1.msra.mxu0 0.0
        %5846 = vmatprep.subr.mxu0 0.0
        %5847 = vmatpush1.msra.mxu0 0.0
        %5848 = vmatprep.subr.mxu0 0.0
        %5849 = vmatpush1.msra.mxu0 0.0
        %5850 = vmatprep.subr.mxu0 0.0
        %5851 = vmatpush1.msra.mxu0 0.0
        %5852 = vmatprep.subr.mxu0 0.0
        %5853 = vmatpush1.msra.mxu0 0.0
        %5854 = vmatprep.subr.mxu0 0.0
        %5855 = vmatpush1.msra.mxu0 0.0
        %5856 = vmatprep.subr.mxu0 0.0
        %5857 = vmatpush1.msra.mxu0 0.0
        %5858 = vmatprep.subr.mxu0 0.0
        %5859 = vmatpush1.msra.mxu0 0.0
        %5860 = vmatprep.subr.mxu0 0.0
        %5861 = vmatpush1.msra.mxu0 0.0
        %5862 = vmatprep.subr.mxu0 0.0
        %5863 = vmatpush1.msra.mxu0 0.0
        %5864 = vmatprep.mubr.f32.mxu0 0.0
        %5865 = vmatmul.mubr.f32.gmra.mrb[0].mxu0 %v5569
        %v5866 = vpop.f32.mrb[0].mxu0
        %v5867 = vadd.f32 0.0, %v5866
        %v5868 = vpop.f32.mrb[0].mxu0
        %v5869 = vadd.f32 0.0, %v5868
        %5870 = vdwg.mxu0
        %v5871 = vadd.f32 %v5517, %v5654
        %v5872 = vadd.f32 %v5518, %v5656
        %v5873 = vadd.f32 %v5519, %v5725
        %v5874 = vadd.f32 %v5520, %v5727
        %v5875 = vadd.f32 %v5521, %v5796
        %v5876 = vadd.f32 %v5522, %v5798
        %v5877 = vadd.f32 %v5523, %v5867
        %v5878 = vadd.f32 %v5524, %v5869
        %v5879 = vld [vmem:[%s262] sm:$0xff]
        %v5880 = vld [vmem:[%s262 + $0x8] sm:$0xff]
        %v5881 = vld [vmem:[%s262 + $0x10] sm:$0xff]
        %v5882 = vld [vmem:[%s262 + $0x18] sm:$0xff]
        %v5883 = vld [vmem:[%s262 + $0x20] sm:$0xf]
        %s5884 = scalar_lea.vmem %s1, 128
        %v5885 = vld [vmem:[%s5884] sm:$0xff]
        %v5891 = vcombine.high %v5879, %v5879
        %v5892 = vcombine.high %v5880, %v5880
        %v5893 = vcombine.high %v5881, %v5881
        %v5894 = vcombine.high %v5882, %v5882
        %5895 = vrot.lane.b32.xlu0 %v5879, 7
        %v5896 = vpop.permute.xlu0 %5895
        %5897 = vrot.lane.b32.xlu0 %v5891, 7
        %v5898 = vpop.permute.xlu0 %5897
        %5899 = vrot.lane.b32.xlu0 %v5880, 7
        %v5900 = vpop.permute.xlu0 %5899
        %5901 = vrot.lane.b32.xlu0 %v5892, 7
        %v5902 = vpop.permute.xlu0 %5901
        %5903 = vrot.lane.b32.xlu0 %v5881, 7
        %v5904 = vpop.permute.xlu0 %5903
        %5905 = vrot.lane.b32.xlu0 %v5893, 7
        %v5906 = vpop.permute.xlu0 %5905
        %5907 = vrot.lane.b32.xlu0 %v5882, 7
        %v5908 = vpop.permute.xlu0 %5907
        %5909 = vrot.lane.b32.xlu0 %v5894, 7
        %v5910 = vpop.permute.xlu0 %5909
        %5911 = vrot.lane.b32.xlu0 %v5883, 7
        %v5912 = vpop.permute.xlu0 %5911
        %vm5913 = vcmask 56320
        %v5914 = vsel %vm5913, %v5896, %v5898
        %v5915 = vsel %vm5913, %v5898, %v5900
        %v5916 = vsel %vm5913, %v5900, %v5902
        %v5917 = vsel %vm5913, %v5902, %v5904
        %v5918 = vsel %vm5913, %v5904, %v5906
        %v5919 = vsel %vm5913, %v5906, %v5908
        %v5920 = vsel %vm5913, %v5908, %v5910
        %v5921 = vsel %vm5913, %v5910, %v5912
        %v5923 = vsel %vm315, %v5885, 0
        %v5925 = vsel %vm319, %v5914, 0
        %v5927 = vsel %vm319, %v5915, 0
        %v5929 = vsel %vm319, %v5916, 0
        %v5931 = vsel %vm319, %v5917, 0
        %v5933 = vsel %vm319, %v5918, 0
        %v5935 = vsel %vm319, %v5919, 0
        %v5937 = vsel %vm319, %v5920, 0
        %v5939 = vsel %vm319, %v5921, 0
        %5941 = vmatprep.subr.mxu0 %v5927
        %5942 = vmatpush1.msra.mxu0 %v5925
        %5943 = vmatprep.subr.mxu0 0.0
        %5944 = vmatpush1.msra.mxu0 0.0
        %5945 = vmatprep.subr.mxu0 0.0
        %5946 = vmatpush1.msra.mxu0 0.0
        %5947 = vmatprep.subr.mxu0 0.0
        %5948 = vmatpush1.msra.mxu0 0.0
        %5949 = vmatprep.subr.mxu0 0.0
        %5950 = vmatpush1.msra.mxu0 0.0
        %5951 = vmatprep.subr.mxu0 0.0
        %5952 = vmatpush1.msra.mxu0 0.0
        %5953 = vmatprep.subr.mxu0 0.0
        %5954 = vmatpush1.msra.mxu0 0.0
        %5955 = vmatprep.subr.mxu0 0.0
        %5956 = vmatpush1.msra.mxu0 0.0
        %5957 = vmatprep.subr.mxu0 0.0
        %5958 = vmatpush1.msra.mxu0 0.0
        %5959 = vmatprep.subr.mxu0 0.0
        %5960 = vmatpush1.msra.mxu0 0.0
        %5961 = vmatprep.subr.mxu0 0.0
        %5962 = vmatpush1.msra.mxu0 0.0
        %5963 = vmatprep.subr.mxu0 0.0
        %5964 = vmatpush1.msra.mxu0 0.0
        %5965 = vmatprep.subr.mxu0 0.0
        %5966 = vmatpush1.msra.mxu0 0.0
        %5967 = vmatprep.subr.mxu0 0.0
        %5968 = vmatpush1.msra.mxu0 0.0
        %5969 = vmatprep.subr.mxu0 0.0
        %5970 = vmatpush1.msra.mxu0 0.0
        %5971 = vmatprep.subr.mxu0 0.0
        %5972 = vmatpush1.msra.mxu0 0.0
        %5973 = vmatprep.subr.mxu0 0.0
        %5974 = vmatpush1.msra.mxu0 0.0
        %5975 = vmatprep.subr.mxu0 0.0
        %5976 = vmatpush1.msra.mxu0 0.0
        %5977 = vmatprep.subr.mxu0 0.0
        %5978 = vmatpush1.msra.mxu0 0.0
        %5979 = vmatprep.subr.mxu0 0.0
        %5980 = vmatpush1.msra.mxu0 0.0
        %5981 = vmatprep.subr.mxu0 0.0
        %5982 = vmatpush1.msra.mxu0 0.0
        %5983 = vmatprep.subr.mxu0 0.0
        %5984 = vmatpush1.msra.mxu0 0.0
        %5985 = vmatprep.subr.mxu0 0.0
        %5986 = vmatpush1.msra.mxu0 0.0
        %5987 = vmatprep.subr.mxu0 0.0
        %5988 = vmatpush1.msra.mxu0 0.0
        %5989 = vmatprep.subr.mxu0 0.0
        %5990 = vmatpush1.msra.mxu0 0.0
        %5991 = vmatprep.subr.mxu0 0.0
        %5992 = vmatpush1.msra.mxu0 0.0
        %5993 = vmatprep.subr.mxu0 0.0
        %5994 = vmatpush1.msra.mxu0 0.0
        %5995 = vmatprep.subr.mxu0 0.0
        %5996 = vmatpush1.msra.mxu0 0.0
        %5997 = vmatprep.subr.mxu0 0.0
        %5998 = vmatpush1.msra.mxu0 0.0
        %5999 = vmatprep.subr.mxu0 0.0
        %6000 = vmatpush1.msra.mxu0 0.0
        %6001 = vmatprep.subr.mxu0 0.0
        %6002 = vmatpush1.msra.mxu0 0.0
        %6003 = vmatprep.subr.mxu0 0.0
        %6004 = vmatpush1.msra.mxu0 0.0
        %6005 = vmatprep.mubr.f32.mxu0 0.0
        %6006 = vmatmul.mubr.f32.gmra.mrb[0].mxu0 %v5923
        %v6007 = vpop.f32.mrb[0].mxu0
        %v6008 = vadd.f32 0.0, %v6007
        %v6009 = vpop.f32.mrb[0].mxu0
        %v6010 = vadd.f32 0.0, %v6009
        %6011 = vdwg.mxu0
        %6012 = vmatprep.subr.mxu0 %v5931
        %6013 = vmatpush1.msra.mxu0 %v5929
        %6014 = vmatprep.subr.mxu0 0.0
        %6015 = vmatpush1.msra.mxu0 0.0
        %6016 = vmatprep.subr.mxu0 0.0
        %6017 = vmatpush1.msra.mxu0 0.0
        %6018 = vmatprep.subr.mxu0 0.0
        %6019 = vmatpush1.msra.mxu0 0.0
        %6020 = vmatprep.subr.mxu0 0.0
        %6021 = vmatpush1.msra.mxu0 0.0
        %6022 = vmatprep.subr.mxu0 0.0
        %6023 = vmatpush1.msra.mxu0 0.0
        %6024 = vmatprep.subr.mxu0 0.0
        %6025 = vmatpush1.msra.mxu0 0.0
        %6026 = vmatprep.subr.mxu0 0.0
        %6027 = vmatpush1.msra.mxu0 0.0
        %6028 = vmatprep.subr.mxu0 0.0
        %6029 = vmatpush1.msra.mxu0 0.0
        %6030 = vmatprep.subr.mxu0 0.0
        %6031 = vmatpush1.msra.mxu0 0.0
        %6032 = vmatprep.subr.mxu0 0.0
        %6033 = vmatpush1.msra.mxu0 0.0
        %6034 = vmatprep.subr.mxu0 0.0
        %6035 = vmatpush1.msra.mxu0 0.0
        %6036 = vmatprep.subr.mxu0 0.0
        %6037 = vmatpush1.msra.mxu0 0.0
        %6038 = vmatprep.subr.mxu0 0.0
        %6039 = vmatpush1.msra.mxu0 0.0
        %6040 = vmatprep.subr.mxu0 0.0
        %6041 = vmatpush1.msra.mxu0 0.0
        %6042 = vmatprep.subr.mxu0 0.0
        %6043 = vmatpush1.msra.mxu0 0.0
        %6044 = vmatprep.subr.mxu0 0.0
        %6045 = vmatpush1.msra.mxu0 0.0
        %6046 = vmatprep.subr.mxu0 0.0
        %6047 = vmatpush1.msra.mxu0 0.0
        %6048 = vmatprep.subr.mxu0 0.0
        %6049 = vmatpush1.msra.mxu0 0.0
        %6050 = vmatprep.subr.mxu0 0.0
        %6051 = vmatpush1.msra.mxu0 0.0
        %6052 = vmatprep.subr.mxu0 0.0
        %6053 = vmatpush1.msra.mxu0 0.0
        %6054 = vmatprep.subr.mxu0 0.0
        %6055 = vmatpush1.msra.mxu0 0.0
        %6056 = vmatprep.subr.mxu0 0.0
        %6057 = vmatpush1.msra.mxu0 0.0
        %6058 = vmatprep.subr.mxu0 0.0
        %6059 = vmatpush1.msra.mxu0 0.0
        %6060 = vmatprep.subr.mxu0 0.0
        %6061 = vmatpush1.msra.mxu0 0.0
        %6062 = vmatprep.subr.mxu0 0.0
        %6063 = vmatpush1.msra.mxu0 0.0
        %6064 = vmatprep.subr.mxu0 0.0
        %6065 = vmatpush1.msra.mxu0 0.0
        %6066 = vmatprep.subr.mxu0 0.0
        %6067 = vmatpush1.msra.mxu0 0.0
        %6068 = vmatprep.subr.mxu0 0.0
        %6069 = vmatpush1.msra.mxu0 0.0
        %6070 = vmatprep.subr.mxu0 0.0
        %6071 = vmatpush1.msra.mxu0 0.0
        %6072 = vmatprep.subr.mxu0 0.0
        %6073 = vmatpush1.msra.mxu0 0.0
        %6074 = vmatprep.subr.mxu0 0.0
        %6075 = vmatpush1.msra.mxu0 0.0
        %6076 = vmatprep.mubr.f32.mxu0 0.0
        %6077 = vmatmul.mubr.f32.gmra.mrb[0].mxu0 %v5923
        %v6078 = vpop.f32.mrb[0].mxu0
        %v6079 = vadd.f32 0.0, %v6078
        %v6080 = vpop.f32.mrb[0].mxu0
        %v6081 = vadd.f32 0.0, %v6080
        %6082 = vdwg.mxu0
        %6083 = vmatprep.subr.mxu0 %v5935
        %6084 = vmatpush1.msra.mxu0 %v5933
        %6085 = vmatprep.subr.mxu0 0.0
        %6086 = vmatpush1.msra.mxu0 0.0
        %6087 = vmatprep.subr.mxu0 0.0
        %6088 = vmatpush1.msra.mxu0 0.0
        %6089 = vmatprep.subr.mxu0 0.0
        %6090 = vmatpush1.msra.mxu0 0.0
        %6091 = vmatprep.subr.mxu0 0.0
        %6092 = vmatpush1.msra.mxu0 0.0
        %6093 = vmatprep.subr.mxu0 0.0
        %6094 = vmatpush1.msra.mxu0 0.0
        %6095 = vmatprep.subr.mxu0 0.0
        %6096 = vmatpush1.msra.mxu0 0.0
        %6097 = vmatprep.subr.mxu0 0.0
        %6098 = vmatpush1.msra.mxu0 0.0
        %6099 = vmatprep.subr.mxu0 0.0
        %6100 = vmatpush1.msra.mxu0 0.0
        %6101 = vmatprep.subr.mxu0 0.0
        %6102 = vmatpush1.msra.mxu0 0.0
        %6103 = vmatprep.subr.mxu0 0.0
        %6104 = vmatpush1.msra.mxu0 0.0
        %6105 = vmatprep.subr.mxu0 0.0
        %6106 = vmatpush1.msra.mxu0 0.0
        %6107 = vmatprep.subr.mxu0 0.0
        %6108 = vmatpush1.msra.mxu0 0.0
        %6109 = vmatprep.subr.mxu0 0.0
        %6110 = vmatpush1.msra.mxu0 0.0
        %6111 = vmatprep.subr.mxu0 0.0
        %6112 = vmatpush1.msra.mxu0 0.0
        %6113 = vmatprep.subr.mxu0 0.0
        %6114 = vmatpush1.msra.mxu0 0.0
        %6115 = vmatprep.subr.mxu0 0.0
        %6116 = vmatpush1.msra.mxu0 0.0
        %6117 = vmatprep.subr.mxu0 0.0
        %6118 = vmatpush1.msra.mxu0 0.0
        %6119 = vmatprep.subr.mxu0 0.0
        %6120 = vmatpush1.msra.mxu0 0.0
        %6121 = vmatprep.subr.mxu0 0.0
        %6122 = vmatpush1.msra.mxu0 0.0
        %6123 = vmatprep.subr.mxu0 0.0
        %6124 = vmatpush1.msra.mxu0 0.0
        %6125 = vmatprep.subr.mxu0 0.0
        %6126 = vmatpush1.msra.mxu0 0.0
        %6127 = vmatprep.subr.mxu0 0.0
        %6128 = vmatpush1.msra.mxu0 0.0
        %6129 = vmatprep.subr.mxu0 0.0
        %6130 = vmatpush1.msra.mxu0 0.0
        %6131 = vmatprep.subr.mxu0 0.0
        %6132 = vmatpush1.msra.mxu0 0.0
        %6133 = vmatprep.subr.mxu0 0.0
        %6134 = vmatpush1.msra.mxu0 0.0
        %6135 = vmatprep.subr.mxu0 0.0
        %6136 = vmatpush1.msra.mxu0 0.0
        %6137 = vmatprep.subr.mxu0 0.0
        %6138 = vmatpush1.msra.mxu0 0.0
        %6139 = vmatprep.subr.mxu0 0.0
        %6140 = vmatpush1.msra.mxu0 0.0
        %6141 = vmatprep.subr.mxu0 0.0
        %6142 = vmatpush1.msra.mxu0 0.0
        %6143 = vmatprep.subr.mxu0 0.0
        %6144 = vmatpush1.msra.mxu0 0.0
        %6145 = vmatprep.subr.mxu0 0.0
        %6146 = vmatpush1.msra.mxu0 0.0
        %6147 = vmatprep.mubr.f32.mxu0 0.0
        %6148 = vmatmul.mubr.f32.gmra.mrb[0].mxu0 %v5923
        %v6149 = vpop.f32.mrb[0].mxu0
        %v6150 = vadd.f32 0.0, %v6149
        %v6151 = vpop.f32.mrb[0].mxu0
        %v6152 = vadd.f32 0.0, %v6151
        %6153 = vdwg.mxu0
        %6154 = vmatprep.subr.mxu0 %v5939
        %6155 = vmatpush1.msra.mxu0 %v5937
        %6156 = vmatprep.subr.mxu0 0.0
        %6157 = vmatpush1.msra.mxu0 0.0
        %6158 = vmatprep.subr.mxu0 0.0
        %6159 = vmatpush1.msra.mxu0 0.0
        %6160 = vmatprep.subr.mxu0 0.0
        %6161 = vmatpush1.msra.mxu0 0.0
        %6162 = vmatprep.subr.mxu0 0.0
        %6163 = vmatpush1.msra.mxu0 0.0
        %6164 = vmatprep.subr.mxu0 0.0
        %6165 = vmatpush1.msra.mxu0 0.0
        %6166 = vmatprep.subr.mxu0 0.0
        %6167 = vmatpush1.msra.mxu0 0.0
        %6168 = vmatprep.subr.mxu0 0.0
        %6169 = vmatpush1.msra.mxu0 0.0
        %6170 = vmatprep.subr.mxu0 0.0
        %6171 = vmatpush1.msra.mxu0 0.0
        %6172 = vmatprep.subr.mxu0 0.0
        %6173 = vmatpush1.msra.mxu0 0.0
        %6174 = vmatprep.subr.mxu0 0.0
        %6175 = vmatpush1.msra.mxu0 0.0
        %6176 = vmatprep.subr.mxu0 0.0
        %6177 = vmatpush1.msra.mxu0 0.0
        %6178 = vmatprep.subr.mxu0 0.0
        %6179 = vmatpush1.msra.mxu0 0.0
        %6180 = vmatprep.subr.mxu0 0.0
        %6181 = vmatpush1.msra.mxu0 0.0
        %6182 = vmatprep.subr.mxu0 0.0
        %6183 = vmatpush1.msra.mxu0 0.0
        %6184 = vmatprep.subr.mxu0 0.0
        %6185 = vmatpush1.msra.mxu0 0.0
        %6186 = vmatprep.subr.mxu0 0.0
        %6187 = vmatpush1.msra.mxu0 0.0
        %6188 = vmatprep.subr.mxu0 0.0
        %6189 = vmatpush1.msra.mxu0 0.0
        %6190 = vmatprep.subr.mxu0 0.0
        %6191 = vmatpush1.msra.mxu0 0.0
        %6192 = vmatprep.subr.mxu0 0.0
        %6193 = vmatpush1.msra.mxu0 0.0
        %6194 = vmatprep.subr.mxu0 0.0
        %6195 = vmatpush1.msra.mxu0 0.0
        %6196 = vmatprep.subr.mxu0 0.0
        %6197 = vmatpush1.msra.mxu0 0.0
        %6198 = vmatprep.subr.mxu0 0.0
        %6199 = vmatpush1.msra.mxu0 0.0
        %6200 = vmatprep.subr.mxu0 0.0
        %6201 = vmatpush1.msra.mxu0 0.0
        %6202 = vmatprep.subr.mxu0 0.0
        %6203 = vmatpush1.msra.mxu0 0.0
        %6204 = vmatprep.subr.mxu0 0.0
        %6205 = vmatpush1.msra.mxu0 0.0
        %6206 = vmatprep.subr.mxu0 0.0
        %6207 = vmatpush1.msra.mxu0 0.0
        %6208 = vmatprep.subr.mxu0 0.0
        %6209 = vmatpush1.msra.mxu0 0.0
        %6210 = vmatprep.subr.mxu0 0.0
        %6211 = vmatpush1.msra.mxu0 0.0
        %6212 = vmatprep.subr.mxu0 0.0
        %6213 = vmatpush1.msra.mxu0 0.0
        %6214 = vmatprep.subr.mxu0 0.0
        %6215 = vmatpush1.msra.mxu0 0.0
        %6216 = vmatprep.subr.mxu0 0.0
        %6217 = vmatpush1.msra.mxu0 0.0
        %6218 = vmatprep.mubr.f32.mxu0 0.0
        %6219 = vmatmul.mubr.f32.gmra.mrb[0].mxu0 %v5923
        %v6220 = vpop.f32.mrb[0].mxu0
        %v6221 = vadd.f32 0.0, %v6220
        %v6222 = vpop.f32.mrb[0].mxu0
        %v6223 = vadd.f32 0.0, %v6222
        %6224 = vdwg.mxu0
        %v6225 = vadd.f32 %v5871, %v6008
        %v6226 = vadd.f32 %v5872, %v6010
        %v6227 = vadd.f32 %v5873, %v6079
        %v6228 = vadd.f32 %v5874, %v6081
        %v6229 = vadd.f32 %v5875, %v6150
        %v6230 = vadd.f32 %v5876, %v6152
        %v6231 = vadd.f32 %v5877, %v6221
        %v6232 = vadd.f32 %v5878, %v6223
        %v6233 = vld [vmem:[%s262] sm:$0xff]
        %v6234 = vld [vmem:[%s262 + $0x8] sm:$0xff]
        %v6235 = vld [vmem:[%s262 + $0x10] sm:$0xff]
        %v6236 = vld [vmem:[%s262 + $0x18] sm:$0xff]
        %v6237 = vld [vmem:[%s262 + $0x20] sm:$0xf]
        %s6238 = scalar_lea.vmem %s1, 136
        %v6239 = vld [vmem:[%s6238] sm:$0xff]
        %v6245 = vcombine.high %v6233, %v6233
        %v6246 = vcombine.high %v6234, %v6234
        %v6247 = vcombine.high %v6235, %v6235
        %v6248 = vcombine.high %v6236, %v6236
        %6249 = vrot.lane.b32.xlu0 %v6233, 6
        %v6250 = vpop.permute.xlu0 %6249
        %6251 = vrot.lane.b32.xlu0 %v6245, 6
        %v6252 = vpop.permute.xlu0 %6251
        %6253 = vrot.lane.b32.xlu0 %v6234, 6
        %v6254 = vpop.permute.xlu0 %6253
        %6255 = vrot.lane.b32.xlu0 %v6246, 6
        %v6256 = vpop.permute.xlu0 %6255
        %6257 = vrot.lane.b32.xlu0 %v6235, 6
        %v6258 = vpop.permute.xlu0 %6257
        %6259 = vrot.lane.b32.xlu0 %v6247, 6
        %v6260 = vpop.permute.xlu0 %6259
        %6261 = vrot.lane.b32.xlu0 %v6236, 6
        %v6262 = vpop.permute.xlu0 %6261
        %6263 = vrot.lane.b32.xlu0 %v6248, 6
        %v6264 = vpop.permute.xlu0 %6263
        %6265 = vrot.lane.b32.xlu0 %v6237, 6
        %v6266 = vpop.permute.xlu0 %6265
        %vm6267 = vcmask 48128
        %v6268 = vsel %vm6267, %v6250, %v6252
        %v6269 = vsel %vm6267, %v6252, %v6254
        %v6270 = vsel %vm6267, %v6254, %v6256
        %v6271 = vsel %vm6267, %v6256, %v6258
        %v6272 = vsel %vm6267, %v6258, %v6260
        %v6273 = vsel %vm6267, %v6260, %v6262
        %v6274 = vsel %vm6267, %v6262, %v6264
        %v6275 = vsel %vm6267, %v6264, %v6266
        %v6277 = vsel %vm315, %v6239, 0
        %v6279 = vsel %vm319, %v6268, 0
        %v6281 = vsel %vm319, %v6269, 0
        %v6283 = vsel %vm319, %v6270, 0
        %v6285 = vsel %vm319, %v6271, 0
        %v6287 = vsel %vm319, %v6272, 0
        %v6289 = vsel %vm319, %v6273, 0
        %v6291 = vsel %vm319, %v6274, 0
        %v6293 = vsel %vm319, %v6275, 0
        %6295 = vmatprep.subr.mxu0 %v6281
        %6296 = vmatpush1.msra.mxu0 %v6279
        %6297 = vmatprep.subr.mxu0 0.0
        %6298 = vmatpush1.msra.mxu0 0.0
        %6299 = vmatprep.subr.mxu0 0.0
        %6300 = vmatpush1.msra.mxu0 0.0
        %6301 = vmatprep.subr.mxu0 0.0
        %6302 = vmatpush1.msra.mxu0 0.0
        %6303 = vmatprep.subr.mxu0 0.0
        %6304 = vmatpush1.msra.mxu0 0.0
        %6305 = vmatprep.subr.mxu0 0.0
        %6306 = vmatpush1.msra.mxu0 0.0
        %6307 = vmatprep.subr.mxu0 0.0
        %6308 = vmatpush1.msra.mxu0 0.0
        %6309 = vmatprep.subr.mxu0 0.0
        %6310 = vmatpush1.msra.mxu0 0.0
        %6311 = vmatprep.subr.mxu0 0.0
        %6312 = vmatpush1.msra.mxu0 0.0
        %6313 = vmatprep.subr.mxu0 0.0
        %6314 = vmatpush1.msra.mxu0 0.0
        %6315 = vmatprep.subr.mxu0 0.0
        %6316 = vmatpush1.msra.mxu0 0.0
        %6317 = vmatprep.subr.mxu0 0.0
        %6318 = vmatpush1.msra.mxu0 0.0
        %6319 = vmatprep.subr.mxu0 0.0
        %6320 = vmatpush1.msra.mxu0 0.0
        %6321 = vmatprep.subr.mxu0 0.0
        %6322 = vmatpush1.msra.mxu0 0.0
        %6323 = vmatprep.subr.mxu0 0.0
        %6324 = vmatpush1.msra.mxu0 0.0
        %6325 = vmatprep.subr.mxu0 0.0
        %6326 = vmatpush1.msra.mxu0 0.0
        %6327 = vmatprep.subr.mxu0 0.0
        %6328 = vmatpush1.msra.mxu0 0.0
        %6329 = vmatprep.subr.mxu0 0.0
        %6330 = vmatpush1.msra.mxu0 0.0
        %6331 = vmatprep.subr.mxu0 0.0
        %6332 = vmatpush1.msra.mxu0 0.0
        %6333 = vmatprep.subr.mxu0 0.0
        %6334 = vmatpush1.msra.mxu0 0.0
        %6335 = vmatprep.subr.mxu0 0.0
        %6336 = vmatpush1.msra.mxu0 0.0
        %6337 = vmatprep.subr.mxu0 0.0
        %6338 = vmatpush1.msra.mxu0 0.0
        %6339 = vmatprep.subr.mxu0 0.0
        %6340 = vmatpush1.msra.mxu0 0.0
        %6341 = vmatprep.subr.mxu0 0.0
        %6342 = vmatpush1.msra.mxu0 0.0
        %6343 = vmatprep.subr.mxu0 0.0
        %6344 = vmatpush1.msra.mxu0 0.0
        %6345 = vmatprep.subr.mxu0 0.0
        %6346 = vmatpush1.msra.mxu0 0.0
        %6347 = vmatprep.subr.mxu0 0.0
        %6348 = vmatpush1.msra.mxu0 0.0
        %6349 = vmatprep.subr.mxu0 0.0
        %6350 = vmatpush1.msra.mxu0 0.0
        %6351 = vmatprep.subr.mxu0 0.0
        %6352 = vmatpush1.msra.mxu0 0.0
        %6353 = vmatprep.subr.mxu0 0.0
        %6354 = vmatpush1.msra.mxu0 0.0
        %6355 = vmatprep.subr.mxu0 0.0
        %6356 = vmatpush1.msra.mxu0 0.0
        %6357 = vmatprep.subr.mxu0 0.0
        %6358 = vmatpush1.msra.mxu0 0.0
        %6359 = vmatprep.mubr.f32.mxu0 0.0
        %6360 = vmatmul.mubr.f32.gmra.mrb[0].mxu0 %v6277
        %v6361 = vpop.f32.mrb[0].mxu0
        %v6362 = vadd.f32 0.0, %v6361
        %v6363 = vpop.f32.mrb[0].mxu0
        %v6364 = vadd.f32 0.0, %v6363
        %6365 = vdwg.mxu0
        %6366 = vmatprep.subr.mxu0 %v6285
        %6367 = vmatpush1.msra.mxu0 %v6283
        %6368 = vmatprep.subr.mxu0 0.0
        %6369 = vmatpush1.msra.mxu0 0.0
        %6370 = vmatprep.subr.mxu0 0.0
        %6371 = vmatpush1.msra.mxu0 0.0
        %6372 = vmatprep.subr.mxu0 0.0
        %6373 = vmatpush1.msra.mxu0 0.0
        %6374 = vmatprep.subr.mxu0 0.0
        %6375 = vmatpush1.msra.mxu0 0.0
        %6376 = vmatprep.subr.mxu0 0.0
        %6377 = vmatpush1.msra.mxu0 0.0
        %6378 = vmatprep.subr.mxu0 0.0
        %6379 = vmatpush1.msra.mxu0 0.0
        %6380 = vmatprep.subr.mxu0 0.0
        %6381 = vmatpush1.msra.mxu0 0.0
        %6382 = vmatprep.subr.mxu0 0.0
        %6383 = vmatpush1.msra.mxu0 0.0
        %6384 = vmatprep.subr.mxu0 0.0
        %6385 = vmatpush1.msra.mxu0 0.0
        %6386 = vmatprep.subr.mxu0 0.0
        %6387 = vmatpush1.msra.mxu0 0.0
        %6388 = vmatprep.subr.mxu0 0.0
        %6389 = vmatpush1.msra.mxu0 0.0
        %6390 = vmatprep.subr.mxu0 0.0
        %6391 = vmatpush1.msra.mxu0 0.0
        %6392 = vmatprep.subr.mxu0 0.0
        %6393 = vmatpush1.msra.mxu0 0.0
        %6394 = vmatprep.subr.mxu0 0.0
        %6395 = vmatpush1.msra.mxu0 0.0
        %6396 = vmatprep.subr.mxu0 0.0
        %6397 = vmatpush1.msra.mxu0 0.0
        %6398 = vmatprep.subr.mxu0 0.0
        %6399 = vmatpush1.msra.mxu0 0.0
        %6400 = vmatprep.subr.mxu0 0.0
        %6401 = vmatpush1.msra.mxu0 0.0
        %6402 = vmatprep.subr.mxu0 0.0
        %6403 = vmatpush1.msra.mxu0 0.0
        %6404 = vmatprep.subr.mxu0 0.0
        %6405 = vmatpush1.msra.mxu0 0.0
        %6406 = vmatprep.subr.mxu0 0.0
        %6407 = vmatpush1.msra.mxu0 0.0
        %6408 = vmatprep.subr.mxu0 0.0
        %6409 = vmatpush1.msra.mxu0 0.0
        %6410 = vmatprep.subr.mxu0 0.0
        %6411 = vmatpush1.msra.mxu0 0.0
        %6412 = vmatprep.subr.mxu0 0.0
        %6413 = vmatpush1.msra.mxu0 0.0
        %6414 = vmatprep.subr.mxu0 0.0
        %6415 = vmatpush1.msra.mxu0 0.0
        %6416 = vmatprep.subr.mxu0 0.0
        %6417 = vmatpush1.msra.mxu0 0.0
        %6418 = vmatprep.subr.mxu0 0.0
        %6419 = vmatpush1.msra.mxu0 0.0
        %6420 = vmatprep.subr.mxu0 0.0
        %6421 = vmatpush1.msra.mxu0 0.0
        %6422 = vmatprep.subr.mxu0 0.0
        %6423 = vmatpush1.msra.mxu0 0.0
        %6424 = vmatprep.subr.mxu0 0.0
        %6425 = vmatpush1.msra.mxu0 0.0
        %6426 = vmatprep.subr.mxu0 0.0
        %6427 = vmatpush1.msra.mxu0 0.0
        %6428 = vmatprep.subr.mxu0 0.0
        %6429 = vmatpush1.msra.mxu0 0.0
        %6430 = vmatprep.mubr.f32.mxu0 0.0
        %6431 = vmatmul.mubr.f32.gmra.mrb[0].mxu0 %v6277
        %v6432 = vpop.f32.mrb[0].mxu0
        %v6433 = vadd.f32 0.0, %v6432
        %v6434 = vpop.f32.mrb[0].mxu0
        %v6435 = vadd.f32 0.0, %v6434
        %6436 = vdwg.mxu0
        %6437 = vmatprep.subr.mxu0 %v6289
        %6438 = vmatpush1.msra.mxu0 %v6287
        %6439 = vmatprep.subr.mxu0 0.0
        %6440 = vmatpush1.msra.mxu0 0.0
        %6441 = vmatprep.subr.mxu0 0.0
        %6442 = vmatpush1.msra.mxu0 0.0
        %6443 = vmatprep.subr.mxu0 0.0
        %6444 = vmatpush1.msra.mxu0 0.0
        %6445 = vmatprep.subr.mxu0 0.0
        %6446 = vmatpush1.msra.mxu0 0.0
        %6447 = vmatprep.subr.mxu0 0.0
        %6448 = vmatpush1.msra.mxu0 0.0
        %6449 = vmatprep.subr.mxu0 0.0
        %6450 = vmatpush1.msra.mxu0 0.0
        %6451 = vmatprep.subr.mxu0 0.0
        %6452 = vmatpush1.msra.mxu0 0.0
        %6453 = vmatprep.subr.mxu0 0.0
        %6454 = vmatpush1.msra.mxu0 0.0
        %6455 = vmatprep.subr.mxu0 0.0
        %6456 = vmatpush1.msra.mxu0 0.0
        %6457 = vmatprep.subr.mxu0 0.0
        %6458 = vmatpush1.msra.mxu0 0.0
        %6459 = vmatprep.subr.mxu0 0.0
        %6460 = vmatpush1.msra.mxu0 0.0
        %6461 = vmatprep.subr.mxu0 0.0
        %6462 = vmatpush1.msra.mxu0 0.0
        %6463 = vmatprep.subr.mxu0 0.0
        %6464 = vmatpush1.msra.mxu0 0.0
        %6465 = vmatprep.subr.mxu0 0.0
        %6466 = vmatpush1.msra.mxu0 0.0
        %6467 = vmatprep.subr.mxu0 0.0
        %6468 = vmatpush1.msra.mxu0 0.0
        %6469 = vmatprep.subr.mxu0 0.0
        %6470 = vmatpush1.msra.mxu0 0.0
        %6471 = vmatprep.subr.mxu0 0.0
        %6472 = vmatpush1.msra.mxu0 0.0
        %6473 = vmatprep.subr.mxu0 0.0
        %6474 = vmatpush1.msra.mxu0 0.0
        %6475 = vmatprep.subr.mxu0 0.0
        %6476 = vmatpush1.msra.mxu0 0.0
        %6477 = vmatprep.subr.mxu0 0.0
        %6478 = vmatpush1.msra.mxu0 0.0
        %6479 = vmatprep.subr.mxu0 0.0
        %6480 = vmatpush1.msra.mxu0 0.0
        %6481 = vmatprep.subr.mxu0 0.0
        %6482 = vmatpush1.msra.mxu0 0.0
        %6483 = vmatprep.subr.mxu0 0.0
        %6484 = vmatpush1.msra.mxu0 0.0
        %6485 = vmatprep.subr.mxu0 0.0
        %6486 = vmatpush1.msra.mxu0 0.0
        %6487 = vmatprep.subr.mxu0 0.0
        %6488 = vmatpush1.msra.mxu0 0.0
        %6489 = vmatprep.subr.mxu0 0.0
        %6490 = vmatpush1.msra.mxu0 0.0
        %6491 = vmatprep.subr.mxu0 0.0
        %6492 = vmatpush1.msra.mxu0 0.0
        %6493 = vmatprep.subr.mxu0 0.0
        %6494 = vmatpush1.msra.mxu0 0.0
        %6495 = vmatprep.subr.mxu0 0.0
        %6496 = vmatpush1.msra.mxu0 0.0
        %6497 = vmatprep.subr.mxu0 0.0
        %6498 = vmatpush1.msra.mxu0 0.0
        %6499 = vmatprep.subr.mxu0 0.0
        %6500 = vmatpush1.msra.mxu0 0.0
        %6501 = vmatprep.mubr.f32.mxu0 0.0
        %6502 = vmatmul.mubr.f32.gmra.mrb[0].mxu0 %v6277
        %v6503 = vpop.f32.mrb[0].mxu0
        %v6504 = vadd.f32 0.0, %v6503
        %v6505 = vpop.f32.mrb[0].mxu0
        %v6506 = vadd.f32 0.0, %v6505
        %6507 = vdwg.mxu0
        %6508 = vmatprep.subr.mxu0 %v6293
        %6509 = vmatpush1.msra.mxu0 %v6291
        %6510 = vmatprep.subr.mxu0 0.0
        %6511 = vmatpush1.msra.mxu0 0.0
        %6512 = vmatprep.subr.mxu0 0.0
        %6513 = vmatpush1.msra.mxu0 0.0
        %6514 = vmatprep.subr.mxu0 0.0
        %6515 = vmatpush1.msra.mxu0 0.0
        %6516 = vmatprep.subr.mxu0 0.0
        %6517 = vmatpush1.msra.mxu0 0.0
        %6518 = vmatprep.subr.mxu0 0.0
        %6519 = vmatpush1.msra.mxu0 0.0
        %6520 = vmatprep.subr.mxu0 0.0
        %6521 = vmatpush1.msra.mxu0 0.0
        %6522 = vmatprep.subr.mxu0 0.0
        %6523 = vmatpush1.msra.mxu0 0.0
        %6524 = vmatprep.subr.mxu0 0.0
        %6525 = vmatpush1.msra.mxu0 0.0
        %6526 = vmatprep.subr.mxu0 0.0
        %6527 = vmatpush1.msra.mxu0 0.0
        %6528 = vmatprep.subr.mxu0 0.0
        %6529 = vmatpush1.msra.mxu0 0.0
        %6530 = vmatprep.subr.mxu0 0.0
        %6531 = vmatpush1.msra.mxu0 0.0
        %6532 = vmatprep.subr.mxu0 0.0
        %6533 = vmatpush1.msra.mxu0 0.0
        %6534 = vmatprep.subr.mxu0 0.0
        %6535 = vmatpush1.msra.mxu0 0.0
        %6536 = vmatprep.subr.mxu0 0.0
        %6537 = vmatpush1.msra.mxu0 0.0
        %6538 = vmatprep.subr.mxu0 0.0
        %6539 = vmatpush1.msra.mxu0 0.0
        %6540 = vmatprep.subr.mxu0 0.0
        %6541 = vmatpush1.msra.mxu0 0.0
        %6542 = vmatprep.subr.mxu0 0.0
        %6543 = vmatpush1.msra.mxu0 0.0
        %6544 = vmatprep.subr.mxu0 0.0
        %6545 = vmatpush1.msra.mxu0 0.0
        %6546 = vmatprep.subr.mxu0 0.0
        %6547 = vmatpush1.msra.mxu0 0.0
        %6548 = vmatprep.subr.mxu0 0.0
        %6549 = vmatpush1.msra.mxu0 0.0
        %6550 = vmatprep.subr.mxu0 0.0
        %6551 = vmatpush1.msra.mxu0 0.0
        %6552 = vmatprep.subr.mxu0 0.0
        %6553 = vmatpush1.msra.mxu0 0.0
        %6554 = vmatprep.subr.mxu0 0.0
        %6555 = vmatpush1.msra.mxu0 0.0
        %6556 = vmatprep.subr.mxu0 0.0
        %6557 = vmatpush1.msra.mxu0 0.0
        %6558 = vmatprep.subr.mxu0 0.0
        %6559 = vmatpush1.msra.mxu0 0.0
        %6560 = vmatprep.subr.mxu0 0.0
        %6561 = vmatpush1.msra.mxu0 0.0
        %6562 = vmatprep.subr.mxu0 0.0
        %6563 = vmatpush1.msra.mxu0 0.0
        %6564 = vmatprep.subr.mxu0 0.0
        %6565 = vmatpush1.msra.mxu0 0.0
        %6566 = vmatprep.subr.mxu0 0.0
        %6567 = vmatpush1.msra.mxu0 0.0
        %6568 = vmatprep.subr.mxu0 0.0
        %6569 = vmatpush1.msra.mxu0 0.0
        %6570 = vmatprep.subr.mxu0 0.0
        %6571 = vmatpush1.msra.mxu0 0.0
        %6572 = vmatprep.mubr.f32.mxu0 0.0
        %6573 = vmatmul.mubr.f32.gmra.mrb[0].mxu0 %v6277
        %v6574 = vpop.f32.mrb[0].mxu0
        %v6575 = vadd.f32 0.0, %v6574
        %v6576 = vpop.f32.mrb[0].mxu0
        %v6577 = vadd.f32 0.0, %v6576
        %6578 = vdwg.mxu0
        %v6579 = vadd.f32 %v6225, %v6362
        %v6580 = vadd.f32 %v6226, %v6364
        %v6581 = vadd.f32 %v6227, %v6433
        %v6582 = vadd.f32 %v6228, %v6435
        %v6583 = vadd.f32 %v6229, %v6504
        %v6584 = vadd.f32 %v6230, %v6506
        %v6585 = vadd.f32 %v6231, %v6575
        %v6586 = vadd.f32 %v6232, %v6577
        %v6587 = vld [vmem:[%s262 + $0x4] sm:$0xff]
        %v6588 = vld [vmem:[%s262 + $0xc] sm:$0xff]
        %v6589 = vld [vmem:[%s262 + $0x14] sm:$0xff]
        %v6590 = vld [vmem:[%s262 + $0x1c] sm:$0xff]
        %v6591 = vld [vmem:[%s262 + $0x24] sm:$0xf]
        %s6592 = scalar_lea.vmem %s1, 144
        %v6593 = vld [vmem:[%s6592] sm:$0xff]
        %v6599 = vcombine.high %v6587, %v6587
        %v6600 = vcombine.high %v6588, %v6588
        %v6601 = vcombine.high %v6589, %v6589
        %v6602 = vcombine.high %v6590, %v6590
        %6603 = vrot.lane.b32.xlu0 %v6587, 56
        %v6604 = vpop.permute.xlu0 %6603
        %6605 = vrot.lane.b32.xlu0 %v6599, 56
        %v6606 = vpop.permute.xlu0 %6605
        %6607 = vrot.lane.b32.xlu0 %v6588, 56
        %v6608 = vpop.permute.xlu0 %6607
        %6609 = vrot.lane.b32.xlu0 %v6600, 56
        %v6610 = vpop.permute.xlu0 %6609
        %6611 = vrot.lane.b32.xlu0 %v6589, 56
        %v6612 = vpop.permute.xlu0 %6611
        %6613 = vrot.lane.b32.xlu0 %v6601, 56
        %v6614 = vpop.permute.xlu0 %6613
        %6615 = vrot.lane.b32.xlu0 %v6590, 56
        %v6616 = vpop.permute.xlu0 %6615
        %6617 = vrot.lane.b32.xlu0 %v6602, 56
        %v6618 = vpop.permute.xlu0 %6617
        %6619 = vrot.lane.b32.xlu0 %v6591, 56
        %v6620 = vpop.permute.xlu0 %6619
        %vm6621 = vcmask 457728
        %v6622 = vsel %vm6621, %v6604, %v6606
        %v6623 = vsel %vm6621, %v6606, %v6608
        %v6624 = vsel %vm6621, %v6608, %v6610
        %v6625 = vsel %vm6621, %v6610, %v6612
        %v6626 = vsel %vm6621, %v6612, %v6614
        %v6627 = vsel %vm6621, %v6614, %v6616
        %v6628 = vsel %vm6621, %v6616, %v6618
        %v6629 = vsel %vm6621, %v6618, %v6620
        %v6631 = vsel %vm315, %v6593, 0
        %v6633 = vsel %vm319, %v6622, 0
        %v6635 = vsel %vm319, %v6623, 0
        %v6637 = vsel %vm319, %v6624, 0
        %v6639 = vsel %vm319, %v6625, 0
        %v6641 = vsel %vm319, %v6626, 0
        %v6643 = vsel %vm319, %v6627, 0
        %v6645 = vsel %vm319, %v6628, 0
        %v6647 = vsel %vm319, %v6629, 0
        %6649 = vmatprep.subr.mxu0 %v6635
        %6650 = vmatpush1.msra.mxu0 %v6633
        %6651 = vmatprep.subr.mxu0 0.0
        %6652 = vmatpush1.msra.mxu0 0.0
        %6653 = vmatprep.subr.mxu0 0.0
        %6654 = vmatpush1.msra.mxu0 0.0
        %6655 = vmatprep.subr.mxu0 0.0
        %6656 = vmatpush1.msra.mxu0 0.0
        %6657 = vmatprep.subr.mxu0 0.0
        %6658 = vmatpush1.msra.mxu0 0.0
        %6659 = vmatprep.subr.mxu0 0.0
        %6660 = vmatpush1.msra.mxu0 0.0
        %6661 = vmatprep.subr.mxu0 0.0
        %6662 = vmatpush1.msra.mxu0 0.0
        %6663 = vmatprep.subr.mxu0 0.0
        %6664 = vmatpush1.msra.mxu0 0.0
        %6665 = vmatprep.subr.mxu0 0.0
        %6666 = vmatpush1.msra.mxu0 0.0
        %6667 = vmatprep.subr.mxu0 0.0
        %6668 = vmatpush1.msra.mxu0 0.0
        %6669 = vmatprep.subr.mxu0 0.0
        %6670 = vmatpush1.msra.mxu0 0.0
        %6671 = vmatprep.subr.mxu0 0.0
        %6672 = vmatpush1.msra.mxu0 0.0
        %6673 = vmatprep.subr.mxu0 0.0
        %6674 = vmatpush1.msra.mxu0 0.0
        %6675 = vmatprep.subr.mxu0 0.0
        %6676 = vmatpush1.msra.mxu0 0.0
        %6677 = vmatprep.subr.mxu0 0.0
        %6678 = vmatpush1.msra.mxu0 0.0
        %6679 = vmatprep.subr.mxu0 0.0
        %6680 = vmatpush1.msra.mxu0 0.0
        %6681 = vmatprep.subr.mxu0 0.0
        %6682 = vmatpush1.msra.mxu0 0.0
        %6683 = vmatprep.subr.mxu0 0.0
        %6684 = vmatpush1.msra.mxu0 0.0
        %6685 = vmatprep.subr.mxu0 0.0
        %6686 = vmatpush1.msra.mxu0 0.0
        %6687 = vmatprep.subr.mxu0 0.0
        %6688 = vmatpush1.msra.mxu0 0.0
        %6689 = vmatprep.subr.mxu0 0.0
        %6690 = vmatpush1.msra.mxu0 0.0
        %6691 = vmatprep.subr.mxu0 0.0
        %6692 = vmatpush1.msra.mxu0 0.0
        %6693 = vmatprep.subr.mxu0 0.0
        %6694 = vmatpush1.msra.mxu0 0.0
        %6695 = vmatprep.subr.mxu0 0.0
        %6696 = vmatpush1.msra.mxu0 0.0
        %6697 = vmatprep.subr.mxu0 0.0
        %6698 = vmatpush1.msra.mxu0 0.0
        %6699 = vmatprep.subr.mxu0 0.0
        %6700 = vmatpush1.msra.mxu0 0.0
        %6701 = vmatprep.subr.mxu0 0.0
        %6702 = vmatpush1.msra.mxu0 0.0
        %6703 = vmatprep.subr.mxu0 0.0
        %6704 = vmatpush1.msra.mxu0 0.0
        %6705 = vmatprep.subr.mxu0 0.0
        %6706 = vmatpush1.msra.mxu0 0.0
        %6707 = vmatprep.subr.mxu0 0.0
        %6708 = vmatpush1.msra.mxu0 0.0
        %6709 = vmatprep.subr.mxu0 0.0
        %6710 = vmatpush1.msra.mxu0 0.0
        %6711 = vmatprep.subr.mxu0 0.0
        %6712 = vmatpush1.msra.mxu0 0.0
        %6713 = vmatprep.mubr.f32.mxu0 0.0
        %6714 = vmatmul.mubr.f32.gmra.mrb[0].mxu0 %v6631
        %v6715 = vpop.f32.mrb[0].mxu0
        %v6716 = vadd.f32 0.0, %v6715
        %v6717 = vpop.f32.mrb[0].mxu0
        %v6718 = vadd.f32 0.0, %v6717
        %6719 = vdwg.mxu0
        %6720 = vmatprep.subr.mxu0 %v6639
        %6721 = vmatpush1.msra.mxu0 %v6637
        %6722 = vmatprep.subr.mxu0 0.0
        %6723 = vmatpush1.msra.mxu0 0.0
        %6724 = vmatprep.subr.mxu0 0.0
        %6725 = vmatpush1.msra.mxu0 0.0
        %6726 = vmatprep.subr.mxu0 0.0
        %6727 = vmatpush1.msra.mxu0 0.0
        %6728 = vmatprep.subr.mxu0 0.0
        %6729 = vmatpush1.msra.mxu0 0.0
        %6730 = vmatprep.subr.mxu0 0.0
        %6731 = vmatpush1.msra.mxu0 0.0
        %6732 = vmatprep.subr.mxu0 0.0
        %6733 = vmatpush1.msra.mxu0 0.0
        %6734 = vmatprep.subr.mxu0 0.0
        %6735 = vmatpush1.msra.mxu0 0.0
        %6736 = vmatprep.subr.mxu0 0.0
        %6737 = vmatpush1.msra.mxu0 0.0
        %6738 = vmatprep.subr.mxu0 0.0
        %6739 = vmatpush1.msra.mxu0 0.0
        %6740 = vmatprep.subr.mxu0 0.0
        %6741 = vmatpush1.msra.mxu0 0.0
        %6742 = vmatprep.subr.mxu0 0.0
        %6743 = vmatpush1.msra.mxu0 0.0
        %6744 = vmatprep.subr.mxu0 0.0
        %6745 = vmatpush1.msra.mxu0 0.0
        %6746 = vmatprep.subr.mxu0 0.0
        %6747 = vmatpush1.msra.mxu0 0.0
        %6748 = vmatprep.subr.mxu0 0.0
        %6749 = vmatpush1.msra.mxu0 0.0
        %6750 = vmatprep.subr.mxu0 0.0
        %6751 = vmatpush1.msra.mxu0 0.0
        %6752 = vmatprep.subr.mxu0 0.0
        %6753 = vmatpush1.msra.mxu0 0.0
        %6754 = vmatprep.subr.mxu0 0.0
        %6755 = vmatpush1.msra.mxu0 0.0
        %6756 = vmatprep.subr.mxu0 0.0
        %6757 = vmatpush1.msra.mxu0 0.0
        %6758 = vmatprep.subr.mxu0 0.0
        %6759 = vmatpush1.msra.mxu0 0.0
        %6760 = vmatprep.subr.mxu0 0.0
        %6761 = vmatpush1.msra.mxu0 0.0
        %6762 = vmatprep.subr.mxu0 0.0
        %6763 = vmatpush1.msra.mxu0 0.0
        %6764 = vmatprep.subr.mxu0 0.0
        %6765 = vmatpush1.msra.mxu0 0.0
        %6766 = vmatprep.subr.mxu0 0.0
        %6767 = vmatpush1.msra.mxu0 0.0
        %6768 = vmatprep.subr.mxu0 0.0
        %6769 = vmatpush1.msra.mxu0 0.0
        %6770 = vmatprep.subr.mxu0 0.0
        %6771 = vmatpush1.msra.mxu0 0.0
        %6772 = vmatprep.subr.mxu0 0.0
        %6773 = vmatpush1.msra.mxu0 0.0
        %6774 = vmatprep.subr.mxu0 0.0
        %6775 = vmatpush1.msra.mxu0 0.0
        %6776 = vmatprep.subr.mxu0 0.0
        %6777 = vmatpush1.msra.mxu0 0.0
        %6778 = vmatprep.subr.mxu0 0.0
        %6779 = vmatpush1.msra.mxu0 0.0
        %6780 = vmatprep.subr.mxu0 0.0
        %6781 = vmatpush1.msra.mxu0 0.0
        %6782 = vmatprep.subr.mxu0 0.0
        %6783 = vmatpush1.msra.mxu0 0.0
        %6784 = vmatprep.mubr.f32.mxu0 0.0
        %6785 = vmatmul.mubr.f32.gmra.mrb[0].mxu0 %v6631
        %v6786 = vpop.f32.mrb[0].mxu0
        %v6787 = vadd.f32 0.0, %v6786
        %v6788 = vpop.f32.mrb[0].mxu0
        %v6789 = vadd.f32 0.0, %v6788
        %6790 = vdwg.mxu0
        %6791 = vmatprep.subr.mxu0 %v6643
        %6792 = vmatpush1.msra.mxu0 %v6641
        %6793 = vmatprep.subr.mxu0 0.0
        %6794 = vmatpush1.msra.mxu0 0.0
        %6795 = vmatprep.subr.mxu0 0.0
        %6796 = vmatpush1.msra.mxu0 0.0
        %6797 = vmatprep.subr.mxu0 0.0
        %6798 = vmatpush1.msra.mxu0 0.0
        %6799 = vmatprep.subr.mxu0 0.0
        %6800 = vmatpush1.msra.mxu0 0.0
        %6801 = vmatprep.subr.mxu0 0.0
        %6802 = vmatpush1.msra.mxu0 0.0
        %6803 = vmatprep.subr.mxu0 0.0
        %6804 = vmatpush1.msra.mxu0 0.0
        %6805 = vmatprep.subr.mxu0 0.0
        %6806 = vmatpush1.msra.mxu0 0.0
        %6807 = vmatprep.subr.mxu0 0.0
        %6808 = vmatpush1.msra.mxu0 0.0
        %6809 = vmatprep.subr.mxu0 0.0
        %6810 = vmatpush1.msra.mxu0 0.0
        %6811 = vmatprep.subr.mxu0 0.0
        %6812 = vmatpush1.msra.mxu0 0.0
        %6813 = vmatprep.subr.mxu0 0.0
        %6814 = vmatpush1.msra.mxu0 0.0
        %6815 = vmatprep.subr.mxu0 0.0
        %6816 = vmatpush1.msra.mxu0 0.0
        %6817 = vmatprep.subr.mxu0 0.0
        %6818 = vmatpush1.msra.mxu0 0.0
        %6819 = vmatprep.subr.mxu0 0.0
        %6820 = vmatpush1.msra.mxu0 0.0
        %6821 = vmatprep.subr.mxu0 0.0
        %6822 = vmatpush1.msra.mxu0 0.0
        %6823 = vmatprep.subr.mxu0 0.0
        %6824 = vmatpush1.msra.mxu0 0.0
        %6825 = vmatprep.subr.mxu0 0.0
        %6826 = vmatpush1.msra.mxu0 0.0
        %6827 = vmatprep.subr.mxu0 0.0
        %6828 = vmatpush1.msra.mxu0 0.0
        %6829 = vmatprep.subr.mxu0 0.0
        %6830 = vmatpush1.msra.mxu0 0.0
        %6831 = vmatprep.subr.mxu0 0.0
        %6832 = vmatpush1.msra.mxu0 0.0
        %6833 = vmatprep.subr.mxu0 0.0
        %6834 = vmatpush1.msra.mxu0 0.0
        %6835 = vmatprep.subr.mxu0 0.0
        %6836 = vmatpush1.msra.mxu0 0.0
        %6837 = vmatprep.subr.mxu0 0.0
        %6838 = vmatpush1.msra.mxu0 0.0
        %6839 = vmatprep.subr.mxu0 0.0
        %6840 = vmatpush1.msra.mxu0 0.0
        %6841 = vmatprep.subr.mxu0 0.0
        %6842 = vmatpush1.msra.mxu0 0.0
        %6843 = vmatprep.subr.mxu0 0.0
        %6844 = vmatpush1.msra.mxu0 0.0
        %6845 = vmatprep.subr.mxu0 0.0
        %6846 = vmatpush1.msra.mxu0 0.0
        %6847 = vmatprep.subr.mxu0 0.0
        %6848 = vmatpush1.msra.mxu0 0.0
        %6849 = vmatprep.subr.mxu0 0.0
        %6850 = vmatpush1.msra.mxu0 0.0
        %6851 = vmatprep.subr.mxu0 0.0
        %6852 = vmatpush1.msra.mxu0 0.0
        %6853 = vmatprep.subr.mxu0 0.0
        %6854 = vmatpush1.msra.mxu0 0.0
        %6855 = vmatprep.mubr.f32.mxu0 0.0
        %6856 = vmatmul.mubr.f32.gmra.mrb[0].mxu0 %v6631
        %v6857 = vpop.f32.mrb[0].mxu0
        %v6858 = vadd.f32 0.0, %v6857
        %v6859 = vpop.f32.mrb[0].mxu0
        %v6860 = vadd.f32 0.0, %v6859
        %6861 = vdwg.mxu0
        %6862 = vmatprep.subr.mxu0 %v6647
        %6863 = vmatpush1.msra.mxu0 %v6645
        %6864 = vmatprep.subr.mxu0 0.0
        %6865 = vmatpush1.msra.mxu0 0.0
        %6866 = vmatprep.subr.mxu0 0.0
        %6867 = vmatpush1.msra.mxu0 0.0
        %6868 = vmatprep.subr.mxu0 0.0
        %6869 = vmatpush1.msra.mxu0 0.0
        %6870 = vmatprep.subr.mxu0 0.0
        %6871 = vmatpush1.msra.mxu0 0.0
        %6872 = vmatprep.subr.mxu0 0.0
        %6873 = vmatpush1.msra.mxu0 0.0
        %6874 = vmatprep.subr.mxu0 0.0
        %6875 = vmatpush1.msra.mxu0 0.0
        %6876 = vmatprep.subr.mxu0 0.0
        %6877 = vmatpush1.msra.mxu0 0.0
        %6878 = vmatprep.subr.mxu0 0.0
        %6879 = vmatpush1.msra.mxu0 0.0
        %6880 = vmatprep.subr.mxu0 0.0
        %6881 = vmatpush1.msra.mxu0 0.0
        %6882 = vmatprep.subr.mxu0 0.0
        %6883 = vmatpush1.msra.mxu0 0.0
        %6884 = vmatprep.subr.mxu0 0.0
        %6885 = vmatpush1.msra.mxu0 0.0
        %6886 = vmatprep.subr.mxu0 0.0
        %6887 = vmatpush1.msra.mxu0 0.0
        %6888 = vmatprep.subr.mxu0 0.0
        %6889 = vmatpush1.msra.mxu0 0.0
        %6890 = vmatprep.subr.mxu0 0.0
        %6891 = vmatpush1.msra.mxu0 0.0
        %6892 = vmatprep.subr.mxu0 0.0
        %6893 = vmatpush1.msra.mxu0 0.0
        %6894 = vmatprep.subr.mxu0 0.0
        %6895 = vmatpush1.msra.mxu0 0.0
        %6896 = vmatprep.subr.mxu0 0.0
        %6897 = vmatpush1.msra.mxu0 0.0
        %6898 = vmatprep.subr.mxu0 0.0
        %6899 = vmatpush1.msra.mxu0 0.0
        %6900 = vmatprep.subr.mxu0 0.0
        %6901 = vmatpush1.msra.mxu0 0.0
        %6902 = vmatprep.subr.mxu0 0.0
        %6903 = vmatpush1.msra.mxu0 0.0
        %6904 = vmatprep.subr.mxu0 0.0
        %6905 = vmatpush1.msra.mxu0 0.0
        %6906 = vmatprep.subr.mxu0 0.0
        %6907 = vmatpush1.msra.mxu0 0.0
        %6908 = vmatprep.subr.mxu0 0.0
        %6909 = vmatpush1.msra.mxu0 0.0
        %6910 = vmatprep.subr.mxu0 0.0
        %6911 = vmatpush1.msra.mxu0 0.0
        %6912 = vmatprep.subr.mxu0 0.0
        %6913 = vmatpush1.msra.mxu0 0.0
        %6914 = vmatprep.subr.mxu0 0.0
        %6915 = vmatpush1.msra.mxu0 0.0
        %6916 = vmatprep.subr.mxu0 0.0
        %6917 = vmatpush1.msra.mxu0 0.0
        %6918 = vmatprep.subr.mxu0 0.0
        %6919 = vmatpush1.msra.mxu0 0.0
        %6920 = vmatprep.subr.mxu0 0.0
        %6921 = vmatpush1.msra.mxu0 0.0
        %6922 = vmatprep.subr.mxu0 0.0
        %6923 = vmatpush1.msra.mxu0 0.0
        %6924 = vmatprep.subr.mxu0 0.0
        %6925 = vmatpush1.msra.mxu0 0.0
        %6926 = vmatprep.mubr.f32.mxu0 0.0
        %6927 = vmatmul.mubr.f32.gmra.mrb[0].mxu0 %v6631
        %v6928 = vpop.f32.mrb[0].mxu0
        %v6929 = vadd.f32 0.0, %v6928
        %v6930 = vpop.f32.mrb[0].mxu0
        %v6931 = vadd.f32 0.0, %v6930
        %6932 = vdwg.mxu0
        %v6933 = vadd.f32 %v6579, %v6716
        %v6934 = vadd.f32 %v6580, %v6718
        %v6935 = vadd.f32 %v6581, %v6787
        %v6936 = vadd.f32 %v6582, %v6789
        %v6937 = vadd.f32 %v6583, %v6858
        %v6938 = vadd.f32 %v6584, %v6860
        %v6939 = vadd.f32 %v6585, %v6929
        %v6940 = vadd.f32 %v6586, %v6931
        %v6941 = vld [vmem:[%s262 + $0x4] sm:$0xff]
        %v6942 = vld [vmem:[%s262 + $0xc] sm:$0xff]
        %v6943 = vld [vmem:[%s262 + $0x14] sm:$0xff]
        %v6944 = vld [vmem:[%s262 + $0x1c] sm:$0xff]
        %v6945 = vld [vmem:[%s262 + $0x24] sm:$0xf]
        %s6946 = scalar_lea.vmem %s1, 152
        %v6947 = vld [vmem:[%s6946] sm:$0xff]
        %v6953 = vcombine.high %v6941, %v6941
        %v6954 = vcombine.high %v6942, %v6942
        %v6955 = vcombine.high %v6943, %v6943
        %v6956 = vcombine.high %v6944, %v6944
        %6957 = vrot.lane.b32.xlu0 %v6941, 55
        %v6958 = vpop.permute.xlu0 %6957
        %6959 = vrot.lane.b32.xlu0 %v6953, 55
        %v6960 = vpop.permute.xlu0 %6959
        %6961 = vrot.lane.b32.xlu0 %v6942, 55
        %v6962 = vpop.permute.xlu0 %6961
        %6963 = vrot.lane.b32.xlu0 %v6954, 55
        %v6964 = vpop.permute.xlu0 %6963
        %6965 = vrot.lane.b32.xlu0 %v6943, 55
        %v6966 = vpop.permute.xlu0 %6965
        %6967 = vrot.lane.b32.xlu0 %v6955, 55
        %v6968 = vpop.permute.xlu0 %6967
        %6969 = vrot.lane.b32.xlu0 %v6944, 55
        %v6970 = vpop.permute.xlu0 %6969
        %6971 = vrot.lane.b32.xlu0 %v6956, 55
        %v6972 = vpop.permute.xlu0 %6971
        %6973 = vrot.lane.b32.xlu0 %v6945, 55
        %v6974 = vpop.permute.xlu0 %6973
        %vm6975 = vcmask 449536
        %v6976 = vsel %vm6975, %v6958, %v6960
        %v6977 = vsel %vm6975, %v6960, %v6962
        %v6978 = vsel %vm6975, %v6962, %v6964
        %v6979 = vsel %vm6975, %v6964, %v6966
        %v6980 = vsel %vm6975, %v6966, %v6968
        %v6981 = vsel %vm6975, %v6968, %v6970
        %v6982 = vsel %vm6975, %v6970, %v6972
        %v6983 = vsel %vm6975, %v6972, %v6974
        %v6985 = vsel %vm315, %v6947, 0
        %v6987 = vsel %vm319, %v6976, 0
        %v6989 = vsel %vm319, %v6977, 0
        %v6991 = vsel %vm319, %v6978, 0
        %v6993 = vsel %vm319, %v6979, 0
        %v6995 = vsel %vm319, %v6980, 0
        %v6997 = vsel %vm319, %v6981, 0
        %v6999 = vsel %vm319, %v6982, 0
        %v7001 = vsel %vm319, %v6983, 0
        %7003 = vmatprep.subr.mxu0 %v6989
        %7004 = vmatpush1.msra.mxu0 %v6987
        %7005 = vmatprep.subr.mxu0 0.0
        %7006 = vmatpush1.msra.mxu0 0.0
        %7007 = vmatprep.subr.mxu0 0.0
        %7008 = vmatpush1.msra.mxu0 0.0
        %7009 = vmatprep.subr.mxu0 0.0
        %7010 = vmatpush1.msra.mxu0 0.0
        %7011 = vmatprep.subr.mxu0 0.0
        %7012 = vmatpush1.msra.mxu0 0.0
        %7013 = vmatprep.subr.mxu0 0.0
        %7014 = vmatpush1.msra.mxu0 0.0
        %7015 = vmatprep.subr.mxu0 0.0
        %7016 = vmatpush1.msra.mxu0 0.0
        %7017 = vmatprep.subr.mxu0 0.0
        %7018 = vmatpush1.msra.mxu0 0.0
        %7019 = vmatprep.subr.mxu0 0.0
        %7020 = vmatpush1.msra.mxu0 0.0
        %7021 = vmatprep.subr.mxu0 0.0
        %7022 = vmatpush1.msra.mxu0 0.0
        %7023 = vmatprep.subr.mxu0 0.0
        %7024 = vmatpush1.msra.mxu0 0.0
        %7025 = vmatprep.subr.mxu0 0.0
        %7026 = vmatpush1.msra.mxu0 0.0
        %7027 = vmatprep.subr.mxu0 0.0
        %7028 = vmatpush1.msra.mxu0 0.0
        %7029 = vmatprep.subr.mxu0 0.0
        %7030 = vmatpush1.msra.mxu0 0.0
        %7031 = vmatprep.subr.mxu0 0.0
        %7032 = vmatpush1.msra.mxu0 0.0
        %7033 = vmatprep.subr.mxu0 0.0
        %7034 = vmatpush1.msra.mxu0 0.0
        %7035 = vmatprep.subr.mxu0 0.0
        %7036 = vmatpush1.msra.mxu0 0.0
        %7037 = vmatprep.subr.mxu0 0.0
        %7038 = vmatpush1.msra.mxu0 0.0
        %7039 = vmatprep.subr.mxu0 0.0
        %7040 = vmatpush1.msra.mxu0 0.0
        %7041 = vmatprep.subr.mxu0 0.0
        %7042 = vmatpush1.msra.mxu0 0.0
        %7043 = vmatprep.subr.mxu0 0.0
        %7044 = vmatpush1.msra.mxu0 0.0
        %7045 = vmatprep.subr.mxu0 0.0
        %7046 = vmatpush1.msra.mxu0 0.0
        %7047 = vmatprep.subr.mxu0 0.0
        %7048 = vmatpush1.msra.mxu0 0.0
        %7049 = vmatprep.subr.mxu0 0.0
        %7050 = vmatpush1.msra.mxu0 0.0
        %7051 = vmatprep.subr.mxu0 0.0
        %7052 = vmatpush1.msra.mxu0 0.0
        %7053 = vmatprep.subr.mxu0 0.0
        %7054 = vmatpush1.msra.mxu0 0.0
        %7055 = vmatprep.subr.mxu0 0.0
        %7056 = vmatpush1.msra.mxu0 0.0
        %7057 = vmatprep.subr.mxu0 0.0
        %7058 = vmatpush1.msra.mxu0 0.0
        %7059 = vmatprep.subr.mxu0 0.0
        %7060 = vmatpush1.msra.mxu0 0.0
        %7061 = vmatprep.subr.mxu0 0.0
        %7062 = vmatpush1.msra.mxu0 0.0
        %7063 = vmatprep.subr.mxu0 0.0
        %7064 = vmatpush1.msra.mxu0 0.0
        %7065 = vmatprep.subr.mxu0 0.0
        %7066 = vmatpush1.msra.mxu0 0.0
        %7067 = vmatprep.mubr.f32.mxu0 0.0
        %7068 = vmatmul.mubr.f32.gmra.mrb[0].mxu0 %v6985
        %v7069 = vpop.f32.mrb[0].mxu0
        %v7070 = vadd.f32 0.0, %v7069
        %v7071 = vpop.f32.mrb[0].mxu0
        %v7072 = vadd.f32 0.0, %v7071
        %7073 = vdwg.mxu0
        %7074 = vmatprep.subr.mxu0 %v6993
        %7075 = vmatpush1.msra.mxu0 %v6991
        %7076 = vmatprep.subr.mxu0 0.0
        %7077 = vmatpush1.msra.mxu0 0.0
        %7078 = vmatprep.subr.mxu0 0.0
        %7079 = vmatpush1.msra.mxu0 0.0
        %7080 = vmatprep.subr.mxu0 0.0
        %7081 = vmatpush1.msra.mxu0 0.0
        %7082 = vmatprep.subr.mxu0 0.0
        %7083 = vmatpush1.msra.mxu0 0.0
        %7084 = vmatprep.subr.mxu0 0.0
        %7085 = vmatpush1.msra.mxu0 0.0
        %7086 = vmatprep.subr.mxu0 0.0
        %7087 = vmatpush1.msra.mxu0 0.0
        %7088 = vmatprep.subr.mxu0 0.0
        %7089 = vmatpush1.msra.mxu0 0.0
        %7090 = vmatprep.subr.mxu0 0.0
        %7091 = vmatpush1.msra.mxu0 0.0
        %7092 = vmatprep.subr.mxu0 0.0
        %7093 = vmatpush1.msra.mxu0 0.0
        %7094 = vmatprep.subr.mxu0 0.0
        %7095 = vmatpush1.msra.mxu0 0.0
        %7096 = vmatprep.subr.mxu0 0.0
        %7097 = vmatpush1.msra.mxu0 0.0
        %7098 = vmatprep.subr.mxu0 0.0
        %7099 = vmatpush1.msra.mxu0 0.0
        %7100 = vmatprep.subr.mxu0 0.0
        %7101 = vmatpush1.msra.mxu0 0.0
        %7102 = vmatprep.subr.mxu0 0.0
        %7103 = vmatpush1.msra.mxu0 0.0
        %7104 = vmatprep.subr.mxu0 0.0
        %7105 = vmatpush1.msra.mxu0 0.0
        %7106 = vmatprep.subr.mxu0 0.0
        %7107 = vmatpush1.msra.mxu0 0.0
        %7108 = vmatprep.subr.mxu0 0.0
        %7109 = vmatpush1.msra.mxu0 0.0
        %7110 = vmatprep.subr.mxu0 0.0
        %7111 = vmatpush1.msra.mxu0 0.0
        %7112 = vmatprep.subr.mxu0 0.0
        %7113 = vmatpush1.msra.mxu0 0.0
        %7114 = vmatprep.subr.mxu0 0.0
        %7115 = vmatpush1.msra.mxu0 0.0
        %7116 = vmatprep.subr.mxu0 0.0
        %7117 = vmatpush1.msra.mxu0 0.0
        %7118 = vmatprep.subr.mxu0 0.0
        %7119 = vmatpush1.msra.mxu0 0.0
        %7120 = vmatprep.subr.mxu0 0.0
        %7121 = vmatpush1.msra.mxu0 0.0
        %7122 = vmatprep.subr.mxu0 0.0
        %7123 = vmatpush1.msra.mxu0 0.0
        %7124 = vmatprep.subr.mxu0 0.0
        %7125 = vmatpush1.msra.mxu0 0.0
        %7126 = vmatprep.subr.mxu0 0.0
        %7127 = vmatpush1.msra.mxu0 0.0
        %7128 = vmatprep.subr.mxu0 0.0
        %7129 = vmatpush1.msra.mxu0 0.0
        %7130 = vmatprep.subr.mxu0 0.0
        %7131 = vmatpush1.msra.mxu0 0.0
        %7132 = vmatprep.subr.mxu0 0.0
        %7133 = vmatpush1.msra.mxu0 0.0
        %7134 = vmatprep.subr.mxu0 0.0
        %7135 = vmatpush1.msra.mxu0 0.0
        %7136 = vmatprep.subr.mxu0 0.0
        %7137 = vmatpush1.msra.mxu0 0.0
        %7138 = vmatprep.mubr.f32.mxu0 0.0
        %7139 = vmatmul.mubr.f32.gmra.mrb[0].mxu0 %v6985
        %v7140 = vpop.f32.mrb[0].mxu0
        %v7141 = vadd.f32 0.0, %v7140
        %v7142 = vpop.f32.mrb[0].mxu0
        %v7143 = vadd.f32 0.0, %v7142
        %7144 = vdwg.mxu0
        %7145 = vmatprep.subr.mxu0 %v6997
        %7146 = vmatpush1.msra.mxu0 %v6995
        %7147 = vmatprep.subr.mxu0 0.0
        %7148 = vmatpush1.msra.mxu0 0.0
        %7149 = vmatprep.subr.mxu0 0.0
        %7150 = vmatpush1.msra.mxu0 0.0
        %7151 = vmatprep.subr.mxu0 0.0
        %7152 = vmatpush1.msra.mxu0 0.0
        %7153 = vmatprep.subr.mxu0 0.0
        %7154 = vmatpush1.msra.mxu0 0.0
        %7155 = vmatprep.subr.mxu0 0.0
        %7156 = vmatpush1.msra.mxu0 0.0
        %7157 = vmatprep.subr.mxu0 0.0
        %7158 = vmatpush1.msra.mxu0 0.0
        %7159 = vmatprep.subr.mxu0 0.0
        %7160 = vmatpush1.msra.mxu0 0.0
        %7161 = vmatprep.subr.mxu0 0.0
        %7162 = vmatpush1.msra.mxu0 0.0
        %7163 = vmatprep.subr.mxu0 0.0
        %7164 = vmatpush1.msra.mxu0 0.0
        %7165 = vmatprep.subr.mxu0 0.0
        %7166 = vmatpush1.msra.mxu0 0.0
        %7167 = vmatprep.subr.mxu0 0.0
        %7168 = vmatpush1.msra.mxu0 0.0
        %7169 = vmatprep.subr.mxu0 0.0
        %7170 = vmatpush1.msra.mxu0 0.0
        %7171 = vmatprep.subr.mxu0 0.0
        %7172 = vmatpush1.msra.mxu0 0.0
        %7173 = vmatprep.subr.mxu0 0.0
        %7174 = vmatpush1.msra.mxu0 0.0
        %7175 = vmatprep.subr.mxu0 0.0
        %7176 = vmatpush1.msra.mxu0 0.0
        %7177 = vmatprep.subr.mxu0 0.0
        %7178 = vmatpush1.msra.mxu0 0.0
        %7179 = vmatprep.subr.mxu0 0.0
        %7180 = vmatpush1.msra.mxu0 0.0
        %7181 = vmatprep.subr.mxu0 0.0
        %7182 = vmatpush1.msra.mxu0 0.0
        %7183 = vmatprep.subr.mxu0 0.0
        %7184 = vmatpush1.msra.mxu0 0.0
        %7185 = vmatprep.subr.mxu0 0.0
        %7186 = vmatpush1.msra.mxu0 0.0
        %7187 = vmatprep.subr.mxu0 0.0
        %7188 = vmatpush1.msra.mxu0 0.0
        %7189 = vmatprep.subr.mxu0 0.0
        %7190 = vmatpush1.msra.mxu0 0.0
        %7191 = vmatprep.subr.mxu0 0.0
        %7192 = vmatpush1.msra.mxu0 0.0
        %7193 = vmatprep.subr.mxu0 0.0
        %7194 = vmatpush1.msra.mxu0 0.0
        %7195 = vmatprep.subr.mxu0 0.0
        %7196 = vmatpush1.msra.mxu0 0.0
        %7197 = vmatprep.subr.mxu0 0.0
        %7198 = vmatpush1.msra.mxu0 0.0
        %7199 = vmatprep.subr.mxu0 0.0
        %7200 = vmatpush1.msra.mxu0 0.0
        %7201 = vmatprep.subr.mxu0 0.0
        %7202 = vmatpush1.msra.mxu0 0.0
        %7203 = vmatprep.subr.mxu0 0.0
        %7204 = vmatpush1.msra.mxu0 0.0
        %7205 = vmatprep.subr.mxu0 0.0
        %7206 = vmatpush1.msra.mxu0 0.0
        %7207 = vmatprep.subr.mxu0 0.0
        %7208 = vmatpush1.msra.mxu0 0.0
        %7209 = vmatprep.mubr.f32.mxu0 0.0
        %7210 = vmatmul.mubr.f32.gmra.mrb[0].mxu0 %v6985
        %v7211 = vpop.f32.mrb[0].mxu0
        %v7212 = vadd.f32 0.0, %v7211
        %v7213 = vpop.f32.mrb[0].mxu0
        %v7214 = vadd.f32 0.0, %v7213
        %7215 = vdwg.mxu0
        %7216 = vmatprep.subr.mxu0 %v7001
        %7217 = vmatpush1.msra.mxu0 %v6999
        %7218 = vmatprep.subr.mxu0 0.0
        %7219 = vmatpush1.msra.mxu0 0.0
        %7220 = vmatprep.subr.mxu0 0.0
        %7221 = vmatpush1.msra.mxu0 0.0
        %7222 = vmatprep.subr.mxu0 0.0
        %7223 = vmatpush1.msra.mxu0 0.0
        %7224 = vmatprep.subr.mxu0 0.0
        %7225 = vmatpush1.msra.mxu0 0.0
        %7226 = vmatprep.subr.mxu0 0.0
        %7227 = vmatpush1.msra.mxu0 0.0
        %7228 = vmatprep.subr.mxu0 0.0
        %7229 = vmatpush1.msra.mxu0 0.0
        %7230 = vmatprep.subr.mxu0 0.0
        %7231 = vmatpush1.msra.mxu0 0.0
        %7232 = vmatprep.subr.mxu0 0.0
        %7233 = vmatpush1.msra.mxu0 0.0
        %7234 = vmatprep.subr.mxu0 0.0
        %7235 = vmatpush1.msra.mxu0 0.0
        %7236 = vmatprep.subr.mxu0 0.0
        %7237 = vmatpush1.msra.mxu0 0.0
        %7238 = vmatprep.subr.mxu0 0.0
        %7239 = vmatpush1.msra.mxu0 0.0
        %7240 = vmatprep.subr.mxu0 0.0
        %7241 = vmatpush1.msra.mxu0 0.0
        %7242 = vmatprep.subr.mxu0 0.0
        %7243 = vmatpush1.msra.mxu0 0.0
        %7244 = vmatprep.subr.mxu0 0.0
        %7245 = vmatpush1.msra.mxu0 0.0
        %7246 = vmatprep.subr.mxu0 0.0
        %7247 = vmatpush1.msra.mxu0 0.0
        %7248 = vmatprep.subr.mxu0 0.0
        %7249 = vmatpush1.msra.mxu0 0.0
        %7250 = vmatprep.subr.mxu0 0.0
        %7251 = vmatpush1.msra.mxu0 0.0
        %7252 = vmatprep.subr.mxu0 0.0
        %7253 = vmatpush1.msra.mxu0 0.0
        %7254 = vmatprep.subr.mxu0 0.0
        %7255 = vmatpush1.msra.mxu0 0.0
        %7256 = vmatprep.subr.mxu0 0.0
        %7257 = vmatpush1.msra.mxu0 0.0
        %7258 = vmatprep.subr.mxu0 0.0
        %7259 = vmatpush1.msra.mxu0 0.0
        %7260 = vmatprep.subr.mxu0 0.0
        %7261 = vmatpush1.msra.mxu0 0.0
        %7262 = vmatprep.subr.mxu0 0.0
        %7263 = vmatpush1.msra.mxu0 0.0
        %7264 = vmatprep.subr.mxu0 0.0
        %7265 = vmatpush1.msra.mxu0 0.0
        %7266 = vmatprep.subr.mxu0 0.0
        %7267 = vmatpush1.msra.mxu0 0.0
        %7268 = vmatprep.subr.mxu0 0.0
        %7269 = vmatpush1.msra.mxu0 0.0
        %7270 = vmatprep.subr.mxu0 0.0
        %7271 = vmatpush1.msra.mxu0 0.0
        %7272 = vmatprep.subr.mxu0 0.0
        %7273 = vmatpush1.msra.mxu0 0.0
        %7274 = vmatprep.subr.mxu0 0.0
        %7275 = vmatpush1.msra.mxu0 0.0
        %7276 = vmatprep.subr.mxu0 0.0
        %7277 = vmatpush1.msra.mxu0 0.0
        %7278 = vmatprep.subr.mxu0 0.0
        %7279 = vmatpush1.msra.mxu0 0.0
        %7280 = vmatprep.mubr.f32.mxu0 0.0
        %7281 = vmatmul.mubr.f32.gmra.mrb[0].mxu0 %v6985
        %v7282 = vpop.f32.mrb[0].mxu0
        %v7283 = vadd.f32 0.0, %v7282
        %v7284 = vpop.f32.mrb[0].mxu0
        %v7285 = vadd.f32 0.0, %v7284
        %7286 = vdwg.mxu0
        %v7287 = vadd.f32 %v6933, %v7070
        %v7288 = vadd.f32 %v6934, %v7072
        %v7289 = vadd.f32 %v6935, %v7141
        %v7290 = vadd.f32 %v6936, %v7143
        %v7291 = vadd.f32 %v6937, %v7212
        %v7292 = vadd.f32 %v6938, %v7214
        %v7293 = vadd.f32 %v6939, %v7283
        %v7294 = vadd.f32 %v6940, %v7285
        %v7295 = vld [vmem:[%s262 + $0x4] sm:$0xff]
        %v7296 = vld [vmem:[%s262 + $0xc] sm:$0xff]
        %v7297 = vld [vmem:[%s262 + $0x14] sm:$0xff]
        %v7298 = vld [vmem:[%s262 + $0x1c] sm:$0xff]
        %v7299 = vld [vmem:[%s262 + $0x24] sm:$0xf]
        %s7300 = scalar_lea.vmem %s1, 160
        %v7301 = vld [vmem:[%s7300] sm:$0xff]
        %v7307 = vcombine.high %v7295, %v7295
        %v7308 = vcombine.high %v7296, %v7296
        %v7309 = vcombine.high %v7297, %v7297
        %v7310 = vcombine.high %v7298, %v7298
        %7311 = vrot.lane.b32.xlu0 %v7295, 54
        %v7312 = vpop.permute.xlu0 %7311
        %7313 = vrot.lane.b32.xlu0 %v7307, 54
        %v7314 = vpop.permute.xlu0 %7313
        %7315 = vrot.lane.b32.xlu0 %v7296, 54
        %v7316 = vpop.permute.xlu0 %7315
        %7317 = vrot.lane.b32.xlu0 %v7308, 54
        %v7318 = vpop.permute.xlu0 %7317
        %7319 = vrot.lane.b32.xlu0 %v7297, 54
        %v7320 = vpop.permute.xlu0 %7319
        %7321 = vrot.lane.b32.xlu0 %v7309, 54
        %v7322 = vpop.permute.xlu0 %7321
        %7323 = vrot.lane.b32.xlu0 %v7298, 54
        %v7324 = vpop.permute.xlu0 %7323
        %7325 = vrot.lane.b32.xlu0 %v7310, 54
        %v7326 = vpop.permute.xlu0 %7325
        %7327 = vrot.lane.b32.xlu0 %v7299, 54
        %v7328 = vpop.permute.xlu0 %7327
        %vm7329 = vcmask 441344
        %v7330 = vsel %vm7329, %v7312, %v7314
        %v7331 = vsel %vm7329, %v7314, %v7316
        %v7332 = vsel %vm7329, %v7316, %v7318
        %v7333 = vsel %vm7329, %v7318, %v7320
        %v7334 = vsel %vm7329, %v7320, %v7322
        %v7335 = vsel %vm7329, %v7322, %v7324
        %v7336 = vsel %vm7329, %v7324, %v7326
        %v7337 = vsel %vm7329, %v7326, %v7328
        %v7339 = vsel %vm315, %v7301, 0
        %v7341 = vsel %vm319, %v7330, 0
        %v7343 = vsel %vm319, %v7331, 0
        %v7345 = vsel %vm319, %v7332, 0
        %v7347 = vsel %vm319, %v7333, 0
        %v7349 = vsel %vm319, %v7334, 0
        %v7351 = vsel %vm319, %v7335, 0
        %v7353 = vsel %vm319, %v7336, 0
        %v7355 = vsel %vm319, %v7337, 0
        %7357 = vmatprep.subr.mxu0 %v7343
        %7358 = vmatpush1.msra.mxu0 %v7341
        %7359 = vmatprep.subr.mxu0 0.0
        %7360 = vmatpush1.msra.mxu0 0.0
        %7361 = vmatprep.subr.mxu0 0.0
        %7362 = vmatpush1.msra.mxu0 0.0
        %7363 = vmatprep.subr.mxu0 0.0
        %7364 = vmatpush1.msra.mxu0 0.0
        %7365 = vmatprep.subr.mxu0 0.0
        %7366 = vmatpush1.msra.mxu0 0.0
        %7367 = vmatprep.subr.mxu0 0.0
        %7368 = vmatpush1.msra.mxu0 0.0
        %7369 = vmatprep.subr.mxu0 0.0
        %7370 = vmatpush1.msra.mxu0 0.0
        %7371 = vmatprep.subr.mxu0 0.0
        %7372 = vmatpush1.msra.mxu0 0.0
        %7373 = vmatprep.subr.mxu0 0.0
        %7374 = vmatpush1.msra.mxu0 0.0
        %7375 = vmatprep.subr.mxu0 0.0
        %7376 = vmatpush1.msra.mxu0 0.0
        %7377 = vmatprep.subr.mxu0 0.0
        %7378 = vmatpush1.msra.mxu0 0.0
        %7379 = vmatprep.subr.mxu0 0.0
        %7380 = vmatpush1.msra.mxu0 0.0
        %7381 = vmatprep.subr.mxu0 0.0
        %7382 = vmatpush1.msra.mxu0 0.0
        %7383 = vmatprep.subr.mxu0 0.0
        %7384 = vmatpush1.msra.mxu0 0.0
        %7385 = vmatprep.subr.mxu0 0.0
        %7386 = vmatpush1.msra.mxu0 0.0
        %7387 = vmatprep.subr.mxu0 0.0
        %7388 = vmatpush1.msra.mxu0 0.0
        %7389 = vmatprep.subr.mxu0 0.0
        %7390 = vmatpush1.msra.mxu0 0.0
        %7391 = vmatprep.subr.mxu0 0.0
        %7392 = vmatpush1.msra.mxu0 0.0
        %7393 = vmatprep.subr.mxu0 0.0
        %7394 = vmatpush1.msra.mxu0 0.0
        %7395 = vmatprep.subr.mxu0 0.0
        %7396 = vmatpush1.msra.mxu0 0.0
        %7397 = vmatprep.subr.mxu0 0.0
        %7398 = vmatpush1.msra.mxu0 0.0
        %7399 = vmatprep.subr.mxu0 0.0
        %7400 = vmatpush1.msra.mxu0 0.0
        %7401 = vmatprep.subr.mxu0 0.0
        %7402 = vmatpush1.msra.mxu0 0.0
        %7403 = vmatprep.subr.mxu0 0.0
        %7404 = vmatpush1.msra.mxu0 0.0
        %7405 = vmatprep.subr.mxu0 0.0
        %7406 = vmatpush1.msra.mxu0 0.0
        %7407 = vmatprep.subr.mxu0 0.0
        %7408 = vmatpush1.msra.mxu0 0.0
        %7409 = vmatprep.subr.mxu0 0.0
        %7410 = vmatpush1.msra.mxu0 0.0
        %7411 = vmatprep.subr.mxu0 0.0
        %7412 = vmatpush1.msra.mxu0 0.0
        %7413 = vmatprep.subr.mxu0 0.0
        %7414 = vmatpush1.msra.mxu0 0.0
        %7415 = vmatprep.subr.mxu0 0.0
        %7416 = vmatpush1.msra.mxu0 0.0
        %7417 = vmatprep.subr.mxu0 0.0
        %7418 = vmatpush1.msra.mxu0 0.0
        %7419 = vmatprep.subr.mxu0 0.0
        %7420 = vmatpush1.msra.mxu0 0.0
        %7421 = vmatprep.mubr.f32.mxu0 0.0
        %7422 = vmatmul.mubr.f32.gmra.mrb[0].mxu0 %v7339
        %v7423 = vpop.f32.mrb[0].mxu0
        %v7424 = vadd.f32 0.0, %v7423
        %v7425 = vpop.f32.mrb[0].mxu0
        %v7426 = vadd.f32 0.0, %v7425
        %7427 = vdwg.mxu0
        %7428 = vmatprep.subr.mxu0 %v7347
        %7429 = vmatpush1.msra.mxu0 %v7345
        %7430 = vmatprep.subr.mxu0 0.0
        %7431 = vmatpush1.msra.mxu0 0.0
        %7432 = vmatprep.subr.mxu0 0.0
        %7433 = vmatpush1.msra.mxu0 0.0
        %7434 = vmatprep.subr.mxu0 0.0
        %7435 = vmatpush1.msra.mxu0 0.0
        %7436 = vmatprep.subr.mxu0 0.0
        %7437 = vmatpush1.msra.mxu0 0.0
        %7438 = vmatprep.subr.mxu0 0.0
        %7439 = vmatpush1.msra.mxu0 0.0
        %7440 = vmatprep.subr.mxu0 0.0
        %7441 = vmatpush1.msra.mxu0 0.0
        %7442 = vmatprep.subr.mxu0 0.0
        %7443 = vmatpush1.msra.mxu0 0.0
        %7444 = vmatprep.subr.mxu0 0.0
        %7445 = vmatpush1.msra.mxu0 0.0
        %7446 = vmatprep.subr.mxu0 0.0
        %7447 = vmatpush1.msra.mxu0 0.0
        %7448 = vmatprep.subr.mxu0 0.0
        %7449 = vmatpush1.msra.mxu0 0.0
        %7450 = vmatprep.subr.mxu0 0.0
        %7451 = vmatpush1.msra.mxu0 0.0
        %7452 = vmatprep.subr.mxu0 0.0
        %7453 = vmatpush1.msra.mxu0 0.0
        %7454 = vmatprep.subr.mxu0 0.0
        %7455 = vmatpush1.msra.mxu0 0.0
        %7456 = vmatprep.subr.mxu0 0.0
        %7457 = vmatpush1.msra.mxu0 0.0
        %7458 = vmatprep.subr.mxu0 0.0
        %7459 = vmatpush1.msra.mxu0 0.0
        %7460 = vmatprep.subr.mxu0 0.0
        %7461 = vmatpush1.msra.mxu0 0.0
        %7462 = vmatprep.subr.mxu0 0.0
        %7463 = vmatpush1.msra.mxu0 0.0
        %7464 = vmatprep.subr.mxu0 0.0
        %7465 = vmatpush1.msra.mxu0 0.0
        %7466 = vmatprep.subr.mxu0 0.0
        %7467 = vmatpush1.msra.mxu0 0.0
        %7468 = vmatprep.subr.mxu0 0.0
        %7469 = vmatpush1.msra.mxu0 0.0
        %7470 = vmatprep.subr.mxu0 0.0
        %7471 = vmatpush1.msra.mxu0 0.0
        %7472 = vmatprep.subr.mxu0 0.0
        %7473 = vmatpush1.msra.mxu0 0.0
        %7474 = vmatprep.subr.mxu0 0.0
        %7475 = vmatpush1.msra.mxu0 0.0
        %7476 = vmatprep.subr.mxu0 0.0
        %7477 = vmatpush1.msra.mxu0 0.0
        %7478 = vmatprep.subr.mxu0 0.0
        %7479 = vmatpush1.msra.mxu0 0.0
        %7480 = vmatprep.subr.mxu0 0.0
        %7481 = vmatpush1.msra.mxu0 0.0
        %7482 = vmatprep.subr.mxu0 0.0
        %7483 = vmatpush1.msra.mxu0 0.0
        %7484 = vmatprep.subr.mxu0 0.0
        %7485 = vmatpush1.msra.mxu0 0.0
        %7486 = vmatprep.subr.mxu0 0.0
        %7487 = vmatpush1.msra.mxu0 0.0
        %7488 = vmatprep.subr.mxu0 0.0
        %7489 = vmatpush1.msra.mxu0 0.0
        %7490 = vmatprep.subr.mxu0 0.0
        %7491 = vmatpush1.msra.mxu0 0.0
        %7492 = vmatprep.mubr.f32.mxu0 0.0
        %7493 = vmatmul.mubr.f32.gmra.mrb[0].mxu0 %v7339
        %v7494 = vpop.f32.mrb[0].mxu0
        %v7495 = vadd.f32 0.0, %v7494
        %v7496 = vpop.f32.mrb[0].mxu0
        %v7497 = vadd.f32 0.0, %v7496
        %7498 = vdwg.mxu0
        %7499 = vmatprep.subr.mxu0 %v7351
        %7500 = vmatpush1.msra.mxu0 %v7349
        %7501 = vmatprep.subr.mxu0 0.0
        %7502 = vmatpush1.msra.mxu0 0.0
        %7503 = vmatprep.subr.mxu0 0.0
        %7504 = vmatpush1.msra.mxu0 0.0
        %7505 = vmatprep.subr.mxu0 0.0
        %7506 = vmatpush1.msra.mxu0 0.0
        %7507 = vmatprep.subr.mxu0 0.0
        %7508 = vmatpush1.msra.mxu0 0.0
        %7509 = vmatprep.subr.mxu0 0.0
        %7510 = vmatpush1.msra.mxu0 0.0
        %7511 = vmatprep.subr.mxu0 0.0
        %7512 = vmatpush1.msra.mxu0 0.0
        %7513 = vmatprep.subr.mxu0 0.0
        %7514 = vmatpush1.msra.mxu0 0.0
        %7515 = vmatprep.subr.mxu0 0.0
        %7516 = vmatpush1.msra.mxu0 0.0
        %7517 = vmatprep.subr.mxu0 0.0
        %7518 = vmatpush1.msra.mxu0 0.0
        %7519 = vmatprep.subr.mxu0 0.0
        %7520 = vmatpush1.msra.mxu0 0.0
        %7521 = vmatprep.subr.mxu0 0.0
        %7522 = vmatpush1.msra.mxu0 0.0
        %7523 = vmatprep.subr.mxu0 0.0
        %7524 = vmatpush1.msra.mxu0 0.0
        %7525 = vmatprep.subr.mxu0 0.0
        %7526 = vmatpush1.msra.mxu0 0.0
        %7527 = vmatprep.subr.mxu0 0.0
        %7528 = vmatpush1.msra.mxu0 0.0
        %7529 = vmatprep.subr.mxu0 0.0
        %7530 = vmatpush1.msra.mxu0 0.0
        %7531 = vmatprep.subr.mxu0 0.0
        %7532 = vmatpush1.msra.mxu0 0.0
        %7533 = vmatprep.subr.mxu0 0.0
        %7534 = vmatpush1.msra.mxu0 0.0
        %7535 = vmatprep.subr.mxu0 0.0
        %7536 = vmatpush1.msra.mxu0 0.0
        %7537 = vmatprep.subr.mxu0 0.0
        %7538 = vmatpush1.msra.mxu0 0.0
        %7539 = vmatprep.subr.mxu0 0.0
        %7540 = vmatpush1.msra.mxu0 0.0
        %7541 = vmatprep.subr.mxu0 0.0
        %7542 = vmatpush1.msra.mxu0 0.0
        %7543 = vmatprep.subr.mxu0 0.0
        %7544 = vmatpush1.msra.mxu0 0.0
        %7545 = vmatprep.subr.mxu0 0.0
        %7546 = vmatpush1.msra.mxu0 0.0
        %7547 = vmatprep.subr.mxu0 0.0
        %7548 = vmatpush1.msra.mxu0 0.0
        %7549 = vmatprep.subr.mxu0 0.0
        %7550 = vmatpush1.msra.mxu0 0.0
        %7551 = vmatprep.subr.mxu0 0.0
        %7552 = vmatpush1.msra.mxu0 0.0
        %7553 = vmatprep.subr.mxu0 0.0
        %7554 = vmatpush1.msra.mxu0 0.0
        %7555 = vmatprep.subr.mxu0 0.0
        %7556 = vmatpush1.msra.mxu0 0.0
        %7557 = vmatprep.subr.mxu0 0.0
        %7558 = vmatpush1.msra.mxu0 0.0
        %7559 = vmatprep.subr.mxu0 0.0
        %7560 = vmatpush1.msra.mxu0 0.0
        %7561 = vmatprep.subr.mxu0 0.0
        %7562 = vmatpush1.msra.mxu0 0.0
        %7563 = vmatprep.mubr.f32.mxu0 0.0
        %7564 = vmatmul.mubr.f32.gmra.mrb[0].mxu0 %v7339
        %v7565 = vpop.f32.mrb[0].mxu0
        %v7566 = vadd.f32 0.0, %v7565
        %v7567 = vpop.f32.mrb[0].mxu0
        %v7568 = vadd.f32 0.0, %v7567
        %7569 = vdwg.mxu0
        %7570 = vmatprep.subr.mxu0 %v7355
        %7571 = vmatpush1.msra.mxu0 %v7353
        %7572 = vmatprep.subr.mxu0 0.0
        %7573 = vmatpush1.msra.mxu0 0.0
        %7574 = vmatprep.subr.mxu0 0.0
        %7575 = vmatpush1.msra.mxu0 0.0
        %7576 = vmatprep.subr.mxu0 0.0
        %7577 = vmatpush1.msra.mxu0 0.0
        %7578 = vmatprep.subr.mxu0 0.0
        %7579 = vmatpush1.msra.mxu0 0.0
        %7580 = vmatprep.subr.mxu0 0.0
        %7581 = vmatpush1.msra.mxu0 0.0
        %7582 = vmatprep.subr.mxu0 0.0
        %7583 = vmatpush1.msra.mxu0 0.0
        %7584 = vmatprep.subr.mxu0 0.0
        %7585 = vmatpush1.msra.mxu0 0.0
        %7586 = vmatprep.subr.mxu0 0.0
        %7587 = vmatpush1.msra.mxu0 0.0
        %7588 = vmatprep.subr.mxu0 0.0
        %7589 = vmatpush1.msra.mxu0 0.0
        %7590 = vmatprep.subr.mxu0 0.0
        %7591 = vmatpush1.msra.mxu0 0.0
        %7592 = vmatprep.subr.mxu0 0.0
        %7593 = vmatpush1.msra.mxu0 0.0
        %7594 = vmatprep.subr.mxu0 0.0
        %7595 = vmatpush1.msra.mxu0 0.0
        %7596 = vmatprep.subr.mxu0 0.0
        %7597 = vmatpush1.msra.mxu0 0.0
        %7598 = vmatprep.subr.mxu0 0.0
        %7599 = vmatpush1.msra.mxu0 0.0
        %7600 = vmatprep.subr.mxu0 0.0
        %7601 = vmatpush1.msra.mxu0 0.0
        %7602 = vmatprep.subr.mxu0 0.0
        %7603 = vmatpush1.msra.mxu0 0.0
        %7604 = vmatprep.subr.mxu0 0.0
        %7605 = vmatpush1.msra.mxu0 0.0
        %7606 = vmatprep.subr.mxu0 0.0
        %7607 = vmatpush1.msra.mxu0 0.0
        %7608 = vmatprep.subr.mxu0 0.0
        %7609 = vmatpush1.msra.mxu0 0.0
        %7610 = vmatprep.subr.mxu0 0.0
        %7611 = vmatpush1.msra.mxu0 0.0
        %7612 = vmatprep.subr.mxu0 0.0
        %7613 = vmatpush1.msra.mxu0 0.0
        %7614 = vmatprep.subr.mxu0 0.0
        %7615 = vmatpush1.msra.mxu0 0.0
        %7616 = vmatprep.subr.mxu0 0.0
        %7617 = vmatpush1.msra.mxu0 0.0
        %7618 = vmatprep.subr.mxu0 0.0
        %7619 = vmatpush1.msra.mxu0 0.0
        %7620 = vmatprep.subr.mxu0 0.0
        %7621 = vmatpush1.msra.mxu0 0.0
        %7622 = vmatprep.subr.mxu0 0.0
        %7623 = vmatpush1.msra.mxu0 0.0
        %7624 = vmatprep.subr.mxu0 0.0
        %7625 = vmatpush1.msra.mxu0 0.0
        %7626 = vmatprep.subr.mxu0 0.0
        %7627 = vmatpush1.msra.mxu0 0.0
        %7628 = vmatprep.subr.mxu0 0.0
        %7629 = vmatpush1.msra.mxu0 0.0
        %7630 = vmatprep.subr.mxu0 0.0
        %7631 = vmatpush1.msra.mxu0 0.0
        %7632 = vmatprep.subr.mxu0 0.0
        %7633 = vmatpush1.msra.mxu0 0.0
        %7634 = vmatprep.mubr.f32.mxu0 0.0
        %7635 = vmatmul.mubr.f32.gmra.mrb[0].mxu0 %v7339
        %v7636 = vpop.f32.mrb[0].mxu0
        %v7637 = vadd.f32 0.0, %v7636
        %v7638 = vpop.f32.mrb[0].mxu0
        %v7639 = vadd.f32 0.0, %v7638
        %7640 = vdwg.mxu0
        %v7641 = vadd.f32 %v7287, %v7424
        %v7642 = vadd.f32 %v7288, %v7426
        %v7643 = vadd.f32 %v7289, %v7495
        %v7644 = vadd.f32 %v7290, %v7497
        %v7645 = vadd.f32 %v7291, %v7566
        %v7646 = vadd.f32 %v7292, %v7568
        %v7647 = vadd.f32 %v7293, %v7637
        %v7648 = vadd.f32 %v7294, %v7639
        %v7649 = vld [vmem:[%s262 + $0x4] sm:$0xff]
        %v7650 = vld [vmem:[%s262 + $0xc] sm:$0xff]
        %v7651 = vld [vmem:[%s262 + $0x14] sm:$0xff]
        %v7652 = vld [vmem:[%s262 + $0x1c] sm:$0xff]
        %v7653 = vld [vmem:[%s262 + $0x24] sm:$0xf]
        %s7654 = scalar_lea.vmem %s1, 168
        %v7655 = vld [vmem:[%s7654] sm:$0xff]
        %v7661 = vcombine.high %v7649, %v7649
        %v7662 = vcombine.high %v7650, %v7650
        %v7663 = vcombine.high %v7651, %v7651
        %v7664 = vcombine.high %v7652, %v7652
        %7665 = vrot.lane.b32.xlu0 %v7649, 46
        %v7666 = vpop.permute.xlu0 %7665
        %7667 = vrot.lane.b32.xlu0 %v7661, 46
        %v7668 = vpop.permute.xlu0 %7667
        %7669 = vrot.lane.b32.xlu0 %v7650, 46
        %v7670 = vpop.permute.xlu0 %7669
        %7671 = vrot.lane.b32.xlu0 %v7662, 46
        %v7672 = vpop.permute.xlu0 %7671
        %7673 = vrot.lane.b32.xlu0 %v7651, 46
        %v7674 = vpop.permute.xlu0 %7673
        %7675 = vrot.lane.b32.xlu0 %v7663, 46
        %v7676 = vpop.permute.xlu0 %7675
        %7677 = vrot.lane.b32.xlu0 %v7652, 46
        %v7678 = vpop.permute.xlu0 %7677
        %7679 = vrot.lane.b32.xlu0 %v7664, 46
        %v7680 = vpop.permute.xlu0 %7679
        %7681 = vrot.lane.b32.xlu0 %v7653, 46
        %v7682 = vpop.permute.xlu0 %7681
        %vm7683 = vcmask 375808
        %v7684 = vsel %vm7683, %v7666, %v7668
        %v7685 = vsel %vm7683, %v7668, %v7670
        %v7686 = vsel %vm7683, %v7670, %v7672
        %v7687 = vsel %vm7683, %v7672, %v7674
        %v7688 = vsel %vm7683, %v7674, %v7676
        %v7689 = vsel %vm7683, %v7676, %v7678
        %v7690 = vsel %vm7683, %v7678, %v7680
        %v7691 = vsel %vm7683, %v7680, %v7682
        %v7693 = vsel %vm315, %v7655, 0
        %v7695 = vsel %vm319, %v7684, 0
        %v7697 = vsel %vm319, %v7685, 0
        %v7699 = vsel %vm319, %v7686, 0
        %v7701 = vsel %vm319, %v7687, 0
        %v7703 = vsel %vm319, %v7688, 0
        %v7705 = vsel %vm319, %v7689, 0
        %v7707 = vsel %vm319, %v7690, 0
        %v7709 = vsel %vm319, %v7691, 0
        %7711 = vmatprep.subr.mxu0 %v7697
        %7712 = vmatpush1.msra.mxu0 %v7695
        %7713 = vmatprep.subr.mxu0 0.0
        %7714 = vmatpush1.msra.mxu0 0.0
        %7715 = vmatprep.subr.mxu0 0.0
        %7716 = vmatpush1.msra.mxu0 0.0
        %7717 = vmatprep.subr.mxu0 0.0
        %7718 = vmatpush1.msra.mxu0 0.0
        %7719 = vmatprep.subr.mxu0 0.0
        %7720 = vmatpush1.msra.mxu0 0.0
        %7721 = vmatprep.subr.mxu0 0.0
        %7722 = vmatpush1.msra.mxu0 0.0
        %7723 = vmatprep.subr.mxu0 0.0
        %7724 = vmatpush1.msra.mxu0 0.0
        %7725 = vmatprep.subr.mxu0 0.0
        %7726 = vmatpush1.msra.mxu0 0.0
        %7727 = vmatprep.subr.mxu0 0.0
        %7728 = vmatpush1.msra.mxu0 0.0
        %7729 = vmatprep.subr.mxu0 0.0
        %7730 = vmatpush1.msra.mxu0 0.0
        %7731 = vmatprep.subr.mxu0 0.0
        %7732 = vmatpush1.msra.mxu0 0.0
        %7733 = vmatprep.subr.mxu0 0.0
        %7734 = vmatpush1.msra.mxu0 0.0
        %7735 = vmatprep.subr.mxu0 0.0
        %7736 = vmatpush1.msra.mxu0 0.0
        %7737 = vmatprep.subr.mxu0 0.0
        %7738 = vmatpush1.msra.mxu0 0.0
        %7739 = vmatprep.subr.mxu0 0.0
        %7740 = vmatpush1.msra.mxu0 0.0
        %7741 = vmatprep.subr.mxu0 0.0
        %7742 = vmatpush1.msra.mxu0 0.0
        %7743 = vmatprep.subr.mxu0 0.0
        %7744 = vmatpush1.msra.mxu0 0.0
        %7745 = vmatprep.subr.mxu0 0.0
        %7746 = vmatpush1.msra.mxu0 0.0
        %7747 = vmatprep.subr.mxu0 0.0
        %7748 = vmatpush1.msra.mxu0 0.0
        %7749 = vmatprep.subr.mxu0 0.0
        %7750 = vmatpush1.msra.mxu0 0.0
        %7751 = vmatprep.subr.mxu0 0.0
        %7752 = vmatpush1.msra.mxu0 0.0
        %7753 = vmatprep.subr.mxu0 0.0
        %7754 = vmatpush1.msra.mxu0 0.0
        %7755 = vmatprep.subr.mxu0 0.0
        %7756 = vmatpush1.msra.mxu0 0.0
        %7757 = vmatprep.subr.mxu0 0.0
        %7758 = vmatpush1.msra.mxu0 0.0
        %7759 = vmatprep.subr.mxu0 0.0
        %7760 = vmatpush1.msra.mxu0 0.0
        %7761 = vmatprep.subr.mxu0 0.0
        %7762 = vmatpush1.msra.mxu0 0.0
        %7763 = vmatprep.subr.mxu0 0.0
        %7764 = vmatpush1.msra.mxu0 0.0
        %7765 = vmatprep.subr.mxu0 0.0
        %7766 = vmatpush1.msra.mxu0 0.0
        %7767 = vmatprep.subr.mxu0 0.0
        %7768 = vmatpush1.msra.mxu0 0.0
        %7769 = vmatprep.subr.mxu0 0.0
        %7770 = vmatpush1.msra.mxu0 0.0
        %7771 = vmatprep.subr.mxu0 0.0
        %7772 = vmatpush1.msra.mxu0 0.0
        %7773 = vmatprep.subr.mxu0 0.0
        %7774 = vmatpush1.msra.mxu0 0.0
        %7775 = vmatprep.mubr.f32.mxu0 0.0
        %7776 = vmatmul.mubr.f32.gmra.mrb[0].mxu0 %v7693
        %v7777 = vpop.f32.mrb[0].mxu0
        %v7778 = vadd.f32 0.0, %v7777
        %v7779 = vpop.f32.mrb[0].mxu0
        %v7780 = vadd.f32 0.0, %v7779
        %7781 = vdwg.mxu0
        %7782 = vmatprep.subr.mxu0 %v7701
        %7783 = vmatpush1.msra.mxu0 %v7699
        %7784 = vmatprep.subr.mxu0 0.0
        %7785 = vmatpush1.msra.mxu0 0.0
        %7786 = vmatprep.subr.mxu0 0.0
        %7787 = vmatpush1.msra.mxu0 0.0
        %7788 = vmatprep.subr.mxu0 0.0
        %7789 = vmatpush1.msra.mxu0 0.0
        %7790 = vmatprep.subr.mxu0 0.0
        %7791 = vmatpush1.msra.mxu0 0.0
        %7792 = vmatprep.subr.mxu0 0.0
        %7793 = vmatpush1.msra.mxu0 0.0
        %7794 = vmatprep.subr.mxu0 0.0
        %7795 = vmatpush1.msra.mxu0 0.0
        %7796 = vmatprep.subr.mxu0 0.0
        %7797 = vmatpush1.msra.mxu0 0.0
        %7798 = vmatprep.subr.mxu0 0.0
        %7799 = vmatpush1.msra.mxu0 0.0
        %7800 = vmatprep.subr.mxu0 0.0
        %7801 = vmatpush1.msra.mxu0 0.0
        %7802 = vmatprep.subr.mxu0 0.0
        %7803 = vmatpush1.msra.mxu0 0.0
        %7804 = vmatprep.subr.mxu0 0.0
        %7805 = vmatpush1.msra.mxu0 0.0
        %7806 = vmatprep.subr.mxu0 0.0
        %7807 = vmatpush1.msra.mxu0 0.0
        %7808 = vmatprep.subr.mxu0 0.0
        %7809 = vmatpush1.msra.mxu0 0.0
        %7810 = vmatprep.subr.mxu0 0.0
        %7811 = vmatpush1.msra.mxu0 0.0
        %7812 = vmatprep.subr.mxu0 0.0
        %7813 = vmatpush1.msra.mxu0 0.0
        %7814 = vmatprep.subr.mxu0 0.0
        %7815 = vmatpush1.msra.mxu0 0.0
        %7816 = vmatprep.subr.mxu0 0.0
        %7817 = vmatpush1.msra.mxu0 0.0
        %7818 = vmatprep.subr.mxu0 0.0
        %7819 = vmatpush1.msra.mxu0 0.0
        %7820 = vmatprep.subr.mxu0 0.0
        %7821 = vmatpush1.msra.mxu0 0.0
        %7822 = vmatprep.subr.mxu0 0.0
        %7823 = vmatpush1.msra.mxu0 0.0
        %7824 = vmatprep.subr.mxu0 0.0
        %7825 = vmatpush1.msra.mxu0 0.0
        %7826 = vmatprep.subr.mxu0 0.0
        %7827 = vmatpush1.msra.mxu0 0.0
        %7828 = vmatprep.subr.mxu0 0.0
        %7829 = vmatpush1.msra.mxu0 0.0
        %7830 = vmatprep.subr.mxu0 0.0
        %7831 = vmatpush1.msra.mxu0 0.0
        %7832 = vmatprep.subr.mxu0 0.0
        %7833 = vmatpush1.msra.mxu0 0.0
        %7834 = vmatprep.subr.mxu0 0.0
        %7835 = vmatpush1.msra.mxu0 0.0
        %7836 = vmatprep.subr.mxu0 0.0
        %7837 = vmatpush1.msra.mxu0 0.0
        %7838 = vmatprep.subr.mxu0 0.0
        %7839 = vmatpush1.msra.mxu0 0.0
        %7840 = vmatprep.subr.mxu0 0.0
        %7841 = vmatpush1.msra.mxu0 0.0
        %7842 = vmatprep.subr.mxu0 0.0
        %7843 = vmatpush1.msra.mxu0 0.0
        %7844 = vmatprep.subr.mxu0 0.0
        %7845 = vmatpush1.msra.mxu0 0.0
        %7846 = vmatprep.mubr.f32.mxu0 0.0
        %7847 = vmatmul.mubr.f32.gmra.mrb[0].mxu0 %v7693
        %v7848 = vpop.f32.mrb[0].mxu0
        %v7849 = vadd.f32 0.0, %v7848
        %v7850 = vpop.f32.mrb[0].mxu0
        %v7851 = vadd.f32 0.0, %v7850
        %7852 = vdwg.mxu0
        %7853 = vmatprep.subr.mxu0 %v7705
        %7854 = vmatpush1.msra.mxu0 %v7703
        %7855 = vmatprep.subr.mxu0 0.0
        %7856 = vmatpush1.msra.mxu0 0.0
        %7857 = vmatprep.subr.mxu0 0.0
        %7858 = vmatpush1.msra.mxu0 0.0
        %7859 = vmatprep.subr.mxu0 0.0
        %7860 = vmatpush1.msra.mxu0 0.0
        %7861 = vmatprep.subr.mxu0 0.0
        %7862 = vmatpush1.msra.mxu0 0.0
        %7863 = vmatprep.subr.mxu0 0.0
        %7864 = vmatpush1.msra.mxu0 0.0
        %7865 = vmatprep.subr.mxu0 0.0
        %7866 = vmatpush1.msra.mxu0 0.0
        %7867 = vmatprep.subr.mxu0 0.0
        %7868 = vmatpush1.msra.mxu0 0.0
        %7869 = vmatprep.subr.mxu0 0.0
        %7870 = vmatpush1.msra.mxu0 0.0
        %7871 = vmatprep.subr.mxu0 0.0
        %7872 = vmatpush1.msra.mxu0 0.0
        %7873 = vmatprep.subr.mxu0 0.0
        %7874 = vmatpush1.msra.mxu0 0.0
        %7875 = vmatprep.subr.mxu0 0.0
        %7876 = vmatpush1.msra.mxu0 0.0
        %7877 = vmatprep.subr.mxu0 0.0
        %7878 = vmatpush1.msra.mxu0 0.0
        %7879 = vmatprep.subr.mxu0 0.0
        %7880 = vmatpush1.msra.mxu0 0.0
        %7881 = vmatprep.subr.mxu0 0.0
        %7882 = vmatpush1.msra.mxu0 0.0
        %7883 = vmatprep.subr.mxu0 0.0
        %7884 = vmatpush1.msra.mxu0 0.0
        %7885 = vmatprep.subr.mxu0 0.0
        %7886 = vmatpush1.msra.mxu0 0.0
        %7887 = vmatprep.subr.mxu0 0.0
        %7888 = vmatpush1.msra.mxu0 0.0
        %7889 = vmatprep.subr.mxu0 0.0
        %7890 = vmatpush1.msra.mxu0 0.0
        %7891 = vmatprep.subr.mxu0 0.0
        %7892 = vmatpush1.msra.mxu0 0.0
        %7893 = vmatprep.subr.mxu0 0.0
        %7894 = vmatpush1.msra.mxu0 0.0
        %7895 = vmatprep.subr.mxu0 0.0
        %7896 = vmatpush1.msra.mxu0 0.0
        %7897 = vmatprep.subr.mxu0 0.0
        %7898 = vmatpush1.msra.mxu0 0.0
        %7899 = vmatprep.subr.mxu0 0.0
        %7900 = vmatpush1.msra.mxu0 0.0
        %7901 = vmatprep.subr.mxu0 0.0
        %7902 = vmatpush1.msra.mxu0 0.0
        %7903 = vmatprep.subr.mxu0 0.0
        %7904 = vmatpush1.msra.mxu0 0.0
        %7905 = vmatprep.subr.mxu0 0.0
        %7906 = vmatpush1.msra.mxu0 0.0
        %7907 = vmatprep.subr.mxu0 0.0
        %7908 = vmatpush1.msra.mxu0 0.0
        %7909 = vmatprep.subr.mxu0 0.0
        %7910 = vmatpush1.msra.mxu0 0.0
        %7911 = vmatprep.subr.mxu0 0.0
        %7912 = vmatpush1.msra.mxu0 0.0
        %7913 = vmatprep.subr.mxu0 0.0
        %7914 = vmatpush1.msra.mxu0 0.0
        %7915 = vmatprep.subr.mxu0 0.0
        %7916 = vmatpush1.msra.mxu0 0.0
        %7917 = vmatprep.mubr.f32.mxu0 0.0
        %7918 = vmatmul.mubr.f32.gmra.mrb[0].mxu0 %v7693
        %v7919 = vpop.f32.mrb[0].mxu0
        %v7920 = vadd.f32 0.0, %v7919
        %v7921 = vpop.f32.mrb[0].mxu0
        %v7922 = vadd.f32 0.0, %v7921
        %7923 = vdwg.mxu0
        %7924 = vmatprep.subr.mxu0 %v7709
        %7925 = vmatpush1.msra.mxu0 %v7707
        %7926 = vmatprep.subr.mxu0 0.0
        %7927 = vmatpush1.msra.mxu0 0.0
        %7928 = vmatprep.subr.mxu0 0.0
        %7929 = vmatpush1.msra.mxu0 0.0
        %7930 = vmatprep.subr.mxu0 0.0
        %7931 = vmatpush1.msra.mxu0 0.0
        %7932 = vmatprep.subr.mxu0 0.0
        %7933 = vmatpush1.msra.mxu0 0.0
        %7934 = vmatprep.subr.mxu0 0.0
        %7935 = vmatpush1.msra.mxu0 0.0
        %7936 = vmatprep.subr.mxu0 0.0
        %7937 = vmatpush1.msra.mxu0 0.0
        %7938 = vmatprep.subr.mxu0 0.0
        %7939 = vmatpush1.msra.mxu0 0.0
        %7940 = vmatprep.subr.mxu0 0.0
        %7941 = vmatpush1.msra.mxu0 0.0
        %7942 = vmatprep.subr.mxu0 0.0
        %7943 = vmatpush1.msra.mxu0 0.0
        %7944 = vmatprep.subr.mxu0 0.0
        %7945 = vmatpush1.msra.mxu0 0.0
        %7946 = vmatprep.subr.mxu0 0.0
        %7947 = vmatpush1.msra.mxu0 0.0
        %7948 = vmatprep.subr.mxu0 0.0
        %7949 = vmatpush1.msra.mxu0 0.0
        %7950 = vmatprep.subr.mxu0 0.0
        %7951 = vmatpush1.msra.mxu0 0.0
        %7952 = vmatprep.subr.mxu0 0.0
        %7953 = vmatpush1.msra.mxu0 0.0
        %7954 = vmatprep.subr.mxu0 0.0
        %7955 = vmatpush1.msra.mxu0 0.0
        %7956 = vmatprep.subr.mxu0 0.0
        %7957 = vmatpush1.msra.mxu0 0.0
        %7958 = vmatprep.subr.mxu0 0.0
        %7959 = vmatpush1.msra.mxu0 0.0
        %7960 = vmatprep.subr.mxu0 0.0
        %7961 = vmatpush1.msra.mxu0 0.0
        %7962 = vmatprep.subr.mxu0 0.0
        %7963 = vmatpush1.msra.mxu0 0.0
        %7964 = vmatprep.subr.mxu0 0.0
        %7965 = vmatpush1.msra.mxu0 0.0
        %7966 = vmatprep.subr.mxu0 0.0
        %7967 = vmatpush1.msra.mxu0 0.0
        %7968 = vmatprep.subr.mxu0 0.0
        %7969 = vmatpush1.msra.mxu0 0.0
        %7970 = vmatprep.subr.mxu0 0.0
        %7971 = vmatpush1.msra.mxu0 0.0
        %7972 = vmatprep.subr.mxu0 0.0
        %7973 = vmatpush1.msra.mxu0 0.0
        %7974 = vmatprep.subr.mxu0 0.0
        %7975 = vmatpush1.msra.mxu0 0.0
        %7976 = vmatprep.subr.mxu0 0.0
        %7977 = vmatpush1.msra.mxu0 0.0
        %7978 = vmatprep.subr.mxu0 0.0
        %7979 = vmatpush1.msra.mxu0 0.0
        %7980 = vmatprep.subr.mxu0 0.0
        %7981 = vmatpush1.msra.mxu0 0.0
        %7982 = vmatprep.subr.mxu0 0.0
        %7983 = vmatpush1.msra.mxu0 0.0
        %7984 = vmatprep.subr.mxu0 0.0
        %7985 = vmatpush1.msra.mxu0 0.0
        %7986 = vmatprep.subr.mxu0 0.0
        %7987 = vmatpush1.msra.mxu0 0.0
        %7988 = vmatprep.mubr.f32.mxu0 0.0
        %7989 = vmatmul.mubr.f32.gmra.mrb[0].mxu0 %v7693
        %v7990 = vpop.f32.mrb[0].mxu0
        %v7991 = vadd.f32 0.0, %v7990
        %v7992 = vpop.f32.mrb[0].mxu0
        %v7993 = vadd.f32 0.0, %v7992
        %7994 = vdwg.mxu0
        %v7995 = vadd.f32 %v7641, %v7778
        %v7996 = vadd.f32 %v7642, %v7780
        %v7997 = vadd.f32 %v7643, %v7849
        %v7998 = vadd.f32 %v7644, %v7851
        %v7999 = vadd.f32 %v7645, %v7920
        %v8000 = vadd.f32 %v7646, %v7922
        %v8001 = vadd.f32 %v7647, %v7991
        %v8002 = vadd.f32 %v7648, %v7993
        %v8003 = vld [vmem:[%s262 + $0x4] sm:$0xff]
        %v8004 = vld [vmem:[%s262 + $0xc] sm:$0xff]
        %v8005 = vld [vmem:[%s262 + $0x14] sm:$0xff]
        %v8006 = vld [vmem:[%s262 + $0x1c] sm:$0xff]
        %v8007 = vld [vmem:[%s262 + $0x24] sm:$0xf]
        %s8008 = scalar_lea.vmem %s1, 176
        %v8009 = vld [vmem:[%s8008] sm:$0xff]
        %v8015 = vcombine.high %v8003, %v8003
        %v8016 = vcombine.high %v8004, %v8004
        %v8017 = vcombine.high %v8005, %v8005
        %v8018 = vcombine.high %v8006, %v8006
        %8019 = vrot.lane.b32.xlu0 %v8003, 45
        %v8020 = vpop.permute.xlu0 %8019
        %8021 = vrot.lane.b32.xlu0 %v8015, 45
        %v8022 = vpop.permute.xlu0 %8021
        %8023 = vrot.lane.b32.xlu0 %v8004, 45
        %v8024 = vpop.permute.xlu0 %8023
        %8025 = vrot.lane.b32.xlu0 %v8016, 45
        %v8026 = vpop.permute.xlu0 %8025
        %8027 = vrot.lane.b32.xlu0 %v8005, 45
        %v8028 = vpop.permute.xlu0 %8027
        %8029 = vrot.lane.b32.xlu0 %v8017, 45
        %v8030 = vpop.permute.xlu0 %8029
        %8031 = vrot.lane.b32.xlu0 %v8006, 45
        %v8032 = vpop.permute.xlu0 %8031
        %8033 = vrot.lane.b32.xlu0 %v8018, 45
        %v8034 = vpop.permute.xlu0 %8033
        %8035 = vrot.lane.b32.xlu0 %v8007, 45
        %v8036 = vpop.permute.xlu0 %8035
        %vm8037 = vcmask 367616
        %v8038 = vsel %vm8037, %v8020, %v8022
        %v8039 = vsel %vm8037, %v8022, %v8024
        %v8040 = vsel %vm8037, %v8024, %v8026
        %v8041 = vsel %vm8037, %v8026, %v8028
        %v8042 = vsel %vm8037, %v8028, %v8030
        %v8043 = vsel %vm8037, %v8030, %v8032
        %v8044 = vsel %vm8037, %v8032, %v8034
        %v8045 = vsel %vm8037, %v8034, %v8036
        %v8047 = vsel %vm315, %v8009, 0
        %v8049 = vsel %vm319, %v8038, 0
        %v8051 = vsel %vm319, %v8039, 0
        %v8053 = vsel %vm319, %v8040, 0
        %v8055 = vsel %vm319, %v8041, 0
        %v8057 = vsel %vm319, %v8042, 0
        %v8059 = vsel %vm319, %v8043, 0
        %v8061 = vsel %vm319, %v8044, 0
        %v8063 = vsel %vm319, %v8045, 0
        %8065 = vmatprep.subr.mxu0 %v8051
        %8066 = vmatpush1.msra.mxu0 %v8049
        %8067 = vmatprep.subr.mxu0 0.0
        %8068 = vmatpush1.msra.mxu0 0.0
        %8069 = vmatprep.subr.mxu0 0.0
        %8070 = vmatpush1.msra.mxu0 0.0
        %8071 = vmatprep.subr.mxu0 0.0
        %8072 = vmatpush1.msra.mxu0 0.0
        %8073 = vmatprep.subr.mxu0 0.0
        %8074 = vmatpush1.msra.mxu0 0.0
        %8075 = vmatprep.subr.mxu0 0.0
        %8076 = vmatpush1.msra.mxu0 0.0
        %8077 = vmatprep.subr.mxu0 0.0
        %8078 = vmatpush1.msra.mxu0 0.0
        %8079 = vmatprep.subr.mxu0 0.0
        %8080 = vmatpush1.msra.mxu0 0.0
        %8081 = vmatprep.subr.mxu0 0.0
        %8082 = vmatpush1.msra.mxu0 0.0
        %8083 = vmatprep.subr.mxu0 0.0
        %8084 = vmatpush1.msra.mxu0 0.0
        %8085 = vmatprep.subr.mxu0 0.0
        %8086 = vmatpush1.msra.mxu0 0.0
        %8087 = vmatprep.subr.mxu0 0.0
        %8088 = vmatpush1.msra.mxu0 0.0
        %8089 = vmatprep.subr.mxu0 0.0
        %8090 = vmatpush1.msra.mxu0 0.0
        %8091 = vmatprep.subr.mxu0 0.0
        %8092 = vmatpush1.msra.mxu0 0.0
        %8093 = vmatprep.subr.mxu0 0.0
        %8094 = vmatpush1.msra.mxu0 0.0
        %8095 = vmatprep.subr.mxu0 0.0
        %8096 = vmatpush1.msra.mxu0 0.0
        %8097 = vmatprep.subr.mxu0 0.0
        %8098 = vmatpush1.msra.mxu0 0.0
        %8099 = vmatprep.subr.mxu0 0.0
        %8100 = vmatpush1.msra.mxu0 0.0
        %8101 = vmatprep.subr.mxu0 0.0
        %8102 = vmatpush1.msra.mxu0 0.0
        %8103 = vmatprep.subr.mxu0 0.0
        %8104 = vmatpush1.msra.mxu0 0.0
        %8105 = vmatprep.subr.mxu0 0.0
        %8106 = vmatpush1.msra.mxu0 0.0
        %8107 = vmatprep.subr.mxu0 0.0
        %8108 = vmatpush1.msra.mxu0 0.0
        %8109 = vmatprep.subr.mxu0 0.0
        %8110 = vmatpush1.msra.mxu0 0.0
        %8111 = vmatprep.subr.mxu0 0.0
        %8112 = vmatpush1.msra.mxu0 0.0
        %8113 = vmatprep.subr.mxu0 0.0
        %8114 = vmatpush1.msra.mxu0 0.0
        %8115 = vmatprep.subr.mxu0 0.0
        %8116 = vmatpush1.msra.mxu0 0.0
        %8117 = vmatprep.subr.mxu0 0.0
        %8118 = vmatpush1.msra.mxu0 0.0
        %8119 = vmatprep.subr.mxu0 0.0
        %8120 = vmatpush1.msra.mxu0 0.0
        %8121 = vmatprep.subr.mxu0 0.0
        %8122 = vmatpush1.msra.mxu0 0.0
        %8123 = vmatprep.subr.mxu0 0.0
        %8124 = vmatpush1.msra.mxu0 0.0
        %8125 = vmatprep.subr.mxu0 0.0
        %8126 = vmatpush1.msra.mxu0 0.0
        %8127 = vmatprep.subr.mxu0 0.0
        %8128 = vmatpush1.msra.mxu0 0.0
        %8129 = vmatprep.mubr.f32.mxu0 0.0
        %8130 = vmatmul.mubr.f32.gmra.mrb[0].mxu0 %v8047
        %v8131 = vpop.f32.mrb[0].mxu0
        %v8132 = vadd.f32 0.0, %v8131
        %v8133 = vpop.f32.mrb[0].mxu0
        %v8134 = vadd.f32 0.0, %v8133
        %8135 = vdwg.mxu0
        %8136 = vmatprep.subr.mxu0 %v8055
        %8137 = vmatpush1.msra.mxu0 %v8053
        %8138 = vmatprep.subr.mxu0 0.0
        %8139 = vmatpush1.msra.mxu0 0.0
        %8140 = vmatprep.subr.mxu0 0.0
        %8141 = vmatpush1.msra.mxu0 0.0
        %8142 = vmatprep.subr.mxu0 0.0
        %8143 = vmatpush1.msra.mxu0 0.0
        %8144 = vmatprep.subr.mxu0 0.0
        %8145 = vmatpush1.msra.mxu0 0.0
        %8146 = vmatprep.subr.mxu0 0.0
        %8147 = vmatpush1.msra.mxu0 0.0
        %8148 = vmatprep.subr.mxu0 0.0
        %8149 = vmatpush1.msra.mxu0 0.0
        %8150 = vmatprep.subr.mxu0 0.0
        %8151 = vmatpush1.msra.mxu0 0.0
        %8152 = vmatprep.subr.mxu0 0.0
        %8153 = vmatpush1.msra.mxu0 0.0
        %8154 = vmatprep.subr.mxu0 0.0
        %8155 = vmatpush1.msra.mxu0 0.0
        %8156 = vmatprep.subr.mxu0 0.0
        %8157 = vmatpush1.msra.mxu0 0.0
        %8158 = vmatprep.subr.mxu0 0.0
        %8159 = vmatpush1.msra.mxu0 0.0
        %8160 = vmatprep.subr.mxu0 0.0
        %8161 = vmatpush1.msra.mxu0 0.0
        %8162 = vmatprep.subr.mxu0 0.0
        %8163 = vmatpush1.msra.mxu0 0.0
        %8164 = vmatprep.subr.mxu0 0.0
        %8165 = vmatpush1.msra.mxu0 0.0
        %8166 = vmatprep.subr.mxu0 0.0
        %8167 = vmatpush1.msra.mxu0 0.0
        %8168 = vmatprep.subr.mxu0 0.0
        %8169 = vmatpush1.msra.mxu0 0.0
        %8170 = vmatprep.subr.mxu0 0.0
        %8171 = vmatpush1.msra.mxu0 0.0
        %8172 = vmatprep.subr.mxu0 0.0
        %8173 = vmatpush1.msra.mxu0 0.0
        %8174 = vmatprep.subr.mxu0 0.0
        %8175 = vmatpush1.msra.mxu0 0.0
        %8176 = vmatprep.subr.mxu0 0.0
        %8177 = vmatpush1.msra.mxu0 0.0
        %8178 = vmatprep.subr.mxu0 0.0
        %8179 = vmatpush1.msra.mxu0 0.0
        %8180 = vmatprep.subr.mxu0 0.0
        %8181 = vmatpush1.msra.mxu0 0.0
        %8182 = vmatprep.subr.mxu0 0.0
        %8183 = vmatpush1.msra.mxu0 0.0
        %8184 = vmatprep.subr.mxu0 0.0
        %8185 = vmatpush1.msra.mxu0 0.0
        %8186 = vmatprep.subr.mxu0 0.0
        %8187 = vmatpush1.msra.mxu0 0.0
        %8188 = vmatprep.subr.mxu0 0.0
        %8189 = vmatpush1.msra.mxu0 0.0
        %8190 = vmatprep.subr.mxu0 0.0
        %8191 = vmatpush1.msra.mxu0 0.0
        %8192 = vmatprep.subr.mxu0 0.0
        %8193 = vmatpush1.msra.mxu0 0.0
        %8194 = vmatprep.subr.mxu0 0.0
        %8195 = vmatpush1.msra.mxu0 0.0
        %8196 = vmatprep.subr.mxu0 0.0
        %8197 = vmatpush1.msra.mxu0 0.0
        %8198 = vmatprep.subr.mxu0 0.0
        %8199 = vmatpush1.msra.mxu0 0.0
        %8200 = vmatprep.mubr.f32.mxu0 0.0
        %8201 = vmatmul.mubr.f32.gmra.mrb[0].mxu0 %v8047
        %v8202 = vpop.f32.mrb[0].mxu0
        %v8203 = vadd.f32 0.0, %v8202
        %v8204 = vpop.f32.mrb[0].mxu0
        %v8205 = vadd.f32 0.0, %v8204
        %8206 = vdwg.mxu0
        %8207 = vmatprep.subr.mxu0 %v8059
        %8208 = vmatpush1.msra.mxu0 %v8057
        %8209 = vmatprep.subr.mxu0 0.0
        %8210 = vmatpush1.msra.mxu0 0.0
        %8211 = vmatprep.subr.mxu0 0.0
        %8212 = vmatpush1.msra.mxu0 0.0
        %8213 = vmatprep.subr.mxu0 0.0
        %8214 = vmatpush1.msra.mxu0 0.0
        %8215 = vmatprep.subr.mxu0 0.0
        %8216 = vmatpush1.msra.mxu0 0.0
        %8217 = vmatprep.subr.mxu0 0.0
        %8218 = vmatpush1.msra.mxu0 0.0
        %8219 = vmatprep.subr.mxu0 0.0
        %8220 = vmatpush1.msra.mxu0 0.0
        %8221 = vmatprep.subr.mxu0 0.0
        %8222 = vmatpush1.msra.mxu0 0.0
        %8223 = vmatprep.subr.mxu0 0.0
        %8224 = vmatpush1.msra.mxu0 0.0
        %8225 = vmatprep.subr.mxu0 0.0
        %8226 = vmatpush1.msra.mxu0 0.0
        %8227 = vmatprep.subr.mxu0 0.0
        %8228 = vmatpush1.msra.mxu0 0.0
        %8229 = vmatprep.subr.mxu0 0.0
        %8230 = vmatpush1.msra.mxu0 0.0
        %8231 = vmatprep.subr.mxu0 0.0
        %8232 = vmatpush1.msra.mxu0 0.0
        %8233 = vmatprep.subr.mxu0 0.0
        %8234 = vmatpush1.msra.mxu0 0.0
        %8235 = vmatprep.subr.mxu0 0.0
        %8236 = vmatpush1.msra.mxu0 0.0
        %8237 = vmatprep.subr.mxu0 0.0
        %8238 = vmatpush1.msra.mxu0 0.0
        %8239 = vmatprep.subr.mxu0 0.0
        %8240 = vmatpush1.msra.mxu0 0.0
        %8241 = vmatprep.subr.mxu0 0.0
        %8242 = vmatpush1.msra.mxu0 0.0
        %8243 = vmatprep.subr.mxu0 0.0
        %8244 = vmatpush1.msra.mxu0 0.0
        %8245 = vmatprep.subr.mxu0 0.0
        %8246 = vmatpush1.msra.mxu0 0.0
        %8247 = vmatprep.subr.mxu0 0.0
        %8248 = vmatpush1.msra.mxu0 0.0
        %8249 = vmatprep.subr.mxu0 0.0
        %8250 = vmatpush1.msra.mxu0 0.0
        %8251 = vmatprep.subr.mxu0 0.0
        %8252 = vmatpush1.msra.mxu0 0.0
        %8253 = vmatprep.subr.mxu0 0.0
        %8254 = vmatpush1.msra.mxu0 0.0
        %8255 = vmatprep.subr.mxu0 0.0
        %8256 = vmatpush1.msra.mxu0 0.0
        %8257 = vmatprep.subr.mxu0 0.0
        %8258 = vmatpush1.msra.mxu0 0.0
        %8259 = vmatprep.subr.mxu0 0.0
        %8260 = vmatpush1.msra.mxu0 0.0
        %8261 = vmatprep.subr.mxu0 0.0
        %8262 = vmatpush1.msra.mxu0 0.0
        %8263 = vmatprep.subr.mxu0 0.0
        %8264 = vmatpush1.msra.mxu0 0.0
        %8265 = vmatprep.subr.mxu0 0.0
        %8266 = vmatpush1.msra.mxu0 0.0
        %8267 = vmatprep.subr.mxu0 0.0
        %8268 = vmatpush1.msra.mxu0 0.0
        %8269 = vmatprep.subr.mxu0 0.0
        %8270 = vmatpush1.msra.mxu0 0.0
        %8271 = vmatprep.mubr.f32.mxu0 0.0
        %8272 = vmatmul.mubr.f32.gmra.mrb[0].mxu0 %v8047
        %v8273 = vpop.f32.mrb[0].mxu0
        %v8274 = vadd.f32 0.0, %v8273
        %v8275 = vpop.f32.mrb[0].mxu0
        %v8276 = vadd.f32 0.0, %v8275
        %8277 = vdwg.mxu0
        %8278 = vmatprep.subr.mxu0 %v8063
        %8279 = vmatpush1.msra.mxu0 %v8061
        %8280 = vmatprep.subr.mxu0 0.0
        %8281 = vmatpush1.msra.mxu0 0.0
        %8282 = vmatprep.subr.mxu0 0.0
        %8283 = vmatpush1.msra.mxu0 0.0
        %8284 = vmatprep.subr.mxu0 0.0
        %8285 = vmatpush1.msra.mxu0 0.0
        %8286 = vmatprep.subr.mxu0 0.0
        %8287 = vmatpush1.msra.mxu0 0.0
        %8288 = vmatprep.subr.mxu0 0.0
        %8289 = vmatpush1.msra.mxu0 0.0
        %8290 = vmatprep.subr.mxu0 0.0
        %8291 = vmatpush1.msra.mxu0 0.0
        %8292 = vmatprep.subr.mxu0 0.0
        %8293 = vmatpush1.msra.mxu0 0.0
        %8294 = vmatprep.subr.mxu0 0.0
        %8295 = vmatpush1.msra.mxu0 0.0
        %8296 = vmatprep.subr.mxu0 0.0
        %8297 = vmatpush1.msra.mxu0 0.0
        %8298 = vmatprep.subr.mxu0 0.0
        %8299 = vmatpush1.msra.mxu0 0.0
        %8300 = vmatprep.subr.mxu0 0.0
        %8301 = vmatpush1.msra.mxu0 0.0
        %8302 = vmatprep.subr.mxu0 0.0
        %8303 = vmatpush1.msra.mxu0 0.0
        %8304 = vmatprep.subr.mxu0 0.0
        %8305 = vmatpush1.msra.mxu0 0.0
        %8306 = vmatprep.subr.mxu0 0.0
        %8307 = vmatpush1.msra.mxu0 0.0
        %8308 = vmatprep.subr.mxu0 0.0
        %8309 = vmatpush1.msra.mxu0 0.0
        %8310 = vmatprep.subr.mxu0 0.0
        %8311 = vmatpush1.msra.mxu0 0.0
        %8312 = vmatprep.subr.mxu0 0.0
        %8313 = vmatpush1.msra.mxu0 0.0
        %8314 = vmatprep.subr.mxu0 0.0
        %8315 = vmatpush1.msra.mxu0 0.0
        %8316 = vmatprep.subr.mxu0 0.0
        %8317 = vmatpush1.msra.mxu0 0.0
        %8318 = vmatprep.subr.mxu0 0.0
        %8319 = vmatpush1.msra.mxu0 0.0
        %8320 = vmatprep.subr.mxu0 0.0
        %8321 = vmatpush1.msra.mxu0 0.0
        %8322 = vmatprep.subr.mxu0 0.0
        %8323 = vmatpush1.msra.mxu0 0.0
        %8324 = vmatprep.subr.mxu0 0.0
        %8325 = vmatpush1.msra.mxu0 0.0
        %8326 = vmatprep.subr.mxu0 0.0
        %8327 = vmatpush1.msra.mxu0 0.0
        %8328 = vmatprep.subr.mxu0 0.0
        %8329 = vmatpush1.msra.mxu0 0.0
        %8330 = vmatprep.subr.mxu0 0.0
        %8331 = vmatpush1.msra.mxu0 0.0
        %8332 = vmatprep.subr.mxu0 0.0
        %8333 = vmatpush1.msra.mxu0 0.0
        %8334 = vmatprep.subr.mxu0 0.0
        %8335 = vmatpush1.msra.mxu0 0.0
        %8336 = vmatprep.subr.mxu0 0.0
        %8337 = vmatpush1.msra.mxu0 0.0
        %8338 = vmatprep.subr.mxu0 0.0
        %8339 = vmatpush1.msra.mxu0 0.0
        %8340 = vmatprep.subr.mxu0 0.0
        %8341 = vmatpush1.msra.mxu0 0.0
        %8342 = vmatprep.mubr.f32.mxu0 0.0
        %8343 = vmatmul.mubr.f32.gmra.mrb[0].mxu0 %v8047
        %v8344 = vpop.f32.mrb[0].mxu0
        %v8345 = vadd.f32 0.0, %v8344
        %v8346 = vpop.f32.mrb[0].mxu0
        %v8347 = vadd.f32 0.0, %v8346
        %8348 = vdwg.mxu0
        %v8349 = vadd.f32 %v7995, %v8132
        %v8350 = vadd.f32 %v7996, %v8134
        %v8351 = vadd.f32 %v7997, %v8203
        %v8352 = vadd.f32 %v7998, %v8205
        %v8353 = vadd.f32 %v7999, %v8274
        %v8354 = vadd.f32 %v8000, %v8276
        %v8355 = vadd.f32 %v8001, %v8345
        %v8356 = vadd.f32 %v8002, %v8347
        %v8357 = vld [vmem:[%s262 + $0x4] sm:$0xff]
        %v8358 = vld [vmem:[%s262 + $0xc] sm:$0xff]
        %v8359 = vld [vmem:[%s262 + $0x14] sm:$0xff]
        %v8360 = vld [vmem:[%s262 + $0x1c] sm:$0xff]
        %v8361 = vld [vmem:[%s262 + $0x24] sm:$0xf]
        %s8362 = scalar_lea.vmem %s1, 184
        %v8363 = vld [vmem:[%s8362] sm:$0xff]
        %v8369 = vcombine.high %v8357, %v8357
        %v8370 = vcombine.high %v8358, %v8358
        %v8371 = vcombine.high %v8359, %v8359
        %v8372 = vcombine.high %v8360, %v8360
        %8373 = vrot.lane.b32.xlu0 %v8357, 44
        %v8374 = vpop.permute.xlu0 %8373
        %8375 = vrot.lane.b32.xlu0 %v8369, 44
        %v8376 = vpop.permute.xlu0 %8375
        %8377 = vrot.lane.b32.xlu0 %v8358, 44
        %v8378 = vpop.permute.xlu0 %8377
        %8379 = vrot.lane.b32.xlu0 %v8370, 44
        %v8380 = vpop.permute.xlu0 %8379
        %8381 = vrot.lane.b32.xlu0 %v8359, 44
        %v8382 = vpop.permute.xlu0 %8381
        %8383 = vrot.lane.b32.xlu0 %v8371, 44
        %v8384 = vpop.permute.xlu0 %8383
        %8385 = vrot.lane.b32.xlu0 %v8360, 44
        %v8386 = vpop.permute.xlu0 %8385
        %8387 = vrot.lane.b32.xlu0 %v8372, 44
        %v8388 = vpop.permute.xlu0 %8387
        %8389 = vrot.lane.b32.xlu0 %v8361, 44
        %v8390 = vpop.permute.xlu0 %8389
        %vm8391 = vcmask 359424
        %v8392 = vsel %vm8391, %v8374, %v8376
        %v8393 = vsel %vm8391, %v8376, %v8378
        %v8394 = vsel %vm8391, %v8378, %v8380
        %v8395 = vsel %vm8391, %v8380, %v8382
        %v8396 = vsel %vm8391, %v8382, %v8384
        %v8397 = vsel %vm8391, %v8384, %v8386
        %v8398 = vsel %vm8391, %v8386, %v8388
        %v8399 = vsel %vm8391, %v8388, %v8390
        %v8401 = vsel %vm315, %v8363, 0
        %v8403 = vsel %vm319, %v8392, 0
        %v8405 = vsel %vm319, %v8393, 0
        %v8407 = vsel %vm319, %v8394, 0
        %v8409 = vsel %vm319, %v8395, 0
        %v8411 = vsel %vm319, %v8396, 0
        %v8413 = vsel %vm319, %v8397, 0
        %v8415 = vsel %vm319, %v8398, 0
        %v8417 = vsel %vm319, %v8399, 0
        %8419 = vmatprep.subr.mxu0 %v8405
        %8420 = vmatpush1.msra.mxu0 %v8403
        %8421 = vmatprep.subr.mxu0 0.0
        %8422 = vmatpush1.msra.mxu0 0.0
        %8423 = vmatprep.subr.mxu0 0.0
        %8424 = vmatpush1.msra.mxu0 0.0
        %8425 = vmatprep.subr.mxu0 0.0
        %8426 = vmatpush1.msra.mxu0 0.0
        %8427 = vmatprep.subr.mxu0 0.0
        %8428 = vmatpush1.msra.mxu0 0.0
        %8429 = vmatprep.subr.mxu0 0.0
        %8430 = vmatpush1.msra.mxu0 0.0
        %8431 = vmatprep.subr.mxu0 0.0
        %8432 = vmatpush1.msra.mxu0 0.0
        %8433 = vmatprep.subr.mxu0 0.0
        %8434 = vmatpush1.msra.mxu0 0.0
        %8435 = vmatprep.subr.mxu0 0.0
        %8436 = vmatpush1.msra.mxu0 0.0
        %8437 = vmatprep.subr.mxu0 0.0
        %8438 = vmatpush1.msra.mxu0 0.0
        %8439 = vmatprep.subr.mxu0 0.0
        %8440 = vmatpush1.msra.mxu0 0.0
        %8441 = vmatprep.subr.mxu0 0.0
        %8442 = vmatpush1.msra.mxu0 0.0
        %8443 = vmatprep.subr.mxu0 0.0
        %8444 = vmatpush1.msra.mxu0 0.0
        %8445 = vmatprep.subr.mxu0 0.0
        %8446 = vmatpush1.msra.mxu0 0.0
        %8447 = vmatprep.subr.mxu0 0.0
        %8448 = vmatpush1.msra.mxu0 0.0
        %8449 = vmatprep.subr.mxu0 0.0
        %8450 = vmatpush1.msra.mxu0 0.0
        %8451 = vmatprep.subr.mxu0 0.0
        %8452 = vmatpush1.msra.mxu0 0.0
        %8453 = vmatprep.subr.mxu0 0.0
        %8454 = vmatpush1.msra.mxu0 0.0
        %8455 = vmatprep.subr.mxu0 0.0
        %8456 = vmatpush1.msra.mxu0 0.0
        %8457 = vmatprep.subr.mxu0 0.0
        %8458 = vmatpush1.msra.mxu0 0.0
        %8459 = vmatprep.subr.mxu0 0.0
        %8460 = vmatpush1.msra.mxu0 0.0
        %8461 = vmatprep.subr.mxu0 0.0
        %8462 = vmatpush1.msra.mxu0 0.0
        %8463 = vmatprep.subr.mxu0 0.0
        %8464 = vmatpush1.msra.mxu0 0.0
        %8465 = vmatprep.subr.mxu0 0.0
        %8466 = vmatpush1.msra.mxu0 0.0
        %8467 = vmatprep.subr.mxu0 0.0
        %8468 = vmatpush1.msra.mxu0 0.0
        %8469 = vmatprep.subr.mxu0 0.0
        %8470 = vmatpush1.msra.mxu0 0.0
        %8471 = vmatprep.subr.mxu0 0.0
        %8472 = vmatpush1.msra.mxu0 0.0
        %8473 = vmatprep.subr.mxu0 0.0
        %8474 = vmatpush1.msra.mxu0 0.0
        %8475 = vmatprep.subr.mxu0 0.0
        %8476 = vmatpush1.msra.mxu0 0.0
        %8477 = vmatprep.subr.mxu0 0.0
        %8478 = vmatpush1.msra.mxu0 0.0
        %8479 = vmatprep.subr.mxu0 0.0
        %8480 = vmatpush1.msra.mxu0 0.0
        %8481 = vmatprep.subr.mxu0 0.0
        %8482 = vmatpush1.msra.mxu0 0.0
        %8483 = vmatprep.mubr.f32.mxu0 0.0
        %8484 = vmatmul.mubr.f32.gmra.mrb[0].mxu0 %v8401
        %v8485 = vpop.f32.mrb[0].mxu0
        %v8486 = vadd.f32 0.0, %v8485
        %v8487 = vpop.f32.mrb[0].mxu0
        %v8488 = vadd.f32 0.0, %v8487
        %8489 = vdwg.mxu0
        %8490 = vmatprep.subr.mxu0 %v8409
        %8491 = vmatpush1.msra.mxu0 %v8407
        %8492 = vmatprep.subr.mxu0 0.0
        %8493 = vmatpush1.msra.mxu0 0.0
        %8494 = vmatprep.subr.mxu0 0.0
        %8495 = vmatpush1.msra.mxu0 0.0
        %8496 = vmatprep.subr.mxu0 0.0
        %8497 = vmatpush1.msra.mxu0 0.0
        %8498 = vmatprep.subr.mxu0 0.0
        %8499 = vmatpush1.msra.mxu0 0.0
        %8500 = vmatprep.subr.mxu0 0.0
        %8501 = vmatpush1.msra.mxu0 0.0
        %8502 = vmatprep.subr.mxu0 0.0
        %8503 = vmatpush1.msra.mxu0 0.0
        %8504 = vmatprep.subr.mxu0 0.0
        %8505 = vmatpush1.msra.mxu0 0.0
        %8506 = vmatprep.subr.mxu0 0.0
        %8507 = vmatpush1.msra.mxu0 0.0
        %8508 = vmatprep.subr.mxu0 0.0
        %8509 = vmatpush1.msra.mxu0 0.0
        %8510 = vmatprep.subr.mxu0 0.0
        %8511 = vmatpush1.msra.mxu0 0.0
        %8512 = vmatprep.subr.mxu0 0.0
        %8513 = vmatpush1.msra.mxu0 0.0
        %8514 = vmatprep.subr.mxu0 0.0
        %8515 = vmatpush1.msra.mxu0 0.0
        %8516 = vmatprep.subr.mxu0 0.0
        %8517 = vmatpush1.msra.mxu0 0.0
        %8518 = vmatprep.subr.mxu0 0.0
        %8519 = vmatpush1.msra.mxu0 0.0
        %8520 = vmatprep.subr.mxu0 0.0
        %8521 = vmatpush1.msra.mxu0 0.0
        %8522 = vmatprep.subr.mxu0 0.0
        %8523 = vmatpush1.msra.mxu0 0.0
        %8524 = vmatprep.subr.mxu0 0.0
        %8525 = vmatpush1.msra.mxu0 0.0
        %8526 = vmatprep.subr.mxu0 0.0
        %8527 = vmatpush1.msra.mxu0 0.0
        %8528 = vmatprep.subr.mxu0 0.0
        %8529 = vmatpush1.msra.mxu0 0.0
        %8530 = vmatprep.subr.mxu0 0.0
        %8531 = vmatpush1.msra.mxu0 0.0
        %8532 = vmatprep.subr.mxu0 0.0
        %8533 = vmatpush1.msra.mxu0 0.0
        %8534 = vmatprep.subr.mxu0 0.0
        %8535 = vmatpush1.msra.mxu0 0.0
        %8536 = vmatprep.subr.mxu0 0.0
        %8537 = vmatpush1.msra.mxu0 0.0
        %8538 = vmatprep.subr.mxu0 0.0
        %8539 = vmatpush1.msra.mxu0 0.0
        %8540 = vmatprep.subr.mxu0 0.0
        %8541 = vmatpush1.msra.mxu0 0.0
        %8542 = vmatprep.subr.mxu0 0.0
        %8543 = vmatpush1.msra.mxu0 0.0
        %8544 = vmatprep.subr.mxu0 0.0
        %8545 = vmatpush1.msra.mxu0 0.0
        %8546 = vmatprep.subr.mxu0 0.0
        %8547 = vmatpush1.msra.mxu0 0.0
        %8548 = vmatprep.subr.mxu0 0.0
        %8549 = vmatpush1.msra.mxu0 0.0
        %8550 = vmatprep.subr.mxu0 0.0
        %8551 = vmatpush1.msra.mxu0 0.0
        %8552 = vmatprep.subr.mxu0 0.0
        %8553 = vmatpush1.msra.mxu0 0.0
        %8554 = vmatprep.mubr.f32.mxu0 0.0
        %8555 = vmatmul.mubr.f32.gmra.mrb[0].mxu0 %v8401
        %v8556 = vpop.f32.mrb[0].mxu0
        %v8557 = vadd.f32 0.0, %v8556
        %v8558 = vpop.f32.mrb[0].mxu0
        %v8559 = vadd.f32 0.0, %v8558
        %8560 = vdwg.mxu0
        %8561 = vmatprep.subr.mxu0 %v8413
        %8562 = vmatpush1.msra.mxu0 %v8411
        %8563 = vmatprep.subr.mxu0 0.0
        %8564 = vmatpush1.msra.mxu0 0.0
        %8565 = vmatprep.subr.mxu0 0.0
        %8566 = vmatpush1.msra.mxu0 0.0
        %8567 = vmatprep.subr.mxu0 0.0
        %8568 = vmatpush1.msra.mxu0 0.0
        %8569 = vmatprep.subr.mxu0 0.0
        %8570 = vmatpush1.msra.mxu0 0.0
        %8571 = vmatprep.subr.mxu0 0.0
        %8572 = vmatpush1.msra.mxu0 0.0
        %8573 = vmatprep.subr.mxu0 0.0
        %8574 = vmatpush1.msra.mxu0 0.0
        %8575 = vmatprep.subr.mxu0 0.0
        %8576 = vmatpush1.msra.mxu0 0.0
        %8577 = vmatprep.subr.mxu0 0.0
        %8578 = vmatpush1.msra.mxu0 0.0
        %8579 = vmatprep.subr.mxu0 0.0
        %8580 = vmatpush1.msra.mxu0 0.0
        %8581 = vmatprep.subr.mxu0 0.0
        %8582 = vmatpush1.msra.mxu0 0.0
        %8583 = vmatprep.subr.mxu0 0.0
        %8584 = vmatpush1.msra.mxu0 0.0
        %8585 = vmatprep.subr.mxu0 0.0
        %8586 = vmatpush1.msra.mxu0 0.0
        %8587 = vmatprep.subr.mxu0 0.0
        %8588 = vmatpush1.msra.mxu0 0.0
        %8589 = vmatprep.subr.mxu0 0.0
        %8590 = vmatpush1.msra.mxu0 0.0
        %8591 = vmatprep.subr.mxu0 0.0
        %8592 = vmatpush1.msra.mxu0 0.0
        %8593 = vmatprep.subr.mxu0 0.0
        %8594 = vmatpush1.msra.mxu0 0.0
        %8595 = vmatprep.subr.mxu0 0.0
        %8596 = vmatpush1.msra.mxu0 0.0
        %8597 = vmatprep.subr.mxu0 0.0
        %8598 = vmatpush1.msra.mxu0 0.0
        %8599 = vmatprep.subr.mxu0 0.0
        %8600 = vmatpush1.msra.mxu0 0.0
        %8601 = vmatprep.subr.mxu0 0.0
        %8602 = vmatpush1.msra.mxu0 0.0
        %8603 = vmatprep.subr.mxu0 0.0
        %8604 = vmatpush1.msra.mxu0 0.0
        %8605 = vmatprep.subr.mxu0 0.0
        %8606 = vmatpush1.msra.mxu0 0.0
        %8607 = vmatprep.subr.mxu0 0.0
        %8608 = vmatpush1.msra.mxu0 0.0
        %8609 = vmatprep.subr.mxu0 0.0
        %8610 = vmatpush1.msra.mxu0 0.0
        %8611 = vmatprep.subr.mxu0 0.0
        %8612 = vmatpush1.msra.mxu0 0.0
        %8613 = vmatprep.subr.mxu0 0.0
        %8614 = vmatpush1.msra.mxu0 0.0
        %8615 = vmatprep.subr.mxu0 0.0
        %8616 = vmatpush1.msra.mxu0 0.0
        %8617 = vmatprep.subr.mxu0 0.0
        %8618 = vmatpush1.msra.mxu0 0.0
        %8619 = vmatprep.subr.mxu0 0.0
        %8620 = vmatpush1.msra.mxu0 0.0
        %8621 = vmatprep.subr.mxu0 0.0
        %8622 = vmatpush1.msra.mxu0 0.0
        %8623 = vmatprep.subr.mxu0 0.0
        %8624 = vmatpush1.msra.mxu0 0.0
        %8625 = vmatprep.mubr.f32.mxu0 0.0
        %8626 = vmatmul.mubr.f32.gmra.mrb[0].mxu0 %v8401
        %v8627 = vpop.f32.mrb[0].mxu0
        %v8628 = vadd.f32 0.0, %v8627
        %v8629 = vpop.f32.mrb[0].mxu0
        %v8630 = vadd.f32 0.0, %v8629
        %8631 = vdwg.mxu0
        %8632 = vmatprep.subr.mxu0 %v8417
        %8633 = vmatpush1.msra.mxu0 %v8415
        %8634 = vmatprep.subr.mxu0 0.0
        %8635 = vmatpush1.msra.mxu0 0.0
        %8636 = vmatprep.subr.mxu0 0.0
        %8637 = vmatpush1.msra.mxu0 0.0
        %8638 = vmatprep.subr.mxu0 0.0
        %8639 = vmatpush1.msra.mxu0 0.0
        %8640 = vmatprep.subr.mxu0 0.0
        %8641 = vmatpush1.msra.mxu0 0.0
        %8642 = vmatprep.subr.mxu0 0.0
        %8643 = vmatpush1.msra.mxu0 0.0
        %8644 = vmatprep.subr.mxu0 0.0
        %8645 = vmatpush1.msra.mxu0 0.0
        %8646 = vmatprep.subr.mxu0 0.0
        %8647 = vmatpush1.msra.mxu0 0.0
        %8648 = vmatprep.subr.mxu0 0.0
        %8649 = vmatpush1.msra.mxu0 0.0
        %8650 = vmatprep.subr.mxu0 0.0
        %8651 = vmatpush1.msra.mxu0 0.0
        %8652 = vmatprep.subr.mxu0 0.0
        %8653 = vmatpush1.msra.mxu0 0.0
        %8654 = vmatprep.subr.mxu0 0.0
        %8655 = vmatpush1.msra.mxu0 0.0
        %8656 = vmatprep.subr.mxu0 0.0
        %8657 = vmatpush1.msra.mxu0 0.0
        %8658 = vmatprep.subr.mxu0 0.0
        %8659 = vmatpush1.msra.mxu0 0.0
        %8660 = vmatprep.subr.mxu0 0.0
        %8661 = vmatpush1.msra.mxu0 0.0
        %8662 = vmatprep.subr.mxu0 0.0
        %8663 = vmatpush1.msra.mxu0 0.0
        %8664 = vmatprep.subr.mxu0 0.0
        %8665 = vmatpush1.msra.mxu0 0.0
        %8666 = vmatprep.subr.mxu0 0.0
        %8667 = vmatpush1.msra.mxu0 0.0
        %8668 = vmatprep.subr.mxu0 0.0
        %8669 = vmatpush1.msra.mxu0 0.0
        %8670 = vmatprep.subr.mxu0 0.0
        %8671 = vmatpush1.msra.mxu0 0.0
        %8672 = vmatprep.subr.mxu0 0.0
        %8673 = vmatpush1.msra.mxu0 0.0
        %8674 = vmatprep.subr.mxu0 0.0
        %8675 = vmatpush1.msra.mxu0 0.0
        %8676 = vmatprep.subr.mxu0 0.0
        %8677 = vmatpush1.msra.mxu0 0.0
        %8678 = vmatprep.subr.mxu0 0.0
        %8679 = vmatpush1.msra.mxu0 0.0
        %8680 = vmatprep.subr.mxu0 0.0
        %8681 = vmatpush1.msra.mxu0 0.0
        %8682 = vmatprep.subr.mxu0 0.0
        %8683 = vmatpush1.msra.mxu0 0.0
        %8684 = vmatprep.subr.mxu0 0.0
        %8685 = vmatpush1.msra.mxu0 0.0
        %8686 = vmatprep.subr.mxu0 0.0
        %8687 = vmatpush1.msra.mxu0 0.0
        %8688 = vmatprep.subr.mxu0 0.0
        %8689 = vmatpush1.msra.mxu0 0.0
        %8690 = vmatprep.subr.mxu0 0.0
        %8691 = vmatpush1.msra.mxu0 0.0
        %8692 = vmatprep.subr.mxu0 0.0
        %8693 = vmatpush1.msra.mxu0 0.0
        %8694 = vmatprep.subr.mxu0 0.0
        %8695 = vmatpush1.msra.mxu0 0.0
        %8696 = vmatprep.mubr.f32.mxu0 0.0
        %8697 = vmatmul.mubr.f32.gmra.mrb[0].mxu0 %v8401
        %v8698 = vpop.f32.mrb[0].mxu0
        %v8699 = vadd.f32 0.0, %v8698
        %v8700 = vpop.f32.mrb[0].mxu0
        %v8701 = vadd.f32 0.0, %v8700
        %8702 = vdwg.mxu0
        %v8703 = vadd.f32 %v8349, %v8486
        %v8704 = vadd.f32 %v8350, %v8488
        %v8705 = vadd.f32 %v8351, %v8557
        %v8706 = vadd.f32 %v8352, %v8559
        %v8707 = vadd.f32 %v8353, %v8628
        %v8708 = vadd.f32 %v8354, %v8630
        %v8709 = vadd.f32 %v8355, %v8699
        %v8710 = vadd.f32 %v8356, %v8701
        %v8711 = vld [vmem:[%s262 + $0x4] sm:$0xff]
        %v8712 = vld [vmem:[%s262 + $0xc] sm:$0xff]
        %v8713 = vld [vmem:[%s262 + $0x14] sm:$0xff]
        %v8714 = vld [vmem:[%s262 + $0x1c] sm:$0xff]
        %v8715 = vld [vmem:[%s262 + $0x24] sm:$0xf]
        %s8716 = scalar_lea.vmem %s1, 192
        %v8717 = vld [vmem:[%s8716] sm:$0xff]
        %v8723 = vcombine.high %v8711, %v8711
        %v8724 = vcombine.high %v8712, %v8712
        %v8725 = vcombine.high %v8713, %v8713
        %v8726 = vcombine.high %v8714, %v8714
        %8727 = vrot.lane.b32.xlu0 %v8711, 36
        %v8728 = vpop.permute.xlu0 %8727
        %8729 = vrot.lane.b32.xlu0 %v8723, 36
        %v8730 = vpop.permute.xlu0 %8729
        %8731 = vrot.lane.b32.xlu0 %v8712, 36
        %v8732 = vpop.permute.xlu0 %8731
        %8733 = vrot.lane.b32.xlu0 %v8724, 36
        %v8734 = vpop.permute.xlu0 %8733
        %8735 = vrot.lane.b32.xlu0 %v8713, 36
        %v8736 = vpop.permute.xlu0 %8735
        %8737 = vrot.lane.b32.xlu0 %v8725, 36
        %v8738 = vpop.permute.xlu0 %8737
        %8739 = vrot.lane.b32.xlu0 %v8714, 36
        %v8740 = vpop.permute.xlu0 %8739
        %8741 = vrot.lane.b32.xlu0 %v8726, 36
        %v8742 = vpop.permute.xlu0 %8741
        %8743 = vrot.lane.b32.xlu0 %v8715, 36
        %v8744 = vpop.permute.xlu0 %8743
        %vm8745 = vcmask 293888
        %v8746 = vsel %vm8745, %v8728, %v8730
        %v8747 = vsel %vm8745, %v8730, %v8732
        %v8748 = vsel %vm8745, %v8732, %v8734
        %v8749 = vsel %vm8745, %v8734, %v8736
        %v8750 = vsel %vm8745, %v8736, %v8738
        %v8751 = vsel %vm8745, %v8738, %v8740
        %v8752 = vsel %vm8745, %v8740, %v8742
        %v8753 = vsel %vm8745, %v8742, %v8744
        %v8755 = vsel %vm315, %v8717, 0
        %v8757 = vsel %vm319, %v8746, 0
        %v8759 = vsel %vm319, %v8747, 0
        %v8761 = vsel %vm319, %v8748, 0
        %v8763 = vsel %vm319, %v8749, 0
        %v8765 = vsel %vm319, %v8750, 0
        %v8767 = vsel %vm319, %v8751, 0
        %v8769 = vsel %vm319, %v8752, 0
        %v8771 = vsel %vm319, %v8753, 0
        %8773 = vmatprep.subr.mxu0 %v8759
        %8774 = vmatpush1.msra.mxu0 %v8757
        %8775 = vmatprep.subr.mxu0 0.0
        %8776 = vmatpush1.msra.mxu0 0.0
        %8777 = vmatprep.subr.mxu0 0.0
        %8778 = vmatpush1.msra.mxu0 0.0
        %8779 = vmatprep.subr.mxu0 0.0
        %8780 = vmatpush1.msra.mxu0 0.0
        %8781 = vmatprep.subr.mxu0 0.0
        %8782 = vmatpush1.msra.mxu0 0.0
        %8783 = vmatprep.subr.mxu0 0.0
        %8784 = vmatpush1.msra.mxu0 0.0
        %8785 = vmatprep.subr.mxu0 0.0
        %8786 = vmatpush1.msra.mxu0 0.0
        %8787 = vmatprep.subr.mxu0 0.0
        %8788 = vmatpush1.msra.mxu0 0.0
        %8789 = vmatprep.subr.mxu0 0.0
        %8790 = vmatpush1.msra.mxu0 0.0
        %8791 = vmatprep.subr.mxu0 0.0
        %8792 = vmatpush1.msra.mxu0 0.0
        %8793 = vmatprep.subr.mxu0 0.0
        %8794 = vmatpush1.msra.mxu0 0.0
        %8795 = vmatprep.subr.mxu0 0.0
        %8796 = vmatpush1.msra.mxu0 0.0
        %8797 = vmatprep.subr.mxu0 0.0
        %8798 = vmatpush1.msra.mxu0 0.0
        %8799 = vmatprep.subr.mxu0 0.0
        %8800 = vmatpush1.msra.mxu0 0.0
        %8801 = vmatprep.subr.mxu0 0.0
        %8802 = vmatpush1.msra.mxu0 0.0
        %8803 = vmatprep.subr.mxu0 0.0
        %8804 = vmatpush1.msra.mxu0 0.0
        %8805 = vmatprep.subr.mxu0 0.0
        %8806 = vmatpush1.msra.mxu0 0.0
        %8807 = vmatprep.subr.mxu0 0.0
        %8808 = vmatpush1.msra.mxu0 0.0
        %8809 = vmatprep.subr.mxu0 0.0
        %8810 = vmatpush1.msra.mxu0 0.0
        %8811 = vmatprep.subr.mxu0 0.0
        %8812 = vmatpush1.msra.mxu0 0.0
        %8813 = vmatprep.subr.mxu0 0.0
        %8814 = vmatpush1.msra.mxu0 0.0
        %8815 = vmatprep.subr.mxu0 0.0
        %8816 = vmatpush1.msra.mxu0 0.0
        %8817 = vmatprep.subr.mxu0 0.0
        %8818 = vmatpush1.msra.mxu0 0.0
        %8819 = vmatprep.subr.mxu0 0.0
        %8820 = vmatpush1.msra.mxu0 0.0
        %8821 = vmatprep.subr.mxu0 0.0
        %8822 = vmatpush1.msra.mxu0 0.0
        %8823 = vmatprep.subr.mxu0 0.0
        %8824 = vmatpush1.msra.mxu0 0.0
        %8825 = vmatprep.subr.mxu0 0.0
        %8826 = vmatpush1.msra.mxu0 0.0
        %8827 = vmatprep.subr.mxu0 0.0
        %8828 = vmatpush1.msra.mxu0 0.0
        %8829 = vmatprep.subr.mxu0 0.0
        %8830 = vmatpush1.msra.mxu0 0.0
        %8831 = vmatprep.subr.mxu0 0.0
        %8832 = vmatpush1.msra.mxu0 0.0
        %8833 = vmatprep.subr.mxu0 0.0
        %8834 = vmatpush1.msra.mxu0 0.0
        %8835 = vmatprep.subr.mxu0 0.0
        %8836 = vmatpush1.msra.mxu0 0.0
        %8837 = vmatprep.mubr.f32.mxu0 0.0
        %8838 = vmatmul.mubr.f32.gmra.mrb[0].mxu0 %v8755
        %v8839 = vpop.f32.mrb[0].mxu0
        %v8840 = vadd.f32 0.0, %v8839
        %v8841 = vpop.f32.mrb[0].mxu0
        %v8842 = vadd.f32 0.0, %v8841
        %8843 = vdwg.mxu0
        %8844 = vmatprep.subr.mxu0 %v8763
        %8845 = vmatpush1.msra.mxu0 %v8761
        %8846 = vmatprep.subr.mxu0 0.0
        %8847 = vmatpush1.msra.mxu0 0.0
        %8848 = vmatprep.subr.mxu0 0.0
        %8849 = vmatpush1.msra.mxu0 0.0
        %8850 = vmatprep.subr.mxu0 0.0
        %8851 = vmatpush1.msra.mxu0 0.0
        %8852 = vmatprep.subr.mxu0 0.0
        %8853 = vmatpush1.msra.mxu0 0.0
        %8854 = vmatprep.subr.mxu0 0.0
        %8855 = vmatpush1.msra.mxu0 0.0
        %8856 = vmatprep.subr.mxu0 0.0
        %8857 = vmatpush1.msra.mxu0 0.0
        %8858 = vmatprep.subr.mxu0 0.0
        %8859 = vmatpush1.msra.mxu0 0.0
        %8860 = vmatprep.subr.mxu0 0.0
        %8861 = vmatpush1.msra.mxu0 0.0
        %8862 = vmatprep.subr.mxu0 0.0
        %8863 = vmatpush1.msra.mxu0 0.0
        %8864 = vmatprep.subr.mxu0 0.0
        %8865 = vmatpush1.msra.mxu0 0.0
        %8866 = vmatprep.subr.mxu0 0.0
        %8867 = vmatpush1.msra.mxu0 0.0
        %8868 = vmatprep.subr.mxu0 0.0
        %8869 = vmatpush1.msra.mxu0 0.0
        %8870 = vmatprep.subr.mxu0 0.0
        %8871 = vmatpush1.msra.mxu0 0.0
        %8872 = vmatprep.subr.mxu0 0.0
        %8873 = vmatpush1.msra.mxu0 0.0
        %8874 = vmatprep.subr.mxu0 0.0
        %8875 = vmatpush1.msra.mxu0 0.0
        %8876 = vmatprep.subr.mxu0 0.0
        %8877 = vmatpush1.msra.mxu0 0.0
        %8878 = vmatprep.subr.mxu0 0.0
        %8879 = vmatpush1.msra.mxu0 0.0
        %8880 = vmatprep.subr.mxu0 0.0
        %8881 = vmatpush1.msra.mxu0 0.0
        %8882 = vmatprep.subr.mxu0 0.0
        %8883 = vmatpush1.msra.mxu0 0.0
        %8884 = vmatprep.subr.mxu0 0.0
        %8885 = vmatpush1.msra.mxu0 0.0
        %8886 = vmatprep.subr.mxu0 0.0
        %8887 = vmatpush1.msra.mxu0 0.0
        %8888 = vmatprep.subr.mxu0 0.0
        %8889 = vmatpush1.msra.mxu0 0.0
        %8890 = vmatprep.subr.mxu0 0.0
        %8891 = vmatpush1.msra.mxu0 0.0
        %8892 = vmatprep.subr.mxu0 0.0
        %8893 = vmatpush1.msra.mxu0 0.0
        %8894 = vmatprep.subr.mxu0 0.0
        %8895 = vmatpush1.msra.mxu0 0.0
        %8896 = vmatprep.subr.mxu0 0.0
        %8897 = vmatpush1.msra.mxu0 0.0
        %8898 = vmatprep.subr.mxu0 0.0
        %8899 = vmatpush1.msra.mxu0 0.0
        %8900 = vmatprep.subr.mxu0 0.0
        %8901 = vmatpush1.msra.mxu0 0.0
        %8902 = vmatprep.subr.mxu0 0.0
        %8903 = vmatpush1.msra.mxu0 0.0
        %8904 = vmatprep.subr.mxu0 0.0
        %8905 = vmatpush1.msra.mxu0 0.0
        %8906 = vmatprep.subr.mxu0 0.0
        %8907 = vmatpush1.msra.mxu0 0.0
        %8908 = vmatprep.mubr.f32.mxu0 0.0
        %8909 = vmatmul.mubr.f32.gmra.mrb[0].mxu0 %v8755
        %v8910 = vpop.f32.mrb[0].mxu0
        %v8911 = vadd.f32 0.0, %v8910
        %v8912 = vpop.f32.mrb[0].mxu0
        %v8913 = vadd.f32 0.0, %v8912
        %8914 = vdwg.mxu0
        %8915 = vmatprep.subr.mxu0 %v8767
        %8916 = vmatpush1.msra.mxu0 %v8765
        %8917 = vmatprep.subr.mxu0 0.0
        %8918 = vmatpush1.msra.mxu0 0.0
        %8919 = vmatprep.subr.mxu0 0.0
        %8920 = vmatpush1.msra.mxu0 0.0
        %8921 = vmatprep.subr.mxu0 0.0
        %8922 = vmatpush1.msra.mxu0 0.0
        %8923 = vmatprep.subr.mxu0 0.0
        %8924 = vmatpush1.msra.mxu0 0.0
        %8925 = vmatprep.subr.mxu0 0.0
        %8926 = vmatpush1.msra.mxu0 0.0
        %8927 = vmatprep.subr.mxu0 0.0
        %8928 = vmatpush1.msra.mxu0 0.0
        %8929 = vmatprep.subr.mxu0 0.0
        %8930 = vmatpush1.msra.mxu0 0.0
        %8931 = vmatprep.subr.mxu0 0.0
        %8932 = vmatpush1.msra.mxu0 0.0
        %8933 = vmatprep.subr.mxu0 0.0
        %8934 = vmatpush1.msra.mxu0 0.0
        %8935 = vmatprep.subr.mxu0 0.0
        %8936 = vmatpush1.msra.mxu0 0.0
        %8937 = vmatprep.subr.mxu0 0.0
        %8938 = vmatpush1.msra.mxu0 0.0
        %8939 = vmatprep.subr.mxu0 0.0
        %8940 = vmatpush1.msra.mxu0 0.0
        %8941 = vmatprep.subr.mxu0 0.0
        %8942 = vmatpush1.msra.mxu0 0.0
        %8943 = vmatprep.subr.mxu0 0.0
        %8944 = vmatpush1.msra.mxu0 0.0
        %8945 = vmatprep.subr.mxu0 0.0
        %8946 = vmatpush1.msra.mxu0 0.0
        %8947 = vmatprep.subr.mxu0 0.0
        %8948 = vmatpush1.msra.mxu0 0.0
        %8949 = vmatprep.subr.mxu0 0.0
        %8950 = vmatpush1.msra.mxu0 0.0
        %8951 = vmatprep.subr.mxu0 0.0
        %8952 = vmatpush1.msra.mxu0 0.0
        %8953 = vmatprep.subr.mxu0 0.0
        %8954 = vmatpush1.msra.mxu0 0.0
        %8955 = vmatprep.subr.mxu0 0.0
        %8956 = vmatpush1.msra.mxu0 0.0
        %8957 = vmatprep.subr.mxu0 0.0
        %8958 = vmatpush1.msra.mxu0 0.0
        %8959 = vmatprep.subr.mxu0 0.0
        %8960 = vmatpush1.msra.mxu0 0.0
        %8961 = vmatprep.subr.mxu0 0.0
        %8962 = vmatpush1.msra.mxu0 0.0
        %8963 = vmatprep.subr.mxu0 0.0
        %8964 = vmatpush1.msra.mxu0 0.0
        %8965 = vmatprep.subr.mxu0 0.0
        %8966 = vmatpush1.msra.mxu0 0.0
        %8967 = vmatprep.subr.mxu0 0.0
        %8968 = vmatpush1.msra.mxu0 0.0
        %8969 = vmatprep.subr.mxu0 0.0
        %8970 = vmatpush1.msra.mxu0 0.0
        %8971 = vmatprep.subr.mxu0 0.0
        %8972 = vmatpush1.msra.mxu0 0.0
        %8973 = vmatprep.subr.mxu0 0.0
        %8974 = vmatpush1.msra.mxu0 0.0
        %8975 = vmatprep.subr.mxu0 0.0
        %8976 = vmatpush1.msra.mxu0 0.0
        %8977 = vmatprep.subr.mxu0 0.0
        %8978 = vmatpush1.msra.mxu0 0.0
        %8979 = vmatprep.mubr.f32.mxu0 0.0
        %8980 = vmatmul.mubr.f32.gmra.mrb[0].mxu0 %v8755
        %v8981 = vpop.f32.mrb[0].mxu0
        %v8982 = vadd.f32 0.0, %v8981
        %v8983 = vpop.f32.mrb[0].mxu0
        %v8984 = vadd.f32 0.0, %v8983
        %8985 = vdwg.mxu0
        %8986 = vmatprep.subr.mxu0 %v8771
        %8987 = vmatpush1.msra.mxu0 %v8769
        %8988 = vmatprep.subr.mxu0 0.0
        %8989 = vmatpush1.msra.mxu0 0.0
        %8990 = vmatprep.subr.mxu0 0.0
        %8991 = vmatpush1.msra.mxu0 0.0
        %8992 = vmatprep.subr.mxu0 0.0
        %8993 = vmatpush1.msra.mxu0 0.0
        %8994 = vmatprep.subr.mxu0 0.0
        %8995 = vmatpush1.msra.mxu0 0.0
        %8996 = vmatprep.subr.mxu0 0.0
        %8997 = vmatpush1.msra.mxu0 0.0
        %8998 = vmatprep.subr.mxu0 0.0
        %8999 = vmatpush1.msra.mxu0 0.0
        %9000 = vmatprep.subr.mxu0 0.0
        %9001 = vmatpush1.msra.mxu0 0.0
        %9002 = vmatprep.subr.mxu0 0.0
        %9003 = vmatpush1.msra.mxu0 0.0
        %9004 = vmatprep.subr.mxu0 0.0
        %9005 = vmatpush1.msra.mxu0 0.0
        %9006 = vmatprep.subr.mxu0 0.0
        %9007 = vmatpush1.msra.mxu0 0.0
        %9008 = vmatprep.subr.mxu0 0.0
        %9009 = vmatpush1.msra.mxu0 0.0
        %9010 = vmatprep.subr.mxu0 0.0
        %9011 = vmatpush1.msra.mxu0 0.0
        %9012 = vmatprep.subr.mxu0 0.0
        %9013 = vmatpush1.msra.mxu0 0.0
        %9014 = vmatprep.subr.mxu0 0.0
        %9015 = vmatpush1.msra.mxu0 0.0
        %9016 = vmatprep.subr.mxu0 0.0
        %9017 = vmatpush1.msra.mxu0 0.0
        %9018 = vmatprep.subr.mxu0 0.0
        %9019 = vmatpush1.msra.mxu0 0.0
        %9020 = vmatprep.subr.mxu0 0.0
        %9021 = vmatpush1.msra.mxu0 0.0
        %9022 = vmatprep.subr.mxu0 0.0
        %9023 = vmatpush1.msra.mxu0 0.0
        %9024 = vmatprep.subr.mxu0 0.0
        %9025 = vmatpush1.msra.mxu0 0.0
        %9026 = vmatprep.subr.mxu0 0.0
        %9027 = vmatpush1.msra.mxu0 0.0
        %9028 = vmatprep.subr.mxu0 0.0
        %9029 = vmatpush1.msra.mxu0 0.0
        %9030 = vmatprep.subr.mxu0 0.0
        %9031 = vmatpush1.msra.mxu0 0.0
        %9032 = vmatprep.subr.mxu0 0.0
        %9033 = vmatpush1.msra.mxu0 0.0
        %9034 = vmatprep.subr.mxu0 0.0
        %9035 = vmatpush1.msra.mxu0 0.0
        %9036 = vmatprep.subr.mxu0 0.0
        %9037 = vmatpush1.msra.mxu0 0.0
        %9038 = vmatprep.subr.mxu0 0.0
        %9039 = vmatpush1.msra.mxu0 0.0
        %9040 = vmatprep.subr.mxu0 0.0
        %9041 = vmatpush1.msra.mxu0 0.0
        %9042 = vmatprep.subr.mxu0 0.0
        %9043 = vmatpush1.msra.mxu0 0.0
        %9044 = vmatprep.subr.mxu0 0.0
        %9045 = vmatpush1.msra.mxu0 0.0
        %9046 = vmatprep.subr.mxu0 0.0
        %9047 = vmatpush1.msra.mxu0 0.0
        %9048 = vmatprep.subr.mxu0 0.0
        %9049 = vmatpush1.msra.mxu0 0.0
        %9050 = vmatprep.mubr.f32.mxu0 0.0
        %9051 = vmatmul.mubr.f32.gmra.mrb[0].mxu0 %v8755
        %v9052 = vpop.f32.mrb[0].mxu0
        %v9053 = vadd.f32 0.0, %v9052
        %v9054 = vpop.f32.mrb[0].mxu0
        %v9055 = vadd.f32 0.0, %v9054
        %9056 = vdwg.mxu0
        %v9057 = vadd.f32 %v8703, %v8840
        %v9058 = vadd.f32 %v8704, %v8842
        %v9059 = vadd.f32 %v8705, %v8911
        %v9060 = vadd.f32 %v8706, %v8913
        %v9061 = vadd.f32 %v8707, %v8982
        %v9062 = vadd.f32 %v8708, %v8984
        %v9063 = vadd.f32 %v8709, %v9053
        %v9064 = vadd.f32 %v8710, %v9055
        %v9065 = vld [vmem:[%s262 + $0x4] sm:$0xff]
        %v9066 = vld [vmem:[%s262 + $0xc] sm:$0xff]
        %v9067 = vld [vmem:[%s262 + $0x14] sm:$0xff]
        %v9068 = vld [vmem:[%s262 + $0x1c] sm:$0xff]
        %v9069 = vld [vmem:[%s262 + $0x24] sm:$0xf]
        %s9070 = scalar_lea.vmem %s1, 200
        %v9071 = vld [vmem:[%s9070] sm:$0xff]
        %v9077 = vcombine.high %v9065, %v9065
        %v9078 = vcombine.high %v9066, %v9066
        %v9079 = vcombine.high %v9067, %v9067
        %v9080 = vcombine.high %v9068, %v9068
        %9081 = vrot.lane.b32.xlu0 %v9065, 35
        %v9082 = vpop.permute.xlu0 %9081
        %9083 = vrot.lane.b32.xlu0 %v9077, 35
        %v9084 = vpop.permute.xlu0 %9083
        %9085 = vrot.lane.b32.xlu0 %v9066, 35
        %v9086 = vpop.permute.xlu0 %9085
        %9087 = vrot.lane.b32.xlu0 %v9078, 35
        %v9088 = vpop.permute.xlu0 %9087
        %9089 = vrot.lane.b32.xlu0 %v9067, 35
        %v9090 = vpop.permute.xlu0 %9089
        %9091 = vrot.lane.b32.xlu0 %v9079, 35
        %v9092 = vpop.permute.xlu0 %9091
        %9093 = vrot.lane.b32.xlu0 %v9068, 35
        %v9094 = vpop.permute.xlu0 %9093
        %9095 = vrot.lane.b32.xlu0 %v9080, 35
        %v9096 = vpop.permute.xlu0 %9095
        %9097 = vrot.lane.b32.xlu0 %v9069, 35
        %v9098 = vpop.permute.xlu0 %9097
        %vm9099 = vcmask 285696
        %v9100 = vsel %vm9099, %v9082, %v9084
        %v9101 = vsel %vm9099, %v9084, %v9086
        %v9102 = vsel %vm9099, %v9086, %v9088
        %v9103 = vsel %vm9099, %v9088, %v9090
        %v9104 = vsel %vm9099, %v9090, %v9092
        %v9105 = vsel %vm9099, %v9092, %v9094
        %v9106 = vsel %vm9099, %v9094, %v9096
        %v9107 = vsel %vm9099, %v9096, %v9098
        %v9109 = vsel %vm315, %v9071, 0
        %v9111 = vsel %vm319, %v9100, 0
        %v9113 = vsel %vm319, %v9101, 0
        %v9115 = vsel %vm319, %v9102, 0
        %v9117 = vsel %vm319, %v9103, 0
        %v9119 = vsel %vm319, %v9104, 0
        %v9121 = vsel %vm319, %v9105, 0
        %v9123 = vsel %vm319, %v9106, 0
        %v9125 = vsel %vm319, %v9107, 0
        %9127 = vmatprep.subr.mxu0 %v9113
        %9128 = vmatpush1.msra.mxu0 %v9111
        %9129 = vmatprep.subr.mxu0 0.0
        %9130 = vmatpush1.msra.mxu0 0.0
        %9131 = vmatprep.subr.mxu0 0.0
        %9132 = vmatpush1.msra.mxu0 0.0
        %9133 = vmatprep.subr.mxu0 0.0
        %9134 = vmatpush1.msra.mxu0 0.0
        %9135 = vmatprep.subr.mxu0 0.0
        %9136 = vmatpush1.msra.mxu0 0.0
        %9137 = vmatprep.subr.mxu0 0.0
        %9138 = vmatpush1.msra.mxu0 0.0
        %9139 = vmatprep.subr.mxu0 0.0
        %9140 = vmatpush1.msra.mxu0 0.0
        %9141 = vmatprep.subr.mxu0 0.0
        %9142 = vmatpush1.msra.mxu0 0.0
        %9143 = vmatprep.subr.mxu0 0.0
        %9144 = vmatpush1.msra.mxu0 0.0
        %9145 = vmatprep.subr.mxu0 0.0
        %9146 = vmatpush1.msra.mxu0 0.0
        %9147 = vmatprep.subr.mxu0 0.0
        %9148 = vmatpush1.msra.mxu0 0.0
        %9149 = vmatprep.subr.mxu0 0.0
        %9150 = vmatpush1.msra.mxu0 0.0
        %9151 = vmatprep.subr.mxu0 0.0
        %9152 = vmatpush1.msra.mxu0 0.0
        %9153 = vmatprep.subr.mxu0 0.0
        %9154 = vmatpush1.msra.mxu0 0.0
        %9155 = vmatprep.subr.mxu0 0.0
        %9156 = vmatpush1.msra.mxu0 0.0
        %9157 = vmatprep.subr.mxu0 0.0
        %9158 = vmatpush1.msra.mxu0 0.0
        %9159 = vmatprep.subr.mxu0 0.0
        %9160 = vmatpush1.msra.mxu0 0.0
        %9161 = vmatprep.subr.mxu0 0.0
        %9162 = vmatpush1.msra.mxu0 0.0
        %9163 = vmatprep.subr.mxu0 0.0
        %9164 = vmatpush1.msra.mxu0 0.0
        %9165 = vmatprep.subr.mxu0 0.0
        %9166 = vmatpush1.msra.mxu0 0.0
        %9167 = vmatprep.subr.mxu0 0.0
        %9168 = vmatpush1.msra.mxu0 0.0
        %9169 = vmatprep.subr.mxu0 0.0
        %9170 = vmatpush1.msra.mxu0 0.0
        %9171 = vmatprep.subr.mxu0 0.0
        %9172 = vmatpush1.msra.mxu0 0.0
        %9173 = vmatprep.subr.mxu0 0.0
        %9174 = vmatpush1.msra.mxu0 0.0
        %9175 = vmatprep.subr.mxu0 0.0
        %9176 = vmatpush1.msra.mxu0 0.0
        %9177 = vmatprep.subr.mxu0 0.0
        %9178 = vmatpush1.msra.mxu0 0.0
        %9179 = vmatprep.subr.mxu0 0.0
        %9180 = vmatpush1.msra.mxu0 0.0
        %9181 = vmatprep.subr.mxu0 0.0
        %9182 = vmatpush1.msra.mxu0 0.0
        %9183 = vmatprep.subr.mxu0 0.0
        %9184 = vmatpush1.msra.mxu0 0.0
        %9185 = vmatprep.subr.mxu0 0.0
        %9186 = vmatpush1.msra.mxu0 0.0
        %9187 = vmatprep.subr.mxu0 0.0
        %9188 = vmatpush1.msra.mxu0 0.0
        %9189 = vmatprep.subr.mxu0 0.0
        %9190 = vmatpush1.msra.mxu0 0.0
        %9191 = vmatprep.mubr.f32.mxu0 0.0
        %9192 = vmatmul.mubr.f32.gmra.mrb[0].mxu0 %v9109
        %v9193 = vpop.f32.mrb[0].mxu0
        %v9194 = vadd.f32 0.0, %v9193
        %v9195 = vpop.f32.mrb[0].mxu0
        %v9196 = vadd.f32 0.0, %v9195
        %9197 = vdwg.mxu0
        %9198 = vmatprep.subr.mxu0 %v9117
        %9199 = vmatpush1.msra.mxu0 %v9115
        %9200 = vmatprep.subr.mxu0 0.0
        %9201 = vmatpush1.msra.mxu0 0.0
        %9202 = vmatprep.subr.mxu0 0.0
        %9203 = vmatpush1.msra.mxu0 0.0
        %9204 = vmatprep.subr.mxu0 0.0
        %9205 = vmatpush1.msra.mxu0 0.0
        %9206 = vmatprep.subr.mxu0 0.0
        %9207 = vmatpush1.msra.mxu0 0.0
        %9208 = vmatprep.subr.mxu0 0.0
        %9209 = vmatpush1.msra.mxu0 0.0
        %9210 = vmatprep.subr.mxu0 0.0
        %9211 = vmatpush1.msra.mxu0 0.0
        %9212 = vmatprep.subr.mxu0 0.0
        %9213 = vmatpush1.msra.mxu0 0.0
        %9214 = vmatprep.subr.mxu0 0.0
        %9215 = vmatpush1.msra.mxu0 0.0
        %9216 = vmatprep.subr.mxu0 0.0
        %9217 = vmatpush1.msra.mxu0 0.0
        %9218 = vmatprep.subr.mxu0 0.0
        %9219 = vmatpush1.msra.mxu0 0.0
        %9220 = vmatprep.subr.mxu0 0.0
        %9221 = vmatpush1.msra.mxu0 0.0
        %9222 = vmatprep.subr.mxu0 0.0
        %9223 = vmatpush1.msra.mxu0 0.0
        %9224 = vmatprep.subr.mxu0 0.0
        %9225 = vmatpush1.msra.mxu0 0.0
        %9226 = vmatprep.subr.mxu0 0.0
        %9227 = vmatpush1.msra.mxu0 0.0
        %9228 = vmatprep.subr.mxu0 0.0
        %9229 = vmatpush1.msra.mxu0 0.0
        %9230 = vmatprep.subr.mxu0 0.0
        %9231 = vmatpush1.msra.mxu0 0.0
        %9232 = vmatprep.subr.mxu0 0.0
        %9233 = vmatpush1.msra.mxu0 0.0
        %9234 = vmatprep.subr.mxu0 0.0
        %9235 = vmatpush1.msra.mxu0 0.0
        %9236 = vmatprep.subr.mxu0 0.0
        %9237 = vmatpush1.msra.mxu0 0.0
        %9238 = vmatprep.subr.mxu0 0.0
        %9239 = vmatpush1.msra.mxu0 0.0
        %9240 = vmatprep.subr.mxu0 0.0
        %9241 = vmatpush1.msra.mxu0 0.0
        %9242 = vmatprep.subr.mxu0 0.0
        %9243 = vmatpush1.msra.mxu0 0.0
        %9244 = vmatprep.subr.mxu0 0.0
        %9245 = vmatpush1.msra.mxu0 0.0
        %9246 = vmatprep.subr.mxu0 0.0
        %9247 = vmatpush1.msra.mxu0 0.0
        %9248 = vmatprep.subr.mxu0 0.0
        %9249 = vmatpush1.msra.mxu0 0.0
        %9250 = vmatprep.subr.mxu0 0.0
        %9251 = vmatpush1.msra.mxu0 0.0
        %9252 = vmatprep.subr.mxu0 0.0
        %9253 = vmatpush1.msra.mxu0 0.0
        %9254 = vmatprep.subr.mxu0 0.0
        %9255 = vmatpush1.msra.mxu0 0.0
        %9256 = vmatprep.subr.mxu0 0.0
        %9257 = vmatpush1.msra.mxu0 0.0
        %9258 = vmatprep.subr.mxu0 0.0
        %9259 = vmatpush1.msra.mxu0 0.0
        %9260 = vmatprep.subr.mxu0 0.0
        %9261 = vmatpush1.msra.mxu0 0.0
        %9262 = vmatprep.mubr.f32.mxu0 0.0
        %9263 = vmatmul.mubr.f32.gmra.mrb[0].mxu0 %v9109
        %v9264 = vpop.f32.mrb[0].mxu0
        %v9265 = vadd.f32 0.0, %v9264
        %v9266 = vpop.f32.mrb[0].mxu0
        %v9267 = vadd.f32 0.0, %v9266
        %9268 = vdwg.mxu0
        %9269 = vmatprep.subr.mxu0 %v9121
        %9270 = vmatpush1.msra.mxu0 %v9119
        %9271 = vmatprep.subr.mxu0 0.0
        %9272 = vmatpush1.msra.mxu0 0.0
        %9273 = vmatprep.subr.mxu0 0.0
        %9274 = vmatpush1.msra.mxu0 0.0
        %9275 = vmatprep.subr.mxu0 0.0
        %9276 = vmatpush1.msra.mxu0 0.0
        %9277 = vmatprep.subr.mxu0 0.0
        %9278 = vmatpush1.msra.mxu0 0.0
        %9279 = vmatprep.subr.mxu0 0.0
        %9280 = vmatpush1.msra.mxu0 0.0
        %9281 = vmatprep.subr.mxu0 0.0
        %9282 = vmatpush1.msra.mxu0 0.0
        %9283 = vmatprep.subr.mxu0 0.0
        %9284 = vmatpush1.msra.mxu0 0.0
        %9285 = vmatprep.subr.mxu0 0.0
        %9286 = vmatpush1.msra.mxu0 0.0
        %9287 = vmatprep.subr.mxu0 0.0
        %9288 = vmatpush1.msra.mxu0 0.0
        %9289 = vmatprep.subr.mxu0 0.0
        %9290 = vmatpush1.msra.mxu0 0.0
        %9291 = vmatprep.subr.mxu0 0.0
        %9292 = vmatpush1.msra.mxu0 0.0
        %9293 = vmatprep.subr.mxu0 0.0
        %9294 = vmatpush1.msra.mxu0 0.0
        %9295 = vmatprep.subr.mxu0 0.0
        %9296 = vmatpush1.msra.mxu0 0.0
        %9297 = vmatprep.subr.mxu0 0.0
        %9298 = vmatpush1.msra.mxu0 0.0
        %9299 = vmatprep.subr.mxu0 0.0
        %9300 = vmatpush1.msra.mxu0 0.0
        %9301 = vmatprep.subr.mxu0 0.0
        %9302 = vmatpush1.msra.mxu0 0.0
        %9303 = vmatprep.subr.mxu0 0.0
        %9304 = vmatpush1.msra.mxu0 0.0
        %9305 = vmatprep.subr.mxu0 0.0
        %9306 = vmatpush1.msra.mxu0 0.0
        %9307 = vmatprep.subr.mxu0 0.0
        %9308 = vmatpush1.msra.mxu0 0.0
        %9309 = vmatprep.subr.mxu0 0.0
        %9310 = vmatpush1.msra.mxu0 0.0
        %9311 = vmatprep.subr.mxu0 0.0
        %9312 = vmatpush1.msra.mxu0 0.0
        %9313 = vmatprep.subr.mxu0 0.0
        %9314 = vmatpush1.msra.mxu0 0.0
        %9315 = vmatprep.subr.mxu0 0.0
        %9316 = vmatpush1.msra.mxu0 0.0
        %9317 = vmatprep.subr.mxu0 0.0
        %9318 = vmatpush1.msra.mxu0 0.0
        %9319 = vmatprep.subr.mxu0 0.0
        %9320 = vmatpush1.msra.mxu0 0.0
        %9321 = vmatprep.subr.mxu0 0.0
        %9322 = vmatpush1.msra.mxu0 0.0
        %9323 = vmatprep.subr.mxu0 0.0
        %9324 = vmatpush1.msra.mxu0 0.0
        %9325 = vmatprep.subr.mxu0 0.0
        %9326 = vmatpush1.msra.mxu0 0.0
        %9327 = vmatprep.subr.mxu0 0.0
        %9328 = vmatpush1.msra.mxu0 0.0
        %9329 = vmatprep.subr.mxu0 0.0
        %9330 = vmatpush1.msra.mxu0 0.0
        %9331 = vmatprep.subr.mxu0 0.0
        %9332 = vmatpush1.msra.mxu0 0.0
        %9333 = vmatprep.mubr.f32.mxu0 0.0
        %9334 = vmatmul.mubr.f32.gmra.mrb[0].mxu0 %v9109
        %v9335 = vpop.f32.mrb[0].mxu0
        %v9336 = vadd.f32 0.0, %v9335
        %v9337 = vpop.f32.mrb[0].mxu0
        %v9338 = vadd.f32 0.0, %v9337
        %9339 = vdwg.mxu0
        %9340 = vmatprep.subr.mxu0 %v9125
        %9341 = vmatpush1.msra.mxu0 %v9123
        %9342 = vmatprep.subr.mxu0 0.0
        %9343 = vmatpush1.msra.mxu0 0.0
        %9344 = vmatprep.subr.mxu0 0.0
        %9345 = vmatpush1.msra.mxu0 0.0
        %9346 = vmatprep.subr.mxu0 0.0
        %9347 = vmatpush1.msra.mxu0 0.0
        %9348 = vmatprep.subr.mxu0 0.0
        %9349 = vmatpush1.msra.mxu0 0.0
        %9350 = vmatprep.subr.mxu0 0.0
        %9351 = vmatpush1.msra.mxu0 0.0
        %9352 = vmatprep.subr.mxu0 0.0
        %9353 = vmatpush1.msra.mxu0 0.0
        %9354 = vmatprep.subr.mxu0 0.0
        %9355 = vmatpush1.msra.mxu0 0.0
        %9356 = vmatprep.subr.mxu0 0.0
        %9357 = vmatpush1.msra.mxu0 0.0
        %9358 = vmatprep.subr.mxu0 0.0
        %9359 = vmatpush1.msra.mxu0 0.0
        %9360 = vmatprep.subr.mxu0 0.0
        %9361 = vmatpush1.msra.mxu0 0.0
        %9362 = vmatprep.subr.mxu0 0.0
        %9363 = vmatpush1.msra.mxu0 0.0
        %9364 = vmatprep.subr.mxu0 0.0
        %9365 = vmatpush1.msra.mxu0 0.0
        %9366 = vmatprep.subr.mxu0 0.0
        %9367 = vmatpush1.msra.mxu0 0.0
        %9368 = vmatprep.subr.mxu0 0.0
        %9369 = vmatpush1.msra.mxu0 0.0
        %9370 = vmatprep.subr.mxu0 0.0
        %9371 = vmatpush1.msra.mxu0 0.0
        %9372 = vmatprep.subr.mxu0 0.0
        %9373 = vmatpush1.msra.mxu0 0.0
        %9374 = vmatprep.subr.mxu0 0.0
        %9375 = vmatpush1.msra.mxu0 0.0
        %9376 = vmatprep.subr.mxu0 0.0
        %9377 = vmatpush1.msra.mxu0 0.0
        %9378 = vmatprep.subr.mxu0 0.0
        %9379 = vmatpush1.msra.mxu0 0.0
        %9380 = vmatprep.subr.mxu0 0.0
        %9381 = vmatpush1.msra.mxu0 0.0
        %9382 = vmatprep.subr.mxu0 0.0
        %9383 = vmatpush1.msra.mxu0 0.0
        %9384 = vmatprep.subr.mxu0 0.0
        %9385 = vmatpush1.msra.mxu0 0.0
        %9386 = vmatprep.subr.mxu0 0.0
        %9387 = vmatpush1.msra.mxu0 0.0
        %9388 = vmatprep.subr.mxu0 0.0
        %9389 = vmatpush1.msra.mxu0 0.0
        %9390 = vmatprep.subr.mxu0 0.0
        %9391 = vmatpush1.msra.mxu0 0.0
        %9392 = vmatprep.subr.mxu0 0.0
        %9393 = vmatpush1.msra.mxu0 0.0
        %9394 = vmatprep.subr.mxu0 0.0
        %9395 = vmatpush1.msra.mxu0 0.0
        %9396 = vmatprep.subr.mxu0 0.0
        %9397 = vmatpush1.msra.mxu0 0.0
        %9398 = vmatprep.subr.mxu0 0.0
        %9399 = vmatpush1.msra.mxu0 0.0
        %9400 = vmatprep.subr.mxu0 0.0
        %9401 = vmatpush1.msra.mxu0 0.0
        %9402 = vmatprep.subr.mxu0 0.0
        %9403 = vmatpush1.msra.mxu0 0.0
        %9404 = vmatprep.mubr.f32.mxu0 0.0
        %9405 = vmatmul.mubr.f32.gmra.mrb[0].mxu0 %v9109
        %v9406 = vpop.f32.mrb[0].mxu0
        %v9407 = vadd.f32 0.0, %v9406
        %v9408 = vpop.f32.mrb[0].mxu0
        %v9409 = vadd.f32 0.0, %v9408
        %9410 = vdwg.mxu0
        %v9411 = vadd.f32 %v9057, %v9194
        %v9412 = vadd.f32 %v9058, %v9196
        %v9413 = vadd.f32 %v9059, %v9265
        %v9414 = vadd.f32 %v9060, %v9267
        %v9415 = vadd.f32 %v9061, %v9336
        %v9416 = vadd.f32 %v9062, %v9338
        %v9417 = vadd.f32 %v9063, %v9407
        %v9418 = vadd.f32 %v9064, %v9409
        %v9419 = vld [vmem:[%s262 + $0x4] sm:$0xff]
        %v9420 = vld [vmem:[%s262 + $0xc] sm:$0xff]
        %v9421 = vld [vmem:[%s262 + $0x14] sm:$0xff]
        %v9422 = vld [vmem:[%s262 + $0x1c] sm:$0xff]
        %v9423 = vld [vmem:[%s262 + $0x24] sm:$0xf]
        %s9424 = scalar_lea.vmem %s1, 208
        %v9425 = vld [vmem:[%s9424] sm:$0xff]
        %v9431 = vcombine.high %v9419, %v9419
        %v9432 = vcombine.high %v9420, %v9420
        %v9433 = vcombine.high %v9421, %v9421
        %v9434 = vcombine.high %v9422, %v9422
        %9435 = vrot.lane.b32.xlu0 %v9419, 34
        %v9436 = vpop.permute.xlu0 %9435
        %9437 = vrot.lane.b32.xlu0 %v9431, 34
        %v9438 = vpop.permute.xlu0 %9437
        %9439 = vrot.lane.b32.xlu0 %v9420, 34
        %v9440 = vpop.permute.xlu0 %9439
        %9441 = vrot.lane.b32.xlu0 %v9432, 34
        %v9442 = vpop.permute.xlu0 %9441
        %9443 = vrot.lane.b32.xlu0 %v9421, 34
        %v9444 = vpop.permute.xlu0 %9443
        %9445 = vrot.lane.b32.xlu0 %v9433, 34
        %v9446 = vpop.permute.xlu0 %9445
        %9447 = vrot.lane.b32.xlu0 %v9422, 34
        %v9448 = vpop.permute.xlu0 %9447
        %9449 = vrot.lane.b32.xlu0 %v9434, 34
        %v9450 = vpop.permute.xlu0 %9449
        %9451 = vrot.lane.b32.xlu0 %v9423, 34
        %v9452 = vpop.permute.xlu0 %9451
        %vm9453 = vcmask 277504
        %v9454 = vsel %vm9453, %v9436, %v9438
        %v9455 = vsel %vm9453, %v9438, %v9440
        %v9456 = vsel %vm9453, %v9440, %v9442
        %v9457 = vsel %vm9453, %v9442, %v9444
        %v9458 = vsel %vm9453, %v9444, %v9446
        %v9459 = vsel %vm9453, %v9446, %v9448
        %v9460 = vsel %vm9453, %v9448, %v9450
        %v9461 = vsel %vm9453, %v9450, %v9452
        %v9463 = vsel %vm315, %v9425, 0
        %v9465 = vsel %vm319, %v9454, 0
        %v9467 = vsel %vm319, %v9455, 0
        %v9469 = vsel %vm319, %v9456, 0
        %v9471 = vsel %vm319, %v9457, 0
        %v9473 = vsel %vm319, %v9458, 0
        %v9475 = vsel %vm319, %v9459, 0
        %v9477 = vsel %vm319, %v9460, 0
        %v9479 = vsel %vm319, %v9461, 0
        %9481 = vmatprep.subr.mxu0 %v9467
        %9482 = vmatpush1.msra.mxu0 %v9465
        %9483 = vmatprep.subr.mxu0 0.0
        %9484 = vmatpush1.msra.mxu0 0.0
        %9485 = vmatprep.subr.mxu0 0.0
        %9486 = vmatpush1.msra.mxu0 0.0
        %9487 = vmatprep.subr.mxu0 0.0
        %9488 = vmatpush1.msra.mxu0 0.0
        %9489 = vmatprep.subr.mxu0 0.0
        %9490 = vmatpush1.msra.mxu0 0.0
        %9491 = vmatprep.subr.mxu0 0.0
        %9492 = vmatpush1.msra.mxu0 0.0
        %9493 = vmatprep.subr.mxu0 0.0
        %9494 = vmatpush1.msra.mxu0 0.0
        %9495 = vmatprep.subr.mxu0 0.0
        %9496 = vmatpush1.msra.mxu0 0.0
        %9497 = vmatprep.subr.mxu0 0.0
        %9498 = vmatpush1.msra.mxu0 0.0
        %9499 = vmatprep.subr.mxu0 0.0
        %9500 = vmatpush1.msra.mxu0 0.0
        %9501 = vmatprep.subr.mxu0 0.0
        %9502 = vmatpush1.msra.mxu0 0.0
        %9503 = vmatprep.subr.mxu0 0.0
        %9504 = vmatpush1.msra.mxu0 0.0
        %9505 = vmatprep.subr.mxu0 0.0
        %9506 = vmatpush1.msra.mxu0 0.0
        %9507 = vmatprep.subr.mxu0 0.0
        %9508 = vmatpush1.msra.mxu0 0.0
        %9509 = vmatprep.subr.mxu0 0.0
        %9510 = vmatpush1.msra.mxu0 0.0
        %9511 = vmatprep.subr.mxu0 0.0
        %9512 = vmatpush1.msra.mxu0 0.0
        %9513 = vmatprep.subr.mxu0 0.0
        %9514 = vmatpush1.msra.mxu0 0.0
        %9515 = vmatprep.subr.mxu0 0.0
        %9516 = vmatpush1.msra.mxu0 0.0
        %9517 = vmatprep.subr.mxu0 0.0
        %9518 = vmatpush1.msra.mxu0 0.0
        %9519 = vmatprep.subr.mxu0 0.0
        %9520 = vmatpush1.msra.mxu0 0.0
        %9521 = vmatprep.subr.mxu0 0.0
        %9522 = vmatpush1.msra.mxu0 0.0
        %9523 = vmatprep.subr.mxu0 0.0
        %9524 = vmatpush1.msra.mxu0 0.0
        %9525 = vmatprep.subr.mxu0 0.0
        %9526 = vmatpush1.msra.mxu0 0.0
        %9527 = vmatprep.subr.mxu0 0.0
        %9528 = vmatpush1.msra.mxu0 0.0
        %9529 = vmatprep.subr.mxu0 0.0
        %9530 = vmatpush1.msra.mxu0 0.0
        %9531 = vmatprep.subr.mxu0 0.0
        %9532 = vmatpush1.msra.mxu0 0.0
        %9533 = vmatprep.subr.mxu0 0.0
        %9534 = vmatpush1.msra.mxu0 0.0
        %9535 = vmatprep.subr.mxu0 0.0
        %9536 = vmatpush1.msra.mxu0 0.0
        %9537 = vmatprep.subr.mxu0 0.0
        %9538 = vmatpush1.msra.mxu0 0.0
        %9539 = vmatprep.subr.mxu0 0.0
        %9540 = vmatpush1.msra.mxu0 0.0
        %9541 = vmatprep.subr.mxu0 0.0
        %9542 = vmatpush1.msra.mxu0 0.0
        %9543 = vmatprep.subr.mxu0 0.0
        %9544 = vmatpush1.msra.mxu0 0.0
        %9545 = vmatprep.mubr.f32.mxu0 0.0
        %9546 = vmatmul.mubr.f32.gmra.mrb[0].mxu0 %v9463
        %v9547 = vpop.f32.mrb[0].mxu0
        %v9548 = vadd.f32 0.0, %v9547
        %v9549 = vpop.f32.mrb[0].mxu0
        %v9550 = vadd.f32 0.0, %v9549
        %9551 = vdwg.mxu0
        %9552 = vmatprep.subr.mxu0 %v9471
        %9553 = vmatpush1.msra.mxu0 %v9469
        %9554 = vmatprep.subr.mxu0 0.0
        %9555 = vmatpush1.msra.mxu0 0.0
        %9556 = vmatprep.subr.mxu0 0.0
        %9557 = vmatpush1.msra.mxu0 0.0
        %9558 = vmatprep.subr.mxu0 0.0
        %9559 = vmatpush1.msra.mxu0 0.0
        %9560 = vmatprep.subr.mxu0 0.0
        %9561 = vmatpush1.msra.mxu0 0.0
        %9562 = vmatprep.subr.mxu0 0.0
        %9563 = vmatpush1.msra.mxu0 0.0
        %9564 = vmatprep.subr.mxu0 0.0
        %9565 = vmatpush1.msra.mxu0 0.0
        %9566 = vmatprep.subr.mxu0 0.0
        %9567 = vmatpush1.msra.mxu0 0.0
        %9568 = vmatprep.subr.mxu0 0.0
        %9569 = vmatpush1.msra.mxu0 0.0
        %9570 = vmatprep.subr.mxu0 0.0
        %9571 = vmatpush1.msra.mxu0 0.0
        %9572 = vmatprep.subr.mxu0 0.0
        %9573 = vmatpush1.msra.mxu0 0.0
        %9574 = vmatprep.subr.mxu0 0.0
        %9575 = vmatpush1.msra.mxu0 0.0
        %9576 = vmatprep.subr.mxu0 0.0
        %9577 = vmatpush1.msra.mxu0 0.0
        %9578 = vmatprep.subr.mxu0 0.0
        %9579 = vmatpush1.msra.mxu0 0.0
        %9580 = vmatprep.subr.mxu0 0.0
        %9581 = vmatpush1.msra.mxu0 0.0
        %9582 = vmatprep.subr.mxu0 0.0
        %9583 = vmatpush1.msra.mxu0 0.0
        %9584 = vmatprep.subr.mxu0 0.0
        %9585 = vmatpush1.msra.mxu0 0.0
        %9586 = vmatprep.subr.mxu0 0.0
        %9587 = vmatpush1.msra.mxu0 0.0
        %9588 = vmatprep.subr.mxu0 0.0
        %9589 = vmatpush1.msra.mxu0 0.0
        %9590 = vmatprep.subr.mxu0 0.0
        %9591 = vmatpush1.msra.mxu0 0.0
        %9592 = vmatprep.subr.mxu0 0.0
        %9593 = vmatpush1.msra.mxu0 0.0
        %9594 = vmatprep.subr.mxu0 0.0
        %9595 = vmatpush1.msra.mxu0 0.0
        %9596 = vmatprep.subr.mxu0 0.0
        %9597 = vmatpush1.msra.mxu0 0.0
        %9598 = vmatprep.subr.mxu0 0.0
        %9599 = vmatpush1.msra.mxu0 0.0
        %9600 = vmatprep.subr.mxu0 0.0
        %9601 = vmatpush1.msra.mxu0 0.0
        %9602 = vmatprep.subr.mxu0 0.0
        %9603 = vmatpush1.msra.mxu0 0.0
        %9604 = vmatprep.subr.mxu0 0.0
        %9605 = vmatpush1.msra.mxu0 0.0
        %9606 = vmatprep.subr.mxu0 0.0
        %9607 = vmatpush1.msra.mxu0 0.0
        %9608 = vmatprep.subr.mxu0 0.0
        %9609 = vmatpush1.msra.mxu0 0.0
        %9610 = vmatprep.subr.mxu0 0.0
        %9611 = vmatpush1.msra.mxu0 0.0
        %9612 = vmatprep.subr.mxu0 0.0
        %9613 = vmatpush1.msra.mxu0 0.0
        %9614 = vmatprep.subr.mxu0 0.0
        %9615 = vmatpush1.msra.mxu0 0.0
        %9616 = vmatprep.mubr.f32.mxu0 0.0
        %9617 = vmatmul.mubr.f32.gmra.mrb[0].mxu0 %v9463
        %v9618 = vpop.f32.mrb[0].mxu0
        %v9619 = vadd.f32 0.0, %v9618
        %v9620 = vpop.f32.mrb[0].mxu0
        %v9621 = vadd.f32 0.0, %v9620
        %9622 = vdwg.mxu0
        %9623 = vmatprep.subr.mxu0 %v9475
        %9624 = vmatpush1.msra.mxu0 %v9473
        %9625 = vmatprep.subr.mxu0 0.0
        %9626 = vmatpush1.msra.mxu0 0.0
        %9627 = vmatprep.subr.mxu0 0.0
        %9628 = vmatpush1.msra.mxu0 0.0
        %9629 = vmatprep.subr.mxu0 0.0
        %9630 = vmatpush1.msra.mxu0 0.0
        %9631 = vmatprep.subr.mxu0 0.0
        %9632 = vmatpush1.msra.mxu0 0.0
        %9633 = vmatprep.subr.mxu0 0.0
        %9634 = vmatpush1.msra.mxu0 0.0
        %9635 = vmatprep.subr.mxu0 0.0
        %9636 = vmatpush1.msra.mxu0 0.0
        %9637 = vmatprep.subr.mxu0 0.0
        %9638 = vmatpush1.msra.mxu0 0.0
        %9639 = vmatprep.subr.mxu0 0.0
        %9640 = vmatpush1.msra.mxu0 0.0
        %9641 = vmatprep.subr.mxu0 0.0
        %9642 = vmatpush1.msra.mxu0 0.0
        %9643 = vmatprep.subr.mxu0 0.0
        %9644 = vmatpush1.msra.mxu0 0.0
        %9645 = vmatprep.subr.mxu0 0.0
        %9646 = vmatpush1.msra.mxu0 0.0
        %9647 = vmatprep.subr.mxu0 0.0
        %9648 = vmatpush1.msra.mxu0 0.0
        %9649 = vmatprep.subr.mxu0 0.0
        %9650 = vmatpush1.msra.mxu0 0.0
        %9651 = vmatprep.subr.mxu0 0.0
        %9652 = vmatpush1.msra.mxu0 0.0
        %9653 = vmatprep.subr.mxu0 0.0
        %9654 = vmatpush1.msra.mxu0 0.0
        %9655 = vmatprep.subr.mxu0 0.0
        %9656 = vmatpush1.msra.mxu0 0.0
        %9657 = vmatprep.subr.mxu0 0.0
        %9658 = vmatpush1.msra.mxu0 0.0
        %9659 = vmatprep.subr.mxu0 0.0
        %9660 = vmatpush1.msra.mxu0 0.0
        %9661 = vmatprep.subr.mxu0 0.0
        %9662 = vmatpush1.msra.mxu0 0.0
        %9663 = vmatprep.subr.mxu0 0.0
        %9664 = vmatpush1.msra.mxu0 0.0
        %9665 = vmatprep.subr.mxu0 0.0
        %9666 = vmatpush1.msra.mxu0 0.0
        %9667 = vmatprep.subr.mxu0 0.0
        %9668 = vmatpush1.msra.mxu0 0.0
        %9669 = vmatprep.subr.mxu0 0.0
        %9670 = vmatpush1.msra.mxu0 0.0
        %9671 = vmatprep.subr.mxu0 0.0
        %9672 = vmatpush1.msra.mxu0 0.0
        %9673 = vmatprep.subr.mxu0 0.0
        %9674 = vmatpush1.msra.mxu0 0.0
        %9675 = vmatprep.subr.mxu0 0.0
        %9676 = vmatpush1.msra.mxu0 0.0
        %9677 = vmatprep.subr.mxu0 0.0
        %9678 = vmatpush1.msra.mxu0 0.0
        %9679 = vmatprep.subr.mxu0 0.0
        %9680 = vmatpush1.msra.mxu0 0.0
        %9681 = vmatprep.subr.mxu0 0.0
        %9682 = vmatpush1.msra.mxu0 0.0
        %9683 = vmatprep.subr.mxu0 0.0
        %9684 = vmatpush1.msra.mxu0 0.0
        %9685 = vmatprep.subr.mxu0 0.0
        %9686 = vmatpush1.msra.mxu0 0.0
        %9687 = vmatprep.mubr.f32.mxu0 0.0
        %9688 = vmatmul.mubr.f32.gmra.mrb[0].mxu0 %v9463
        %v9689 = vpop.f32.mrb[0].mxu0
        %v9690 = vadd.f32 0.0, %v9689
        %v9691 = vpop.f32.mrb[0].mxu0
        %v9692 = vadd.f32 0.0, %v9691
        %9693 = vdwg.mxu0
        %9694 = vmatprep.subr.mxu0 %v9479
        %9695 = vmatpush1.msra.mxu0 %v9477
        %9696 = vmatprep.subr.mxu0 0.0
        %9697 = vmatpush1.msra.mxu0 0.0
        %9698 = vmatprep.subr.mxu0 0.0
        %9699 = vmatpush1.msra.mxu0 0.0
        %9700 = vmatprep.subr.mxu0 0.0
        %9701 = vmatpush1.msra.mxu0 0.0
        %9702 = vmatprep.subr.mxu0 0.0
        %9703 = vmatpush1.msra.mxu0 0.0
        %9704 = vmatprep.subr.mxu0 0.0
        %9705 = vmatpush1.msra.mxu0 0.0
        %9706 = vmatprep.subr.mxu0 0.0
        %9707 = vmatpush1.msra.mxu0 0.0
        %9708 = vmatprep.subr.mxu0 0.0
        %9709 = vmatpush1.msra.mxu0 0.0
        %9710 = vmatprep.subr.mxu0 0.0
        %9711 = vmatpush1.msra.mxu0 0.0
        %9712 = vmatprep.subr.mxu0 0.0
        %9713 = vmatpush1.msra.mxu0 0.0
        %9714 = vmatprep.subr.mxu0 0.0
        %9715 = vmatpush1.msra.mxu0 0.0
        %9716 = vmatprep.subr.mxu0 0.0
        %9717 = vmatpush1.msra.mxu0 0.0
        %9718 = vmatprep.subr.mxu0 0.0
        %9719 = vmatpush1.msra.mxu0 0.0
        %9720 = vmatprep.subr.mxu0 0.0
        %9721 = vmatpush1.msra.mxu0 0.0
        %9722 = vmatprep.subr.mxu0 0.0
        %9723 = vmatpush1.msra.mxu0 0.0
        %9724 = vmatprep.subr.mxu0 0.0
        %9725 = vmatpush1.msra.mxu0 0.0
        %9726 = vmatprep.subr.mxu0 0.0
        %9727 = vmatpush1.msra.mxu0 0.0
        %9728 = vmatprep.subr.mxu0 0.0
        %9729 = vmatpush1.msra.mxu0 0.0
        %9730 = vmatprep.subr.mxu0 0.0
        %9731 = vmatpush1.msra.mxu0 0.0
        %9732 = vmatprep.subr.mxu0 0.0
        %9733 = vmatpush1.msra.mxu0 0.0
        %9734 = vmatprep.subr.mxu0 0.0
        %9735 = vmatpush1.msra.mxu0 0.0
        %9736 = vmatprep.subr.mxu0 0.0
        %9737 = vmatpush1.msra.mxu0 0.0
        %9738 = vmatprep.subr.mxu0 0.0
        %9739 = vmatpush1.msra.mxu0 0.0
        %9740 = vmatprep.subr.mxu0 0.0
        %9741 = vmatpush1.msra.mxu0 0.0
        %9742 = vmatprep.subr.mxu0 0.0
        %9743 = vmatpush1.msra.mxu0 0.0
        %9744 = vmatprep.subr.mxu0 0.0
        %9745 = vmatpush1.msra.mxu0 0.0
        %9746 = vmatprep.subr.mxu0 0.0
        %9747 = vmatpush1.msra.mxu0 0.0
        %9748 = vmatprep.subr.mxu0 0.0
        %9749 = vmatpush1.msra.mxu0 0.0
        %9750 = vmatprep.subr.mxu0 0.0
        %9751 = vmatpush1.msra.mxu0 0.0
        %9752 = vmatprep.subr.mxu0 0.0
        %9753 = vmatpush1.msra.mxu0 0.0
        %9754 = vmatprep.subr.mxu0 0.0
        %9755 = vmatpush1.msra.mxu0 0.0
        %9756 = vmatprep.subr.mxu0 0.0
        %9757 = vmatpush1.msra.mxu0 0.0
        %9758 = vmatprep.mubr.f32.mxu0 0.0
        %9759 = vmatmul.mubr.f32.gmra.mrb[0].mxu0 %v9463
        %v9760 = vpop.f32.mrb[0].mxu0
        %v9761 = vadd.f32 0.0, %v9760
        %v9762 = vpop.f32.mrb[0].mxu0
        %v9763 = vadd.f32 0.0, %v9762
        %9764 = vdwg.mxu0
        %v9765 = vadd.f32 %v9411, %v9548
        %v9766 = vadd.f32 %v9412, %v9550
        %v9767 = vadd.f32 %v9413, %v9619
        %v9768 = vadd.f32 %v9414, %v9621
        %v9769 = vadd.f32 %v9415, %v9690
        %v9770 = vadd.f32 %v9416, %v9692
        %v9771 = vadd.f32 %v9417, %v9761
        %v9772 = vadd.f32 %v9418, %v9763
        %v9773 = vld [vmem:[%s2] sm:$0xff]
        %9775 = vset.pattern.permute.xlu0 0
        %9776 = vperm.xlu0 %9775, %v9773
        %v9777 = vpop.permute.xlu0 %9776
        %v9779 = vadd.f32 %v9765, %v9777
        %v9780 = vadd.f32 %v9766, %v9777
        %v9781 = vadd.f32 %v9767, %v9777
        %v9782 = vadd.f32 %v9768, %v9777
        %v9783 = vadd.f32 %v9769, %v9777
        %v9784 = vadd.f32 %v9770, %v9777
        %v9785 = vadd.f32 %v9771, %v9777
        %v9786 = vadd.f32 %v9772, %v9777
        %9787 = vst [vmem:[%s245] sm:$0xff] %v9779
        %9788 = vst [vmem:[%s245 + $0x8] sm:$0xff] %v9780
        %9789 = vst [vmem:[%s245 + $0x10] sm:$0xff] %v9781
        %9790 = vst [vmem:[%s245 + $0x18] sm:$0xff] %v9782
        %9791 = vst [vmem:[%s245 + $0x20] sm:$0xff] %v9783
        %9792 = vst [vmem:[%s245 + $0x28] sm:$0xff] %v9784
        %9793 = vst [vmem:[%s245 + $0x30] sm:$0xff] %v9785
        %9794 = vst [vmem:[%s245 + $0x38] sm:$0xff] %v9786
        %v9795 = vld [vmem:[%s3] sm:$0xff]
        %v9797 = vlaneseq
        %v9798 = vshrl.u32 %v9797, 7
        %v9799 = vsub.s32 0, %v9798
        %v9800 = vrot.slane %v9795, %v9799
        %v9801 = vlaneseq
        %v9802 = vshrl.u32 %v9801, 7
        %v9803 = vsub.s32 1, %v9802
        %v9804 = vrot.slane %v9795, %v9803
        %v9805 = vlaneseq
        %v9806 = vshrl.u32 %v9805, 7
        %v9807 = vsub.s32 2, %v9806
        %v9808 = vrot.slane %v9795, %v9807
        %v9809 = vlaneseq
        %v9810 = vshrl.u32 %v9809, 7
        %v9811 = vsub.s32 3, %v9810
        %v9812 = vrot.slane %v9795, %v9811
        %v9813 = vlaneseq
        %v9814 = vshrl.u32 %v9813, 7
        %v9815 = vsub.s32 4, %v9814
        %v9816 = vrot.slane %v9795, %v9815
        %v9817 = vlaneseq
        %v9818 = vshrl.u32 %v9817, 7
        %v9819 = vsub.s32 5, %v9818
        %v9820 = vrot.slane %v9795, %v9819
        %v9821 = vlaneseq
        %v9822 = vshrl.u32 %v9821, 7
        %v9823 = vsub.s32 6, %v9822
        %v9824 = vrot.slane %v9795, %v9823
        %v9825 = vlaneseq
        %v9826 = vshrl.u32 %v9825, 7
        %v9827 = vsub.s32 7, %v9826
        %v9828 = vrot.slane %v9795, %v9827
        %v9837 = vmul.f32 %v9779, %v9800
        %v9838 = vmul.f32 %v9780, %v9804
        %v9839 = vmul.f32 %v9781, %v9808
        %v9840 = vmul.f32 %v9782, %v9812
        %v9841 = vmul.f32 %v9783, %v9816
        %v9842 = vmul.f32 %v9784, %v9820
        %v9843 = vmul.f32 %v9785, %v9824
        %v9844 = vmul.f32 %v9786, %v9828
        %v9845 = vadd.f32 %v9837, %v9838
        %v9846 = vadd.f32 %v9845, %v9839
        %v9847 = vadd.f32 %v9846, %v9840
        %v9848 = vadd.f32 %v9847, %v9841
        %v9849 = vadd.f32 %v9848, %v9842
        %v9850 = vadd.f32 %v9849, %v9843
        %v9851 = vadd.f32 %v9850, %v9844
        %9852 = vadd.xlane.f32.xlu0 %v9851
        %v9853 = vpop.xlane.xlu0 %9852
        %vm9854 = vcmask 7168
        %9855 = vst.msk [vmem:[%s266] sm:$0xff] %vm9854, %v9853
        %v9856 = vmul.f32 %v9837, %v9779
        %v9857 = vmul.f32 %v9838, %v9780
        %v9858 = vmul.f32 %v9839, %v9781
        %v9859 = vmul.f32 %v9840, %v9782
        %v9860 = vmul.f32 %v9841, %v9783
        %v9861 = vmul.f32 %v9842, %v9784
        %v9862 = vmul.f32 %v9843, %v9785
        %v9863 = vmul.f32 %v9844, %v9786
        %v9864 = vadd.f32 %v9856, %v9857
        %v9865 = vadd.f32 %v9864, %v9858
        %v9866 = vadd.f32 %v9865, %v9859
        %v9867 = vadd.f32 %v9866, %v9860
        %v9868 = vadd.f32 %v9867, %v9861
        %v9869 = vadd.f32 %v9868, %v9862
        %v9870 = vadd.f32 %v9869, %v9863
        %9871 = vadd.xlane.f32.xlu0 %v9870
        %v9872 = vpop.xlane.xlu0 %9871
        %9873 = vst.msk [vmem:[%s270] sm:$0xff] %vm9854, %v9872
        %s9874 = sand.u32 %s118, 1
        %s9875 = scalar_lea.sflag [#allocation3], %s9874
        %s9876 = sand.u32 %s118, 1
        %s9877 = smul.addr %s9876, 64
        %s9878 = scalar_lea.vmem [#allocation2], %s9877
        %p9879 = scmp.lt.s32.totalorder %s21, 1
        %s9880 = scalar_select %p9879, %s21, 1
        %s9881 = smul.addr %s9880, 8
        %s9882 = scalar_lea.vmem %s5, %s9881
        %p9883 = scmp.lt.s32.totalorder %s21, 1
        %s9884 = scalar_select %p9883, %s21, 1
        %s9885 = smul.addr %s9884, 8
        %s9886 = scalar_lea.vmem %s6, %s9885
        // Predicated region
        $region37: #{tpu_custom_call.1} parent=35 // pred_check
          %p9887 = pneg %p128
        $region38: #{tpu_custom_call.1} parent=35 // pred_check_branch
          %9889 = sbr.rel (%p9887) target = $region40
        $region39: #{tpu_custom_call.1} parent=35 // pred_region
          %s9891 = ssub.s32 1024, 1024
          %9892 = vsyncadd %s9875, %s9891
          %s9893 = smul.addr %s21, 8
          %s9894 = smul.addr %s9893, 128
          %s9895 = scalar_lea.hbm %s4, %s9894
          %s9897 = sshll.u32 %s9878, 4
          %s9898 = int_to_ptr.vmem [resolvable:$true] %s9897
          %9900 = dma.vmem_to_hbm [thread:$0]  %s9898, 1024, %s9895, %s9875
        $region40: #{tpu_custom_call.1} parent=35 // pred_fallthru
          _
        // Predicated region
        $region41: #{tpu_custom_call.1} parent=35 // pred_check
          %p9901 = pneg %p154
        $region42: #{tpu_custom_call.1} parent=35 // pred_check_branch
          %9903 = sbr.rel (%p9901) target = $region44
        $region43: #{tpu_custom_call.1} parent=35 // pred_region
          _
        $region44: #{tpu_custom_call.1} parent=35 // pred_fallthru
          _
        // Predicated region
        $region45: #{tpu_custom_call.1} parent=35 // pred_check
          %p9904 = pneg %p180
        $region46: #{tpu_custom_call.1} parent=35 // pred_check_branch
          %9906 = sbr.rel (%p9904) target = $region48
        $region47: #{tpu_custom_call.1} parent=35 // pred_region
          _
        $region48: #{tpu_custom_call.1} parent=35 // pred_fallthru
          _
      $region36: #{tpu_custom_call.1} parent=5 // pred_fallthru
        _
      %p9907 = scmp.le.s32.totalorder 2, %s16
      // Predicated region
      $region49: #{tpu_custom_call.1} parent=5 // pred_check
        %p9908 = pneg %p9907
      $region50: #{tpu_custom_call.1} parent=5 // pred_check_branch
        %9910 = sbr.rel (%p9908) target = $region52
      $region51: #{tpu_custom_call.1} parent=5 // pred_region
        %s9911 = ssub.s32 %s16, 2
        // Predicated region
        $region53: #{tpu_custom_call.1} parent=51 // pred_check
          %p9912 = pneg %p134
        $region54: #{tpu_custom_call.1} parent=51 // pred_check_branch
          %9914 = sbr.rel (%p9912) target = $region56
        $region55: #{tpu_custom_call.1} parent=51 // pred_region
          %s9915 = sand.u32 %s119, 1
          %s9916 = scalar_lea.sflag [#allocation3], %s9915
          %s9917 = sand.u32 %s119, 1
          %s9918 = smul.addr %s9917, 64
          %s9919 = scalar_lea.vmem [#allocation2], %s9918
          %9920 = dma.done %s9916, 1024
        $region56: #{tpu_custom_call.1} parent=51 // pred_fallthru
          _
        // Predicated region
        $region57: #{tpu_custom_call.1} parent=51 // pred_check
          %p9921 = pneg %p160
        $region58: #{tpu_custom_call.1} parent=51 // pred_check_branch
          %9923 = sbr.rel (%p9921) target = $region60
        $region59: #{tpu_custom_call.1} parent=51 // pred_region
          %p9924 = scmp.lt.s32.totalorder %s22, 1
          %s9925 = scalar_select %p9924, %s22, 1
          %s9926 = smul.addr %s9925, 8
          %s9927 = scalar_lea.vmem %s5, %s9926
        $region60: #{tpu_custom_call.1} parent=51 // pred_fallthru
          _
        // Predicated region
        $region61: #{tpu_custom_call.1} parent=51 // pred_check
          %p9928 = pneg %p186
        $region62: #{tpu_custom_call.1} parent=51 // pred_check_branch
          %9930 = sbr.rel (%p9928) target = $region64
        $region63: #{tpu_custom_call.1} parent=51 // pred_region
          %p9931 = scmp.lt.s32.totalorder %s22, 1
          %s9932 = scalar_select %p9931, %s22, 1
          %s9933 = smul.addr %s9932, 8
          %s9934 = scalar_lea.vmem %s6, %s9933
        $region64: #{tpu_custom_call.1} parent=51 // pred_fallthru
          _
      $region52: #{tpu_custom_call.1} parent=5 // pred_fallthru
        _
    $region6: #{tpu_custom_call.1} parent=1 // loop_footer
      %s20 = sadd.s32 1, %s16
    $region7: #{tpu_custom_call.1} parent=1 // loop_footer_branch
      %15 = sbr.rel target = $region3
    $region8: #{tpu_custom_call.1} parent=1 // loop_exit
      _
    %9935 = vsyncpa [#allocation3], 1
    %s9936 = scalar_lea.sflag [#allocation3], 1
    %9937 = vsyncpa %s9936, 1

</llo_original>
